<compile_context>
chip_gen: v7x
topology: tpu7x:2x2x1
jax: 0.10.0
libtpu: 0.0.40
codegen_flags: <defaults>
</compile_context>

<pallas_src>
import functools

import jax
import jax.numpy as jnp
from jax.experimental import pallas as pl
from jax.experimental.pallas import tpu as pltpu


_VMEM_LIMIT = 32 * 1024 * 1024  # far below v5e/v6e (128 MiB) and v7x (64 MiB)


# ---------------------------------------------------------------------------
# Pallas kernels
# ---------------------------------------------------------------------------
def _conv_relu_pool_kernel(p00_ref, p01_ref, p10_ref, p11_ref, w_ref, b_ref,
                           o_ref, *, wh, p_out, cin_is_one):
    """Fused 3x3 conv + bias + ReLU + 2x2 max-pool for ONE image.

    Phase refs: [1, Cin, S] where S = Hh*Wh, Hh = (H+2)//2; phase[pi][pj]
    holds padded_input[:, pi::2, pj::2] flattened over space (lane axis).
    w_ref: [9, Cout, Cin] (tap-major, t = dh*3 + dw).  b_ref: [Cout, 1] f32.
    o_ref: [1, Cout, S]; columns p = h2*Wh + w2 (h2 < H/2, w2 < W/2) hold the
    pooled activation, the remaining columns are zero-filled and discarded
    by the caller.
    """
    cout, s = o_ref.shape[1], o_ref.shape[2]

    # Full phase tiles for this image, resident in VMEM.
    ph = ((p00_ref[0], p01_ref[0]), (p10_ref[0], p11_ref[0]))   # each [Cin, S]

    # Per-tap weights [Cout, Cin] (f32 copies for the Cin==1 VPU path).
    wts = [w_ref[t] for t in range(9)]
    if cin_is_one:
        wts = [w.astype(jnp.float32) for w in wts]

    # The 16 distinct shifted input slices (row/col offsets r, c in [0, 4)).
    # Corner (ci,cj) + tap (dh,dw) reads slice (r, c) = (ci+dh, cj+dw); the
    # element for pooled pixel p sits at lane p + (r//2)*Wh + (c//2) of phase
    # (r%2, c%2) -- a contiguous static lane slice, no gather, no im2col.
    def tap(r, c):
        off = (r // 2) * wh + (c // 2)
        v = ph[r % 2][c % 2][:, off:off + p_out]                 # [Cin, Pout]
        return v.astype(jnp.float32) if cin_is_one else v

    taps = {(r, c): tap(r, c) for r in range(4) for c in range(4)}

    pooled = None
    for ci in (0, 1):                       # 2x2 pool-window corners
        for cj in (0, 1):
            acc = None
            for dh in range(3):             # 3x3 conv taps
                for dw in range(3):
                    x = taps[(ci + dh, cj + dw)]
                    wt = wts[dh * 3 + dw]
                    if cin_is_one:
                        y = wt * x          # [Cout,1]*[1,P] VPU broadcast MAC
                    else:
                        y = jnp.dot(wt, x, preferred_element_type=jnp.float32)
                    acc = y if acc is None else acc + y
            pooled = acc if pooled is None else jnp.maximum(pooled, acc)

    # Bias + ReLU hoisted outside the corner max (monotone, shared bias).
    out = jnp.maximum(pooled + b_ref[...], 0.0)

    o_ref[0, :, :] = jnp.zeros((cout, s), o_ref.dtype)   # deterministic tail
    o_ref[0, :, 0:p_out] = out.astype(o_ref.dtype)


def _mlp_kernel(x_ref, w1_ref, b1_ref, w2_ref, b2_ref, o_ref):
    """Fused fc1 (+bias+ReLU) -> fc2 (+bias).  x:[tm,K] -> o:[tm,10]."""
    h = jnp.dot(x_ref[...], w1_ref[...], preferred_element_type=jnp.float32)
    h = jnp.maximum(h + b1_ref[...], 0.0)
    y = jnp.dot(h.astype(w2_ref.dtype), w2_ref[...],
                preferred_element_type=jnp.float32)
    o_ref[...] = (y + b2_ref[...]).astype(o_ref.dtype)


# ---------------------------------------------------------------------------
# pallas_call wrappers
# ---------------------------------------------------------------------------
def pallas_conv_relu_pool(phases, w_taps, b_col, *, wh):
    """Fused conv+ReLU+pool, grid over batch (one image per step)."""
    p00, p01, p10, p11 = phases
    batch, cin, s = p00.shape
    _, cout, cin_w = w_taps.shape
    assert cin_w == cin and b_col.shape == (cout, 1)
    p_out = s - wh - 1                       # widest tap offset is wh + 1

    phase_spec = pl.BlockSpec((1, cin, s), lambda i: (i, 0, 0))
    kernel = functools.partial(_conv_relu_pool_kernel, wh=wh, p_out=p_out,
                               cin_is_one=(cin == 1))
    return pl.pallas_call(
        kernel,
        out_shape=jax.ShapeDtypeStruct((batch, cout, s), p00.dtype),
        grid=(batch,),
        in_specs=[phase_spec, phase_spec, phase_spec, phase_spec,
                  pl.BlockSpec((9, cout, cin), lambda i: (0, 0, 0)),
                  pl.BlockSpec((cout, 1), lambda i: (0, 0))],
        out_specs=pl.BlockSpec((1, cout, s), lambda i: (i, 0, 0)),
        compiler_params=pltpu.CompilerParams(
            dimension_semantics=("parallel",),
            vmem_limit_bytes=_VMEM_LIMIT),
    )(p00, p01, p10, p11, w_taps, b_col)


def _m_tile(m, tile_m):
    """Rows per block for an M-tiled grid.

    Tiny M -> one full block.  Otherwise aim for >=2 balanced, 8-aligned
    blocks (v7x has two TensorCores), capped at tile_m.  NOTE: a partial
    final block is fine ONLY because rows are fully independent in these
    kernels (no reductions over M).
    """
    if m <= 8:
        return m
    half = -(-m // 2)
    return min(m, min(tile_m, -(-half // 8) * 8))


def pallas_mlp(x, w1, b1, w2, b2, *, tile_m=512):
    """Fused fc1+ReLU+fc2 in one pallas_call, tiled over M (batch)."""
    x = x.astype(w1.dtype)
    m, k = x.shape
    n1 = w1.shape[1]
    n2 = w2.shape[1]
    assert w1.shape == (k, n1) and w2.shape == (n1, n2)
    tm = _m_tile(m, tile_m)
    return pl.pallas_call(
        _mlp_kernel,
        out_shape=jax.ShapeDtypeStruct((m, n2), jnp.float32),
        grid=(pl.cdiv(m, tm),),
        in_specs=[pl.BlockSpec((tm, k), lambda i: (i, 0)),
                  pl.BlockSpec((k, n1), lambda i: (0, 0)),
                  pl.BlockSpec((1, n1), lambda i: (0, 0)),
                  pl.BlockSpec((n1, n2), lambda i: (0, 0)),
                  pl.BlockSpec((1, n2), lambda i: (0, 0))],
        out_specs=pl.BlockSpec((tm, n2), lambda i: (i, 0)),
        compiler_params=pltpu.CompilerParams(
            dimension_semantics=("parallel",),
            vmem_limit_bytes=_VMEM_LIMIT),
    )(x, w1, b1, w2, b2)


# ---------------------------------------------------------------------------
# Glue: pad + phase split (plain XLA, zero byte inflation, all NCHW)
# ---------------------------------------------------------------------------
def conv_relu_pool(x_nchw, w_taps, b_col):
    """NCHW x:[B,Cin,H,W] -> pooled NCHW activation [B,Cout,H//2,W//2]."""
    batch, cin, h, w = x_nchw.shape
    cd = w_taps.dtype
    xp = jnp.pad(x_nchw, ((0, 0), (0, 0), (1, 1), (1, 1)))
    hh, wh = (h + 2) // 2, (w + 2) // 2
    phases = [xp[:, :, pi::2, pj::2].reshape(batch, cin, hh * wh).astype(cd)
              for pi in (0, 1) for pj in (0, 1)]
    out = pallas_conv_relu_pool(phases, w_taps, b_col, wh=wh)
    cout = w_taps.shape[1]
    return out.reshape(batch, cout, hh, wh)[:, :, :h // 2, :w // 2]


# ---------------------------------------------------------------------------
# Parameters
# ---------------------------------------------------------------------------
def init_params(key):
    """Raw parameters in PyTorch layouts (as nn.Conv2d / nn.Linear store them)."""
    ks = jax.random.split(key, 8)
    s = 0.05
    return {
        "conv1_w": jax.random.normal(ks[0], (32, 1, 3, 3), jnp.float32) * s,
        "conv1_b": jax.random.normal(ks[1], (32,), jnp.float32) * s,
        "conv2_w": jax.random.normal(ks[2], (64, 32, 3, 3), jnp.float32) * s,
        "conv2_b": jax.random.normal(ks[3], (64,), jnp.float32) * s,
        "fc1_w": jax.random.normal(ks[4], (128, 64 * 7 * 7), jnp.float32) * s,
        "fc1_b": jax.random.normal(ks[5], (128,), jnp.float32) * s,
        "fc2_w": jax.random.normal(ks[6], (10, 128), jnp.float32) * s,
        "fc2_b": jax.random.normal(ks[7], (10,), jnp.float32) * s,
    }


def prepare_params(p, compute_dtype=jnp.bfloat16):
    """One-time conversion to kernel-ready layouts (no per-forward work)."""
    def conv_w(w):           # [Cout,Cin,3,3] -> [9, Cout, Cin], t = dh*3 + dw
        co, ci, kh, kw = w.shape
        return (jnp.transpose(w, (2, 3, 0, 1))
                .reshape(kh * kw, co, ci).astype(compute_dtype))

    return {
        "conv1_w": conv_w(p["conv1_w"]),
        "conv1_b": p["conv1_b"].reshape(-1, 1).astype(jnp.float32),
        "conv2_w": conv_w(p["conv2_w"]),
        "conv2_b": p["conv2_b"].reshape(-1, 1).astype(jnp.float32),
        "fc1_w": p["fc1_w"].T.astype(compute_dtype),   # [3136, 128]
        "fc1_b": p["fc1_b"].reshape(1, -1).astype(jnp.float32),
        "fc2_w": p["fc2_w"].T.astype(compute_dtype),   # [128, 10]
        "fc2_b": p["fc2_b"].reshape(1, -1).astype(jnp.float32),
    }


# ---------------------------------------------------------------------------
# Forward pass (matches CNN.forward)
# ---------------------------------------------------------------------------
def cnn_forward(x_nchw, params):
    """pool(relu(conv1)) -> pool(relu(conv2)) -> flatten -> fc1+relu -> fc2."""
    batch = x_nchw.shape[0]
    h = conv_relu_pool(x_nchw, params["conv1_w"], params["conv1_b"])  # [B,32,14,14]
    h = conv_relu_pool(h, params["conv2_w"], params["conv2_b"])       # [B,64, 7, 7]
    h = h.reshape(batch, 64 * 7 * 7)        # NCHW flatten == PyTorch .view()
    return pallas_mlp(h, params["fc1_w"], params["fc1_b"],
                      params["fc2_w"], params["fc2_b"])


def cnn_reference(x_nchw, raw):
    """Plain-JAX (XLA) reference implementing the PyTorch module's math."""
    hp = jax.lax.Precision.HIGHEST

    def conv(x, w, b):
        y = jax.lax.conv_general_dilated(
            x, w, (1, 1), "SAME",
            dimension_numbers=("NCHW", "OIHW", "NCHW"), precision=hp)
        return jax.nn.relu(y + b.reshape(1, -1, 1, 1))

    def pool(x):
        return jax.lax.reduce_window(x, -jnp.inf, jax.lax.max,
                                     (1, 1, 2, 2), (1, 1, 2, 2), "VALID")

    h = pool(conv(x_nchw, raw["conv1_w"], raw["conv1_b"]))
    h = pool(conv(h, raw["conv2_w"], raw["conv2_b"]))
    h = h.reshape(x_nchw.shape[0], -1)
    h = jax.nn.relu(jnp.dot(h, raw["fc1_w"].T, precision=hp) + raw["fc1_b"])
    return jnp.dot(h, raw["fc2_w"].T, precision=hp) + raw["fc2_b"]


if __name__ == "__main__":
    key = jax.random.PRNGKey(0)
    k_params, k_x = jax.random.split(key)
    raw_params = init_params(k_params)

    # MNIST-shaped input required by fc1 (64*7*7); small batch of 2.
    x = jax.random.normal(k_x, (2, 1, 28, 28), jnp.float32)
    ref = cnn_reference(x, raw_params)

    fwd = jax.jit(cnn_forward)

    # 1) f32 mode: tight numerical check of the kernel math.
    params_f32 = prepare_params(raw_params, jnp.float32)
    y32 = fwd(x, params_f32)
    jax.block_until_ready(y32)
    assert y32.shape == (2, 10)
    d32 = float(jnp.max(jnp.abs(y32 - ref)))
    assert jnp.allclose(y32, ref, atol=2e-3, rtol=2e-3), (
        "f32 path max abs diff vs reference: %g" % d32)

    # 2) bf16 mode (performance default): looser tolerance.
    params_bf16 = prepare_params(raw_params, jnp.bfloat16)
    ybf = fwd(x, params_bf16)
    jax.block_until_ready(ybf)
    assert ybf.shape == (2, 10)
    dbf = float(jnp.max(jnp.abs(ybf - ref)))
    assert jnp.allclose(ybf, ref, atol=3e-2, rtol=3e-2), (
        "bf16 path max abs diff vs reference: %g" % dbf)

    print("KERNEL_OK")
</pallas_src>

<mosaic_0001>
module attributes {stable_mosaic.version = 11 : i64} {
  func.func @_conv_relu_pool_kernel(%arg0: i32, %arg1: memref<1x1x225xf32, #tpu.memory_space<vmem>>, %arg2: memref<1x1x225xf32, #tpu.memory_space<vmem>>, %arg3: memref<1x1x225xf32, #tpu.memory_space<vmem>>, %arg4: memref<1x1x225xf32, #tpu.memory_space<vmem>>, %arg5: memref<9x32x1xf32, #tpu.memory_space<vmem>>, %arg6: memref<32x1xf32, #tpu.memory_space<vmem>>, %arg7: memref<1x32x225xf32, #tpu.memory_space<vmem>>) attributes {dimension_semantics = [#tpu.dimension_semantics<parallel>], iteration_bounds = array<i64: 2>, scalar_prefetch = 0 : i64, scratch_operands = 0 : i64, tpu.core_type = #tpu.core_type<tc>, window_params = [{transform_indices = @transform_0, window_bounds = array<i64: 1, 1, 225>}, {transform_indices = @transform_1, window_bounds = array<i64: 1, 1, 225>}, {transform_indices = @transform_2, window_bounds = array<i64: 1, 1, 225>}, {transform_indices = @transform_3, window_bounds = array<i64: 1, 1, 225>}, {pipeline_mode = #tpu.pipeline_mode<synchronous>, transform_indices = @transform_4, window_bounds = array<i64: 9, 32, 1>}, {pipeline_mode = #tpu.pipeline_mode<synchronous>, transform_indices = @transform_5, window_bounds = array<i64: 32, 1>}, {transform_indices = @transform_6, window_bounds = array<i64: 1, 32, 225>}]} {
    %c0 = arith.constant 0 : index
    %c0_0 = arith.constant 0 : index
    %c0_1 = arith.constant 0 : index
    %0 = vector.load %arg1[%c0, %c0_0, %c0_1] : memref<1x1x225xf32, #tpu.memory_space<vmem>>, vector<1x1x225xf32>
    %1 = vector.shape_cast %0 : vector<1x1x225xf32> to vector<1x225xf32>
    %c0_2 = arith.constant 0 : index
    %c0_3 = arith.constant 0 : index
    %c0_4 = arith.constant 0 : index
    %2 = vector.load %arg2[%c0_2, %c0_3, %c0_4] : memref<1x1x225xf32, #tpu.memory_space<vmem>>, vector<1x1x225xf32>
    %3 = vector.shape_cast %2 : vector<1x1x225xf32> to vector<1x225xf32>
    %c0_5 = arith.constant 0 : index
    %c0_6 = arith.constant 0 : index
    %c0_7 = arith.constant 0 : index
    %4 = vector.load %arg3[%c0_5, %c0_6, %c0_7] : memref<1x1x225xf32, #tpu.memory_space<vmem>>, vector<1x1x225xf32>
    %5 = vector.shape_cast %4 : vector<1x1x225xf32> to vector<1x225xf32>
    %c0_8 = arith.constant 0 : index
    %c0_9 = arith.constant 0 : index
    %c0_10 = arith.constant 0 : index
    %6 = vector.load %arg4[%c0_8, %c0_9, %c0_10] : memref<1x1x225xf32, #tpu.memory_space<vmem>>, vector<1x1x225xf32>
    %7 = vector.shape_cast %6 : vector<1x1x225xf32> to vector<1x225xf32>
    %c0_11 = arith.constant 0 : index
    %c0_12 = arith.constant 0 : index
    %c0_13 = arith.constant 0 : index
    %8 = vector.load %arg5[%c0_11, %c0_12, %c0_13] : memref<9x32x1xf32, #tpu.memory_space<vmem>>, vector<1x32x1xf32>
    %9 = vector.shape_cast %8 : vector<1x32x1xf32> to vector<32x1xf32>
    %c1 = arith.constant 1 : index
    %c0_14 = arith.constant 0 : index
    %c0_15 = arith.constant 0 : index
    %10 = vector.load %arg5[%c1, %c0_14, %c0_15] : memref<9x32x1xf32, #tpu.memory_space<vmem>>, vector<1x32x1xf32>
    %11 = vector.shape_cast %10 : vector<1x32x1xf32> to vector<32x1xf32>
    %c2 = arith.constant 2 : index
    %c0_16 = arith.constant 0 : index
    %c0_17 = arith.constant 0 : index
    %12 = vector.load %arg5[%c2, %c0_16, %c0_17] : memref<9x32x1xf32, #tpu.memory_space<vmem>>, vector<1x32x1xf32>
    %13 = vector.shape_cast %12 : vector<1x32x1xf32> to vector<32x1xf32>
    %c3 = arith.constant 3 : index
    %c0_18 = arith.constant 0 : index
    %c0_19 = arith.constant 0 : index
    %14 = vector.load %arg5[%c3, %c0_18, %c0_19] : memref<9x32x1xf32, #tpu.memory_space<vmem>>, vector<1x32x1xf32>
    %15 = vector.shape_cast %14 : vector<1x32x1xf32> to vector<32x1xf32>
    %c4 = arith.constant 4 : index
    %c0_20 = arith.constant 0 : index
    %c0_21 = arith.constant 0 : index
    %16 = vector.load %arg5[%c4, %c0_20, %c0_21] : memref<9x32x1xf32, #tpu.memory_space<vmem>>, vector<1x32x1xf32>
    %17 = vector.shape_cast %16 : vector<1x32x1xf32> to vector<32x1xf32>
    %c5 = arith.constant 5 : index
    %c0_22 = arith.constant 0 : index
    %c0_23 = arith.constant 0 : index
    %18 = vector.load %arg5[%c5, %c0_22, %c0_23] : memref<9x32x1xf32, #tpu.memory_space<vmem>>, vector<1x32x1xf32>
    %19 = vector.shape_cast %18 : vector<1x32x1xf32> to vector<32x1xf32>
    %c6 = arith.constant 6 : index
    %c0_24 = arith.constant 0 : index
    %c0_25 = arith.constant 0 : index
    %20 = vector.load %arg5[%c6, %c0_24, %c0_25] : memref<9x32x1xf32, #tpu.memory_space<vmem>>, vector<1x32x1xf32>
    %21 = vector.shape_cast %20 : vector<1x32x1xf32> to vector<32x1xf32>
    %c7 = arith.constant 7 : index
    %c0_26 = arith.constant 0 : index
    %c0_27 = arith.constant 0 : index
    %22 = vector.load %arg5[%c7, %c0_26, %c0_27] : memref<9x32x1xf32, #tpu.memory_space<vmem>>, vector<1x32x1xf32>
    %23 = vector.shape_cast %22 : vector<1x32x1xf32> to vector<32x1xf32>
    %c8 = arith.constant 8 : index
    %c0_28 = arith.constant 0 : index
    %c0_29 = arith.constant 0 : index
    %24 = vector.load %arg5[%c8, %c0_28, %c0_29] : memref<9x32x1xf32, #tpu.memory_space<vmem>>, vector<1x32x1xf32>
    %25 = vector.shape_cast %24 : vector<1x32x1xf32> to vector<32x1xf32>
    %26 = vector.extract_strided_slice %1 {offsets = [0, 0], sizes = [1, 209], strides = [1, 1]} : vector<1x225xf32> to vector<1x209xf32>
    %27 = vector.extract_strided_slice %3 {offsets = [0, 0], sizes = [1, 209], strides = [1, 1]} : vector<1x225xf32> to vector<1x209xf32>
    %28 = vector.extract_strided_slice %1 {offsets = [0, 1], sizes = [1, 209], strides = [1, 1]} : vector<1x225xf32> to vector<1x209xf32>
    %29 = vector.extract_strided_slice %3 {offsets = [0, 1], sizes = [1, 209], strides = [1, 1]} : vector<1x225xf32> to vector<1x209xf32>
    %30 = vector.extract_strided_slice %5 {offsets = [0, 0], sizes = [1, 209], strides = [1, 1]} : vector<1x225xf32> to vector<1x209xf32>
    %31 = vector.extract_strided_slice %7 {offsets = [0, 0], sizes = [1, 209], strides = [1, 1]} : vector<1x225xf32> to vector<1x209xf32>
    %32 = vector.extract_strided_slice %5 {offsets = [0, 1], sizes = [1, 209], strides = [1, 1]} : vector<1x225xf32> to vector<1x209xf32>
    %33 = vector.extract_strided_slice %7 {offsets = [0, 1], sizes = [1, 209], strides = [1, 1]} : vector<1x225xf32> to vector<1x209xf32>
    %34 = vector.extract_strided_slice %1 {offsets = [0, 15], sizes = [1, 209], strides = [1, 1]} : vector<1x225xf32> to vector<1x209xf32>
    %35 = vector.extract_strided_slice %3 {offsets = [0, 15], sizes = [1, 209], strides = [1, 1]} : vector<1x225xf32> to vector<1x209xf32>
    %36 = vector.extract_strided_slice %1 {offsets = [0, 16], sizes = [1, 209], strides = [1, 1]} : vector<1x225xf32> to vector<1x209xf32>
    %37 = vector.extract_strided_slice %3 {offsets = [0, 16], sizes = [1, 209], strides = [1, 1]} : vector<1x225xf32> to vector<1x209xf32>
    %38 = vector.extract_strided_slice %5 {offsets = [0, 15], sizes = [1, 209], strides = [1, 1]} : vector<1x225xf32> to vector<1x209xf32>
    %39 = vector.extract_strided_slice %7 {offsets = [0, 15], sizes = [1, 209], strides = [1, 1]} : vector<1x225xf32> to vector<1x209xf32>
    %40 = vector.extract_strided_slice %5 {offsets = [0, 16], sizes = [1, 209], strides = [1, 1]} : vector<1x225xf32> to vector<1x209xf32>
    %41 = vector.extract_strided_slice %7 {offsets = [0, 16], sizes = [1, 209], strides = [1, 1]} : vector<1x225xf32> to vector<1x209xf32>
    %42 = vector.broadcast %9 : vector<32x1xf32> to vector<32x209xf32>
    %43 = vector.broadcast %26 : vector<1x209xf32> to vector<32x209xf32>
    %44 = arith.mulf %42, %43 : vector<32x209xf32>
    %45 = vector.broadcast %11 : vector<32x1xf32> to vector<32x209xf32>
    %46 = vector.broadcast %27 : vector<1x209xf32> to vector<32x209xf32>
    %47 = arith.mulf %45, %46 : vector<32x209xf32>
    %48 = arith.addf %44, %47 : vector<32x209xf32>
    %49 = vector.broadcast %13 : vector<32x1xf32> to vector<32x209xf32>
    %50 = vector.broadcast %28 : vector<1x209xf32> to vector<32x209xf32>
    %51 = arith.mulf %49, %50 : vector<32x209xf32>
    %52 = arith.addf %48, %51 : vector<32x209xf32>
    %53 = vector.broadcast %15 : vector<32x1xf32> to vector<32x209xf32>
    %54 = vector.broadcast %30 : vector<1x209xf32> to vector<32x209xf32>
    %55 = arith.mulf %53, %54 : vector<32x209xf32>
    %56 = arith.addf %52, %55 : vector<32x209xf32>
    %57 = vector.broadcast %17 : vector<32x1xf32> to vector<32x209xf32>
    %58 = vector.broadcast %31 : vector<1x209xf32> to vector<32x209xf32>
    %59 = arith.mulf %57, %58 : vector<32x209xf32>
    %60 = arith.addf %56, %59 : vector<32x209xf32>
    %61 = vector.broadcast %19 : vector<32x1xf32> to vector<32x209xf32>
    %62 = vector.broadcast %32 : vector<1x209xf32> to vector<32x209xf32>
    %63 = arith.mulf %61, %62 : vector<32x209xf32>
    %64 = arith.addf %60, %63 : vector<32x209xf32>
    %65 = vector.broadcast %21 : vector<32x1xf32> to vector<32x209xf32>
    %66 = vector.broadcast %34 : vector<1x209xf32> to vector<32x209xf32>
    %67 = arith.mulf %65, %66 : vector<32x209xf32>
    %68 = arith.addf %64, %67 : vector<32x209xf32>
    %69 = vector.broadcast %23 : vector<32x1xf32> to vector<32x209xf32>
    %70 = vector.broadcast %35 : vector<1x209xf32> to vector<32x209xf32>
    %71 = arith.mulf %69, %70 : vector<32x209xf32>
    %72 = arith.addf %68, %71 : vector<32x209xf32>
    %73 = vector.broadcast %25 : vector<32x1xf32> to vector<32x209xf32>
    %74 = vector.broadcast %36 : vector<1x209xf32> to vector<32x209xf32>
    %75 = arith.mulf %73, %74 : vector<32x209xf32>
    %76 = arith.addf %72, %75 : vector<32x209xf32>
    %77 = vector.broadcast %9 : vector<32x1xf32> to vector<32x209xf32>
    %78 = vector.broadcast %27 : vector<1x209xf32> to vector<32x209xf32>
    %79 = arith.mulf %77, %78 : vector<32x209xf32>
    %80 = vector.broadcast %11 : vector<32x1xf32> to vector<32x209xf32>
    %81 = vector.broadcast %28 : vector<1x209xf32> to vector<32x209xf32>
    %82 = arith.mulf %80, %81 : vector<32x209xf32>
    %83 = arith.addf %79, %82 : vector<32x209xf32>
    %84 = vector.broadcast %13 : vector<32x1xf32> to vector<32x209xf32>
    %85 = vector.broadcast %29 : vector<1x209xf32> to vector<32x209xf32>
    %86 = arith.mulf %84, %85 : vector<32x209xf32>
    %87 = arith.addf %83, %86 : vector<32x209xf32>
    %88 = vector.broadcast %15 : vector<32x1xf32> to vector<32x209xf32>
    %89 = vector.broadcast %31 : vector<1x209xf32> to vector<32x209xf32>
    %90 = arith.mulf %88, %89 : vector<32x209xf32>
    %91 = arith.addf %87, %90 : vector<32x209xf32>
    %92 = vector.broadcast %17 : vector<32x1xf32> to vector<32x209xf32>
    %93 = vector.broadcast %32 : vector<1x209xf32> to vector<32x209xf32>
    %94 = arith.mulf %92, %93 : vector<32x209xf32>
    %95 = arith.addf %91, %94 : vector<32x209xf32>
    %96 = vector.broadcast %19 : vector<32x1xf32> to vector<32x209xf32>
    %97 = vector.broadcast %33 : vector<1x209xf32> to vector<32x209xf32>
    %98 = arith.mulf %96, %97 : vector<32x209xf32>
    %99 = arith.addf %95, %98 : vector<32x209xf32>
    %100 = vector.broadcast %21 : vector<32x1xf32> to vector<32x209xf32>
    %101 = vector.broadcast %35 : vector<1x209xf32> to vector<32x209xf32>
    %102 = arith.mulf %100, %101 : vector<32x209xf32>
    %103 = arith.addf %99, %102 : vector<32x209xf32>
    %104 = vector.broadcast %23 : vector<32x1xf32> to vector<32x209xf32>
    %105 = vector.broadcast %36 : vector<1x209xf32> to vector<32x209xf32>
    %106 = arith.mulf %104, %105 : vector<32x209xf32>
    %107 = arith.addf %103, %106 : vector<32x209xf32>
    %108 = vector.broadcast %25 : vector<32x1xf32> to vector<32x209xf32>
    %109 = vector.broadcast %37 : vector<1x209xf32> to vector<32x209xf32>
    %110 = arith.mulf %108, %109 : vector<32x209xf32>
    %111 = arith.addf %107, %110 : vector<32x209xf32>
    %112 = arith.maximumf %76, %111 : vector<32x209xf32>
    %113 = vector.broadcast %9 : vector<32x1xf32> to vector<32x209xf32>
    %114 = vector.broadcast %30 : vector<1x209xf32> to vector<32x209xf32>
    %115 = arith.mulf %113, %114 : vector<32x209xf32>
    %116 = vector.broadcast %11 : vector<32x1xf32> to vector<32x209xf32>
    %117 = vector.broadcast %31 : vector<1x209xf32> to vector<32x209xf32>
    %118 = arith.mulf %116, %117 : vector<32x209xf32>
    %119 = arith.addf %115, %118 : vector<32x209xf32>
    %120 = vector.broadcast %13 : vector<32x1xf32> to vector<32x209xf32>
    %121 = vector.broadcast %32 : vector<1x209xf32> to vector<32x209xf32>
    %122 = arith.mulf %120, %121 : vector<32x209xf32>
    %123 = arith.addf %119, %122 : vector<32x209xf32>
    %124 = vector.broadcast %15 : vector<32x1xf32> to vector<32x209xf32>
    %125 = vector.broadcast %34 : vector<1x209xf32> to vector<32x209xf32>
    %126 = arith.mulf %124, %125 : vector<32x209xf32>
    %127 = arith.addf %123, %126 : vector<32x209xf32>
    %128 = vector.broadcast %17 : vector<32x1xf32> to vector<32x209xf32>
    %129 = vector.broadcast %35 : vector<1x209xf32> to vector<32x209xf32>
    %130 = arith.mulf %128, %129 : vector<32x209xf32>
    %131 = arith.addf %127, %130 : vector<32x209xf32>
    %132 = vector.broadcast %19 : vector<32x1xf32> to vector<32x209xf32>
    %133 = vector.broadcast %36 : vector<1x209xf32> to vector<32x209xf32>
    %134 = arith.mulf %132, %133 : vector<32x209xf32>
    %135 = arith.addf %131, %134 : vector<32x209xf32>
    %136 = vector.broadcast %21 : vector<32x1xf32> to vector<32x209xf32>
    %137 = vector.broadcast %38 : vector<1x209xf32> to vector<32x209xf32>
    %138 = arith.mulf %136, %137 : vector<32x209xf32>
    %139 = arith.addf %135, %138 : vector<32x209xf32>
    %140 = vector.broadcast %23 : vector<32x1xf32> to vector<32x209xf32>
    %141 = vector.broadcast %39 : vector<1x209xf32> to vector<32x209xf32>
    %142 = arith.mulf %140, %141 : vector<32x209xf32>
    %143 = arith.addf %139, %142 : vector<32x209xf32>
    %144 = vector.broadcast %25 : vector<32x1xf32> to vector<32x209xf32>
    %145 = vector.broadcast %40 : vector<1x209xf32> to vector<32x209xf32>
    %146 = arith.mulf %144, %145 : vector<32x209xf32>
    %147 = arith.addf %143, %146 : vector<32x209xf32>
    %148 = arith.maximumf %112, %147 : vector<32x209xf32>
    %149 = vector.broadcast %9 : vector<32x1xf32> to vector<32x209xf32>
    %150 = vector.broadcast %31 : vector<1x209xf32> to vector<32x209xf32>
    %151 = arith.mulf %149, %150 : vector<32x209xf32>
    %152 = vector.broadcast %11 : vector<32x1xf32> to vector<32x209xf32>
    %153 = vector.broadcast %32 : vector<1x209xf32> to vector<32x209xf32>
    %154 = arith.mulf %152, %153 : vector<32x209xf32>
    %155 = arith.addf %151, %154 : vector<32x209xf32>
    %156 = vector.broadcast %13 : vector<32x1xf32> to vector<32x209xf32>
    %157 = vector.broadcast %33 : vector<1x209xf32> to vector<32x209xf32>
    %158 = arith.mulf %156, %157 : vector<32x209xf32>
    %159 = arith.addf %155, %158 : vector<32x209xf32>
    %160 = vector.broadcast %15 : vector<32x1xf32> to vector<32x209xf32>
    %161 = vector.broadcast %35 : vector<1x209xf32> to vector<32x209xf32>
    %162 = arith.mulf %160, %161 : vector<32x209xf32>
    %163 = arith.addf %159, %162 : vector<32x209xf32>
    %164 = vector.broadcast %17 : vector<32x1xf32> to vector<32x209xf32>
    %165 = vector.broadcast %36 : vector<1x209xf32> to vector<32x209xf32>
    %166 = arith.mulf %164, %165 : vector<32x209xf32>
    %167 = arith.addf %163, %166 : vector<32x209xf32>
    %168 = vector.broadcast %19 : vector<32x1xf32> to vector<32x209xf32>
    %169 = vector.broadcast %37 : vector<1x209xf32> to vector<32x209xf32>
    %170 = arith.mulf %168, %169 : vector<32x209xf32>
    %171 = arith.addf %167, %170 : vector<32x209xf32>
    %172 = vector.broadcast %21 : vector<32x1xf32> to vector<32x209xf32>
    %173 = vector.broadcast %39 : vector<1x209xf32> to vector<32x209xf32>
    %174 = arith.mulf %172, %173 : vector<32x209xf32>
    %175 = arith.addf %171, %174 : vector<32x209xf32>
    %176 = vector.broadcast %23 : vector<32x1xf32> to vector<32x209xf32>
    %177 = vector.broadcast %40 : vector<1x209xf32> to vector<32x209xf32>
    %178 = arith.mulf %176, %177 : vector<32x209xf32>
    %179 = arith.addf %175, %178 : vector<32x209xf32>
    %180 = vector.broadcast %25 : vector<32x1xf32> to vector<32x209xf32>
    %181 = vector.broadcast %41 : vector<1x209xf32> to vector<32x209xf32>
    %182 = arith.mulf %180, %181 : vector<32x209xf32>
    %183 = arith.addf %179, %182 : vector<32x209xf32>
    %184 = arith.maximumf %148, %183 : vector<32x209xf32>
    %c0_30 = arith.constant 0 : index
    %c0_31 = arith.constant 0 : index
    %185 = vector.load %arg6[%c0_30, %c0_31] : memref<32x1xf32, #tpu.memory_space<vmem>>, vector<32x1xf32>
    %186 = vector.broadcast %185 : vector<32x1xf32> to vector<32x209xf32>
    %187 = arith.addf %184, %186 : vector<32x209xf32>
    %cst = arith.constant 0.000000e+00 : f32
    %188 = vector.broadcast %cst : f32 to vector<32x209xf32>
    %189 = arith.maximumf %187, %188 : vector<32x209xf32>
    %cst_32 = arith.constant 0.000000e+00 : f32
    %190 = vector.broadcast %cst_32 : f32 to vector<32x225xf32>
    %c0_33 = arith.constant 0 : index
    %c0_34 = arith.constant 0 : index
    %c0_35 = arith.constant 0 : index
    %191 = vector.load %arg7[%c0_33, %c0_34, %c0_35] : memref<1x32x225xf32, #tpu.memory_space<vmem>>, vector<1x32x225xf32>
    %192 = vector.shape_cast %191 : vector<1x32x225xf32> to vector<32x225xf32>
    %193 = vector.shape_cast %190 : vector<32x225xf32> to vector<1x32x225xf32>
    tpu.vector_store %arg7[%c0_33, %c0_34, %c0_35], %193 {strides = array<i32>} : memref<1x32x225xf32, #tpu.memory_space<vmem>>, vector<1x32x225xf32>,
    %c0_36 = arith.constant 0 : index
    %c0_37 = arith.constant 0 : index
    %c0_38 = arith.constant 0 : index
    %194 = vector.load %arg7[%c0_36, %c0_37, %c0_38] : memref<1x32x225xf32, #tpu.memory_space<vmem>>, vector<1x32x209xf32>
    %195 = vector.shape_cast %194 : vector<1x32x209xf32> to vector<32x209xf32>
    %196 = vector.shape_cast %189 : vector<32x209xf32> to vector<1x32x209xf32>
    tpu.vector_store %arg7[%c0_36, %c0_37, %c0_38], %196 {strides = array<i32>} : memref<1x32x225xf32, #tpu.memory_space<vmem>>, vector<1x32x209xf32>,
    return
  }
  func.func @transform_0(%arg0: i32) -> (i32, i32, i32) {
    %c0_i32 = arith.constant 0 : i32
    %c0_i32_0 = arith.constant 0 : i32
    %c0_i32_1 = arith.constant 0 : i32
    return %arg0, %c0_i32, %c0_i32_0 : i32, i32, i32
  }
  func.func @transform_1(%arg0: i32) -> (i32, i32, i32) {
    %c0_i32 = arith.constant 0 : i32
    %c0_i32_0 = arith.constant 0 : i32
    %c0_i32_1 = arith.constant 0 : i32
    return %arg0, %c0_i32, %c0_i32_0 : i32, i32, i32
  }
  func.func @transform_2(%arg0: i32) -> (i32, i32, i32) {
    %c0_i32 = arith.constant 0 : i32
    %c0_i32_0 = arith.constant 0 : i32
    %c0_i32_1 = arith.constant 0 : i32
    return %arg0, %c0_i32, %c0_i32_0 : i32, i32, i32
  }
  func.func @transform_3(%arg0: i32) -> (i32, i32, i32) {
    %c0_i32 = arith.constant 0 : i32
    %c0_i32_0 = arith.constant 0 : i32
    %c0_i32_1 = arith.constant 0 : i32
    return %arg0, %c0_i32, %c0_i32_0 : i32, i32, i32
  }
  func.func @transform_4(%arg0: i32) -> (i32, i32, i32) {
    %c0_i32 = arith.constant 0 : i32
    %c0_i32_0 = arith.constant 0 : i32
    %c0_i32_1 = arith.constant 0 : i32
    %c0_i32_2 = arith.constant 0 : i32
    return %c0_i32, %c0_i32_0, %c0_i32_1 : i32, i32, i32
  }
  func.func @transform_5(%arg0: i32) -> (i32, i32) {
    %c0_i32 = arith.constant 0 : i32
    %c0_i32_0 = arith.constant 0 : i32
    %c0_i32_1 = arith.constant 0 : i32
    return %c0_i32, %c0_i32_0 : i32, i32
  }
  func.func @transform_6(%arg0: i32) -> (i32, i32, i32) {
    %c0_i32 = arith.constant 0 : i32
    %c0_i32_0 = arith.constant 0 : i32
    %c0_i32_1 = arith.constant 0 : i32
    return %arg0, %c0_i32, %c0_i32_0 : i32, i32, i32
  }
}

module attributes {stable_mosaic.version = 11 : i64} {
  func.func @_conv_relu_pool_kernel(%arg0: i32, %arg1: memref<1x32x64xf32, #tpu.memory_space<vmem>>, %arg2: memref<1x32x64xf32, #tpu.memory_space<vmem>>, %arg3: memref<1x32x64xf32, #tpu.memory_space<vmem>>, %arg4: memref<1x32x64xf32, #tpu.memory_space<vmem>>, %arg5: memref<9x64x32xf32, #tpu.memory_space<vmem>>, %arg6: memref<64x1xf32, #tpu.memory_space<vmem>>, %arg7: memref<1x64x64xf32, #tpu.memory_space<vmem>>) attributes {dimension_semantics = [#tpu.dimension_semantics<parallel>], iteration_bounds = array<i64: 2>, scalar_prefetch = 0 : i64, scratch_operands = 0 : i64, tpu.core_type = #tpu.core_type<tc>, window_params = [{transform_indices = @transform_0, window_bounds = array<i64: 1, 32, 64>}, {transform_indices = @transform_1, window_bounds = array<i64: 1, 32, 64>}, {transform_indices = @transform_2, window_bounds = array<i64: 1, 32, 64>}, {transform_indices = @transform_3, window_bounds = array<i64: 1, 32, 64>}, {pipeline_mode = #tpu.pipeline_mode<synchronous>, transform_indices = @transform_4, window_bounds = array<i64: 9, 64, 32>}, {pipeline_mode = #tpu.pipeline_mode<synchronous>, transform_indices = @transform_5, window_bounds = array<i64: 64, 1>}, {transform_indices = @transform_6, window_bounds = array<i64: 1, 64, 64>}]} {
    %c0 = arith.constant 0 : index
    %c0_0 = arith.constant 0 : index
    %c0_1 = arith.constant 0 : index
    %0 = vector.load %arg1[%c0, %c0_0, %c0_1] : memref<1x32x64xf32, #tpu.memory_space<vmem>>, vector<1x32x64xf32>
    %1 = vector.shape_cast %0 : vector<1x32x64xf32> to vector<32x64xf32>
    %c0_2 = arith.constant 0 : index
    %c0_3 = arith.constant 0 : index
    %c0_4 = arith.constant 0 : index
    %2 = vector.load %arg2[%c0_2, %c0_3, %c0_4] : memref<1x32x64xf32, #tpu.memory_space<vmem>>, vector<1x32x64xf32>
    %3 = vector.shape_cast %2 : vector<1x32x64xf32> to vector<32x64xf32>
    %c0_5 = arith.constant 0 : index
    %c0_6 = arith.constant 0 : index
    %c0_7 = arith.constant 0 : index
    %4 = vector.load %arg3[%c0_5, %c0_6, %c0_7] : memref<1x32x64xf32, #tpu.memory_space<vmem>>, vector<1x32x64xf32>
    %5 = vector.shape_cast %4 : vector<1x32x64xf32> to vector<32x64xf32>
    %c0_8 = arith.constant 0 : index
    %c0_9 = arith.constant 0 : index
    %c0_10 = arith.constant 0 : index
    %6 = vector.load %arg4[%c0_8, %c0_9, %c0_10] : memref<1x32x64xf32, #tpu.memory_space<vmem>>, vector<1x32x64xf32>
    %7 = vector.shape_cast %6 : vector<1x32x64xf32> to vector<32x64xf32>
    %c0_11 = arith.constant 0 : index
    %c0_12 = arith.constant 0 : index
    %c0_13 = arith.constant 0 : index
    %8 = vector.load %arg5[%c0_11, %c0_12, %c0_13] : memref<9x64x32xf32, #tpu.memory_space<vmem>>, vector<1x64x32xf32>
    %9 = vector.shape_cast %8 : vector<1x64x32xf32> to vector<64x32xf32>
    %c1 = arith.constant 1 : index
    %c0_14 = arith.constant 0 : index
    %c0_15 = arith.constant 0 : index
    %10 = vector.load %arg5[%c1, %c0_14, %c0_15] : memref<9x64x32xf32, #tpu.memory_space<vmem>>, vector<1x64x32xf32>
    %11 = vector.shape_cast %10 : vector<1x64x32xf32> to vector<64x32xf32>
    %c2 = arith.constant 2 : index
    %c0_16 = arith.constant 0 : index
    %c0_17 = arith.constant 0 : index
    %12 = vector.load %arg5[%c2, %c0_16, %c0_17] : memref<9x64x32xf32, #tpu.memory_space<vmem>>, vector<1x64x32xf32>
    %13 = vector.shape_cast %12 : vector<1x64x32xf32> to vector<64x32xf32>
    %c3 = arith.constant 3 : index
    %c0_18 = arith.constant 0 : index
    %c0_19 = arith.constant 0 : index
    %14 = vector.load %arg5[%c3, %c0_18, %c0_19] : memref<9x64x32xf32, #tpu.memory_space<vmem>>, vector<1x64x32xf32>
    %15 = vector.shape_cast %14 : vector<1x64x32xf32> to vector<64x32xf32>
    %c4 = arith.constant 4 : index
    %c0_20 = arith.constant 0 : index
    %c0_21 = arith.constant 0 : index
    %16 = vector.load %arg5[%c4, %c0_20, %c0_21] : memref<9x64x32xf32, #tpu.memory_space<vmem>>, vector<1x64x32xf32>
    %17 = vector.shape_cast %16 : vector<1x64x32xf32> to vector<64x32xf32>
    %c5 = arith.constant 5 : index
    %c0_22 = arith.constant 0 : index
    %c0_23 = arith.constant 0 : index
    %18 = vector.load %arg5[%c5, %c0_22, %c0_23] : memref<9x64x32xf32, #tpu.memory_space<vmem>>, vector<1x64x32xf32>
    %19 = vector.shape_cast %18 : vector<1x64x32xf32> to vector<64x32xf32>
    %c6 = arith.constant 6 : index
    %c0_24 = arith.constant 0 : index
    %c0_25 = arith.constant 0 : index
    %20 = vector.load %arg5[%c6, %c0_24, %c0_25] : memref<9x64x32xf32, #tpu.memory_space<vmem>>, vector<1x64x32xf32>
    %21 = vector.shape_cast %20 : vector<1x64x32xf32> to vector<64x32xf32>
    %c7 = arith.constant 7 : index
    %c0_26 = arith.constant 0 : index
    %c0_27 = arith.constant 0 : index
    %22 = vector.load %arg5[%c7, %c0_26, %c0_27] : memref<9x64x32xf32, #tpu.memory_space<vmem>>, vector<1x64x32xf32>
    %23 = vector.shape_cast %22 : vector<1x64x32xf32> to vector<64x32xf32>
    %c8 = arith.constant 8 : index
    %c0_28 = arith.constant 0 : index
    %c0_29 = arith.constant 0 : index
    %24 = vector.load %arg5[%c8, %c0_28, %c0_29] : memref<9x64x32xf32, #tpu.memory_space<vmem>>, vector<1x64x32xf32>
    %25 = vector.shape_cast %24 : vector<1x64x32xf32> to vector<64x32xf32>
    %26 = vector.extract_strided_slice %1 {offsets = [0, 0], sizes = [32, 55], strides = [1, 1]} : vector<32x64xf32> to vector<32x55xf32>
    %27 = vector.extract_strided_slice %3 {offsets = [0, 0], sizes = [32, 55], strides = [1, 1]} : vector<32x64xf32> to vector<32x55xf32>
    %28 = vector.extract_strided_slice %1 {offsets = [0, 1], sizes = [32, 55], strides = [1, 1]} : vector<32x64xf32> to vector<32x55xf32>
    %29 = vector.extract_strided_slice %3 {offsets = [0, 1], sizes = [32, 55], strides = [1, 1]} : vector<32x64xf32> to vector<32x55xf32>
    %30 = vector.extract_strided_slice %5 {offsets = [0, 0], sizes = [32, 55], strides = [1, 1]} : vector<32x64xf32> to vector<32x55xf32>
    %31 = vector.extract_strided_slice %7 {offsets = [0, 0], sizes = [32, 55], strides = [1, 1]} : vector<32x64xf32> to vector<32x55xf32>
    %32 = vector.extract_strided_slice %5 {offsets = [0, 1], sizes = [32, 55], strides = [1, 1]} : vector<32x64xf32> to vector<32x55xf32>
    %33 = vector.extract_strided_slice %7 {offsets = [0, 1], sizes = [32, 55], strides = [1, 1]} : vector<32x64xf32> to vector<32x55xf32>
    %34 = vector.extract_strided_slice %1 {offsets = [0, 8], sizes = [32, 55], strides = [1, 1]} : vector<32x64xf32> to vector<32x55xf32>
    %35 = vector.extract_strided_slice %3 {offsets = [0, 8], sizes = [32, 55], strides = [1, 1]} : vector<32x64xf32> to vector<32x55xf32>
    %36 = vector.extract_strided_slice %1 {offsets = [0, 9], sizes = [32, 55], strides = [1, 1]} : vector<32x64xf32> to vector<32x55xf32>
    %37 = vector.extract_strided_slice %3 {offsets = [0, 9], sizes = [32, 55], strides = [1, 1]} : vector<32x64xf32> to vector<32x55xf32>
    %38 = vector.extract_strided_slice %5 {offsets = [0, 8], sizes = [32, 55], strides = [1, 1]} : vector<32x64xf32> to vector<32x55xf32>
    %39 = vector.extract_strided_slice %7 {offsets = [0, 8], sizes = [32, 55], strides = [1, 1]} : vector<32x64xf32> to vector<32x55xf32>
    %40 = vector.extract_strided_slice %5 {offsets = [0, 9], sizes = [32, 55], strides = [1, 1]} : vector<32x64xf32> to vector<32x55xf32>
    %41 = vector.extract_strided_slice %7 {offsets = [0, 9], sizes = [32, 55], strides = [1, 1]} : vector<32x64xf32> to vector<32x55xf32>
    %cst = arith.constant dense<0.000000e+00> : vector<64x55xf32>
    %42 = tpu.matmul %9, %26, %cst {dimension_numbers = #tpu.dot_dimension_numbers<[1], [0], [0], [1], [0, 0, 1, 1], [], []>} : vector<64x32xf32>, vector<32x55xf32>, vector<64x55xf32> -> vector<64x55xf32>
    %cst_30 = arith.constant dense<0.000000e+00> : vector<64x55xf32>
    %43 = tpu.matmul %11, %27, %cst_30 {dimension_numbers = #tpu.dot_dimension_numbers<[1], [0], [0], [1], [0, 0, 1, 1], [], []>} : vector<64x32xf32>, vector<32x55xf32>, vector<64x55xf32> -> vector<64x55xf32>
    %44 = arith.addf %42, %43 : vector<64x55xf32>
    %cst_31 = arith.constant dense<0.000000e+00> : vector<64x55xf32>
    %45 = tpu.matmul %13, %28, %cst_31 {dimension_numbers = #tpu.dot_dimension_numbers<[1], [0], [0], [1], [0, 0, 1, 1], [], []>} : vector<64x32xf32>, vector<32x55xf32>, vector<64x55xf32> -> vector<64x55xf32>
    %46 = arith.addf %44, %45 : vector<64x55xf32>
    %cst_32 = arith.constant dense<0.000000e+00> : vector<64x55xf32>
    %47 = tpu.matmul %15, %30, %cst_32 {dimension_numbers = #tpu.dot_dimension_numbers<[1], [0], [0], [1], [0, 0, 1, 1], [], []>} : vector<64x32xf32>, vector<32x55xf32>, vector<64x55xf32> -> vector<64x55xf32>
    %48 = arith.addf %46, %47 : vector<64x55xf32>
    %cst_33 = arith.constant dense<0.000000e+00> : vector<64x55xf32>
    %49 = tpu.matmul %17, %31, %cst_33 {dimension_numbers = #tpu.dot_dimension_numbers<[1], [0], [0], [1], [0, 0, 1, 1], [], []>} : vector<64x32xf32>, vector<32x55xf32>, vector<64x55xf32> -> vector<64x55xf32>
    %50 = arith.addf %48, %49 : vector<64x55xf32>
    %cst_34 = arith.constant dense<0.000000e+00> : vector<64x55xf32>
    %51 = tpu.matmul %19, %32, %cst_34 {dimension_numbers = #tpu.dot_dimension_numbers<[1], [0], [0], [1], [0, 0, 1, 1], [], []>} : vector<64x32xf32>, vector<32x55xf32>, vector<64x55xf32> -> vector<64x55xf32>
    %52 = arith.addf %50, %51 : vector<64x55xf32>
    %cst_35 = arith.constant dense<0.000000e+00> : vector<64x55xf32>
    %53 = tpu.matmul %21, %34, %cst_35 {dimension_numbers = #tpu.dot_dimension_numbers<[1], [0], [0], [1], [0, 0, 1, 1], [], []>} : vector<64x32xf32>, vector<32x55xf32>, vector<64x55xf32> -> vector<64x55xf32>
    %54 = arith.addf %52, %53 : vector<64x55xf32>
    %cst_36 = arith.constant dense<0.000000e+00> : vector<64x55xf32>
    %55 = tpu.matmul %23, %35, %cst_36 {dimension_numbers = #tpu.dot_dimension_numbers<[1], [0], [0], [1], [0, 0, 1, 1], [], []>} : vector<64x32xf32>, vector<32x55xf32>, vector<64x55xf32> -> vector<64x55xf32>
    %56 = arith.addf %54, %55 : vector<64x55xf32>
    %cst_37 = arith.constant dense<0.000000e+00> : vector<64x55xf32>
    %57 = tpu.matmul %25, %36, %cst_37 {dimension_numbers = #tpu.dot_dimension_numbers<[1], [0], [0], [1], [0, 0, 1, 1], [], []>} : vector<64x32xf32>, vector<32x55xf32>, vector<64x55xf32> -> vector<64x55xf32>
    %58 = arith.addf %56, %57 : vector<64x55xf32>
    %cst_38 = arith.constant dense<0.000000e+00> : vector<64x55xf32>
    %59 = tpu.matmul %9, %27, %cst_38 {dimension_numbers = #tpu.dot_dimension_numbers<[1], [0], [0], [1], [0, 0, 1, 1], [], []>} : vector<64x32xf32>, vector<32x55xf32>, vector<64x55xf32> -> vector<64x55xf32>
    %cst_39 = arith.constant dense<0.000000e+00> : vector<64x55xf32>
    %60 = tpu.matmul %11, %28, %cst_39 {dimension_numbers = #tpu.dot_dimension_numbers<[1], [0], [0], [1], [0, 0, 1, 1], [], []>} : vector<64x32xf32>, vector<32x55xf32>, vector<64x55xf32> -> vector<64x55xf32>
    %61 = arith.addf %59, %60 : vector<64x55xf32>
    %cst_40 = arith.constant dense<0.000000e+00> : vector<64x55xf32>
    %62 = tpu.matmul %13, %29, %cst_40 {dimension_numbers = #tpu.dot_dimension_numbers<[1], [0], [0], [1], [0, 0, 1, 1], [], []>} : vector<64x32xf32>, vector<32x55xf32>, vector<64x55xf32> -> vector<64x55xf32>
    %63 = arith.addf %61, %62 : vector<64x55xf32>
    %cst_41 = arith.constant dense<0.000000e+00> : vector<64x55xf32>
    %64 = tpu.matmul %15, %31, %cst_41 {dimension_numbers = #tpu.dot_dimension_numbers<[1], [0], [0], [1], [0, 0, 1, 1], [], []>} : vector<64x32xf32>, vector<32x55xf32>, vector<64x55xf32> -> vector<64x55xf32>
    %65 = arith.addf %63, %64 : vector<64x55xf32>
    %cst_42 = arith.constant dense<0.000000e+00> : vector<64x55xf32>
    %66 = tpu.matmul %17, %32, %cst_42 {dimension_numbers = #tpu.dot_dimension_numbers<[1], [0], [0], [1], [0, 0, 1, 1], [], []>} : vector<64x32xf32>, vector<32x55xf32>, vector<64x55xf32> -> vector<64x55xf32>
    %67 = arith.addf %65, %66 : vector<64x55xf32>
    %cst_43 = arith.constant dense<0.000000e+00> : vector<64x55xf32>
    %68 = tpu.matmul %19, %33, %cst_43 {dimension_numbers = #tpu.dot_dimension_numbers<[1], [0], [0], [1], [0, 0, 1, 1], [], []>} : vector<64x32xf32>, vector<32x55xf32>, vector<64x55xf32> -> vector<64x55xf32>
    %69 = arith.addf %67, %68 : vector<64x55xf32>
    %cst_44 = arith.constant dense<0.000000e+00> : vector<64x55xf32>
    %70 = tpu.matmul %21, %35, %cst_44 {dimension_numbers = #tpu.dot_dimension_numbers<[1], [0], [0], [1], [0, 0, 1, 1], [], []>} : vector<64x32xf32>, vector<32x55xf32>, vector<64x55xf32> -> vector<64x55xf32>
    %71 = arith.addf %69, %70 : vector<64x55xf32>
    %cst_45 = arith.constant dense<0.000000e+00> : vector<64x55xf32>
    %72 = tpu.matmul %23, %36, %cst_45 {dimension_numbers = #tpu.dot_dimension_numbers<[1], [0], [0], [1], [0, 0, 1, 1], [], []>} : vector<64x32xf32>, vector<32x55xf32>, vector<64x55xf32> -> vector<64x55xf32>
    %73 = arith.addf %71, %72 : vector<64x55xf32>
    %cst_46 = arith.constant dense<0.000000e+00> : vector<64x55xf32>
    %74 = tpu.matmul %25, %37, %cst_46 {dimension_numbers = #tpu.dot_dimension_numbers<[1], [0], [0], [1], [0, 0, 1, 1], [], []>} : vector<64x32xf32>, vector<32x55xf32>, vector<64x55xf32> -> vector<64x55xf32>
    %75 = arith.addf %73, %74 : vector<64x55xf32>
    %76 = arith.maximumf %58, %75 : vector<64x55xf32>
    %cst_47 = arith.constant dense<0.000000e+00> : vector<64x55xf32>
    %77 = tpu.matmul %9, %30, %cst_47 {dimension_numbers = #tpu.dot_dimension_numbers<[1], [0], [0], [1], [0, 0, 1, 1], [], []>} : vector<64x32xf32>, vector<32x55xf32>, vector<64x55xf32> -> vector<64x55xf32>
    %cst_48 = arith.constant dense<0.000000e+00> : vector<64x55xf32>
    %78 = tpu.matmul %11, %31, %cst_48 {dimension_numbers = #tpu.dot_dimension_numbers<[1], [0], [0], [1], [0, 0, 1, 1], [], []>} : vector<64x32xf32>, vector<32x55xf32>, vector<64x55xf32> -> vector<64x55xf32>
    %79 = arith.addf %77, %78 : vector<64x55xf32>
    %cst_49 = arith.constant dense<0.000000e+00> : vector<64x55xf32>
    %80 = tpu.matmul %13, %32, %cst_49 {dimension_numbers = #tpu.dot_dimension_numbers<[1], [0], [0], [1], [0, 0, 1, 1], [], []>} : vector<64x32xf32>, vector<32x55xf32>, vector<64x55xf32> -> vector<64x55xf32>
    %81 = arith.addf %79, %80 : vector<64x55xf32>
    %cst_50 = arith.constant dense<0.000000e+00> : vector<64x55xf32>
    %82 = tpu.matmul %15, %34, %cst_50 {dimension_numbers = #tpu.dot_dimension_numbers<[1], [0], [0], [1], [0, 0, 1, 1], [], []>} : vector<64x32xf32>, vector<32x55xf32>, vector<64x55xf32> -> vector<64x55xf32>
    %83 = arith.addf %81, %82 : vector<64x55xf32>
    %cst_51 = arith.constant dense<0.000000e+00> : vector<64x55xf32>
    %84 = tpu.matmul %17, %35, %cst_51 {dimension_numbers = #tpu.dot_dimension_numbers<[1], [0], [0], [1], [0, 0, 1, 1], [], []>} : vector<64x32xf32>, vector<32x55xf32>, vector<64x55xf32> -> vector<64x55xf32>
    %85 = arith.addf %83, %84 : vector<64x55xf32>
    %cst_52 = arith.constant dense<0.000000e+00> : vector<64x55xf32>
    %86 = tpu.matmul %19, %36, %cst_52 {dimension_numbers = #tpu.dot_dimension_numbers<[1], [0], [0], [1], [0, 0, 1, 1], [], []>} : vector<64x32xf32>, vector<32x55xf32>, vector<64x55xf32> -> vector<64x55xf32>
    %87 = arith.addf %85, %86 : vector<64x55xf32>
    %cst_53 = arith.constant dense<0.000000e+00> : vector<64x55xf32>
    %88 = tpu.matmul %21, %38, %cst_53 {dimension_numbers = #tpu.dot_dimension_numbers<[1], [0], [0], [1], [0, 0, 1, 1], [], []>} : vector<64x32xf32>, vector<32x55xf32>, vector<64x55xf32> -> vector<64x55xf32>
    %89 = arith.addf %87, %88 : vector<64x55xf32>
    %cst_54 = arith.constant dense<0.000000e+00> : vector<64x55xf32>
    %90 = tpu.matmul %23, %39, %cst_54 {dimension_numbers = #tpu.dot_dimension_numbers<[1], [0], [0], [1], [0, 0, 1, 1], [], []>} : vector<64x32xf32>, vector<32x55xf32>, vector<64x55xf32> -> vector<64x55xf32>
    %91 = arith.addf %89, %90 : vector<64x55xf32>
    %cst_55 = arith.constant dense<0.000000e+00> : vector<64x55xf32>
    %92 = tpu.matmul %25, %40, %cst_55 {dimension_numbers = #tpu.dot_dimension_numbers<[1], [0], [0], [1], [0, 0, 1, 1], [], []>} : vector<64x32xf32>, vector<32x55xf32>, vector<64x55xf32> -> vector<64x55xf32>
    %93 = arith.addf %91, %92 : vector<64x55xf32>
    %94 = arith.maximumf %76, %93 : vector<64x55xf32>
    %cst_56 = arith.constant dense<0.000000e+00> : vector<64x55xf32>
    %95 = tpu.matmul %9, %31, %cst_56 {dimension_numbers = #tpu.dot_dimension_numbers<[1], [0], [0], [1], [0, 0, 1, 1], [], []>} : vector<64x32xf32>, vector<32x55xf32>, vector<64x55xf32> -> vector<64x55xf32>
    %cst_57 = arith.constant dense<0.000000e+00> : vector<64x55xf32>
    %96 = tpu.matmul %11, %32, %cst_57 {dimension_numbers = #tpu.dot_dimension_numbers<[1], [0], [0], [1], [0, 0, 1, 1], [], []>} : vector<64x32xf32>, vector<32x55xf32>, vector<64x55xf32> -> vector<64x55xf32>
    %97 = arith.addf %95, %96 : vector<64x55xf32>
    %cst_58 = arith.constant dense<0.000000e+00> : vector<64x55xf32>
    %98 = tpu.matmul %13, %33, %cst_58 {dimension_numbers = #tpu.dot_dimension_numbers<[1], [0], [0], [1], [0, 0, 1, 1], [], []>} : vector<64x32xf32>, vector<32x55xf32>, vector<64x55xf32> -> vector<64x55xf32>
    %99 = arith.addf %97, %98 : vector<64x55xf32>
    %cst_59 = arith.constant dense<0.000000e+00> : vector<64x55xf32>
    %100 = tpu.matmul %15, %35, %cst_59 {dimension_numbers = #tpu.dot_dimension_numbers<[1], [0], [0], [1], [0, 0, 1, 1], [], []>} : vector<64x32xf32>, vector<32x55xf32>, vector<64x55xf32> -> vector<64x55xf32>
    %101 = arith.addf %99, %100 : vector<64x55xf32>
    %cst_60 = arith.constant dense<0.000000e+00> : vector<64x55xf32>
    %102 = tpu.matmul %17, %36, %cst_60 {dimension_numbers = #tpu.dot_dimension_numbers<[1], [0], [0], [1], [0, 0, 1, 1], [], []>} : vector<64x32xf32>, vector<32x55xf32>, vector<64x55xf32> -> vector<64x55xf32>
    %103 = arith.addf %101, %102 : vector<64x55xf32>
    %cst_61 = arith.constant dense<0.000000e+00> : vector<64x55xf32>
    %104 = tpu.matmul %19, %37, %cst_61 {dimension_numbers = #tpu.dot_dimension_numbers<[1], [0], [0], [1], [0, 0, 1, 1], [], []>} : vector<64x32xf32>, vector<32x55xf32>, vector<64x55xf32> -> vector<64x55xf32>
    %105 = arith.addf %103, %104 : vector<64x55xf32>
    %cst_62 = arith.constant dense<0.000000e+00> : vector<64x55xf32>
    %106 = tpu.matmul %21, %39, %cst_62 {dimension_numbers = #tpu.dot_dimension_numbers<[1], [0], [0], [1], [0, 0, 1, 1], [], []>} : vector<64x32xf32>, vector<32x55xf32>, vector<64x55xf32> -> vector<64x55xf32>
    %107 = arith.addf %105, %106 : vector<64x55xf32>
    %cst_63 = arith.constant dense<0.000000e+00> : vector<64x55xf32>
    %108 = tpu.matmul %23, %40, %cst_63 {dimension_numbers = #tpu.dot_dimension_numbers<[1], [0], [0], [1], [0, 0, 1, 1], [], []>} : vector<64x32xf32>, vector<32x55xf32>, vector<64x55xf32> -> vector<64x55xf32>
    %109 = arith.addf %107, %108 : vector<64x55xf32>
    %cst_64 = arith.constant dense<0.000000e+00> : vector<64x55xf32>
    %110 = tpu.matmul %25, %41, %cst_64 {dimension_numbers = #tpu.dot_dimension_numbers<[1], [0], [0], [1], [0, 0, 1, 1], [], []>} : vector<64x32xf32>, vector<32x55xf32>, vector<64x55xf32> -> vector<64x55xf32>
    %111 = arith.addf %109, %110 : vector<64x55xf32>
    %112 = arith.maximumf %94, %111 : vector<64x55xf32>
    %c0_65 = arith.constant 0 : index
    %c0_66 = arith.constant 0 : index
    %113 = vector.load %arg6[%c0_65, %c0_66] : memref<64x1xf32, #tpu.memory_space<vmem>>, vector<64x1xf32>
    %114 = vector.broadcast %113 : vector<64x1xf32> to vector<64x55xf32>
    %115 = arith.addf %112, %114 : vector<64x55xf32>
    %cst_67 = arith.constant 0.000000e+00 : f32
    %116 = vector.broadcast %cst_67 : f32 to vector<64x55xf32>
    %117 = arith.maximumf %115, %116 : vector<64x55xf32>
    %cst_68 = arith.constant 0.000000e+00 : f32
    %118 = vector.broadcast %cst_68 : f32 to vector<64x64xf32>
    %c0_69 = arith.constant 0 : index
    %c0_70 = arith.constant 0 : index
    %c0_71 = arith.constant 0 : index
    %119 = vector.load %arg7[%c0_69, %c0_70, %c0_71] : memref<1x64x64xf32, #tpu.memory_space<vmem>>, vector<1x64x64xf32>
    %120 = vector.shape_cast %119 : vector<1x64x64xf32> to vector<64x64xf32>
    %121 = vector.shape_cast %118 : vector<64x64xf32> to vector<1x64x64xf32>
    tpu.vector_store %arg7[%c0_69, %c0_70, %c0_71], %121 {strides = array<i32>} : memref<1x64x64xf32, #tpu.memory_space<vmem>>, vector<1x64x64xf32>,
    %c0_72 = arith.constant 0 : index
    %c0_73 = arith.constant 0 : index
    %c0_74 = arith.constant 0 : index
    %122 = vector.load %arg7[%c0_72, %c0_73, %c0_74] : memref<1x64x64xf32, #tpu.memory_space<vmem>>, vector<1x64x55xf32>
    %123 = vector.shape_cast %122 : vector<1x64x55xf32> to vector<64x55xf32>
    %124 = vector.shape_cast %117 : vector<64x55xf32> to vector<1x64x55xf32>
    tpu.vector_store %arg7[%c0_72, %c0_73, %c0_74], %124 {strides = array<i32>} : memref<1x64x64xf32, #tpu.memory_space<vmem>>, vector<1x64x55xf32>,
    return
  }
  func.func @transform_0(%arg0: i32) -> (i32, i32, i32) {
    %c0_i32 = arith.constant 0 : i32
    %c0_i32_0 = arith.constant 0 : i32
    %c0_i32_1 = arith.constant 0 : i32
    return %arg0, %c0_i32, %c0_i32_0 : i32, i32, i32
  }
  func.func @transform_1(%arg0: i32) -> (i32, i32, i32) {
    %c0_i32 = arith.constant 0 : i32
    %c0_i32_0 = arith.constant 0 : i32
    %c0_i32_1 = arith.constant 0 : i32
    return %arg0, %c0_i32, %c0_i32_0 : i32, i32, i32
  }
  func.func @transform_2(%arg0: i32) -> (i32, i32, i32) {
    %c0_i32 = arith.constant 0 : i32
    %c0_i32_0 = arith.constant 0 : i32
    %c0_i32_1 = arith.constant 0 : i32
    return %arg0, %c0_i32, %c0_i32_0 : i32, i32, i32
  }
  func.func @transform_3(%arg0: i32) -> (i32, i32, i32) {
    %c0_i32 = arith.constant 0 : i32
    %c0_i32_0 = arith.constant 0 : i32
    %c0_i32_1 = arith.constant 0 : i32
    return %arg0, %c0_i32, %c0_i32_0 : i32, i32, i32
  }
  func.func @transform_4(%arg0: i32) -> (i32, i32, i32) {
    %c0_i32 = arith.constant 0 : i32
    %c0_i32_0 = arith.constant 0 : i32
    %c0_i32_1 = arith.constant 0 : i32
    %c0_i32_2 = arith.constant 0 : i32
    return %c0_i32, %c0_i32_0, %c0_i32_1 : i32, i32, i32
  }
  func.func @transform_5(%arg0: i32) -> (i32, i32) {
    %c0_i32 = arith.constant 0 : i32
    %c0_i32_0 = arith.constant 0 : i32
    %c0_i32_1 = arith.constant 0 : i32
    return %c0_i32, %c0_i32_0 : i32, i32
  }
  func.func @transform_6(%arg0: i32) -> (i32, i32, i32) {
    %c0_i32 = arith.constant 0 : i32
    %c0_i32_0 = arith.constant 0 : i32
    %c0_i32_1 = arith.constant 0 : i32
    return %arg0, %c0_i32, %c0_i32_0 : i32, i32, i32
  }
}

module attributes {stable_mosaic.version = 11 : i64} {
  func.func @_mlp_kernel(%arg0: i32, %arg1: memref<2x3136xf32, #tpu.memory_space<vmem>>, %arg2: memref<3136x128xf32, #tpu.memory_space<vmem>>, %arg3: memref<1x128xf32, #tpu.memory_space<vmem>>, %arg4: memref<128x10xf32, #tpu.memory_space<vmem>>, %arg5: memref<1x10xf32, #tpu.memory_space<vmem>>, %arg6: memref<2x10xf32, #tpu.memory_space<vmem>>) attributes {dimension_semantics = [#tpu.dimension_semantics<parallel>], iteration_bounds = array<i64: 1>, scalar_prefetch = 0 : i64, scratch_operands = 0 : i64, tpu.core_type = #tpu.core_type<tc>, window_params = [{transform_indices = @transform_0, window_bounds = array<i64: 2, 3136>}, {pipeline_mode = #tpu.pipeline_mode<synchronous>, transform_indices = @transform_1, window_bounds = array<i64: 3136, 128>}, {pipeline_mode = #tpu.pipeline_mode<synchronous>, transform_indices = @transform_2, window_bounds = array<i64: 1, 128>}, {pipeline_mode = #tpu.pipeline_mode<synchronous>, transform_indices = @transform_3, window_bounds = array<i64: 128, 10>}, {pipeline_mode = #tpu.pipeline_mode<synchronous>, transform_indices = @transform_4, window_bounds = array<i64: 1, 10>}, {transform_indices = @transform_5, window_bounds = array<i64: 2, 10>}]} {
    %c0 = arith.constant 0 : index
    %c0_0 = arith.constant 0 : index
    %0 = vector.load %arg1[%c0, %c0_0] : memref<2x3136xf32, #tpu.memory_space<vmem>>, vector<2x3136xf32>
    %c0_1 = arith.constant 0 : index
    %c0_2 = arith.constant 0 : index
    %1 = vector.load %arg2[%c0_1, %c0_2] : memref<3136x128xf32, #tpu.memory_space<vmem>>, vector<3136x128xf32>
    %cst = arith.constant dense<0.000000e+00> : vector<2x128xf32>
    %2 = tpu.matmul %0, %1, %cst {dimension_numbers = #tpu.dot_dimension_numbers<[1], [0], [0], [1], [0, 0, 1, 1], [], []>} : vector<2x3136xf32>, vector<3136x128xf32>, vector<2x128xf32> -> vector<2x128xf32>
    %c0_3 = arith.constant 0 : index
    %c0_4 = arith.constant 0 : index
    %3 = vector.load %arg3[%c0_3, %c0_4] : memref<1x128xf32, #tpu.memory_space<vmem>>, vector<1x128xf32>
    %4 = vector.broadcast %3 : vector<1x128xf32> to vector<2x128xf32>
    %5 = arith.addf %2, %4 : vector<2x128xf32>
    %cst_5 = arith.constant 0.000000e+00 : f32
    %6 = vector.broadcast %cst_5 : f32 to vector<2x128xf32>
    %7 = arith.maximumf %5, %6 : vector<2x128xf32>
    %c0_6 = arith.constant 0 : index
    %c0_7 = arith.constant 0 : index
    %8 = vector.load %arg4[%c0_6, %c0_7] : memref<128x10xf32, #tpu.memory_space<vmem>>, vector<128x10xf32>
    %cst_8 = arith.constant dense<0.000000e+00> : vector<2x10xf32>
    %9 = tpu.matmul %7, %8, %cst_8 {dimension_numbers = #tpu.dot_dimension_numbers<[1], [0], [0], [1], [0, 0, 1, 1], [], []>} : vector<2x128xf32>, vector<128x10xf32>, vector<2x10xf32> -> vector<2x10xf32>
    %c0_9 = arith.constant 0 : index
    %c0_10 = arith.constant 0 : index
    %10 = vector.load %arg5[%c0_9, %c0_10] : memref<1x10xf32, #tpu.memory_space<vmem>>, vector<1x10xf32>
    %11 = vector.broadcast %10 : vector<1x10xf32> to vector<2x10xf32>
    %12 = arith.addf %9, %11 : vector<2x10xf32>
    %c0_11 = arith.constant 0 : index
    %c0_12 = arith.constant 0 : index
    %13 = vector.load %arg6[%c0_11, %c0_12] : memref<2x10xf32, #tpu.memory_space<vmem>>, vector<2x10xf32>
    tpu.vector_store %arg6[%c0_11, %c0_12], %12 {strides = array<i32>} : memref<2x10xf32, #tpu.memory_space<vmem>>, vector<2x10xf32>,
    return
  }
  func.func @transform_0(%arg0: i32) -> (i32, i32) {
    %c0_i32 = arith.constant 0 : i32
    %c0_i32_0 = arith.constant 0 : i32
    return %arg0, %c0_i32 : i32, i32
  }
  func.func @transform_1(%arg0: i32) -> (i32, i32) {
    %c0_i32 = arith.constant 0 : i32
    %c0_i32_0 = arith.constant 0 : i32
    %c0_i32_1 = arith.constant 0 : i32
    return %c0_i32, %c0_i32_0 : i32, i32
  }
  func.func @transform_2(%arg0: i32) -> (i32, i32) {
    %c0_i32 = arith.constant 0 : i32
    %c0_i32_0 = arith.constant 0 : i32
    %c0_i32_1 = arith.constant 0 : i32
    return %c0_i32, %c0_i32_0 : i32, i32
  }
  func.func @transform_3(%arg0: i32) -> (i32, i32) {
    %c0_i32 = arith.constant 0 : i32
    %c0_i32_0 = arith.constant 0 : i32
    %c0_i32_1 = arith.constant 0 : i32
    return %c0_i32, %c0_i32_0 : i32, i32
  }
  func.func @transform_4(%arg0: i32) -> (i32, i32) {
    %c0_i32 = arith.constant 0 : i32
    %c0_i32_0 = arith.constant 0 : i32
    %c0_i32_1 = arith.constant 0 : i32
    return %c0_i32, %c0_i32_0 : i32, i32
  }
  func.func @transform_5(%arg0: i32) -> (i32, i32) {
    %c0_i32 = arith.constant 0 : i32
    %c0_i32_0 = arith.constant 0 : i32
    return %arg0, %c0_i32 : i32, i32
  }
}

</mosaic_0001>

<llo_original>
// kernel: cnn_forward.3
$region0: #{cnn_forward.3}
  #allocation0 [shape = 'u32[]', space=smem, size = 0x4, offset = 0x4, fixed_abs, tag = 'smem constant byte address 0x4 - core index']
  #allocation1 [shape = 'u32[144,128]{1,0:T(1,128)}', space=vmem, size = 0x12000, scoped, tag = 'internal scratch']
  %s0 = inlined_call_operand.vmem [shape: f32[2,1,225], index: 0, kind: input, shape index: {}]
  %s1 = inlined_call_operand.vmem [shape: f32[2,1,225], index: 1, kind: input, shape index: {}]
  %s2 = inlined_call_operand.vmem [shape: f32[2,1,225], index: 2, kind: input, shape index: {}]
  %s3 = inlined_call_operand.vmem [shape: f32[2,1,225], index: 3, kind: input, shape index: {}]
  %s4 = inlined_call_operand.vmem [shape: f32[9,32,1], index: 4, kind: input, shape index: {}]
  %s5 = inlined_call_operand.vmem [shape: f32[32,1], index: 5, kind: input, shape index: {}]
  %s6 = inlined_call_operand.vmem [shape: f32[2,32,225], index: 6, kind: output, shape index: {}]
  %s7 = sld [smem:[#allocation0]]
  $region57: #{cnn_forward.3} parent=0
    _
  %s9 = ssub.s32 1, %s7
  %s10 = scalar_select 0, %s9, %s7
  loop: start=0, step=1, limit=4
  $region2: #{cnn_forward.3} parent=0 // loop_pre_header
    _
  $region3: #{cnn_forward.3} parent=0 // loop_header
    %s12 = sphi 0, %s16
    %p13 = scmp.ge.s32.totalorder %s12, 4
    %s22 = sphi 0, %s24
    %s25 = sphi 0, %s22
    %s26 = sphi 0, %s25
    %s42 = sphi 0, %s26
    %s48 = sphi 0, %s50
    %s51 = sphi 0, %s48
    %s52 = sphi 0, %s51
    %s68 = sphi 0, %s52
    %s74 = sphi 0, %s76
    %s77 = sphi 0, %s74
    %s78 = sphi 0, %s77
    %s94 = sphi 0, %s78
    %s100 = sphi 0, %s102
    %s103 = sphi 0, %s100
    %s104 = sphi 0, %s103
    %s120 = sphi 0, %s104
    %s124 = sphi 0, %s124
    %s126 = sphi 0, %s124
    %s127 = sphi 0, %s126
    %s141 = sphi 0, %s127
    %s145 = sphi 0, %s145
    %s147 = sphi 0, %s145
    %s148 = sphi 0, %s147
    %s162 = sphi 0, %s148
    %s168 = sphi 0, %s170
    %s171 = sphi 0, %s168
    %s172 = sphi 0, %s171
    %s188 = sphi 0, %s172
  $region4: #{cnn_forward.3} parent=0 // loop_header_branch
    %15 = sbr.rel (%p13) target = $region8
  $region5: #{cnn_forward.3} parent=0 // loop_body
    %s17 = ssub.s32 %s12, 1
    %s18 = ssub.s32 %s12, 2
    %s19 = sadd.s32 %s12, 1
    %s20 = ssub.s32 %s12, %s19
    %p21 = scmp.eq.s32.totalorder %s20, 0
    %s23 = sadd.s32 %s22, 1
    %s24 = scalar_select %p21, %s22, %s23
    %p27 = pneg %p21
    %p28 = scmp.eq.s32.totalorder %s12, 1
    %p29 = por %p27, %p28
    %p30 = scmp.ne.s32.totalorder %s22, %s25
    %p31 = scmp.eq.s32.totalorder %s12, 0
    %p32 = por %p30, %p31
    %p33 = scmp.ne.s32.totalorder %s22, %s25
    %p34 = scmp.eq.s32.totalorder %s17, 1
    %p35 = por %p33, %p34
    %p36 = scmp.ne.s32.totalorder %s25, %s26
    %p37 = scmp.eq.s32.totalorder %s17, 0
    %p38 = por %p36, %p37
    %p39 = scmp.ne.s32.totalorder %s25, %s26
    %p40 = scmp.eq.s32.totalorder %s18, 1
    %p41 = por %p39, %p40
    %p43 = scmp.ne.s32.totalorder %s26, %s42
    %p44 = scmp.eq.s32.totalorder %s18, 0
    %p45 = por %p43, %p44
    %s46 = ssub.s32 %s12, %s19
    %p47 = scmp.eq.s32.totalorder %s46, 0
    %s49 = sadd.s32 %s48, 1
    %s50 = scalar_select %p47, %s48, %s49
    %p53 = pneg %p47
    %p54 = scmp.eq.s32.totalorder %s12, 1
    %p55 = por %p53, %p54
    %p56 = scmp.ne.s32.totalorder %s48, %s51
    %p57 = scmp.eq.s32.totalorder %s12, 0
    %p58 = por %p56, %p57
    %p59 = scmp.ne.s32.totalorder %s48, %s51
    %p60 = scmp.eq.s32.totalorder %s17, 1
    %p61 = por %p59, %p60
    %p62 = scmp.ne.s32.totalorder %s51, %s52
    %p63 = scmp.eq.s32.totalorder %s17, 0
    %p64 = por %p62, %p63
    %p65 = scmp.ne.s32.totalorder %s51, %s52
    %p66 = scmp.eq.s32.totalorder %s18, 1
    %p67 = por %p65, %p66
    %p69 = scmp.ne.s32.totalorder %s52, %s68
    %p70 = scmp.eq.s32.totalorder %s18, 0
    %p71 = por %p69, %p70
    %s72 = ssub.s32 %s12, %s19
    %p73 = scmp.eq.s32.totalorder %s72, 0
    %s75 = sadd.s32 %s74, 1
    %s76 = scalar_select %p73, %s74, %s75
    %p79 = pneg %p73
    %p80 = scmp.eq.s32.totalorder %s12, 1
    %p81 = por %p79, %p80
    %p82 = scmp.ne.s32.totalorder %s74, %s77
    %p83 = scmp.eq.s32.totalorder %s12, 0
    %p84 = por %p82, %p83
    %p85 = scmp.ne.s32.totalorder %s74, %s77
    %p86 = scmp.eq.s32.totalorder %s17, 1
    %p87 = por %p85, %p86
    %p88 = scmp.ne.s32.totalorder %s77, %s78
    %p89 = scmp.eq.s32.totalorder %s17, 0
    %p90 = por %p88, %p89
    %p91 = scmp.ne.s32.totalorder %s77, %s78
    %p92 = scmp.eq.s32.totalorder %s18, 1
    %p93 = por %p91, %p92
    %p95 = scmp.ne.s32.totalorder %s78, %s94
    %p96 = scmp.eq.s32.totalorder %s18, 0
    %p97 = por %p95, %p96
    %s98 = ssub.s32 %s12, %s19
    %p99 = scmp.eq.s32.totalorder %s98, 0
    %s101 = sadd.s32 %s100, 1
    %s102 = scalar_select %p99, %s100, %s101
    %p105 = pneg %p99
    %p106 = scmp.eq.s32.totalorder %s12, 1
    %p107 = por %p105, %p106
    %p108 = scmp.ne.s32.totalorder %s100, %s103
    %p109 = scmp.eq.s32.totalorder %s12, 0
    %p110 = por %p108, %p109
    %p111 = scmp.ne.s32.totalorder %s100, %s103
    %p112 = scmp.eq.s32.totalorder %s17, 1
    %p113 = por %p111, %p112
    %p114 = scmp.ne.s32.totalorder %s103, %s104
    %p115 = scmp.eq.s32.totalorder %s17, 0
    %p116 = por %p114, %p115
    %p117 = scmp.ne.s32.totalorder %s103, %s104
    %p118 = scmp.eq.s32.totalorder %s18, 1
    %p119 = por %p117, %p118
    %p121 = scmp.ne.s32.totalorder %s104, %s120
    %p122 = scmp.eq.s32.totalorder %s18, 0
    %p123 = por %p121, %p122
    %s125 = sadd.s32 %s124, 1
    %p128 = scmp.eq.s32.totalorder %s12, 1
    %p129 = scmp.ne.s32.totalorder %s124, %s126
    %p130 = scmp.eq.s32.totalorder %s12, 0
    %p131 = por %p129, %p130
    %p132 = scmp.ne.s32.totalorder %s124, %s126
    %p133 = scmp.eq.s32.totalorder %s17, 1
    %p134 = por %p132, %p133
    %p135 = scmp.ne.s32.totalorder %s126, %s127
    %p136 = scmp.eq.s32.totalorder %s17, 0
    %p137 = por %p135, %p136
    %p138 = scmp.ne.s32.totalorder %s126, %s127
    %p139 = scmp.eq.s32.totalorder %s18, 1
    %p140 = por %p138, %p139
    %p142 = scmp.ne.s32.totalorder %s127, %s141
    %p143 = scmp.eq.s32.totalorder %s18, 0
    %p144 = por %p142, %p143
    %s146 = sadd.s32 %s145, 1
    %p149 = scmp.eq.s32.totalorder %s12, 1
    %p150 = scmp.ne.s32.totalorder %s145, %s147
    %p151 = scmp.eq.s32.totalorder %s12, 0
    %p152 = por %p150, %p151
    %p153 = scmp.ne.s32.totalorder %s145, %s147
    %p154 = scmp.eq.s32.totalorder %s17, 1
    %p155 = por %p153, %p154
    %p156 = scmp.ne.s32.totalorder %s147, %s148
    %p157 = scmp.eq.s32.totalorder %s17, 0
    %p158 = por %p156, %p157
    %p159 = scmp.ne.s32.totalorder %s147, %s148
    %p160 = scmp.eq.s32.totalorder %s18, 1
    %p161 = por %p159, %p160
    %p163 = scmp.ne.s32.totalorder %s148, %s162
    %p164 = scmp.eq.s32.totalorder %s18, 0
    %p165 = por %p163, %p164
    %s166 = ssub.s32 %s12, %s19
    %p167 = scmp.eq.s32.totalorder %s166, 0
    %s169 = sadd.s32 %s168, 1
    %s170 = scalar_select %p167, %s168, %s169
    %p173 = pneg %p167
    %p174 = scmp.eq.s32.totalorder %s12, 1
    %p175 = por %p173, %p174
    %p176 = scmp.ne.s32.totalorder %s168, %s171
    %p177 = scmp.eq.s32.totalorder %s12, 0
    %p178 = por %p176, %p177
    %p179 = scmp.ne.s32.totalorder %s168, %s171
    %p180 = scmp.eq.s32.totalorder %s17, 1
    %p181 = por %p179, %p180
    %p182 = scmp.ne.s32.totalorder %s171, %s172
    %p183 = scmp.eq.s32.totalorder %s17, 0
    %p184 = por %p182, %p183
    %p185 = scmp.ne.s32.totalorder %s171, %s172
    %p186 = scmp.eq.s32.totalorder %s18, 1
    %p187 = por %p185, %p186
    %p189 = scmp.ne.s32.totalorder %s172, %s188
    %p190 = scmp.eq.s32.totalorder %s18, 0
    %p191 = por %p189, %p190
    %p192 = scmp.le.s32.totalorder 1, %s12
    %p193 = scmp.lt.s32.totalorder %s12, 3
    %p194 = pnand %p192, %p193
    %p195 = pneg %p194
    // Predicated region
    $region9: #{cnn_forward.3} parent=5 // pred_check
      _
    $region10: #{cnn_forward.3} parent=5 // pred_check_branch
      %197 = sbr.rel (%p194) target = $region12
    $region11: #{cnn_forward.3} parent=5 // pred_region
      %s198 = ssub.s32 %s12, 1
      // Predicated region
      $region13: #{cnn_forward.3} parent=11 // pred_check
        %p199 = pneg %p137
      $region14: #{cnn_forward.3} parent=11 // pred_check_branch
        %201 = sbr.rel (%p199) target = $region16
      $region15: #{cnn_forward.3} parent=11 // pred_region
        _
      $region16: #{cnn_forward.3} parent=11 // pred_fallthru
        _
      // Predicated region
      $region17: #{cnn_forward.3} parent=11 // pred_check
        %p202 = pneg %p158
      $region18: #{cnn_forward.3} parent=11 // pred_check_branch
        %204 = sbr.rel (%p202) target = $region20
      $region19: #{cnn_forward.3} parent=11 // pred_region
        _
      $region20: #{cnn_forward.3} parent=11 // pred_fallthru
        _
    $region12: #{cnn_forward.3} parent=5 // pred_fallthru
      _
    %p205 = scmp.lt.s32.totalorder %s12, 2
    // Predicated region
    $region21: #{cnn_forward.3} parent=5 // pred_check
      %p206 = pneg %p205
    $region22: #{cnn_forward.3} parent=5 // pred_check_branch
      %208 = sbr.rel (%p206) target = $region24
    $region23: #{cnn_forward.3} parent=5 // pred_region
      // Predicated region
      $region25: #{cnn_forward.3} parent=23 // pred_check
        %p209 = pneg %p32
      $region26: #{cnn_forward.3} parent=23 // pred_check_branch
        %211 = sbr.rel (%p209) target = $region28
      $region27: #{cnn_forward.3} parent=23 // pred_region
        %p212 = scmp.lt.s32.totalorder %s12, 1
        %s213 = scalar_select %p212, %s12, 1
        %s214 = smul.addr %s213, 2
        %s215 = scalar_lea.vmem %s0, %s214
      $region28: #{cnn_forward.3} parent=23 // pred_fallthru
        _
      // Predicated region
      $region29: #{cnn_forward.3} parent=23 // pred_check
        %p216 = pneg %p58
      $region30: #{cnn_forward.3} parent=23 // pred_check_branch
        %218 = sbr.rel (%p216) target = $region32
      $region31: #{cnn_forward.3} parent=23 // pred_region
        %p219 = scmp.lt.s32.totalorder %s12, 1
        %s220 = scalar_select %p219, %s12, 1
        %s221 = smul.addr %s220, 2
        %s222 = scalar_lea.vmem %s1, %s221
      $region32: #{cnn_forward.3} parent=23 // pred_fallthru
        _
      // Predicated region
      $region33: #{cnn_forward.3} parent=23 // pred_check
        %p223 = pneg %p84
      $region34: #{cnn_forward.3} parent=23 // pred_check_branch
        %225 = sbr.rel (%p223) target = $region36
      $region35: #{cnn_forward.3} parent=23 // pred_region
        %p226 = scmp.lt.s32.totalorder %s12, 1
        %s227 = scalar_select %p226, %s12, 1
        %s228 = smul.addr %s227, 2
        %s229 = scalar_lea.vmem %s2, %s228
      $region36: #{cnn_forward.3} parent=23 // pred_fallthru
        _
      // Predicated region
      $region37: #{cnn_forward.3} parent=23 // pred_check
        %p230 = pneg %p110
      $region38: #{cnn_forward.3} parent=23 // pred_check_branch
        %232 = sbr.rel (%p230) target = $region40
      $region39: #{cnn_forward.3} parent=23 // pred_region
        %p233 = scmp.lt.s32.totalorder %s12, 1
        %s234 = scalar_select %p233, %s12, 1
        %s235 = smul.addr %s234, 2
        %s236 = scalar_lea.vmem %s3, %s235
      $region40: #{cnn_forward.3} parent=23 // pred_fallthru
        _
    $region24: #{cnn_forward.3} parent=5 // pred_fallthru
      _
    %p237 = scmp.le.s32.totalorder 1, %s12
    %p238 = scmp.lt.s32.totalorder %s12, 3
    %p239 = pnand %p237, %p238
    %p240 = pneg %p239
    // Predicated region
    $region41: #{cnn_forward.3} parent=5 // pred_check
      _
    $region42: #{cnn_forward.3} parent=5 // pred_check_branch
      %242 = sbr.rel (%p239) target = $region44
    $region43: #{cnn_forward.3} parent=5 // pred_region
      %s243 = ssub.s32 %s12, 1
      %p244 = scmp.lt.s32.totalorder %s17, 1
      %s245 = scalar_select %p244, %s17, 1
      %s246 = smul.addr %s245, 2
      %s247 = scalar_lea.vmem %s0, %s246
      %p248 = pneg %p38
      %p249 = pneg %p35
      %p250 = scmp.lt.s32.totalorder %s17, 1
      %s251 = scalar_select %p250, %s17, 1
      %s252 = smul.addr %s251, 2
      %s253 = scalar_lea.vmem %s1, %s252
      %p254 = pneg %p64
      %p255 = pneg %p61
      %p256 = scmp.lt.s32.totalorder %s17, 1
      %s257 = scalar_select %p256, %s17, 1
      %s258 = smul.addr %s257, 2
      %s259 = scalar_lea.vmem %s2, %s258
      %p260 = pneg %p90
      %p261 = pneg %p87
      %p262 = scmp.lt.s32.totalorder %s17, 1
      %s263 = scalar_select %p262, %s17, 1
      %s264 = smul.addr %s263, 2
      %s265 = scalar_lea.vmem %s3, %s264
      %p266 = pneg %p116
      %p267 = pneg %p113
      %p268 = pneg %p137
      %p269 = pneg %p134
      %p270 = pneg %p158
      %p271 = pneg %p155
      %p272 = pneg %p184
      %p273 = pneg %p181
      %p274 = scmp.lt.s32.totalorder %s17, 1
      %s275 = scalar_select %p274, %s17, 1
      %s276 = smul.addr %s275, 8
      %s277 = smul.addr %s276, 8
      %s278 = scalar_lea.vmem %s6, %s277
      %p279 = scmp.lt.s32.totalorder %s17, 1
      %s280 = scalar_select %p279, %s17, 1
      %s281 = smul.addr %s280, 2
      %s282 = scalar_lea.vmem %s0, %s281
      %p283 = scmp.lt.s32.totalorder %s17, 1
      %s284 = scalar_select %p283, %s17, 1
      %s285 = smul.addr %s284, 2
      %s286 = scalar_lea.vmem %s1, %s285
      %p287 = scmp.lt.s32.totalorder %s17, 1
      %s288 = scalar_select %p287, %s17, 1
      %s289 = smul.addr %s288, 2
      %s290 = scalar_lea.vmem %s2, %s289
      %p291 = scmp.lt.s32.totalorder %s17, 1
      %s292 = scalar_select %p291, %s17, 1
      %s293 = smul.addr %s292, 2
      %s294 = scalar_lea.vmem %s3, %s293
      %p295 = scmp.lt.s32.totalorder %s17, 1
      %s296 = scalar_select %p295, %s17, 1
      %s297 = smul.addr %s296, 8
      %s298 = smul.addr %s297, 8
      %s299 = scalar_lea.vmem %s6, %s298
      %v300 = vld [vmem:[%s282] sm:$0x3]
      %v301 = vld [vmem:[%s286] sm:$0x3]
      %v302 = vld [vmem:[%s290] sm:$0x3]
      %v303 = vld [vmem:[%s294] sm:$0x3]
      %v304 = vld [vmem:[%s4] sm:$0xff]
      %v305 = vld [vmem:[%s4 + $0x8] sm:$0xff]
      %v306 = vld [vmem:[%s4 + $0x10] sm:$0xff]
      %v307 = vld [vmem:[%s4 + $0x18] sm:$0xff]
      %s308 = scalar_lea.vmem %s4, 32
      %v309 = vld [vmem:[%s308] sm:$0xff]
      %v310 = vld [vmem:[%s308 + $0x8] sm:$0xff]
      %v311 = vld [vmem:[%s308 + $0x10] sm:$0xff]
      %v312 = vld [vmem:[%s308 + $0x18] sm:$0xff]
      %s313 = scalar_lea.vmem %s4, 64
      %v314 = vld [vmem:[%s313] sm:$0xff]
      %v315 = vld [vmem:[%s313 + $0x8] sm:$0xff]
      %v316 = vld [vmem:[%s313 + $0x10] sm:$0xff]
      %v317 = vld [vmem:[%s313 + $0x18] sm:$0xff]
      %s318 = scalar_lea.vmem %s4, 96
      %v319 = vld [vmem:[%s318] sm:$0xff]
      %v320 = vld [vmem:[%s318 + $0x8] sm:$0xff]
      %v321 = vld [vmem:[%s318 + $0x10] sm:$0xff]
      %v322 = vld [vmem:[%s318 + $0x18] sm:$0xff]
      %s323 = scalar_lea.vmem %s4, 128
      %v324 = vld [vmem:[%s323] sm:$0xff]
      %v325 = vld [vmem:[%s323 + $0x8] sm:$0xff]
      %v326 = vld [vmem:[%s323 + $0x10] sm:$0xff]
      %v327 = vld [vmem:[%s323 + $0x18] sm:$0xff]
      %s328 = scalar_lea.vmem %s4, 160
      %v329 = vld [vmem:[%s328] sm:$0xff]
      %v330 = vld [vmem:[%s328 + $0x8] sm:$0xff]
      %v331 = vld [vmem:[%s328 + $0x10] sm:$0xff]
      %v332 = vld [vmem:[%s328 + $0x18] sm:$0xff]
      %s333 = scalar_lea.vmem %s4, 192
      %v334 = vld [vmem:[%s333] sm:$0xff]
      %v335 = vld [vmem:[%s333 + $0x8] sm:$0xff]
      %v336 = vld [vmem:[%s333 + $0x10] sm:$0xff]
      %v337 = vld [vmem:[%s333 + $0x18] sm:$0xff]
      %s338 = scalar_lea.vmem %s4, 224
      %v339 = vld [vmem:[%s338] sm:$0xff]
      %v340 = vld [vmem:[%s338 + $0x8] sm:$0xff]
      %v341 = vld [vmem:[%s338 + $0x10] sm:$0xff]
      %v342 = vld [vmem:[%s338 + $0x18] sm:$0xff]
      %s343 = scalar_lea.vmem %s4, 256
      %v344 = vld [vmem:[%s343] sm:$0xff]
      %v345 = vld [vmem:[%s343 + $0x8] sm:$0xff]
      %v346 = vld [vmem:[%s343 + $0x10] sm:$0xff]
      %v347 = vld [vmem:[%s343 + $0x18] sm:$0xff]
      %349 = vset.pattern.permute.xlu0 0
      %350 = vperm.xlu0 %349, %v304
      %v351 = vpop.permute.xlu0 %350
      %354 = vset.pattern.permute.xlu0 0
      %355 = vperm.xlu0 %354, %v305
      %v356 = vpop.permute.xlu0 %355
      %359 = vset.pattern.permute.xlu0 0
      %360 = vperm.xlu0 %359, %v306
      %v361 = vpop.permute.xlu0 %360
      %364 = vset.pattern.permute.xlu0 0
      %365 = vperm.xlu0 %364, %v307
      %v366 = vpop.permute.xlu0 %365
      %v369 = vlaneseq
      %v370 = vshrl.u32 %v369, 7
      %v371 = vsub.s32 0, %v370
      %v372 = vrot.slane %v300, %v371
      %v373 = vlaneseq
      %v374 = vshrl.u32 %v373, 7
      %v375 = vsub.s32 1, %v374
      %v376 = vrot.slane %v300, %v375
      %v379 = vmul.f32 %v351, %v372
      %v380 = vmul.f32 %v351, %v376
      %v381 = vmul.f32 %v356, %v372
      %v382 = vmul.f32 %v356, %v376
      %v383 = vmul.f32 %v361, %v372
      %v384 = vmul.f32 %v361, %v376
      %v385 = vmul.f32 %v366, %v372
      %v386 = vmul.f32 %v366, %v376
      %388 = vset.pattern.permute.xlu0 0
      %389 = vperm.xlu0 %388, %v309
      %v390 = vpop.permute.xlu0 %389
      %393 = vset.pattern.permute.xlu0 0
      %394 = vperm.xlu0 %393, %v310
      %v395 = vpop.permute.xlu0 %394
      %398 = vset.pattern.permute.xlu0 0
      %399 = vperm.xlu0 %398, %v311
      %v400 = vpop.permute.xlu0 %399
      %403 = vset.pattern.permute.xlu0 0
      %404 = vperm.xlu0 %403, %v312
      %v405 = vpop.permute.xlu0 %404
      %v408 = vlaneseq
      %v409 = vshrl.u32 %v408, 7
      %v410 = vsub.s32 0, %v409
      %v411 = vrot.slane %v301, %v410
      %v412 = vlaneseq
      %v413 = vshrl.u32 %v412, 7
      %v414 = vsub.s32 1, %v413
      %v415 = vrot.slane %v301, %v414
      %v418 = vmul.f32 %v390, %v411
      %v419 = vmul.f32 %v390, %v415
      %v420 = vmul.f32 %v395, %v411
      %v421 = vmul.f32 %v395, %v415
      %v422 = vmul.f32 %v400, %v411
      %v423 = vmul.f32 %v400, %v415
      %v424 = vmul.f32 %v405, %v411
      %v425 = vmul.f32 %v405, %v415
      %v426 = vadd.f32 %v379, %v418
      %v427 = vadd.f32 %v380, %v419
      %v428 = vadd.f32 %v381, %v420
      %v429 = vadd.f32 %v382, %v421
      %v430 = vadd.f32 %v383, %v422
      %v431 = vadd.f32 %v384, %v423
      %v432 = vadd.f32 %v385, %v424
      %v433 = vadd.f32 %v386, %v425
      %435 = vset.pattern.permute.xlu0 0
      %436 = vperm.xlu0 %435, %v314
      %v437 = vpop.permute.xlu0 %436
      %440 = vset.pattern.permute.xlu0 0
      %441 = vperm.xlu0 %440, %v315
      %v442 = vpop.permute.xlu0 %441
      %445 = vset.pattern.permute.xlu0 0
      %446 = vperm.xlu0 %445, %v316
      %v447 = vpop.permute.xlu0 %446
      %450 = vset.pattern.permute.xlu0 0
      %451 = vperm.xlu0 %450, %v317
      %v452 = vpop.permute.xlu0 %451
      %v454 = vmul.f32 %v437, %v372
      %v455 = vmul.f32 %v437, %v376
      %v456 = vmul.f32 %v442, %v372
      %v457 = vmul.f32 %v442, %v376
      %v458 = vmul.f32 %v447, %v372
      %v459 = vmul.f32 %v447, %v376
      %v460 = vmul.f32 %v452, %v372
      %v461 = vmul.f32 %v452, %v376
      %470 = vrot.lane.b32.xlu0 %v454, 127
      %v471 = vpop.permute.xlu0 %470
      %472 = vrot.lane.b32.xlu0 %v455, 127
      %v473 = vpop.permute.xlu0 %472
      %474 = vrot.lane.b32.xlu0 %v456, 127
      %v475 = vpop.permute.xlu0 %474
      %476 = vrot.lane.b32.xlu0 %v457, 127
      %v477 = vpop.permute.xlu0 %476
      %478 = vrot.lane.b32.xlu0 %v458, 127
      %v479 = vpop.permute.xlu0 %478
      %480 = vrot.lane.b32.xlu0 %v459, 127
      %v481 = vpop.permute.xlu0 %480
      %482 = vrot.lane.b32.xlu0 %v460, 127
      %v483 = vpop.permute.xlu0 %482
      %484 = vrot.lane.b32.xlu0 %v461, 127
      %v485 = vpop.permute.xlu0 %484
      %vm486 = vcmask 1039360
      %v487 = vsel %vm486, %v471, %v473
      %v488 = vsel %vm486, %v475, %v477
      %v489 = vsel %vm486, %v479, %v481
      %v490 = vsel %vm486, %v483, %v485
      %v499 = vadd.f32 %v426, %v487
      %v500 = vadd.f32 %v427, %v473
      %v501 = vadd.f32 %v428, %v488
      %v502 = vadd.f32 %v429, %v477
      %v503 = vadd.f32 %v430, %v489
      %v504 = vadd.f32 %v431, %v481
      %v505 = vadd.f32 %v432, %v490
      %v506 = vadd.f32 %v433, %v485
      %508 = vset.pattern.permute.xlu0 0
      %509 = vperm.xlu0 %508, %v319
      %v510 = vpop.permute.xlu0 %509
      %513 = vset.pattern.permute.xlu0 0
      %514 = vperm.xlu0 %513, %v320
      %v515 = vpop.permute.xlu0 %514
      %518 = vset.pattern.permute.xlu0 0
      %519 = vperm.xlu0 %518, %v321
      %v520 = vpop.permute.xlu0 %519
      %523 = vset.pattern.permute.xlu0 0
      %524 = vperm.xlu0 %523, %v322
      %v525 = vpop.permute.xlu0 %524
      %v528 = vlaneseq
      %v529 = vshrl.u32 %v528, 7
      %v530 = vsub.s32 0, %v529
      %v531 = vrot.slane %v302, %v530
      %v532 = vlaneseq
      %v533 = vshrl.u32 %v532, 7
      %v534 = vsub.s32 1, %v533
      %v535 = vrot.slane %v302, %v534
      %v538 = vmul.f32 %v510, %v531
      %v539 = vmul.f32 %v510, %v535
      %v540 = vmul.f32 %v515, %v531
      %v541 = vmul.f32 %v515, %v535
      %v542 = vmul.f32 %v520, %v531
      %v543 = vmul.f32 %v520, %v535
      %v544 = vmul.f32 %v525, %v531
      %v545 = vmul.f32 %v525, %v535
      %v546 = vadd.f32 %v499, %v538
      %v547 = vadd.f32 %v500, %v539
      %v548 = vadd.f32 %v501, %v540
      %v549 = vadd.f32 %v502, %v541
      %v550 = vadd.f32 %v503, %v542
      %v551 = vadd.f32 %v504, %v543
      %v552 = vadd.f32 %v505, %v544
      %v553 = vadd.f32 %v506, %v545
      %555 = vset.pattern.permute.xlu0 0
      %556 = vperm.xlu0 %555, %v324
      %v557 = vpop.permute.xlu0 %556
      %560 = vset.pattern.permute.xlu0 0
      %561 = vperm.xlu0 %560, %v325
      %v562 = vpop.permute.xlu0 %561
      %565 = vset.pattern.permute.xlu0 0
      %566 = vperm.xlu0 %565, %v326
      %v567 = vpop.permute.xlu0 %566
      %570 = vset.pattern.permute.xlu0 0
      %571 = vperm.xlu0 %570, %v327
      %v572 = vpop.permute.xlu0 %571
      %v575 = vlaneseq
      %v576 = vshrl.u32 %v575, 7
      %v577 = vsub.s32 0, %v576
      %v578 = vrot.slane %v303, %v577
      %v579 = vlaneseq
      %v580 = vshrl.u32 %v579, 7
      %v581 = vsub.s32 1, %v580
      %v582 = vrot.slane %v303, %v581
      %v585 = vmul.f32 %v557, %v578
      %v586 = vmul.f32 %v557, %v582
      %v587 = vmul.f32 %v562, %v578
      %v588 = vmul.f32 %v562, %v582
      %v589 = vmul.f32 %v567, %v578
      %v590 = vmul.f32 %v567, %v582
      %v591 = vmul.f32 %v572, %v578
      %v592 = vmul.f32 %v572, %v582
      %v593 = vadd.f32 %v546, %v585
      %v594 = vadd.f32 %v547, %v586
      %v595 = vadd.f32 %v548, %v587
      %v596 = vadd.f32 %v549, %v588
      %v597 = vadd.f32 %v550, %v589
      %v598 = vadd.f32 %v551, %v590
      %v599 = vadd.f32 %v552, %v591
      %v600 = vadd.f32 %v553, %v592
      %602 = vset.pattern.permute.xlu0 0
      %603 = vperm.xlu0 %602, %v329
      %v604 = vpop.permute.xlu0 %603
      %607 = vset.pattern.permute.xlu0 0
      %608 = vperm.xlu0 %607, %v330
      %v609 = vpop.permute.xlu0 %608
      %612 = vset.pattern.permute.xlu0 0
      %613 = vperm.xlu0 %612, %v331
      %v614 = vpop.permute.xlu0 %613
      %617 = vset.pattern.permute.xlu0 0
      %618 = vperm.xlu0 %617, %v332
      %v619 = vpop.permute.xlu0 %618
      %v621 = vmul.f32 %v604, %v531
      %v622 = vmul.f32 %v604, %v535
      %v623 = vmul.f32 %v609, %v531
      %v624 = vmul.f32 %v609, %v535
      %v625 = vmul.f32 %v614, %v531
      %v626 = vmul.f32 %v614, %v535
      %v627 = vmul.f32 %v619, %v531
      %v628 = vmul.f32 %v619, %v535
      %637 = vrot.lane.b32.xlu0 %v621, 127
      %v638 = vpop.permute.xlu0 %637
      %639 = vrot.lane.b32.xlu0 %v622, 127
      %v640 = vpop.permute.xlu0 %639
      %641 = vrot.lane.b32.xlu0 %v623, 127
      %v642 = vpop.permute.xlu0 %641
      %643 = vrot.lane.b32.xlu0 %v624, 127
      %v644 = vpop.permute.xlu0 %643
      %645 = vrot.lane.b32.xlu0 %v625, 127
      %v646 = vpop.permute.xlu0 %645
      %647 = vrot.lane.b32.xlu0 %v626, 127
      %v648 = vpop.permute.xlu0 %647
      %649 = vrot.lane.b32.xlu0 %v627, 127
      %v650 = vpop.permute.xlu0 %649
      %651 = vrot.lane.b32.xlu0 %v628, 127
      %v652 = vpop.permute.xlu0 %651
      %v653 = vsel %vm486, %v638, %v640
      %v654 = vsel %vm486, %v642, %v644
      %v655 = vsel %vm486, %v646, %v648
      %v656 = vsel %vm486, %v650, %v652
      %v665 = vadd.f32 %v593, %v653
      %v666 = vadd.f32 %v594, %v640
      %v667 = vadd.f32 %v595, %v654
      %v668 = vadd.f32 %v596, %v644
      %v669 = vadd.f32 %v597, %v655
      %v670 = vadd.f32 %v598, %v648
      %v671 = vadd.f32 %v599, %v656
      %v672 = vadd.f32 %v600, %v652
      %674 = vset.pattern.permute.xlu0 0
      %675 = vperm.xlu0 %674, %v334
      %v676 = vpop.permute.xlu0 %675
      %679 = vset.pattern.permute.xlu0 0
      %680 = vperm.xlu0 %679, %v335
      %v681 = vpop.permute.xlu0 %680
      %684 = vset.pattern.permute.xlu0 0
      %685 = vperm.xlu0 %684, %v336
      %v686 = vpop.permute.xlu0 %685
      %689 = vset.pattern.permute.xlu0 0
      %690 = vperm.xlu0 %689, %v337
      %v691 = vpop.permute.xlu0 %690
      %v693 = vmul.f32 %v676, %v372
      %v694 = vmul.f32 %v676, %v376
      %v695 = vmul.f32 %v681, %v372
      %v696 = vmul.f32 %v681, %v376
      %v697 = vmul.f32 %v686, %v372
      %v698 = vmul.f32 %v686, %v376
      %v699 = vmul.f32 %v691, %v372
      %v700 = vmul.f32 %v691, %v376
      %709 = vrot.lane.b32.xlu0 %v693, 113
      %v710 = vpop.permute.xlu0 %709
      %711 = vrot.lane.b32.xlu0 %v694, 113
      %v712 = vpop.permute.xlu0 %711
      %713 = vrot.lane.b32.xlu0 %v695, 113
      %v714 = vpop.permute.xlu0 %713
      %715 = vrot.lane.b32.xlu0 %v696, 113
      %v716 = vpop.permute.xlu0 %715
      %717 = vrot.lane.b32.xlu0 %v697, 113
      %v718 = vpop.permute.xlu0 %717
      %719 = vrot.lane.b32.xlu0 %v698, 113
      %v720 = vpop.permute.xlu0 %719
      %721 = vrot.lane.b32.xlu0 %v699, 113
      %v722 = vpop.permute.xlu0 %721
      %723 = vrot.lane.b32.xlu0 %v700, 113
      %v724 = vpop.permute.xlu0 %723
      %vm725 = vcmask 924672
      %v726 = vsel %vm725, %v710, %v712
      %v727 = vsel %vm725, %v714, %v716
      %v728 = vsel %vm725, %v718, %v720
      %v729 = vsel %vm725, %v722, %v724
      %v738 = vadd.f32 %v665, %v726
      %v739 = vadd.f32 %v666, %v712
      %v740 = vadd.f32 %v667, %v727
      %v741 = vadd.f32 %v668, %v716
      %v742 = vadd.f32 %v669, %v728
      %v743 = vadd.f32 %v670, %v720
      %v744 = vadd.f32 %v671, %v729
      %v745 = vadd.f32 %v672, %v724
      %747 = vset.pattern.permute.xlu0 0
      %748 = vperm.xlu0 %747, %v339
      %v749 = vpop.permute.xlu0 %748
      %752 = vset.pattern.permute.xlu0 0
      %753 = vperm.xlu0 %752, %v340
      %v754 = vpop.permute.xlu0 %753
      %757 = vset.pattern.permute.xlu0 0
      %758 = vperm.xlu0 %757, %v341
      %v759 = vpop.permute.xlu0 %758
      %762 = vset.pattern.permute.xlu0 0
      %763 = vperm.xlu0 %762, %v342
      %v764 = vpop.permute.xlu0 %763
      %v766 = vmul.f32 %v749, %v411
      %v767 = vmul.f32 %v749, %v415
      %v768 = vmul.f32 %v754, %v411
      %v769 = vmul.f32 %v754, %v415
      %v770 = vmul.f32 %v759, %v411
      %v771 = vmul.f32 %v759, %v415
      %v772 = vmul.f32 %v764, %v411
      %v773 = vmul.f32 %v764, %v415
      %782 = vrot.lane.b32.xlu0 %v766, 113
      %v783 = vpop.permute.xlu0 %782
      %784 = vrot.lane.b32.xlu0 %v767, 113
      %v785 = vpop.permute.xlu0 %784
      %786 = vrot.lane.b32.xlu0 %v768, 113
      %v787 = vpop.permute.xlu0 %786
      %788 = vrot.lane.b32.xlu0 %v769, 113
      %v789 = vpop.permute.xlu0 %788
      %790 = vrot.lane.b32.xlu0 %v770, 113
      %v791 = vpop.permute.xlu0 %790
      %792 = vrot.lane.b32.xlu0 %v771, 113
      %v793 = vpop.permute.xlu0 %792
      %794 = vrot.lane.b32.xlu0 %v772, 113
      %v795 = vpop.permute.xlu0 %794
      %796 = vrot.lane.b32.xlu0 %v773, 113
      %v797 = vpop.permute.xlu0 %796
      %v798 = vsel %vm725, %v783, %v785
      %v799 = vsel %vm725, %v787, %v789
      %v800 = vsel %vm725, %v791, %v793
      %v801 = vsel %vm725, %v795, %v797
      %v810 = vadd.f32 %v738, %v798
      %v811 = vadd.f32 %v739, %v785
      %v812 = vadd.f32 %v740, %v799
      %v813 = vadd.f32 %v741, %v789
      %v814 = vadd.f32 %v742, %v800
      %v815 = vadd.f32 %v743, %v793
      %v816 = vadd.f32 %v744, %v801
      %v817 = vadd.f32 %v745, %v797
      %819 = vset.pattern.permute.xlu0 0
      %820 = vperm.xlu0 %819, %v344
      %v821 = vpop.permute.xlu0 %820
      %824 = vset.pattern.permute.xlu0 0
      %825 = vperm.xlu0 %824, %v345
      %v826 = vpop.permute.xlu0 %825
      %829 = vset.pattern.permute.xlu0 0
      %830 = vperm.xlu0 %829, %v346
      %v831 = vpop.permute.xlu0 %830
      %834 = vset.pattern.permute.xlu0 0
      %835 = vperm.xlu0 %834, %v347
      %v836 = vpop.permute.xlu0 %835
      %v838 = vmul.f32 %v821, %v372
      %v839 = vmul.f32 %v821, %v376
      %v840 = vmul.f32 %v826, %v372
      %v841 = vmul.f32 %v826, %v376
      %v842 = vmul.f32 %v831, %v372
      %v843 = vmul.f32 %v831, %v376
      %v844 = vmul.f32 %v836, %v372
      %v845 = vmul.f32 %v836, %v376
      %854 = vrot.lane.b32.xlu0 %v838, 112
      %v855 = vpop.permute.xlu0 %854
      %856 = vrot.lane.b32.xlu0 %v839, 112
      %v857 = vpop.permute.xlu0 %856
      %858 = vrot.lane.b32.xlu0 %v840, 112
      %v859 = vpop.permute.xlu0 %858
      %860 = vrot.lane.b32.xlu0 %v841, 112
      %v861 = vpop.permute.xlu0 %860
      %862 = vrot.lane.b32.xlu0 %v842, 112
      %v863 = vpop.permute.xlu0 %862
      %864 = vrot.lane.b32.xlu0 %v843, 112
      %v865 = vpop.permute.xlu0 %864
      %866 = vrot.lane.b32.xlu0 %v844, 112
      %v867 = vpop.permute.xlu0 %866
      %868 = vrot.lane.b32.xlu0 %v845, 112
      %v869 = vpop.permute.xlu0 %868
      %vm870 = vcmask 916480
      %v871 = vsel %vm870, %v855, %v857
      %v872 = vsel %vm870, %v859, %v861
      %v873 = vsel %vm870, %v863, %v865
      %v874 = vsel %vm870, %v867, %v869
      %v883 = vadd.f32 %v810, %v871
      %v884 = vadd.f32 %v811, %v857
      %v885 = vadd.f32 %v812, %v872
      %v886 = vadd.f32 %v813, %v861
      %v887 = vadd.f32 %v814, %v873
      %v888 = vadd.f32 %v815, %v865
      %v889 = vadd.f32 %v816, %v874
      %v890 = vadd.f32 %v817, %v869
      %v891 = vmul.f32 %v351, %v411
      %v892 = vmul.f32 %v351, %v415
      %v893 = vmul.f32 %v356, %v411
      %v894 = vmul.f32 %v356, %v415
      %v895 = vmul.f32 %v361, %v411
      %v896 = vmul.f32 %v361, %v415
      %v897 = vmul.f32 %v366, %v411
      %v898 = vmul.f32 %v366, %v415
      %v899 = vmul.f32 %v390, %v372
      %v900 = vmul.f32 %v390, %v376
      %v901 = vmul.f32 %v395, %v372
      %v902 = vmul.f32 %v395, %v376
      %v903 = vmul.f32 %v400, %v372
      %v904 = vmul.f32 %v400, %v376
      %v905 = vmul.f32 %v405, %v372
      %v906 = vmul.f32 %v405, %v376
      %915 = vrot.lane.b32.xlu0 %v899, 127
      %v916 = vpop.permute.xlu0 %915
      %917 = vrot.lane.b32.xlu0 %v900, 127
      %v918 = vpop.permute.xlu0 %917
      %919 = vrot.lane.b32.xlu0 %v901, 127
      %v920 = vpop.permute.xlu0 %919
      %921 = vrot.lane.b32.xlu0 %v902, 127
      %v922 = vpop.permute.xlu0 %921
      %923 = vrot.lane.b32.xlu0 %v903, 127
      %v924 = vpop.permute.xlu0 %923
      %925 = vrot.lane.b32.xlu0 %v904, 127
      %v926 = vpop.permute.xlu0 %925
      %927 = vrot.lane.b32.xlu0 %v905, 127
      %v928 = vpop.permute.xlu0 %927
      %929 = vrot.lane.b32.xlu0 %v906, 127
      %v930 = vpop.permute.xlu0 %929
      %v931 = vsel %vm486, %v916, %v918
      %v932 = vsel %vm486, %v920, %v922
      %v933 = vsel %vm486, %v924, %v926
      %v934 = vsel %vm486, %v928, %v930
      %v943 = vadd.f32 %v891, %v931
      %v944 = vadd.f32 %v892, %v918
      %v945 = vadd.f32 %v893, %v932
      %v946 = vadd.f32 %v894, %v922
      %v947 = vadd.f32 %v895, %v933
      %v948 = vadd.f32 %v896, %v926
      %v949 = vadd.f32 %v897, %v934
      %v950 = vadd.f32 %v898, %v930
      %v951 = vmul.f32 %v437, %v411
      %v952 = vmul.f32 %v437, %v415
      %v953 = vmul.f32 %v442, %v411
      %v954 = vmul.f32 %v442, %v415
      %v955 = vmul.f32 %v447, %v411
      %v956 = vmul.f32 %v447, %v415
      %v957 = vmul.f32 %v452, %v411
      %v958 = vmul.f32 %v452, %v415
      %967 = vrot.lane.b32.xlu0 %v951, 127
      %v968 = vpop.permute.xlu0 %967
      %969 = vrot.lane.b32.xlu0 %v952, 127
      %v970 = vpop.permute.xlu0 %969
      %971 = vrot.lane.b32.xlu0 %v953, 127
      %v972 = vpop.permute.xlu0 %971
      %973 = vrot.lane.b32.xlu0 %v954, 127
      %v974 = vpop.permute.xlu0 %973
      %975 = vrot.lane.b32.xlu0 %v955, 127
      %v976 = vpop.permute.xlu0 %975
      %977 = vrot.lane.b32.xlu0 %v956, 127
      %v978 = vpop.permute.xlu0 %977
      %979 = vrot.lane.b32.xlu0 %v957, 127
      %v980 = vpop.permute.xlu0 %979
      %981 = vrot.lane.b32.xlu0 %v958, 127
      %v982 = vpop.permute.xlu0 %981
      %v983 = vsel %vm486, %v968, %v970
      %v984 = vsel %vm486, %v972, %v974
      %v985 = vsel %vm486, %v976, %v978
      %v986 = vsel %vm486, %v980, %v982
      %v995 = vadd.f32 %v943, %v983
      %v996 = vadd.f32 %v944, %v970
      %v997 = vadd.f32 %v945, %v984
      %v998 = vadd.f32 %v946, %v974
      %v999 = vadd.f32 %v947, %v985
      %v1000 = vadd.f32 %v948, %v978
      %v1001 = vadd.f32 %v949, %v986
      %v1002 = vadd.f32 %v950, %v982
      %v1003 = vmul.f32 %v510, %v578
      %v1004 = vmul.f32 %v510, %v582
      %v1005 = vmul.f32 %v515, %v578
      %v1006 = vmul.f32 %v515, %v582
      %v1007 = vmul.f32 %v520, %v578
      %v1008 = vmul.f32 %v520, %v582
      %v1009 = vmul.f32 %v525, %v578
      %v1010 = vmul.f32 %v525, %v582
      %v1011 = vadd.f32 %v995, %v1003
      %v1012 = vadd.f32 %v996, %v1004
      %v1013 = vadd.f32 %v997, %v1005
      %v1014 = vadd.f32 %v998, %v1006
      %v1015 = vadd.f32 %v999, %v1007
      %v1016 = vadd.f32 %v1000, %v1008
      %v1017 = vadd.f32 %v1001, %v1009
      %v1018 = vadd.f32 %v1002, %v1010
      %v1019 = vmul.f32 %v557, %v531
      %v1020 = vmul.f32 %v557, %v535
      %v1021 = vmul.f32 %v562, %v531
      %v1022 = vmul.f32 %v562, %v535
      %v1023 = vmul.f32 %v567, %v531
      %v1024 = vmul.f32 %v567, %v535
      %v1025 = vmul.f32 %v572, %v531
      %v1026 = vmul.f32 %v572, %v535
      %1035 = vrot.lane.b32.xlu0 %v1019, 127
      %v1036 = vpop.permute.xlu0 %1035
      %1037 = vrot.lane.b32.xlu0 %v1020, 127
      %v1038 = vpop.permute.xlu0 %1037
      %1039 = vrot.lane.b32.xlu0 %v1021, 127
      %v1040 = vpop.permute.xlu0 %1039
      %1041 = vrot.lane.b32.xlu0 %v1022, 127
      %v1042 = vpop.permute.xlu0 %1041
      %1043 = vrot.lane.b32.xlu0 %v1023, 127
      %v1044 = vpop.permute.xlu0 %1043
      %1045 = vrot.lane.b32.xlu0 %v1024, 127
      %v1046 = vpop.permute.xlu0 %1045
      %1047 = vrot.lane.b32.xlu0 %v1025, 127
      %v1048 = vpop.permute.xlu0 %1047
      %1049 = vrot.lane.b32.xlu0 %v1026, 127
      %v1050 = vpop.permute.xlu0 %1049
      %v1051 = vsel %vm486, %v1036, %v1038
      %v1052 = vsel %vm486, %v1040, %v1042
      %v1053 = vsel %vm486, %v1044, %v1046
      %v1054 = vsel %vm486, %v1048, %v1050
      %v1063 = vadd.f32 %v1011, %v1051
      %v1064 = vadd.f32 %v1012, %v1038
      %v1065 = vadd.f32 %v1013, %v1052
      %v1066 = vadd.f32 %v1014, %v1042
      %v1067 = vadd.f32 %v1015, %v1053
      %v1068 = vadd.f32 %v1016, %v1046
      %v1069 = vadd.f32 %v1017, %v1054
      %v1070 = vadd.f32 %v1018, %v1050
      %v1071 = vmul.f32 %v604, %v578
      %v1072 = vmul.f32 %v604, %v582
      %v1073 = vmul.f32 %v609, %v578
      %v1074 = vmul.f32 %v609, %v582
      %v1075 = vmul.f32 %v614, %v578
      %v1076 = vmul.f32 %v614, %v582
      %v1077 = vmul.f32 %v619, %v578
      %v1078 = vmul.f32 %v619, %v582
      %1087 = vrot.lane.b32.xlu0 %v1071, 127
      %v1088 = vpop.permute.xlu0 %1087
      %1089 = vrot.lane.b32.xlu0 %v1072, 127
      %v1090 = vpop.permute.xlu0 %1089
      %1091 = vrot.lane.b32.xlu0 %v1073, 127
      %v1092 = vpop.permute.xlu0 %1091
      %1093 = vrot.lane.b32.xlu0 %v1074, 127
      %v1094 = vpop.permute.xlu0 %1093
      %1095 = vrot.lane.b32.xlu0 %v1075, 127
      %v1096 = vpop.permute.xlu0 %1095
      %1097 = vrot.lane.b32.xlu0 %v1076, 127
      %v1098 = vpop.permute.xlu0 %1097
      %1099 = vrot.lane.b32.xlu0 %v1077, 127
      %v1100 = vpop.permute.xlu0 %1099
      %1101 = vrot.lane.b32.xlu0 %v1078, 127
      %v1102 = vpop.permute.xlu0 %1101
      %v1103 = vsel %vm486, %v1088, %v1090
      %v1104 = vsel %vm486, %v1092, %v1094
      %v1105 = vsel %vm486, %v1096, %v1098
      %v1106 = vsel %vm486, %v1100, %v1102
      %v1115 = vadd.f32 %v1063, %v1103
      %v1116 = vadd.f32 %v1064, %v1090
      %v1117 = vadd.f32 %v1065, %v1104
      %v1118 = vadd.f32 %v1066, %v1094
      %v1119 = vadd.f32 %v1067, %v1105
      %v1120 = vadd.f32 %v1068, %v1098
      %v1121 = vadd.f32 %v1069, %v1106
      %v1122 = vadd.f32 %v1070, %v1102
      %v1123 = vmul.f32 %v676, %v411
      %v1124 = vmul.f32 %v676, %v415
      %v1125 = vmul.f32 %v681, %v411
      %v1126 = vmul.f32 %v681, %v415
      %v1127 = vmul.f32 %v686, %v411
      %v1128 = vmul.f32 %v686, %v415
      %v1129 = vmul.f32 %v691, %v411
      %v1130 = vmul.f32 %v691, %v415
      %1139 = vrot.lane.b32.xlu0 %v1123, 113
      %v1140 = vpop.permute.xlu0 %1139
      %1141 = vrot.lane.b32.xlu0 %v1124, 113
      %v1142 = vpop.permute.xlu0 %1141
      %1143 = vrot.lane.b32.xlu0 %v1125, 113
      %v1144 = vpop.permute.xlu0 %1143
      %1145 = vrot.lane.b32.xlu0 %v1126, 113
      %v1146 = vpop.permute.xlu0 %1145
      %1147 = vrot.lane.b32.xlu0 %v1127, 113
      %v1148 = vpop.permute.xlu0 %1147
      %1149 = vrot.lane.b32.xlu0 %v1128, 113
      %v1150 = vpop.permute.xlu0 %1149
      %1151 = vrot.lane.b32.xlu0 %v1129, 113
      %v1152 = vpop.permute.xlu0 %1151
      %1153 = vrot.lane.b32.xlu0 %v1130, 113
      %v1154 = vpop.permute.xlu0 %1153
      %v1155 = vsel %vm725, %v1140, %v1142
      %v1156 = vsel %vm725, %v1144, %v1146
      %v1157 = vsel %vm725, %v1148, %v1150
      %v1158 = vsel %vm725, %v1152, %v1154
      %v1167 = vadd.f32 %v1115, %v1155
      %v1168 = vadd.f32 %v1116, %v1142
      %v1169 = vadd.f32 %v1117, %v1156
      %v1170 = vadd.f32 %v1118, %v1146
      %v1171 = vadd.f32 %v1119, %v1157
      %v1172 = vadd.f32 %v1120, %v1150
      %v1173 = vadd.f32 %v1121, %v1158
      %v1174 = vadd.f32 %v1122, %v1154
      %v1175 = vmul.f32 %v749, %v372
      %v1176 = vmul.f32 %v749, %v376
      %v1177 = vmul.f32 %v754, %v372
      %v1178 = vmul.f32 %v754, %v376
      %v1179 = vmul.f32 %v759, %v372
      %v1180 = vmul.f32 %v759, %v376
      %v1181 = vmul.f32 %v764, %v372
      %v1182 = vmul.f32 %v764, %v376
      %1191 = vrot.lane.b32.xlu0 %v1175, 112
      %v1192 = vpop.permute.xlu0 %1191
      %1193 = vrot.lane.b32.xlu0 %v1176, 112
      %v1194 = vpop.permute.xlu0 %1193
      %1195 = vrot.lane.b32.xlu0 %v1177, 112
      %v1196 = vpop.permute.xlu0 %1195
      %1197 = vrot.lane.b32.xlu0 %v1178, 112
      %v1198 = vpop.permute.xlu0 %1197
      %1199 = vrot.lane.b32.xlu0 %v1179, 112
      %v1200 = vpop.permute.xlu0 %1199
      %1201 = vrot.lane.b32.xlu0 %v1180, 112
      %v1202 = vpop.permute.xlu0 %1201
      %1203 = vrot.lane.b32.xlu0 %v1181, 112
      %v1204 = vpop.permute.xlu0 %1203
      %1205 = vrot.lane.b32.xlu0 %v1182, 112
      %v1206 = vpop.permute.xlu0 %1205
      %v1207 = vsel %vm870, %v1192, %v1194
      %v1208 = vsel %vm870, %v1196, %v1198
      %v1209 = vsel %vm870, %v1200, %v1202
      %v1210 = vsel %vm870, %v1204, %v1206
      %v1219 = vadd.f32 %v1167, %v1207
      %v1220 = vadd.f32 %v1168, %v1194
      %v1221 = vadd.f32 %v1169, %v1208
      %v1222 = vadd.f32 %v1170, %v1198
      %v1223 = vadd.f32 %v1171, %v1209
      %v1224 = vadd.f32 %v1172, %v1202
      %v1225 = vadd.f32 %v1173, %v1210
      %v1226 = vadd.f32 %v1174, %v1206
      %v1227 = vmul.f32 %v821, %v411
      %v1228 = vmul.f32 %v821, %v415
      %v1229 = vmul.f32 %v826, %v411
      %v1230 = vmul.f32 %v826, %v415
      %v1231 = vmul.f32 %v831, %v411
      %v1232 = vmul.f32 %v831, %v415
      %v1233 = vmul.f32 %v836, %v411
      %v1234 = vmul.f32 %v836, %v415
      %1243 = vrot.lane.b32.xlu0 %v1227, 112
      %v1244 = vpop.permute.xlu0 %1243
      %1245 = vrot.lane.b32.xlu0 %v1228, 112
      %v1246 = vpop.permute.xlu0 %1245
      %1247 = vrot.lane.b32.xlu0 %v1229, 112
      %v1248 = vpop.permute.xlu0 %1247
      %1249 = vrot.lane.b32.xlu0 %v1230, 112
      %v1250 = vpop.permute.xlu0 %1249
      %1251 = vrot.lane.b32.xlu0 %v1231, 112
      %v1252 = vpop.permute.xlu0 %1251
      %1253 = vrot.lane.b32.xlu0 %v1232, 112
      %v1254 = vpop.permute.xlu0 %1253
      %1255 = vrot.lane.b32.xlu0 %v1233, 112
      %v1256 = vpop.permute.xlu0 %1255
      %1257 = vrot.lane.b32.xlu0 %v1234, 112
      %v1258 = vpop.permute.xlu0 %1257
      %v1259 = vsel %vm870, %v1244, %v1246
      %v1260 = vsel %vm870, %v1248, %v1250
      %v1261 = vsel %vm870, %v1252, %v1254
      %v1262 = vsel %vm870, %v1256, %v1258
      %v1271 = vadd.f32 %v1219, %v1259
      %v1272 = vadd.f32 %v1220, %v1246
      %v1273 = vadd.f32 %v1221, %v1260
      %v1274 = vadd.f32 %v1222, %v1250
      %v1275 = vadd.f32 %v1223, %v1261
      %v1276 = vadd.f32 %v1224, %v1254
      %v1277 = vadd.f32 %v1225, %v1262
      %v1278 = vadd.f32 %v1226, %v1258
      %v1279 = vmax.f32 %v883, %v1271
      %v1280 = vmax.f32 %v884, %v1272
      %v1281 = vmax.f32 %v885, %v1273
      %v1282 = vmax.f32 %v886, %v1274
      %v1283 = vmax.f32 %v887, %v1275
      %v1284 = vmax.f32 %v888, %v1276
      %v1285 = vmax.f32 %v889, %v1277
      %v1286 = vmax.f32 %v890, %v1278
      %v1287 = vmul.f32 %v351, %v531
      %v1288 = vmul.f32 %v351, %v535
      %v1289 = vmul.f32 %v356, %v531
      %v1290 = vmul.f32 %v356, %v535
      %v1291 = vmul.f32 %v361, %v531
      %v1292 = vmul.f32 %v361, %v535
      %v1293 = vmul.f32 %v366, %v531
      %v1294 = vmul.f32 %v366, %v535
      %v1295 = vmul.f32 %v390, %v578
      %v1296 = vmul.f32 %v390, %v582
      %v1297 = vmul.f32 %v395, %v578
      %v1298 = vmul.f32 %v395, %v582
      %v1299 = vmul.f32 %v400, %v578
      %v1300 = vmul.f32 %v400, %v582
      %v1301 = vmul.f32 %v405, %v578
      %v1302 = vmul.f32 %v405, %v582
      %v1303 = vadd.f32 %v1287, %v1295
      %v1304 = vadd.f32 %v1288, %v1296
      %v1305 = vadd.f32 %v1289, %v1297
      %v1306 = vadd.f32 %v1290, %v1298
      %v1307 = vadd.f32 %v1291, %v1299
      %v1308 = vadd.f32 %v1292, %v1300
      %v1309 = vadd.f32 %v1293, %v1301
      %v1310 = vadd.f32 %v1294, %v1302
      %v1311 = vmul.f32 %v437, %v531
      %v1312 = vmul.f32 %v437, %v535
      %v1313 = vmul.f32 %v442, %v531
      %v1314 = vmul.f32 %v442, %v535
      %v1315 = vmul.f32 %v447, %v531
      %v1316 = vmul.f32 %v447, %v535
      %v1317 = vmul.f32 %v452, %v531
      %v1318 = vmul.f32 %v452, %v535
      %1327 = vrot.lane.b32.xlu0 %v1311, 127
      %v1328 = vpop.permute.xlu0 %1327
      %1329 = vrot.lane.b32.xlu0 %v1312, 127
      %v1330 = vpop.permute.xlu0 %1329
      %1331 = vrot.lane.b32.xlu0 %v1313, 127
      %v1332 = vpop.permute.xlu0 %1331
      %1333 = vrot.lane.b32.xlu0 %v1314, 127
      %v1334 = vpop.permute.xlu0 %1333
      %1335 = vrot.lane.b32.xlu0 %v1315, 127
      %v1336 = vpop.permute.xlu0 %1335
      %1337 = vrot.lane.b32.xlu0 %v1316, 127
      %v1338 = vpop.permute.xlu0 %1337
      %1339 = vrot.lane.b32.xlu0 %v1317, 127
      %v1340 = vpop.permute.xlu0 %1339
      %1341 = vrot.lane.b32.xlu0 %v1318, 127
      %v1342 = vpop.permute.xlu0 %1341
      %v1343 = vsel %vm486, %v1328, %v1330
      %v1344 = vsel %vm486, %v1332, %v1334
      %v1345 = vsel %vm486, %v1336, %v1338
      %v1346 = vsel %vm486, %v1340, %v1342
      %v1355 = vadd.f32 %v1303, %v1343
      %v1356 = vadd.f32 %v1304, %v1330
      %v1357 = vadd.f32 %v1305, %v1344
      %v1358 = vadd.f32 %v1306, %v1334
      %v1359 = vadd.f32 %v1307, %v1345
      %v1360 = vadd.f32 %v1308, %v1338
      %v1361 = vadd.f32 %v1309, %v1346
      %v1362 = vadd.f32 %v1310, %v1342
      %v1363 = vmul.f32 %v510, %v372
      %v1364 = vmul.f32 %v510, %v376
      %v1365 = vmul.f32 %v515, %v372
      %v1366 = vmul.f32 %v515, %v376
      %v1367 = vmul.f32 %v520, %v372
      %v1368 = vmul.f32 %v520, %v376
      %v1369 = vmul.f32 %v525, %v372
      %v1370 = vmul.f32 %v525, %v376
      %1379 = vrot.lane.b32.xlu0 %v1363, 113
      %v1380 = vpop.permute.xlu0 %1379
      %1381 = vrot.lane.b32.xlu0 %v1364, 113
      %v1382 = vpop.permute.xlu0 %1381
      %1383 = vrot.lane.b32.xlu0 %v1365, 113
      %v1384 = vpop.permute.xlu0 %1383
      %1385 = vrot.lane.b32.xlu0 %v1366, 113
      %v1386 = vpop.permute.xlu0 %1385
      %1387 = vrot.lane.b32.xlu0 %v1367, 113
      %v1388 = vpop.permute.xlu0 %1387
      %1389 = vrot.lane.b32.xlu0 %v1368, 113
      %v1390 = vpop.permute.xlu0 %1389
      %1391 = vrot.lane.b32.xlu0 %v1369, 113
      %v1392 = vpop.permute.xlu0 %1391
      %1393 = vrot.lane.b32.xlu0 %v1370, 113
      %v1394 = vpop.permute.xlu0 %1393
      %v1395 = vsel %vm725, %v1380, %v1382
      %v1396 = vsel %vm725, %v1384, %v1386
      %v1397 = vsel %vm725, %v1388, %v1390
      %v1398 = vsel %vm725, %v1392, %v1394
      %v1407 = vadd.f32 %v1355, %v1395
      %v1408 = vadd.f32 %v1356, %v1382
      %v1409 = vadd.f32 %v1357, %v1396
      %v1410 = vadd.f32 %v1358, %v1386
      %v1411 = vadd.f32 %v1359, %v1397
      %v1412 = vadd.f32 %v1360, %v1390
      %v1413 = vadd.f32 %v1361, %v1398
      %v1414 = vadd.f32 %v1362, %v1394
      %v1415 = vmul.f32 %v557, %v411
      %v1416 = vmul.f32 %v557, %v415
      %v1417 = vmul.f32 %v562, %v411
      %v1418 = vmul.f32 %v562, %v415
      %v1419 = vmul.f32 %v567, %v411
      %v1420 = vmul.f32 %v567, %v415
      %v1421 = vmul.f32 %v572, %v411
      %v1422 = vmul.f32 %v572, %v415
      %1431 = vrot.lane.b32.xlu0 %v1415, 113
      %v1432 = vpop.permute.xlu0 %1431
      %1433 = vrot.lane.b32.xlu0 %v1416, 113
      %v1434 = vpop.permute.xlu0 %1433
      %1435 = vrot.lane.b32.xlu0 %v1417, 113
      %v1436 = vpop.permute.xlu0 %1435
      %1437 = vrot.lane.b32.xlu0 %v1418, 113
      %v1438 = vpop.permute.xlu0 %1437
      %1439 = vrot.lane.b32.xlu0 %v1419, 113
      %v1440 = vpop.permute.xlu0 %1439
      %1441 = vrot.lane.b32.xlu0 %v1420, 113
      %v1442 = vpop.permute.xlu0 %1441
      %1443 = vrot.lane.b32.xlu0 %v1421, 113
      %v1444 = vpop.permute.xlu0 %1443
      %1445 = vrot.lane.b32.xlu0 %v1422, 113
      %v1446 = vpop.permute.xlu0 %1445
      %v1447 = vsel %vm725, %v1432, %v1434
      %v1448 = vsel %vm725, %v1436, %v1438
      %v1449 = vsel %vm725, %v1440, %v1442
      %v1450 = vsel %vm725, %v1444, %v1446
      %v1459 = vadd.f32 %v1407, %v1447
      %v1460 = vadd.f32 %v1408, %v1434
      %v1461 = vadd.f32 %v1409, %v1448
      %v1462 = vadd.f32 %v1410, %v1438
      %v1463 = vadd.f32 %v1411, %v1449
      %v1464 = vadd.f32 %v1412, %v1442
      %v1465 = vadd.f32 %v1413, %v1450
      %v1466 = vadd.f32 %v1414, %v1446
      %v1467 = vmul.f32 %v604, %v372
      %v1468 = vmul.f32 %v604, %v376
      %v1469 = vmul.f32 %v609, %v372
      %v1470 = vmul.f32 %v609, %v376
      %v1471 = vmul.f32 %v614, %v372
      %v1472 = vmul.f32 %v614, %v376
      %v1473 = vmul.f32 %v619, %v372
      %v1474 = vmul.f32 %v619, %v376
      %1483 = vrot.lane.b32.xlu0 %v1467, 112
      %v1484 = vpop.permute.xlu0 %1483
      %1485 = vrot.lane.b32.xlu0 %v1468, 112
      %v1486 = vpop.permute.xlu0 %1485
      %1487 = vrot.lane.b32.xlu0 %v1469, 112
      %v1488 = vpop.permute.xlu0 %1487
      %1489 = vrot.lane.b32.xlu0 %v1470, 112
      %v1490 = vpop.permute.xlu0 %1489
      %1491 = vrot.lane.b32.xlu0 %v1471, 112
      %v1492 = vpop.permute.xlu0 %1491
      %1493 = vrot.lane.b32.xlu0 %v1472, 112
      %v1494 = vpop.permute.xlu0 %1493
      %1495 = vrot.lane.b32.xlu0 %v1473, 112
      %v1496 = vpop.permute.xlu0 %1495
      %1497 = vrot.lane.b32.xlu0 %v1474, 112
      %v1498 = vpop.permute.xlu0 %1497
      %v1499 = vsel %vm870, %v1484, %v1486
      %v1500 = vsel %vm870, %v1488, %v1490
      %v1501 = vsel %vm870, %v1492, %v1494
      %v1502 = vsel %vm870, %v1496, %v1498
      %v1511 = vadd.f32 %v1459, %v1499
      %v1512 = vadd.f32 %v1460, %v1486
      %v1513 = vadd.f32 %v1461, %v1500
      %v1514 = vadd.f32 %v1462, %v1490
      %v1515 = vadd.f32 %v1463, %v1501
      %v1516 = vadd.f32 %v1464, %v1494
      %v1517 = vadd.f32 %v1465, %v1502
      %v1518 = vadd.f32 %v1466, %v1498
      %v1519 = vmul.f32 %v676, %v531
      %v1520 = vmul.f32 %v676, %v535
      %v1521 = vmul.f32 %v681, %v531
      %v1522 = vmul.f32 %v681, %v535
      %v1523 = vmul.f32 %v686, %v531
      %v1524 = vmul.f32 %v686, %v535
      %v1525 = vmul.f32 %v691, %v531
      %v1526 = vmul.f32 %v691, %v535
      %1535 = vrot.lane.b32.xlu0 %v1519, 113
      %v1536 = vpop.permute.xlu0 %1535
      %1537 = vrot.lane.b32.xlu0 %v1520, 113
      %v1538 = vpop.permute.xlu0 %1537
      %1539 = vrot.lane.b32.xlu0 %v1521, 113
      %v1540 = vpop.permute.xlu0 %1539
      %1541 = vrot.lane.b32.xlu0 %v1522, 113
      %v1542 = vpop.permute.xlu0 %1541
      %1543 = vrot.lane.b32.xlu0 %v1523, 113
      %v1544 = vpop.permute.xlu0 %1543
      %1545 = vrot.lane.b32.xlu0 %v1524, 113
      %v1546 = vpop.permute.xlu0 %1545
      %1547 = vrot.lane.b32.xlu0 %v1525, 113
      %v1548 = vpop.permute.xlu0 %1547
      %1549 = vrot.lane.b32.xlu0 %v1526, 113
      %v1550 = vpop.permute.xlu0 %1549
      %v1551 = vsel %vm725, %v1536, %v1538
      %v1552 = vsel %vm725, %v1540, %v1542
      %v1553 = vsel %vm725, %v1544, %v1546
      %v1554 = vsel %vm725, %v1548, %v1550
      %v1563 = vadd.f32 %v1511, %v1551
      %v1564 = vadd.f32 %v1512, %v1538
      %v1565 = vadd.f32 %v1513, %v1552
      %v1566 = vadd.f32 %v1514, %v1542
      %v1567 = vadd.f32 %v1515, %v1553
      %v1568 = vadd.f32 %v1516, %v1546
      %v1569 = vadd.f32 %v1517, %v1554
      %v1570 = vadd.f32 %v1518, %v1550
      %v1571 = vmul.f32 %v749, %v578
      %v1572 = vmul.f32 %v749, %v582
      %v1573 = vmul.f32 %v754, %v578
      %v1574 = vmul.f32 %v754, %v582
      %v1575 = vmul.f32 %v759, %v578
      %v1576 = vmul.f32 %v759, %v582
      %v1577 = vmul.f32 %v764, %v578
      %v1578 = vmul.f32 %v764, %v582
      %1587 = vrot.lane.b32.xlu0 %v1571, 113
      %v1588 = vpop.permute.xlu0 %1587
      %1589 = vrot.lane.b32.xlu0 %v1572, 113
      %v1590 = vpop.permute.xlu0 %1589
      %1591 = vrot.lane.b32.xlu0 %v1573, 113
      %v1592 = vpop.permute.xlu0 %1591
      %1593 = vrot.lane.b32.xlu0 %v1574, 113
      %v1594 = vpop.permute.xlu0 %1593
      %1595 = vrot.lane.b32.xlu0 %v1575, 113
      %v1596 = vpop.permute.xlu0 %1595
      %1597 = vrot.lane.b32.xlu0 %v1576, 113
      %v1598 = vpop.permute.xlu0 %1597
      %1599 = vrot.lane.b32.xlu0 %v1577, 113
      %v1600 = vpop.permute.xlu0 %1599
      %1601 = vrot.lane.b32.xlu0 %v1578, 113
      %v1602 = vpop.permute.xlu0 %1601
      %v1603 = vsel %vm725, %v1588, %v1590
      %v1604 = vsel %vm725, %v1592, %v1594
      %v1605 = vsel %vm725, %v1596, %v1598
      %v1606 = vsel %vm725, %v1600, %v1602
      %v1615 = vadd.f32 %v1563, %v1603
      %v1616 = vadd.f32 %v1564, %v1590
      %v1617 = vadd.f32 %v1565, %v1604
      %v1618 = vadd.f32 %v1566, %v1594
      %v1619 = vadd.f32 %v1567, %v1605
      %v1620 = vadd.f32 %v1568, %v1598
      %v1621 = vadd.f32 %v1569, %v1606
      %v1622 = vadd.f32 %v1570, %v1602
      %v1623 = vmul.f32 %v821, %v531
      %v1624 = vmul.f32 %v821, %v535
      %v1625 = vmul.f32 %v826, %v531
      %v1626 = vmul.f32 %v826, %v535
      %v1627 = vmul.f32 %v831, %v531
      %v1628 = vmul.f32 %v831, %v535
      %v1629 = vmul.f32 %v836, %v531
      %v1630 = vmul.f32 %v836, %v535
      %1639 = vrot.lane.b32.xlu0 %v1623, 112
      %v1640 = vpop.permute.xlu0 %1639
      %1641 = vrot.lane.b32.xlu0 %v1624, 112
      %v1642 = vpop.permute.xlu0 %1641
      %1643 = vrot.lane.b32.xlu0 %v1625, 112
      %v1644 = vpop.permute.xlu0 %1643
      %1645 = vrot.lane.b32.xlu0 %v1626, 112
      %v1646 = vpop.permute.xlu0 %1645
      %1647 = vrot.lane.b32.xlu0 %v1627, 112
      %v1648 = vpop.permute.xlu0 %1647
      %1649 = vrot.lane.b32.xlu0 %v1628, 112
      %v1650 = vpop.permute.xlu0 %1649
      %1651 = vrot.lane.b32.xlu0 %v1629, 112
      %v1652 = vpop.permute.xlu0 %1651
      %1653 = vrot.lane.b32.xlu0 %v1630, 112
      %v1654 = vpop.permute.xlu0 %1653
      %v1655 = vsel %vm870, %v1640, %v1642
      %v1656 = vsel %vm870, %v1644, %v1646
      %v1657 = vsel %vm870, %v1648, %v1650
      %v1658 = vsel %vm870, %v1652, %v1654
      %v1667 = vadd.f32 %v1615, %v1655
      %v1668 = vadd.f32 %v1616, %v1642
      %v1669 = vadd.f32 %v1617, %v1656
      %v1670 = vadd.f32 %v1618, %v1646
      %v1671 = vadd.f32 %v1619, %v1657
      %v1672 = vadd.f32 %v1620, %v1650
      %v1673 = vadd.f32 %v1621, %v1658
      %v1674 = vadd.f32 %v1622, %v1654
      %v1675 = vmax.f32 %v1279, %v1667
      %v1676 = vmax.f32 %v1280, %v1668
      %v1677 = vmax.f32 %v1281, %v1669
      %v1678 = vmax.f32 %v1282, %v1670
      %v1679 = vmax.f32 %v1283, %v1671
      %v1680 = vmax.f32 %v1284, %v1672
      %v1681 = vmax.f32 %v1285, %v1673
      %v1682 = vmax.f32 %v1286, %v1674
      %v1683 = vmul.f32 %v351, %v578
      %v1684 = vmul.f32 %v351, %v582
      %v1685 = vmul.f32 %v356, %v578
      %v1686 = vmul.f32 %v356, %v582
      %v1687 = vmul.f32 %v361, %v578
      %v1688 = vmul.f32 %v361, %v582
      %v1689 = vmul.f32 %v366, %v578
      %v1690 = vmul.f32 %v366, %v582
      %v1691 = vmul.f32 %v390, %v531
      %v1692 = vmul.f32 %v390, %v535
      %v1693 = vmul.f32 %v395, %v531
      %v1694 = vmul.f32 %v395, %v535
      %v1695 = vmul.f32 %v400, %v531
      %v1696 = vmul.f32 %v400, %v535
      %v1697 = vmul.f32 %v405, %v531
      %v1698 = vmul.f32 %v405, %v535
      %1707 = vrot.lane.b32.xlu0 %v1691, 127
      %v1708 = vpop.permute.xlu0 %1707
      %1709 = vrot.lane.b32.xlu0 %v1692, 127
      %v1710 = vpop.permute.xlu0 %1709
      %1711 = vrot.lane.b32.xlu0 %v1693, 127
      %v1712 = vpop.permute.xlu0 %1711
      %1713 = vrot.lane.b32.xlu0 %v1694, 127
      %v1714 = vpop.permute.xlu0 %1713
      %1715 = vrot.lane.b32.xlu0 %v1695, 127
      %v1716 = vpop.permute.xlu0 %1715
      %1717 = vrot.lane.b32.xlu0 %v1696, 127
      %v1718 = vpop.permute.xlu0 %1717
      %1719 = vrot.lane.b32.xlu0 %v1697, 127
      %v1720 = vpop.permute.xlu0 %1719
      %1721 = vrot.lane.b32.xlu0 %v1698, 127
      %v1722 = vpop.permute.xlu0 %1721
      %v1723 = vsel %vm486, %v1708, %v1710
      %v1724 = vsel %vm486, %v1712, %v1714
      %v1725 = vsel %vm486, %v1716, %v1718
      %v1726 = vsel %vm486, %v1720, %v1722
      %v1735 = vadd.f32 %v1683, %v1723
      %v1736 = vadd.f32 %v1684, %v1710
      %v1737 = vadd.f32 %v1685, %v1724
      %v1738 = vadd.f32 %v1686, %v1714
      %v1739 = vadd.f32 %v1687, %v1725
      %v1740 = vadd.f32 %v1688, %v1718
      %v1741 = vadd.f32 %v1689, %v1726
      %v1742 = vadd.f32 %v1690, %v1722
      %v1743 = vmul.f32 %v437, %v578
      %v1744 = vmul.f32 %v437, %v582
      %v1745 = vmul.f32 %v442, %v578
      %v1746 = vmul.f32 %v442, %v582
      %v1747 = vmul.f32 %v447, %v578
      %v1748 = vmul.f32 %v447, %v582
      %v1749 = vmul.f32 %v452, %v578
      %v1750 = vmul.f32 %v452, %v582
      %1759 = vrot.lane.b32.xlu0 %v1743, 127
      %v1760 = vpop.permute.xlu0 %1759
      %1761 = vrot.lane.b32.xlu0 %v1744, 127
      %v1762 = vpop.permute.xlu0 %1761
      %1763 = vrot.lane.b32.xlu0 %v1745, 127
      %v1764 = vpop.permute.xlu0 %1763
      %1765 = vrot.lane.b32.xlu0 %v1746, 127
      %v1766 = vpop.permute.xlu0 %1765
      %1767 = vrot.lane.b32.xlu0 %v1747, 127
      %v1768 = vpop.permute.xlu0 %1767
      %1769 = vrot.lane.b32.xlu0 %v1748, 127
      %v1770 = vpop.permute.xlu0 %1769
      %1771 = vrot.lane.b32.xlu0 %v1749, 127
      %v1772 = vpop.permute.xlu0 %1771
      %1773 = vrot.lane.b32.xlu0 %v1750, 127
      %v1774 = vpop.permute.xlu0 %1773
      %v1775 = vsel %vm486, %v1760, %v1762
      %v1776 = vsel %vm486, %v1764, %v1766
      %v1777 = vsel %vm486, %v1768, %v1770
      %v1778 = vsel %vm486, %v1772, %v1774
      %v1787 = vadd.f32 %v1735, %v1775
      %v1788 = vadd.f32 %v1736, %v1762
      %v1789 = vadd.f32 %v1737, %v1776
      %v1790 = vadd.f32 %v1738, %v1766
      %v1791 = vadd.f32 %v1739, %v1777
      %v1792 = vadd.f32 %v1740, %v1770
      %v1793 = vadd.f32 %v1741, %v1778
      %v1794 = vadd.f32 %v1742, %v1774
      %v1795 = vmul.f32 %v510, %v411
      %v1796 = vmul.f32 %v510, %v415
      %v1797 = vmul.f32 %v515, %v411
      %v1798 = vmul.f32 %v515, %v415
      %v1799 = vmul.f32 %v520, %v411
      %v1800 = vmul.f32 %v520, %v415
      %v1801 = vmul.f32 %v525, %v411
      %v1802 = vmul.f32 %v525, %v415
      %1811 = vrot.lane.b32.xlu0 %v1795, 113
      %v1812 = vpop.permute.xlu0 %1811
      %1813 = vrot.lane.b32.xlu0 %v1796, 113
      %v1814 = vpop.permute.xlu0 %1813
      %1815 = vrot.lane.b32.xlu0 %v1797, 113
      %v1816 = vpop.permute.xlu0 %1815
      %1817 = vrot.lane.b32.xlu0 %v1798, 113
      %v1818 = vpop.permute.xlu0 %1817
      %1819 = vrot.lane.b32.xlu0 %v1799, 113
      %v1820 = vpop.permute.xlu0 %1819
      %1821 = vrot.lane.b32.xlu0 %v1800, 113
      %v1822 = vpop.permute.xlu0 %1821
      %1823 = vrot.lane.b32.xlu0 %v1801, 113
      %v1824 = vpop.permute.xlu0 %1823
      %1825 = vrot.lane.b32.xlu0 %v1802, 113
      %v1826 = vpop.permute.xlu0 %1825
      %v1827 = vsel %vm725, %v1812, %v1814
      %v1828 = vsel %vm725, %v1816, %v1818
      %v1829 = vsel %vm725, %v1820, %v1822
      %v1830 = vsel %vm725, %v1824, %v1826
      %v1839 = vadd.f32 %v1787, %v1827
      %v1840 = vadd.f32 %v1788, %v1814
      %v1841 = vadd.f32 %v1789, %v1828
      %v1842 = vadd.f32 %v1790, %v1818
      %v1843 = vadd.f32 %v1791, %v1829
      %v1844 = vadd.f32 %v1792, %v1822
      %v1845 = vadd.f32 %v1793, %v1830
      %v1846 = vadd.f32 %v1794, %v1826
      %v1847 = vmul.f32 %v557, %v372
      %v1848 = vmul.f32 %v557, %v376
      %v1849 = vmul.f32 %v562, %v372
      %v1850 = vmul.f32 %v562, %v376
      %v1851 = vmul.f32 %v567, %v372
      %v1852 = vmul.f32 %v567, %v376
      %v1853 = vmul.f32 %v572, %v372
      %v1854 = vmul.f32 %v572, %v376
      %1863 = vrot.lane.b32.xlu0 %v1847, 112
      %v1864 = vpop.permute.xlu0 %1863
      %1865 = vrot.lane.b32.xlu0 %v1848, 112
      %v1866 = vpop.permute.xlu0 %1865
      %1867 = vrot.lane.b32.xlu0 %v1849, 112
      %v1868 = vpop.permute.xlu0 %1867
      %1869 = vrot.lane.b32.xlu0 %v1850, 112
      %v1870 = vpop.permute.xlu0 %1869
      %1871 = vrot.lane.b32.xlu0 %v1851, 112
      %v1872 = vpop.permute.xlu0 %1871
      %1873 = vrot.lane.b32.xlu0 %v1852, 112
      %v1874 = vpop.permute.xlu0 %1873
      %1875 = vrot.lane.b32.xlu0 %v1853, 112
      %v1876 = vpop.permute.xlu0 %1875
      %1877 = vrot.lane.b32.xlu0 %v1854, 112
      %v1878 = vpop.permute.xlu0 %1877
      %v1879 = vsel %vm870, %v1864, %v1866
      %v1880 = vsel %vm870, %v1868, %v1870
      %v1881 = vsel %vm870, %v1872, %v1874
      %v1882 = vsel %vm870, %v1876, %v1878
      %v1891 = vadd.f32 %v1839, %v1879
      %v1892 = vadd.f32 %v1840, %v1866
      %v1893 = vadd.f32 %v1841, %v1880
      %v1894 = vadd.f32 %v1842, %v1870
      %v1895 = vadd.f32 %v1843, %v1881
      %v1896 = vadd.f32 %v1844, %v1874
      %v1897 = vadd.f32 %v1845, %v1882
      %v1898 = vadd.f32 %v1846, %v1878
      %v1899 = vmul.f32 %v604, %v411
      %v1900 = vmul.f32 %v604, %v415
      %v1901 = vmul.f32 %v609, %v411
      %v1902 = vmul.f32 %v609, %v415
      %v1903 = vmul.f32 %v614, %v411
      %v1904 = vmul.f32 %v614, %v415
      %v1905 = vmul.f32 %v619, %v411
      %v1906 = vmul.f32 %v619, %v415
      %1915 = vrot.lane.b32.xlu0 %v1899, 112
      %v1916 = vpop.permute.xlu0 %1915
      %1917 = vrot.lane.b32.xlu0 %v1900, 112
      %v1918 = vpop.permute.xlu0 %1917
      %1919 = vrot.lane.b32.xlu0 %v1901, 112
      %v1920 = vpop.permute.xlu0 %1919
      %1921 = vrot.lane.b32.xlu0 %v1902, 112
      %v1922 = vpop.permute.xlu0 %1921
      %1923 = vrot.lane.b32.xlu0 %v1903, 112
      %v1924 = vpop.permute.xlu0 %1923
      %1925 = vrot.lane.b32.xlu0 %v1904, 112
      %v1926 = vpop.permute.xlu0 %1925
      %1927 = vrot.lane.b32.xlu0 %v1905, 112
      %v1928 = vpop.permute.xlu0 %1927
      %1929 = vrot.lane.b32.xlu0 %v1906, 112
      %v1930 = vpop.permute.xlu0 %1929
      %v1931 = vsel %vm870, %v1916, %v1918
      %v1932 = vsel %vm870, %v1920, %v1922
      %v1933 = vsel %vm870, %v1924, %v1926
      %v1934 = vsel %vm870, %v1928, %v1930
      %v1943 = vadd.f32 %v1891, %v1931
      %v1944 = vadd.f32 %v1892, %v1918
      %v1945 = vadd.f32 %v1893, %v1932
      %v1946 = vadd.f32 %v1894, %v1922
      %v1947 = vadd.f32 %v1895, %v1933
      %v1948 = vadd.f32 %v1896, %v1926
      %v1949 = vadd.f32 %v1897, %v1934
      %v1950 = vadd.f32 %v1898, %v1930
      %v1951 = vmul.f32 %v676, %v578
      %v1952 = vmul.f32 %v676, %v582
      %v1953 = vmul.f32 %v681, %v578
      %v1954 = vmul.f32 %v681, %v582
      %v1955 = vmul.f32 %v686, %v578
      %v1956 = vmul.f32 %v686, %v582
      %v1957 = vmul.f32 %v691, %v578
      %v1958 = vmul.f32 %v691, %v582
      %1967 = vrot.lane.b32.xlu0 %v1951, 113
      %v1968 = vpop.permute.xlu0 %1967
      %1969 = vrot.lane.b32.xlu0 %v1952, 113
      %v1970 = vpop.permute.xlu0 %1969
      %1971 = vrot.lane.b32.xlu0 %v1953, 113
      %v1972 = vpop.permute.xlu0 %1971
      %1973 = vrot.lane.b32.xlu0 %v1954, 113
      %v1974 = vpop.permute.xlu0 %1973
      %1975 = vrot.lane.b32.xlu0 %v1955, 113
      %v1976 = vpop.permute.xlu0 %1975
      %1977 = vrot.lane.b32.xlu0 %v1956, 113
      %v1978 = vpop.permute.xlu0 %1977
      %1979 = vrot.lane.b32.xlu0 %v1957, 113
      %v1980 = vpop.permute.xlu0 %1979
      %1981 = vrot.lane.b32.xlu0 %v1958, 113
      %v1982 = vpop.permute.xlu0 %1981
      %v1983 = vsel %vm725, %v1968, %v1970
      %v1984 = vsel %vm725, %v1972, %v1974
      %v1985 = vsel %vm725, %v1976, %v1978
      %v1986 = vsel %vm725, %v1980, %v1982
      %v1995 = vadd.f32 %v1943, %v1983
      %v1996 = vadd.f32 %v1944, %v1970
      %v1997 = vadd.f32 %v1945, %v1984
      %v1998 = vadd.f32 %v1946, %v1974
      %v1999 = vadd.f32 %v1947, %v1985
      %v2000 = vadd.f32 %v1948, %v1978
      %v2001 = vadd.f32 %v1949, %v1986
      %v2002 = vadd.f32 %v1950, %v1982
      %v2003 = vmul.f32 %v749, %v531
      %v2004 = vmul.f32 %v749, %v535
      %v2005 = vmul.f32 %v754, %v531
      %v2006 = vmul.f32 %v754, %v535
      %v2007 = vmul.f32 %v759, %v531
      %v2008 = vmul.f32 %v759, %v535
      %v2009 = vmul.f32 %v764, %v531
      %v2010 = vmul.f32 %v764, %v535
      %2019 = vrot.lane.b32.xlu0 %v2003, 112
      %v2020 = vpop.permute.xlu0 %2019
      %2021 = vrot.lane.b32.xlu0 %v2004, 112
      %v2022 = vpop.permute.xlu0 %2021
      %2023 = vrot.lane.b32.xlu0 %v2005, 112
      %v2024 = vpop.permute.xlu0 %2023
      %2025 = vrot.lane.b32.xlu0 %v2006, 112
      %v2026 = vpop.permute.xlu0 %2025
      %2027 = vrot.lane.b32.xlu0 %v2007, 112
      %v2028 = vpop.permute.xlu0 %2027
      %2029 = vrot.lane.b32.xlu0 %v2008, 112
      %v2030 = vpop.permute.xlu0 %2029
      %2031 = vrot.lane.b32.xlu0 %v2009, 112
      %v2032 = vpop.permute.xlu0 %2031
      %2033 = vrot.lane.b32.xlu0 %v2010, 112
      %v2034 = vpop.permute.xlu0 %2033
      %v2035 = vsel %vm870, %v2020, %v2022
      %v2036 = vsel %vm870, %v2024, %v2026
      %v2037 = vsel %vm870, %v2028, %v2030
      %v2038 = vsel %vm870, %v2032, %v2034
      %v2047 = vadd.f32 %v1995, %v2035
      %v2048 = vadd.f32 %v1996, %v2022
      %v2049 = vadd.f32 %v1997, %v2036
      %v2050 = vadd.f32 %v1998, %v2026
      %v2051 = vadd.f32 %v1999, %v2037
      %v2052 = vadd.f32 %v2000, %v2030
      %v2053 = vadd.f32 %v2001, %v2038
      %v2054 = vadd.f32 %v2002, %v2034
      %v2055 = vmul.f32 %v821, %v578
      %v2056 = vmul.f32 %v821, %v582
      %v2057 = vmul.f32 %v826, %v578
      %v2058 = vmul.f32 %v826, %v582
      %v2059 = vmul.f32 %v831, %v578
      %v2060 = vmul.f32 %v831, %v582
      %v2061 = vmul.f32 %v836, %v578
      %v2062 = vmul.f32 %v836, %v582
      %2071 = vrot.lane.b32.xlu0 %v2055, 112
      %v2072 = vpop.permute.xlu0 %2071
      %2073 = vrot.lane.b32.xlu0 %v2056, 112
      %v2074 = vpop.permute.xlu0 %2073
      %2075 = vrot.lane.b32.xlu0 %v2057, 112
      %v2076 = vpop.permute.xlu0 %2075
      %2077 = vrot.lane.b32.xlu0 %v2058, 112
      %v2078 = vpop.permute.xlu0 %2077
      %2079 = vrot.lane.b32.xlu0 %v2059, 112
      %v2080 = vpop.permute.xlu0 %2079
      %2081 = vrot.lane.b32.xlu0 %v2060, 112
      %v2082 = vpop.permute.xlu0 %2081
      %2083 = vrot.lane.b32.xlu0 %v2061, 112
      %v2084 = vpop.permute.xlu0 %2083
      %2085 = vrot.lane.b32.xlu0 %v2062, 112
      %v2086 = vpop.permute.xlu0 %2085
      %v2087 = vsel %vm870, %v2072, %v2074
      %v2088 = vsel %vm870, %v2076, %v2078
      %v2089 = vsel %vm870, %v2080, %v2082
      %v2090 = vsel %vm870, %v2084, %v2086
      %v2099 = vadd.f32 %v2047, %v2087
      %v2100 = vadd.f32 %v2048, %v2074
      %v2101 = vadd.f32 %v2049, %v2088
      %v2102 = vadd.f32 %v2050, %v2078
      %v2103 = vadd.f32 %v2051, %v2089
      %v2104 = vadd.f32 %v2052, %v2082
      %v2105 = vadd.f32 %v2053, %v2090
      %v2106 = vadd.f32 %v2054, %v2086
      %v2107 = vmax.f32 %v1675, %v2099
      %v2108 = vmax.f32 %v1676, %v2100
      %v2109 = vmax.f32 %v1677, %v2101
      %v2110 = vmax.f32 %v1678, %v2102
      %v2111 = vmax.f32 %v1679, %v2103
      %v2112 = vmax.f32 %v1680, %v2104
      %v2113 = vmax.f32 %v1681, %v2105
      %v2114 = vmax.f32 %v1682, %v2106
      %v2115 = vld [vmem:[%s5] sm:$0xff]
      %v2116 = vld [vmem:[%s5 + $0x8] sm:$0xff]
      %v2117 = vld [vmem:[%s5 + $0x10] sm:$0xff]
      %v2118 = vld [vmem:[%s5 + $0x18] sm:$0xff]
      %2120 = vset.pattern.permute.xlu0 0
      %2121 = vperm.xlu0 %2120, %v2115
      %v2122 = vpop.permute.xlu0 %2121
      %2125 = vset.pattern.permute.xlu0 0
      %2126 = vperm.xlu0 %2125, %v2116
      %v2127 = vpop.permute.xlu0 %2126
      %2130 = vset.pattern.permute.xlu0 0
      %2131 = vperm.xlu0 %2130, %v2117
      %v2132 = vpop.permute.xlu0 %2131
      %2135 = vset.pattern.permute.xlu0 0
      %2136 = vperm.xlu0 %2135, %v2118
      %v2137 = vpop.permute.xlu0 %2136
      %v2139 = vadd.f32 %v2107, %v2122
      %v2140 = vadd.f32 %v2108, %v2122
      %v2141 = vadd.f32 %v2109, %v2127
      %v2142 = vadd.f32 %v2110, %v2127
      %v2143 = vadd.f32 %v2111, %v2132
      %v2144 = vadd.f32 %v2112, %v2132
      %v2145 = vadd.f32 %v2113, %v2137
      %v2146 = vadd.f32 %v2114, %v2137
      %v2147 = vmax.f32 %v2139, 0.0
      %v2148 = vmax.f32 %v2140, 0.0
      %v2149 = vmax.f32 %v2141, 0.0
      %v2150 = vmax.f32 %v2142, 0.0
      %v2151 = vmax.f32 %v2143, 0.0
      %v2152 = vmax.f32 %v2144, 0.0
      %v2153 = vmax.f32 %v2145, 0.0
      %v2154 = vmax.f32 %v2146, 0.0
      %2155 = vst [vmem:[%s299] sm:$0xff] 0.0
      %vm2156 = vcmask 793600
      %2157 = vst.msk [vmem:[%s299 + $0x8] sm:$0xff] %vm2156, 0.0
      %2158 = vst [vmem:[%s299 + $0x10] sm:$0xff] 0.0
      %2159 = vst.msk [vmem:[%s299 + $0x18] sm:$0xff] %vm2156, 0.0
      %2160 = vst [vmem:[%s299 + $0x20] sm:$0xff] 0.0
      %2161 = vst.msk [vmem:[%s299 + $0x28] sm:$0xff] %vm2156, 0.0
      %2162 = vst [vmem:[%s299 + $0x30] sm:$0xff] 0.0
      %2163 = vst.msk [vmem:[%s299 + $0x38] sm:$0xff] %vm2156, 0.0
      %2164 = vst [vmem:[%s299] sm:$0xff] %v2147
      %vm2165 = vcmask 662528
      %2166 = vst.msk [vmem:[%s299 + $0x8] sm:$0xff] %vm2165, %v2148
      %2167 = vst [vmem:[%s299 + $0x10] sm:$0xff] %v2149
      %2168 = vst.msk [vmem:[%s299 + $0x18] sm:$0xff] %vm2165, %v2150
      %2169 = vst [vmem:[%s299 + $0x20] sm:$0xff] %v2151
      %2170 = vst.msk [vmem:[%s299 + $0x28] sm:$0xff] %vm2165, %v2152
      %2171 = vst [vmem:[%s299 + $0x30] sm:$0xff] %v2153
      %2172 = vst.msk [vmem:[%s299 + $0x38] sm:$0xff] %vm2165, %v2154
      %p2173 = scmp.lt.s32.totalorder %s17, 1
      %s2174 = scalar_select %p2173, %s17, 1
      %s2175 = smul.addr %s2174, 8
      %s2176 = smul.addr %s2175, 8
      %s2177 = scalar_lea.vmem %s6, %s2176
      // Predicated region
      $region45: #{cnn_forward.3} parent=43 // pred_check
        %p2178 = pneg %p181
      $region46: #{cnn_forward.3} parent=43 // pred_check_branch
        %2180 = sbr.rel (%p2178) target = $region48
      $region47: #{cnn_forward.3} parent=43 // pred_region
        _
      $region48: #{cnn_forward.3} parent=43 // pred_fallthru
        _
    $region44: #{cnn_forward.3} parent=5 // pred_fallthru
      _
    %p2181 = scmp.le.s32.totalorder 2, %s12
    // Predicated region
    $region49: #{cnn_forward.3} parent=5 // pred_check
      %p2182 = pneg %p2181
    $region50: #{cnn_forward.3} parent=5 // pred_check_branch
      %2184 = sbr.rel (%p2182) target = $region52
    $region51: #{cnn_forward.3} parent=5 // pred_region
      %s2185 = ssub.s32 %s12, 2
      // Predicated region
      $region53: #{cnn_forward.3} parent=51 // pred_check
        %p2186 = pneg %p187
      $region54: #{cnn_forward.3} parent=51 // pred_check_branch
        %2188 = sbr.rel (%p2186) target = $region56
      $region55: #{cnn_forward.3} parent=51 // pred_region
        %p2189 = scmp.lt.s32.totalorder %s18, 1
        %s2190 = scalar_select %p2189, %s18, 1
        %s2191 = smul.addr %s2190, 8
        %s2192 = smul.addr %s2191, 8
        %s2193 = scalar_lea.vmem %s6, %s2192
      $region56: #{cnn_forward.3} parent=51 // pred_fallthru
        _
    $region52: #{cnn_forward.3} parent=5 // pred_fallthru
      _
  $region6: #{cnn_forward.3} parent=0 // loop_footer
    %s16 = sadd.s32 1, %s12
  $region7: #{cnn_forward.3} parent=0 // loop_footer_branch
    %11 = sbr.rel target = $region3
  $region8: #{cnn_forward.3} parent=0 // loop_exit
    _

// kernel: cnn_forward.4
$region0: #{cnn_forward.4}
  #allocation0 [shape = 'u32[]', space=smem, size = 0x4, offset = 0x4, fixed_abs, tag = 'smem constant byte address 0x4 - core index']
  #allocation1 [shape = 'u32[144,128]{1,0:T(1,128)}', space=vmem, size = 0x12000, scoped, tag = 'internal scratch']
  %s0 = inlined_call_operand.vmem [shape: f32[2,32,64], index: 0, kind: input, shape index: {}]
  %s1 = inlined_call_operand.vmem [shape: f32[2,32,64], index: 1, kind: input, shape index: {}]
  %s2 = inlined_call_operand.vmem [shape: f32[2,32,64], index: 2, kind: input, shape index: {}]
  %s3 = inlined_call_operand.vmem [shape: f32[2,32,64], index: 3, kind: input, shape index: {}]
  %s4 = inlined_call_operand.vmem [shape: f32[9,64,32], index: 4, kind: input, shape index: {}]
  %s5 = inlined_call_operand.vmem [shape: f32[64,1], index: 5, kind: input, shape index: {}]
  %s6 = inlined_call_operand.vmem [shape: f32[2,64,64], index: 6, kind: output, shape index: {}]
  %s7 = sld [smem:[#allocation0]]
  $region57: #{cnn_forward.4} parent=0
    _
  %s9 = ssub.s32 1, %s7
  %s10 = scalar_select 0, %s9, %s7
  loop: start=0, step=1, limit=4
  $region2: #{cnn_forward.4} parent=0 // loop_pre_header
    _
  $region3: #{cnn_forward.4} parent=0 // loop_header
    %s12 = sphi 0, %s16
    %p13 = scmp.ge.s32.totalorder %s12, 4
    %s22 = sphi 0, %s24
    %s25 = sphi 0, %s22
    %s26 = sphi 0, %s25
    %s42 = sphi 0, %s26
    %s48 = sphi 0, %s50
    %s51 = sphi 0, %s48
    %s52 = sphi 0, %s51
    %s68 = sphi 0, %s52
    %s74 = sphi 0, %s76
    %s77 = sphi 0, %s74
    %s78 = sphi 0, %s77
    %s94 = sphi 0, %s78
    %s100 = sphi 0, %s102
    %s103 = sphi 0, %s100
    %s104 = sphi 0, %s103
    %s120 = sphi 0, %s104
    %s124 = sphi 0, %s124
    %s126 = sphi 0, %s124
    %s127 = sphi 0, %s126
    %s141 = sphi 0, %s127
    %s145 = sphi 0, %s145
    %s147 = sphi 0, %s145
    %s148 = sphi 0, %s147
    %s162 = sphi 0, %s148
    %s168 = sphi 0, %s170
    %s171 = sphi 0, %s168
    %s172 = sphi 0, %s171
    %s188 = sphi 0, %s172
  $region4: #{cnn_forward.4} parent=0 // loop_header_branch
    %15 = sbr.rel (%p13) target = $region8
  $region5: #{cnn_forward.4} parent=0 // loop_body
    %s17 = ssub.s32 %s12, 1
    %s18 = ssub.s32 %s12, 2
    %s19 = sadd.s32 %s12, 1
    %s20 = ssub.s32 %s12, %s19
    %p21 = scmp.eq.s32.totalorder %s20, 0
    %s23 = sadd.s32 %s22, 1
    %s24 = scalar_select %p21, %s22, %s23
    %p27 = pneg %p21
    %p28 = scmp.eq.s32.totalorder %s12, 1
    %p29 = por %p27, %p28
    %p30 = scmp.ne.s32.totalorder %s22, %s25
    %p31 = scmp.eq.s32.totalorder %s12, 0
    %p32 = por %p30, %p31
    %p33 = scmp.ne.s32.totalorder %s22, %s25
    %p34 = scmp.eq.s32.totalorder %s17, 1
    %p35 = por %p33, %p34
    %p36 = scmp.ne.s32.totalorder %s25, %s26
    %p37 = scmp.eq.s32.totalorder %s17, 0
    %p38 = por %p36, %p37
    %p39 = scmp.ne.s32.totalorder %s25, %s26
    %p40 = scmp.eq.s32.totalorder %s18, 1
    %p41 = por %p39, %p40
    %p43 = scmp.ne.s32.totalorder %s26, %s42
    %p44 = scmp.eq.s32.totalorder %s18, 0
    %p45 = por %p43, %p44
    %s46 = ssub.s32 %s12, %s19
    %p47 = scmp.eq.s32.totalorder %s46, 0
    %s49 = sadd.s32 %s48, 1
    %s50 = scalar_select %p47, %s48, %s49
    %p53 = pneg %p47
    %p54 = scmp.eq.s32.totalorder %s12, 1
    %p55 = por %p53, %p54
    %p56 = scmp.ne.s32.totalorder %s48, %s51
    %p57 = scmp.eq.s32.totalorder %s12, 0
    %p58 = por %p56, %p57
    %p59 = scmp.ne.s32.totalorder %s48, %s51
    %p60 = scmp.eq.s32.totalorder %s17, 1
    %p61 = por %p59, %p60
    %p62 = scmp.ne.s32.totalorder %s51, %s52
    %p63 = scmp.eq.s32.totalorder %s17, 0
    %p64 = por %p62, %p63
    %p65 = scmp.ne.s32.totalorder %s51, %s52
    %p66 = scmp.eq.s32.totalorder %s18, 1
    %p67 = por %p65, %p66
    %p69 = scmp.ne.s32.totalorder %s52, %s68
    %p70 = scmp.eq.s32.totalorder %s18, 0
    %p71 = por %p69, %p70
    %s72 = ssub.s32 %s12, %s19
    %p73 = scmp.eq.s32.totalorder %s72, 0
    %s75 = sadd.s32 %s74, 1
    %s76 = scalar_select %p73, %s74, %s75
    %p79 = pneg %p73
    %p80 = scmp.eq.s32.totalorder %s12, 1
    %p81 = por %p79, %p80
    %p82 = scmp.ne.s32.totalorder %s74, %s77
    %p83 = scmp.eq.s32.totalorder %s12, 0
    %p84 = por %p82, %p83
    %p85 = scmp.ne.s32.totalorder %s74, %s77
    %p86 = scmp.eq.s32.totalorder %s17, 1
    %p87 = por %p85, %p86
    %p88 = scmp.ne.s32.totalorder %s77, %s78
    %p89 = scmp.eq.s32.totalorder %s17, 0
    %p90 = por %p88, %p89
    %p91 = scmp.ne.s32.totalorder %s77, %s78
    %p92 = scmp.eq.s32.totalorder %s18, 1
    %p93 = por %p91, %p92
    %p95 = scmp.ne.s32.totalorder %s78, %s94
    %p96 = scmp.eq.s32.totalorder %s18, 0
    %p97 = por %p95, %p96
    %s98 = ssub.s32 %s12, %s19
    %p99 = scmp.eq.s32.totalorder %s98, 0
    %s101 = sadd.s32 %s100, 1
    %s102 = scalar_select %p99, %s100, %s101
    %p105 = pneg %p99
    %p106 = scmp.eq.s32.totalorder %s12, 1
    %p107 = por %p105, %p106
    %p108 = scmp.ne.s32.totalorder %s100, %s103
    %p109 = scmp.eq.s32.totalorder %s12, 0
    %p110 = por %p108, %p109
    %p111 = scmp.ne.s32.totalorder %s100, %s103
    %p112 = scmp.eq.s32.totalorder %s17, 1
    %p113 = por %p111, %p112
    %p114 = scmp.ne.s32.totalorder %s103, %s104
    %p115 = scmp.eq.s32.totalorder %s17, 0
    %p116 = por %p114, %p115
    %p117 = scmp.ne.s32.totalorder %s103, %s104
    %p118 = scmp.eq.s32.totalorder %s18, 1
    %p119 = por %p117, %p118
    %p121 = scmp.ne.s32.totalorder %s104, %s120
    %p122 = scmp.eq.s32.totalorder %s18, 0
    %p123 = por %p121, %p122
    %s125 = sadd.s32 %s124, 1
    %p128 = scmp.eq.s32.totalorder %s12, 1
    %p129 = scmp.ne.s32.totalorder %s124, %s126
    %p130 = scmp.eq.s32.totalorder %s12, 0
    %p131 = por %p129, %p130
    %p132 = scmp.ne.s32.totalorder %s124, %s126
    %p133 = scmp.eq.s32.totalorder %s17, 1
    %p134 = por %p132, %p133
    %p135 = scmp.ne.s32.totalorder %s126, %s127
    %p136 = scmp.eq.s32.totalorder %s17, 0
    %p137 = por %p135, %p136
    %p138 = scmp.ne.s32.totalorder %s126, %s127
    %p139 = scmp.eq.s32.totalorder %s18, 1
    %p140 = por %p138, %p139
    %p142 = scmp.ne.s32.totalorder %s127, %s141
    %p143 = scmp.eq.s32.totalorder %s18, 0
    %p144 = por %p142, %p143
    %s146 = sadd.s32 %s145, 1
    %p149 = scmp.eq.s32.totalorder %s12, 1
    %p150 = scmp.ne.s32.totalorder %s145, %s147
    %p151 = scmp.eq.s32.totalorder %s12, 0
    %p152 = por %p150, %p151
    %p153 = scmp.ne.s32.totalorder %s145, %s147
    %p154 = scmp.eq.s32.totalorder %s17, 1
    %p155 = por %p153, %p154
    %p156 = scmp.ne.s32.totalorder %s147, %s148
    %p157 = scmp.eq.s32.totalorder %s17, 0
    %p158 = por %p156, %p157
    %p159 = scmp.ne.s32.totalorder %s147, %s148
    %p160 = scmp.eq.s32.totalorder %s18, 1
    %p161 = por %p159, %p160
    %p163 = scmp.ne.s32.totalorder %s148, %s162
    %p164 = scmp.eq.s32.totalorder %s18, 0
    %p165 = por %p163, %p164
    %s166 = ssub.s32 %s12, %s19
    %p167 = scmp.eq.s32.totalorder %s166, 0
    %s169 = sadd.s32 %s168, 1
    %s170 = scalar_select %p167, %s168, %s169
    %p173 = pneg %p167
    %p174 = scmp.eq.s32.totalorder %s12, 1
    %p175 = por %p173, %p174
    %p176 = scmp.ne.s32.totalorder %s168, %s171
    %p177 = scmp.eq.s32.totalorder %s12, 0
    %p178 = por %p176, %p177
    %p179 = scmp.ne.s32.totalorder %s168, %s171
    %p180 = scmp.eq.s32.totalorder %s17, 1
    %p181 = por %p179, %p180
    %p182 = scmp.ne.s32.totalorder %s171, %s172
    %p183 = scmp.eq.s32.totalorder %s17, 0
    %p184 = por %p182, %p183
    %p185 = scmp.ne.s32.totalorder %s171, %s172
    %p186 = scmp.eq.s32.totalorder %s18, 1
    %p187 = por %p185, %p186
    %p189 = scmp.ne.s32.totalorder %s172, %s188
    %p190 = scmp.eq.s32.totalorder %s18, 0
    %p191 = por %p189, %p190
    %p192 = scmp.le.s32.totalorder 1, %s12
    %p193 = scmp.lt.s32.totalorder %s12, 3
    %p194 = pnand %p192, %p193
    %p195 = pneg %p194
    // Predicated region
    $region9: #{cnn_forward.4} parent=5 // pred_check
      _
    $region10: #{cnn_forward.4} parent=5 // pred_check_branch
      %197 = sbr.rel (%p194) target = $region12
    $region11: #{cnn_forward.4} parent=5 // pred_region
      %s198 = ssub.s32 %s12, 1
      // Predicated region
      $region13: #{cnn_forward.4} parent=11 // pred_check
        %p199 = pneg %p137
      $region14: #{cnn_forward.4} parent=11 // pred_check_branch
        %201 = sbr.rel (%p199) target = $region16
      $region15: #{cnn_forward.4} parent=11 // pred_region
        _
      $region16: #{cnn_forward.4} parent=11 // pred_fallthru
        _
      // Predicated region
      $region17: #{cnn_forward.4} parent=11 // pred_check
        %p202 = pneg %p158
      $region18: #{cnn_forward.4} parent=11 // pred_check_branch
        %204 = sbr.rel (%p202) target = $region20
      $region19: #{cnn_forward.4} parent=11 // pred_region
        _
      $region20: #{cnn_forward.4} parent=11 // pred_fallthru
        _
    $region12: #{cnn_forward.4} parent=5 // pred_fallthru
      _
    %p205 = scmp.lt.s32.totalorder %s12, 2
    // Predicated region
    $region21: #{cnn_forward.4} parent=5 // pred_check
      %p206 = pneg %p205
    $region22: #{cnn_forward.4} parent=5 // pred_check_branch
      %208 = sbr.rel (%p206) target = $region24
    $region23: #{cnn_forward.4} parent=5 // pred_region
      // Predicated region
      $region25: #{cnn_forward.4} parent=23 // pred_check
        %p209 = pneg %p32
      $region26: #{cnn_forward.4} parent=23 // pred_check_branch
        %211 = sbr.rel (%p209) target = $region28
      $region27: #{cnn_forward.4} parent=23 // pred_region
        %p212 = scmp.lt.s32.totalorder %s12, 1
        %s213 = scalar_select %p212, %s12, 1
        %s214 = smul.addr %s213, 4
        %s215 = smul.addr %s214, 8
        %s216 = scalar_lea.vmem %s0, %s215
      $region28: #{cnn_forward.4} parent=23 // pred_fallthru
        _
      // Predicated region
      $region29: #{cnn_forward.4} parent=23 // pred_check
        %p217 = pneg %p58
      $region30: #{cnn_forward.4} parent=23 // pred_check_branch
        %219 = sbr.rel (%p217) target = $region32
      $region31: #{cnn_forward.4} parent=23 // pred_region
        %p220 = scmp.lt.s32.totalorder %s12, 1
        %s221 = scalar_select %p220, %s12, 1
        %s222 = smul.addr %s221, 4
        %s223 = smul.addr %s222, 8
        %s224 = scalar_lea.vmem %s1, %s223
      $region32: #{cnn_forward.4} parent=23 // pred_fallthru
        _
      // Predicated region
      $region33: #{cnn_forward.4} parent=23 // pred_check
        %p225 = pneg %p84
      $region34: #{cnn_forward.4} parent=23 // pred_check_branch
        %227 = sbr.rel (%p225) target = $region36
      $region35: #{cnn_forward.4} parent=23 // pred_region
        %p228 = scmp.lt.s32.totalorder %s12, 1
        %s229 = scalar_select %p228, %s12, 1
        %s230 = smul.addr %s229, 4
        %s231 = smul.addr %s230, 8
        %s232 = scalar_lea.vmem %s2, %s231
      $region36: #{cnn_forward.4} parent=23 // pred_fallthru
        _
      // Predicated region
      $region37: #{cnn_forward.4} parent=23 // pred_check
        %p233 = pneg %p110
      $region38: #{cnn_forward.4} parent=23 // pred_check_branch
        %235 = sbr.rel (%p233) target = $region40
      $region39: #{cnn_forward.4} parent=23 // pred_region
        %p236 = scmp.lt.s32.totalorder %s12, 1
        %s237 = scalar_select %p236, %s12, 1
        %s238 = smul.addr %s237, 4
        %s239 = smul.addr %s238, 8
        %s240 = scalar_lea.vmem %s3, %s239
      $region40: #{cnn_forward.4} parent=23 // pred_fallthru
        _
    $region24: #{cnn_forward.4} parent=5 // pred_fallthru
      _
    %p241 = scmp.le.s32.totalorder 1, %s12
    %p242 = scmp.lt.s32.totalorder %s12, 3
    %p243 = pnand %p241, %p242
    %p244 = pneg %p243
    // Predicated region
    $region41: #{cnn_forward.4} parent=5 // pred_check
      _
    $region42: #{cnn_forward.4} parent=5 // pred_check_branch
      %246 = sbr.rel (%p243) target = $region44
    $region43: #{cnn_forward.4} parent=5 // pred_region
      %s247 = ssub.s32 %s12, 1
      %p248 = scmp.lt.s32.totalorder %s17, 1
      %s249 = scalar_select %p248, %s17, 1
      %s250 = smul.addr %s249, 4
      %s251 = smul.addr %s250, 8
      %s252 = scalar_lea.vmem %s0, %s251
      %p253 = pneg %p38
      %p254 = pneg %p35
      %p255 = scmp.lt.s32.totalorder %s17, 1
      %s256 = scalar_select %p255, %s17, 1
      %s257 = smul.addr %s256, 4
      %s258 = smul.addr %s257, 8
      %s259 = scalar_lea.vmem %s1, %s258
      %p260 = pneg %p64
      %p261 = pneg %p61
      %p262 = scmp.lt.s32.totalorder %s17, 1
      %s263 = scalar_select %p262, %s17, 1
      %s264 = smul.addr %s263, 4
      %s265 = smul.addr %s264, 8
      %s266 = scalar_lea.vmem %s2, %s265
      %p267 = pneg %p90
      %p268 = pneg %p87
      %p269 = scmp.lt.s32.totalorder %s17, 1
      %s270 = scalar_select %p269, %s17, 1
      %s271 = smul.addr %s270, 4
      %s272 = smul.addr %s271, 8
      %s273 = scalar_lea.vmem %s3, %s272
      %p274 = pneg %p116
      %p275 = pneg %p113
      %p276 = pneg %p137
      %p277 = pneg %p134
      %p278 = pneg %p158
      %p279 = pneg %p155
      %p280 = pneg %p184
      %p281 = pneg %p181
      %p282 = scmp.lt.s32.totalorder %s17, 1
      %s283 = scalar_select %p282, %s17, 1
      %s284 = smul.addr %s283, 8
      %s285 = smul.addr %s284, 8
      %s286 = scalar_lea.vmem %s6, %s285
      %p287 = scmp.lt.s32.totalorder %s17, 1
      %s288 = scalar_select %p287, %s17, 1
      %s289 = smul.addr %s288, 4
      %s290 = smul.addr %s289, 8
      %s291 = scalar_lea.vmem %s0, %s290
      %p292 = scmp.lt.s32.totalorder %s17, 1
      %s293 = scalar_select %p292, %s17, 1
      %s294 = smul.addr %s293, 4
      %s295 = smul.addr %s294, 8
      %s296 = scalar_lea.vmem %s1, %s295
      %p297 = scmp.lt.s32.totalorder %s17, 1
      %s298 = scalar_select %p297, %s17, 1
      %s299 = smul.addr %s298, 4
      %s300 = smul.addr %s299, 8
      %s301 = scalar_lea.vmem %s2, %s300
      %p302 = scmp.lt.s32.totalorder %s17, 1
      %s303 = scalar_select %p302, %s17, 1
      %s304 = smul.addr %s303, 4
      %s305 = smul.addr %s304, 8
      %s306 = scalar_lea.vmem %s3, %s305
      %p307 = scmp.lt.s32.totalorder %s17, 1
      %s308 = scalar_select %p307, %s17, 1
      %s309 = smul.addr %s308, 8
      %s310 = smul.addr %s309, 8
      %s311 = scalar_lea.vmem %s6, %s310
      %v312 = vld [vmem:[%s291] sm:$0xff]
      %v313 = vld [vmem:[%s291 + $0x8] sm:$0xff]
      %v314 = vld [vmem:[%s291 + $0x10] sm:$0xff]
      %v315 = vld [vmem:[%s291 + $0x18] sm:$0xff]
      %v316 = vld [vmem:[%s296] sm:$0xff]
      %v317 = vld [vmem:[%s296 + $0x8] sm:$0xff]
      %v318 = vld [vmem:[%s296 + $0x10] sm:$0xff]
      %v319 = vld [vmem:[%s296 + $0x18] sm:$0xff]
      %v320 = vld [vmem:[%s301] sm:$0xff]
      %v321 = vld [vmem:[%s301 + $0x8] sm:$0xff]
      %v322 = vld [vmem:[%s301 + $0x10] sm:$0xff]
      %v323 = vld [vmem:[%s301 + $0x18] sm:$0xff]
      %v324 = vld [vmem:[%s306] sm:$0xff]
      %v325 = vld [vmem:[%s306 + $0x8] sm:$0xff]
      %v326 = vld [vmem:[%s306 + $0x10] sm:$0xff]
      %v327 = vld [vmem:[%s306 + $0x18] sm:$0xff]
      %v328 = vld [vmem:[%s4] sm:$0xff]
      %v329 = vld [vmem:[%s4 + $0x8] sm:$0xff]
      %v330 = vld [vmem:[%s4 + $0x10] sm:$0xff]
      %v331 = vld [vmem:[%s4 + $0x18] sm:$0xff]
      %v332 = vld [vmem:[%s4 + $0x20] sm:$0xff]
      %v333 = vld [vmem:[%s4 + $0x28] sm:$0xff]
      %v334 = vld [vmem:[%s4 + $0x30] sm:$0xff]
      %v335 = vld [vmem:[%s4 + $0x38] sm:$0xff]
      %s336 = scalar_lea.vmem %s4, 64
      %v337 = vld [vmem:[%s336] sm:$0xff]
      %v338 = vld [vmem:[%s336 + $0x8] sm:$0xff]
      %v339 = vld [vmem:[%s336 + $0x10] sm:$0xff]
      %v340 = vld [vmem:[%s336 + $0x18] sm:$0xff]
      %v341 = vld [vmem:[%s336 + $0x20] sm:$0xff]
      %v342 = vld [vmem:[%s336 + $0x28] sm:$0xff]
      %v343 = vld [vmem:[%s336 + $0x30] sm:$0xff]
      %v344 = vld [vmem:[%s336 + $0x38] sm:$0xff]
      %s345 = scalar_lea.vmem %s4, 128
      %v346 = vld [vmem:[%s345] sm:$0xff]
      %v347 = vld [vmem:[%s345 + $0x8] sm:$0xff]
      %v348 = vld [vmem:[%s345 + $0x10] sm:$0xff]
      %v349 = vld [vmem:[%s345 + $0x18] sm:$0xff]
      %v350 = vld [vmem:[%s345 + $0x20] sm:$0xff]
      %v351 = vld [vmem:[%s345 + $0x28] sm:$0xff]
      %v352 = vld [vmem:[%s345 + $0x30] sm:$0xff]
      %v353 = vld [vmem:[%s345 + $0x38] sm:$0xff]
      %s354 = scalar_lea.vmem %s4, 192
      %v355 = vld [vmem:[%s354] sm:$0xff]
      %v356 = vld [vmem:[%s354 + $0x8] sm:$0xff]
      %v357 = vld [vmem:[%s354 + $0x10] sm:$0xff]
      %v358 = vld [vmem:[%s354 + $0x18] sm:$0xff]
      %v359 = vld [vmem:[%s354 + $0x20] sm:$0xff]
      %v360 = vld [vmem:[%s354 + $0x28] sm:$0xff]
      %v361 = vld [vmem:[%s354 + $0x30] sm:$0xff]
      %v362 = vld [vmem:[%s354 + $0x38] sm:$0xff]
      %s363 = scalar_lea.vmem %s4, 256
      %v364 = vld [vmem:[%s363] sm:$0xff]
      %v365 = vld [vmem:[%s363 + $0x8] sm:$0xff]
      %v366 = vld [vmem:[%s363 + $0x10] sm:$0xff]
      %v367 = vld [vmem:[%s363 + $0x18] sm:$0xff]
      %v368 = vld [vmem:[%s363 + $0x20] sm:$0xff]
      %v369 = vld [vmem:[%s363 + $0x28] sm:$0xff]
      %v370 = vld [vmem:[%s363 + $0x30] sm:$0xff]
      %v371 = vld [vmem:[%s363 + $0x38] sm:$0xff]
      %s372 = scalar_lea.vmem %s4, 320
      %v373 = vld [vmem:[%s372] sm:$0xff]
      %v374 = vld [vmem:[%s372 + $0x8] sm:$0xff]
      %v375 = vld [vmem:[%s372 + $0x10] sm:$0xff]
      %v376 = vld [vmem:[%s372 + $0x18] sm:$0xff]
      %v377 = vld [vmem:[%s372 + $0x20] sm:$0xff]
      %v378 = vld [vmem:[%s372 + $0x28] sm:$0xff]
      %v379 = vld [vmem:[%s372 + $0x30] sm:$0xff]
      %v380 = vld [vmem:[%s372 + $0x38] sm:$0xff]
      %s381 = scalar_lea.vmem %s4, 384
      %v382 = vld [vmem:[%s381] sm:$0xff]
      %v383 = vld [vmem:[%s381 + $0x8] sm:$0xff]
      %v384 = vld [vmem:[%s381 + $0x10] sm:$0xff]
      %v385 = vld [vmem:[%s381 + $0x18] sm:$0xff]
      %v386 = vld [vmem:[%s381 + $0x20] sm:$0xff]
      %v387 = vld [vmem:[%s381 + $0x28] sm:$0xff]
      %v388 = vld [vmem:[%s381 + $0x30] sm:$0xff]
      %v389 = vld [vmem:[%s381 + $0x38] sm:$0xff]
      %s390 = scalar_lea.vmem %s4, 448
      %v391 = vld [vmem:[%s390] sm:$0xff]
      %v392 = vld [vmem:[%s390 + $0x8] sm:$0xff]
      %v393 = vld [vmem:[%s390 + $0x10] sm:$0xff]
      %v394 = vld [vmem:[%s390 + $0x18] sm:$0xff]
      %v395 = vld [vmem:[%s390 + $0x20] sm:$0xff]
      %v396 = vld [vmem:[%s390 + $0x28] sm:$0xff]
      %v397 = vld [vmem:[%s390 + $0x30] sm:$0xff]
      %v398 = vld [vmem:[%s390 + $0x38] sm:$0xff]
      %s399 = scalar_lea.vmem %s4, 512
      %v400 = vld [vmem:[%s399] sm:$0xff]
      %v401 = vld [vmem:[%s399 + $0x8] sm:$0xff]
      %v402 = vld [vmem:[%s399 + $0x10] sm:$0xff]
      %v403 = vld [vmem:[%s399 + $0x18] sm:$0xff]
      %v404 = vld [vmem:[%s399 + $0x20] sm:$0xff]
      %v405 = vld [vmem:[%s399 + $0x28] sm:$0xff]
      %v406 = vld [vmem:[%s399 + $0x30] sm:$0xff]
      %v407 = vld [vmem:[%s399 + $0x38] sm:$0xff]
      %vm408 = vcmask 261120
      %v410 = vsel %vm408, %v337, 0
      %v413 = vsel %vm408, %v338, 0
      %v416 = vsel %vm408, %v339, 0
      %v419 = vsel %vm408, %v340, 0
      %v422 = vsel %vm408, %v341, 0
      %v425 = vsel %vm408, %v342, 0
      %v428 = vsel %vm408, %v343, 0
      %v431 = vsel %vm408, %v344, 0
      %433 = vmatprep.subr.mxu0 0.0
      %434 = vmatpush1.msra.mxu0 %v316
      %435 = vmatprep.subr.mxu0 0.0
      %436 = vmatpush1.msra.mxu0 %v317
      %437 = vmatprep.subr.mxu0 0.0
      %438 = vmatpush1.msra.mxu0 %v318
      %439 = vmatprep.subr.mxu0 0.0
      %440 = vmatpush1.msra.mxu0 %v319
      %441 = vmatprep.subr.mxu0 0.0
      %442 = vmatpush1.msra.mxu0 0.0
      %443 = vmatprep.subr.mxu0 0.0
      %444 = vmatpush1.msra.mxu0 0.0
      %445 = vmatprep.subr.mxu0 0.0
      %446 = vmatpush1.msra.mxu0 0.0
      %447 = vmatprep.subr.mxu0 0.0
      %448 = vmatpush1.msra.mxu0 0.0
      %449 = vmatprep.subr.mxu0 0.0
      %450 = vmatpush1.msra.mxu0 0.0
      %451 = vmatprep.subr.mxu0 0.0
      %452 = vmatpush1.msra.mxu0 0.0
      %453 = vmatprep.subr.mxu0 0.0
      %454 = vmatpush1.msra.mxu0 0.0
      %455 = vmatprep.subr.mxu0 0.0
      %456 = vmatpush1.msra.mxu0 0.0
      %457 = vmatprep.subr.mxu0 0.0
      %458 = vmatpush1.msra.mxu0 0.0
      %459 = vmatprep.subr.mxu0 0.0
      %460 = vmatpush1.msra.mxu0 0.0
      %461 = vmatprep.subr.mxu0 0.0
      %462 = vmatpush1.msra.mxu0 0.0
      %463 = vmatprep.subr.mxu0 0.0
      %464 = vmatpush1.msra.mxu0 0.0
      %465 = vmatprep.subr.mxu0 0.0
      %466 = vmatpush1.msra.mxu0 0.0
      %467 = vmatprep.subr.mxu0 0.0
      %468 = vmatpush1.msra.mxu0 0.0
      %469 = vmatprep.subr.mxu0 0.0
      %470 = vmatpush1.msra.mxu0 0.0
      %471 = vmatprep.subr.mxu0 0.0
      %472 = vmatpush1.msra.mxu0 0.0
      %473 = vmatprep.subr.mxu0 0.0
      %474 = vmatpush1.msra.mxu0 0.0
      %475 = vmatprep.subr.mxu0 0.0
      %476 = vmatpush1.msra.mxu0 0.0
      %477 = vmatprep.subr.mxu0 0.0
      %478 = vmatpush1.msra.mxu0 0.0
      %479 = vmatprep.subr.mxu0 0.0
      %480 = vmatpush1.msra.mxu0 0.0
      %481 = vmatprep.subr.mxu0 0.0
      %482 = vmatpush1.msra.mxu0 0.0
      %483 = vmatprep.subr.mxu0 0.0
      %484 = vmatpush1.msra.mxu0 0.0
      %485 = vmatprep.subr.mxu0 0.0
      %486 = vmatpush1.msra.mxu0 0.0
      %487 = vmatprep.subr.mxu0 0.0
      %488 = vmatpush1.msra.mxu0 0.0
      %489 = vmatprep.subr.mxu0 0.0
      %490 = vmatpush1.msra.mxu0 0.0
      %491 = vmatprep.subr.mxu0 0.0
      %492 = vmatpush1.msra.mxu0 0.0
      %493 = vmatprep.subr.mxu0 0.0
      %494 = vmatpush1.msra.mxu0 0.0
      %495 = vmatprep.subr.mxu0 0.0
      %496 = vmatpush1.msra.mxu0 0.0
      %497 = vmatprep.mubr.f32.mxu0 0.0
      %498 = vmatmul.mubr.f32.gmra.mrb[0].mxu0 %v410
      %v499 = vpop.f32.mrb[0].mxu0
      %v500 = vadd.f32 0.0, %v499
      %v501 = vpop.f32.mrb[0].mxu0
      %502 = vmatprep.mubr.f32.mxu0 0.0
      %503 = vmatmul.mubr.f32.gmra.mrb[0].mxu0 %v413
      %v504 = vpop.f32.mrb[0].mxu0
      %v505 = vadd.f32 0.0, %v504
      %v506 = vpop.f32.mrb[0].mxu0
      %507 = vmatprep.mubr.f32.mxu0 0.0
      %508 = vmatmul.mubr.f32.gmra.mrb[0].mxu0 %v416
      %v509 = vpop.f32.mrb[0].mxu0
      %v510 = vadd.f32 0.0, %v509
      %v511 = vpop.f32.mrb[0].mxu0
      %512 = vmatprep.mubr.f32.mxu0 0.0
      %513 = vmatmul.mubr.f32.gmra.mrb[0].mxu0 %v419
      %v514 = vpop.f32.mrb[0].mxu0
      %v515 = vadd.f32 0.0, %v514
      %v516 = vpop.f32.mrb[0].mxu0
      %517 = vmatprep.mubr.f32.mxu0 0.0
      %518 = vmatmul.mubr.f32.gmra.mrb[0].mxu0 %v422
      %v519 = vpop.f32.mrb[0].mxu0
      %v520 = vadd.f32 0.0, %v519
      %v521 = vpop.f32.mrb[0].mxu0
      %522 = vmatprep.mubr.f32.mxu0 0.0
      %523 = vmatmul.mubr.f32.gmra.mrb[0].mxu0 %v425
      %v524 = vpop.f32.mrb[0].mxu0
      %v525 = vadd.f32 0.0, %v524
      %v526 = vpop.f32.mrb[0].mxu0
      %527 = vmatprep.mubr.f32.mxu0 0.0
      %528 = vmatmul.mubr.f32.gmra.mrb[0].mxu0 %v428
      %v529 = vpop.f32.mrb[0].mxu0
      %v530 = vadd.f32 0.0, %v529
      %v531 = vpop.f32.mrb[0].mxu0
      %532 = vmatprep.mubr.f32.mxu0 0.0
      %533 = vmatmul.mubr.f32.gmra.mrb[0].mxu0 %v431
      %v534 = vpop.f32.mrb[0].mxu0
      %v535 = vadd.f32 0.0, %v534
      %v536 = vpop.f32.mrb[0].mxu0
      %537 = vdwg.mxu0
      %v539 = vsel %vm408, %v328, 0
      %v542 = vsel %vm408, %v329, 0
      %v545 = vsel %vm408, %v330, 0
      %v548 = vsel %vm408, %v331, 0
      %v551 = vsel %vm408, %v332, 0
      %v554 = vsel %vm408, %v333, 0
      %v557 = vsel %vm408, %v334, 0
      %v560 = vsel %vm408, %v335, 0
      %562 = vmatprep.subr.mxu0 0.0
      %563 = vmatpush1.msra.mxu0 %v312
      %564 = vmatprep.subr.mxu0 0.0
      %565 = vmatpush1.msra.mxu0 %v313
      %566 = vmatprep.subr.mxu0 0.0
      %567 = vmatpush1.msra.mxu0 %v314
      %568 = vmatprep.subr.mxu0 0.0
      %569 = vmatpush1.msra.mxu0 %v315
      %570 = vmatprep.subr.mxu0 0.0
      %571 = vmatpush1.msra.mxu0 0.0
      %572 = vmatprep.subr.mxu0 0.0
      %573 = vmatpush1.msra.mxu0 0.0
      %574 = vmatprep.subr.mxu0 0.0
      %575 = vmatpush1.msra.mxu0 0.0
      %576 = vmatprep.subr.mxu0 0.0
      %577 = vmatpush1.msra.mxu0 0.0
      %578 = vmatprep.subr.mxu0 0.0
      %579 = vmatpush1.msra.mxu0 0.0
      %580 = vmatprep.subr.mxu0 0.0
      %581 = vmatpush1.msra.mxu0 0.0
      %582 = vmatprep.subr.mxu0 0.0
      %583 = vmatpush1.msra.mxu0 0.0
      %584 = vmatprep.subr.mxu0 0.0
      %585 = vmatpush1.msra.mxu0 0.0
      %586 = vmatprep.subr.mxu0 0.0
      %587 = vmatpush1.msra.mxu0 0.0
      %588 = vmatprep.subr.mxu0 0.0
      %589 = vmatpush1.msra.mxu0 0.0
      %590 = vmatprep.subr.mxu0 0.0
      %591 = vmatpush1.msra.mxu0 0.0
      %592 = vmatprep.subr.mxu0 0.0
      %593 = vmatpush1.msra.mxu0 0.0
      %594 = vmatprep.subr.mxu0 0.0
      %595 = vmatpush1.msra.mxu0 0.0
      %596 = vmatprep.subr.mxu0 0.0
      %597 = vmatpush1.msra.mxu0 0.0
      %598 = vmatprep.subr.mxu0 0.0
      %599 = vmatpush1.msra.mxu0 0.0
      %600 = vmatprep.subr.mxu0 0.0
      %601 = vmatpush1.msra.mxu0 0.0
      %602 = vmatprep.subr.mxu0 0.0
      %603 = vmatpush1.msra.mxu0 0.0
      %604 = vmatprep.subr.mxu0 0.0
      %605 = vmatpush1.msra.mxu0 0.0
      %606 = vmatprep.subr.mxu0 0.0
      %607 = vmatpush1.msra.mxu0 0.0
      %608 = vmatprep.subr.mxu0 0.0
      %609 = vmatpush1.msra.mxu0 0.0
      %610 = vmatprep.subr.mxu0 0.0
      %611 = vmatpush1.msra.mxu0 0.0
      %612 = vmatprep.subr.mxu0 0.0
      %613 = vmatpush1.msra.mxu0 0.0
      %614 = vmatprep.subr.mxu0 0.0
      %615 = vmatpush1.msra.mxu0 0.0
      %616 = vmatprep.subr.mxu0 0.0
      %617 = vmatpush1.msra.mxu0 0.0
      %618 = vmatprep.subr.mxu0 0.0
      %619 = vmatpush1.msra.mxu0 0.0
      %620 = vmatprep.subr.mxu0 0.0
      %621 = vmatpush1.msra.mxu0 0.0
      %622 = vmatprep.subr.mxu0 0.0
      %623 = vmatpush1.msra.mxu0 0.0
      %624 = vmatprep.subr.mxu0 0.0
      %625 = vmatpush1.msra.mxu0 0.0
      %626 = vmatprep.mubr.f32.mxu0 0.0
      %627 = vmatmul.mubr.f32.gmra.mrb[0].mxu0 %v539
      %v628 = vpop.f32.mrb[0].mxu0
      %v629 = vadd.f32 %v500, %v628
      %v630 = vpop.f32.mrb[0].mxu0
      %631 = vmatprep.mubr.f32.mxu0 0.0
      %632 = vmatmul.mubr.f32.gmra.mrb[0].mxu0 %v542
      %v633 = vpop.f32.mrb[0].mxu0
      %v634 = vadd.f32 %v505, %v633
      %v635 = vpop.f32.mrb[0].mxu0
      %636 = vmatprep.mubr.f32.mxu0 0.0
      %637 = vmatmul.mubr.f32.gmra.mrb[0].mxu0 %v545
      %v638 = vpop.f32.mrb[0].mxu0
      %v639 = vadd.f32 %v510, %v638
      %v640 = vpop.f32.mrb[0].mxu0
      %641 = vmatprep.mubr.f32.mxu0 0.0
      %642 = vmatmul.mubr.f32.gmra.mrb[0].mxu0 %v548
      %v643 = vpop.f32.mrb[0].mxu0
      %v644 = vadd.f32 %v515, %v643
      %v645 = vpop.f32.mrb[0].mxu0
      %646 = vmatprep.mubr.f32.mxu0 0.0
      %647 = vmatmul.mubr.f32.gmra.mrb[0].mxu0 %v551
      %v648 = vpop.f32.mrb[0].mxu0
      %v649 = vadd.f32 %v520, %v648
      %v650 = vpop.f32.mrb[0].mxu0
      %651 = vmatprep.mubr.f32.mxu0 0.0
      %652 = vmatmul.mubr.f32.gmra.mrb[0].mxu0 %v554
      %v653 = vpop.f32.mrb[0].mxu0
      %v654 = vadd.f32 %v525, %v653
      %v655 = vpop.f32.mrb[0].mxu0
      %656 = vmatprep.mubr.f32.mxu0 0.0
      %657 = vmatmul.mubr.f32.gmra.mrb[0].mxu0 %v557
      %v658 = vpop.f32.mrb[0].mxu0
      %v659 = vadd.f32 %v530, %v658
      %v660 = vpop.f32.mrb[0].mxu0
      %661 = vmatprep.mubr.f32.mxu0 0.0
      %662 = vmatmul.mubr.f32.gmra.mrb[0].mxu0 %v560
      %v663 = vpop.f32.mrb[0].mxu0
      %v664 = vadd.f32 %v535, %v663
      %v665 = vpop.f32.mrb[0].mxu0
      %666 = vdwg.mxu0
      %671 = vrot.lane.b32.xlu0 %v312, 127
      %v672 = vpop.permute.xlu0 %671
      %673 = vrot.lane.b32.xlu0 %v313, 127
      %v674 = vpop.permute.xlu0 %673
      %675 = vrot.lane.b32.xlu0 %v314, 127
      %v676 = vpop.permute.xlu0 %675
      %677 = vrot.lane.b32.xlu0 %v315, 127
      %v678 = vpop.permute.xlu0 %677
      %v684 = vsel %vm408, %v346, 0
      %v687 = vsel %vm408, %v347, 0
      %v690 = vsel %vm408, %v348, 0
      %v693 = vsel %vm408, %v349, 0
      %v696 = vsel %vm408, %v350, 0
      %v699 = vsel %vm408, %v351, 0
      %v702 = vsel %vm408, %v352, 0
      %v705 = vsel %vm408, %v353, 0
      %707 = vmatprep.subr.mxu0 0.0
      %708 = vmatpush1.msra.mxu0 %v672
      %709 = vmatprep.subr.mxu0 0.0
      %710 = vmatpush1.msra.mxu0 %v674
      %711 = vmatprep.subr.mxu0 0.0
      %712 = vmatpush1.msra.mxu0 %v676
      %713 = vmatprep.subr.mxu0 0.0
      %714 = vmatpush1.msra.mxu0 %v678
      %715 = vmatprep.subr.mxu0 0.0
      %716 = vmatpush1.msra.mxu0 0.0
      %717 = vmatprep.subr.mxu0 0.0
      %718 = vmatpush1.msra.mxu0 0.0
      %719 = vmatprep.subr.mxu0 0.0
      %720 = vmatpush1.msra.mxu0 0.0
      %721 = vmatprep.subr.mxu0 0.0
      %722 = vmatpush1.msra.mxu0 0.0
      %723 = vmatprep.subr.mxu0 0.0
      %724 = vmatpush1.msra.mxu0 0.0
      %725 = vmatprep.subr.mxu0 0.0
      %726 = vmatpush1.msra.mxu0 0.0
      %727 = vmatprep.subr.mxu0 0.0
      %728 = vmatpush1.msra.mxu0 0.0
      %729 = vmatprep.subr.mxu0 0.0
      %730 = vmatpush1.msra.mxu0 0.0
      %731 = vmatprep.subr.mxu0 0.0
      %732 = vmatpush1.msra.mxu0 0.0
      %733 = vmatprep.subr.mxu0 0.0
      %734 = vmatpush1.msra.mxu0 0.0
      %735 = vmatprep.subr.mxu0 0.0
      %736 = vmatpush1.msra.mxu0 0.0
      %737 = vmatprep.subr.mxu0 0.0
      %738 = vmatpush1.msra.mxu0 0.0
      %739 = vmatprep.subr.mxu0 0.0
      %740 = vmatpush1.msra.mxu0 0.0
      %741 = vmatprep.subr.mxu0 0.0
      %742 = vmatpush1.msra.mxu0 0.0
      %743 = vmatprep.subr.mxu0 0.0
      %744 = vmatpush1.msra.mxu0 0.0
      %745 = vmatprep.subr.mxu0 0.0
      %746 = vmatpush1.msra.mxu0 0.0
      %747 = vmatprep.subr.mxu0 0.0
      %748 = vmatpush1.msra.mxu0 0.0
      %749 = vmatprep.subr.mxu0 0.0
      %750 = vmatpush1.msra.mxu0 0.0
      %751 = vmatprep.subr.mxu0 0.0
      %752 = vmatpush1.msra.mxu0 0.0
      %753 = vmatprep.subr.mxu0 0.0
      %754 = vmatpush1.msra.mxu0 0.0
      %755 = vmatprep.subr.mxu0 0.0
      %756 = vmatpush1.msra.mxu0 0.0
      %757 = vmatprep.subr.mxu0 0.0
      %758 = vmatpush1.msra.mxu0 0.0
      %759 = vmatprep.subr.mxu0 0.0
      %760 = vmatpush1.msra.mxu0 0.0
      %761 = vmatprep.subr.mxu0 0.0
      %762 = vmatpush1.msra.mxu0 0.0
      %763 = vmatprep.subr.mxu0 0.0
      %764 = vmatpush1.msra.mxu0 0.0
      %765 = vmatprep.subr.mxu0 0.0
      %766 = vmatpush1.msra.mxu0 0.0
      %767 = vmatprep.subr.mxu0 0.0
      %768 = vmatpush1.msra.mxu0 0.0
      %769 = vmatprep.subr.mxu0 0.0
      %770 = vmatpush1.msra.mxu0 0.0
      %771 = vmatprep.mubr.f32.mxu0 0.0
      %772 = vmatmul.mubr.f32.gmra.mrb[0].mxu0 %v684
      %v773 = vpop.f32.mrb[0].mxu0
      %v774 = vadd.f32 0.0, %v773
      %v775 = vpop.f32.mrb[0].mxu0
      %776 = vmatprep.mubr.f32.mxu0 0.0
      %777 = vmatmul.mubr.f32.gmra.mrb[0].mxu0 %v687
      %v778 = vpop.f32.mrb[0].mxu0
      %v779 = vadd.f32 0.0, %v778
      %v780 = vpop.f32.mrb[0].mxu0
      %781 = vmatprep.mubr.f32.mxu0 0.0
      %782 = vmatmul.mubr.f32.gmra.mrb[0].mxu0 %v690
      %v783 = vpop.f32.mrb[0].mxu0
      %v784 = vadd.f32 0.0, %v783
      %v785 = vpop.f32.mrb[0].mxu0
      %786 = vmatprep.mubr.f32.mxu0 0.0
      %787 = vmatmul.mubr.f32.gmra.mrb[0].mxu0 %v693
      %v788 = vpop.f32.mrb[0].mxu0
      %v789 = vadd.f32 0.0, %v788
      %v790 = vpop.f32.mrb[0].mxu0
      %791 = vmatprep.mubr.f32.mxu0 0.0
      %792 = vmatmul.mubr.f32.gmra.mrb[0].mxu0 %v696
      %v793 = vpop.f32.mrb[0].mxu0
      %v794 = vadd.f32 0.0, %v793
      %v795 = vpop.f32.mrb[0].mxu0
      %796 = vmatprep.mubr.f32.mxu0 0.0
      %797 = vmatmul.mubr.f32.gmra.mrb[0].mxu0 %v699
      %v798 = vpop.f32.mrb[0].mxu0
      %v799 = vadd.f32 0.0, %v798
      %v800 = vpop.f32.mrb[0].mxu0
      %801 = vmatprep.mubr.f32.mxu0 0.0
      %802 = vmatmul.mubr.f32.gmra.mrb[0].mxu0 %v702
      %v803 = vpop.f32.mrb[0].mxu0
      %v804 = vadd.f32 0.0, %v803
      %v805 = vpop.f32.mrb[0].mxu0
      %806 = vmatprep.mubr.f32.mxu0 0.0
      %807 = vmatmul.mubr.f32.gmra.mrb[0].mxu0 %v705
      %v808 = vpop.f32.mrb[0].mxu0
      %v809 = vadd.f32 0.0, %v808
      %v810 = vpop.f32.mrb[0].mxu0
      %811 = vdwg.mxu0
      %v812 = vadd.f32 %v629, %v774
      %v813 = vadd.f32 %v634, %v779
      %v814 = vadd.f32 %v639, %v784
      %v815 = vadd.f32 %v644, %v789
      %v816 = vadd.f32 %v649, %v794
      %v817 = vadd.f32 %v654, %v799
      %v818 = vadd.f32 %v659, %v804
      %v819 = vadd.f32 %v664, %v809
      %v821 = vsel %vm408, %v355, 0
      %v824 = vsel %vm408, %v356, 0
      %v827 = vsel %vm408, %v357, 0
      %v830 = vsel %vm408, %v358, 0
      %v833 = vsel %vm408, %v359, 0
      %v836 = vsel %vm408, %v360, 0
      %v839 = vsel %vm408, %v361, 0
      %v842 = vsel %vm408, %v362, 0
      %844 = vmatprep.subr.mxu0 0.0
      %845 = vmatpush1.msra.mxu0 %v320
      %846 = vmatprep.subr.mxu0 0.0
      %847 = vmatpush1.msra.mxu0 %v321
      %848 = vmatprep.subr.mxu0 0.0
      %849 = vmatpush1.msra.mxu0 %v322
      %850 = vmatprep.subr.mxu0 0.0
      %851 = vmatpush1.msra.mxu0 %v323
      %852 = vmatprep.subr.mxu0 0.0
      %853 = vmatpush1.msra.mxu0 0.0
      %854 = vmatprep.subr.mxu0 0.0
      %855 = vmatpush1.msra.mxu0 0.0
      %856 = vmatprep.subr.mxu0 0.0
      %857 = vmatpush1.msra.mxu0 0.0
      %858 = vmatprep.subr.mxu0 0.0
      %859 = vmatpush1.msra.mxu0 0.0
      %860 = vmatprep.subr.mxu0 0.0
      %861 = vmatpush1.msra.mxu0 0.0
      %862 = vmatprep.subr.mxu0 0.0
      %863 = vmatpush1.msra.mxu0 0.0
      %864 = vmatprep.subr.mxu0 0.0
      %865 = vmatpush1.msra.mxu0 0.0
      %866 = vmatprep.subr.mxu0 0.0
      %867 = vmatpush1.msra.mxu0 0.0
      %868 = vmatprep.subr.mxu0 0.0
      %869 = vmatpush1.msra.mxu0 0.0
      %870 = vmatprep.subr.mxu0 0.0
      %871 = vmatpush1.msra.mxu0 0.0
      %872 = vmatprep.subr.mxu0 0.0
      %873 = vmatpush1.msra.mxu0 0.0
      %874 = vmatprep.subr.mxu0 0.0
      %875 = vmatpush1.msra.mxu0 0.0
      %876 = vmatprep.subr.mxu0 0.0
      %877 = vmatpush1.msra.mxu0 0.0
      %878 = vmatprep.subr.mxu0 0.0
      %879 = vmatpush1.msra.mxu0 0.0
      %880 = vmatprep.subr.mxu0 0.0
      %881 = vmatpush1.msra.mxu0 0.0
      %882 = vmatprep.subr.mxu0 0.0
      %883 = vmatpush1.msra.mxu0 0.0
      %884 = vmatprep.subr.mxu0 0.0
      %885 = vmatpush1.msra.mxu0 0.0
      %886 = vmatprep.subr.mxu0 0.0
      %887 = vmatpush1.msra.mxu0 0.0
      %888 = vmatprep.subr.mxu0 0.0
      %889 = vmatpush1.msra.mxu0 0.0
      %890 = vmatprep.subr.mxu0 0.0
      %891 = vmatpush1.msra.mxu0 0.0
      %892 = vmatprep.subr.mxu0 0.0
      %893 = vmatpush1.msra.mxu0 0.0
      %894 = vmatprep.subr.mxu0 0.0
      %895 = vmatpush1.msra.mxu0 0.0
      %896 = vmatprep.subr.mxu0 0.0
      %897 = vmatpush1.msra.mxu0 0.0
      %898 = vmatprep.subr.mxu0 0.0
      %899 = vmatpush1.msra.mxu0 0.0
      %900 = vmatprep.subr.mxu0 0.0
      %901 = vmatpush1.msra.mxu0 0.0
      %902 = vmatprep.subr.mxu0 0.0
      %903 = vmatpush1.msra.mxu0 0.0
      %904 = vmatprep.subr.mxu0 0.0
      %905 = vmatpush1.msra.mxu0 0.0
      %906 = vmatprep.subr.mxu0 0.0
      %907 = vmatpush1.msra.mxu0 0.0
      %908 = vmatprep.mubr.f32.mxu0 0.0
      %909 = vmatmul.mubr.f32.gmra.mrb[0].mxu0 %v821
      %v910 = vpop.f32.mrb[0].mxu0
      %v911 = vadd.f32 0.0, %v910
      %v912 = vpop.f32.mrb[0].mxu0
      %913 = vmatprep.mubr.f32.mxu0 0.0
      %914 = vmatmul.mubr.f32.gmra.mrb[0].mxu0 %v824
      %v915 = vpop.f32.mrb[0].mxu0
      %v916 = vadd.f32 0.0, %v915
      %v917 = vpop.f32.mrb[0].mxu0
      %918 = vmatprep.mubr.f32.mxu0 0.0
      %919 = vmatmul.mubr.f32.gmra.mrb[0].mxu0 %v827
      %v920 = vpop.f32.mrb[0].mxu0
      %v921 = vadd.f32 0.0, %v920
      %v922 = vpop.f32.mrb[0].mxu0
      %923 = vmatprep.mubr.f32.mxu0 0.0
      %924 = vmatmul.mubr.f32.gmra.mrb[0].mxu0 %v830
      %v925 = vpop.f32.mrb[0].mxu0
      %v926 = vadd.f32 0.0, %v925
      %v927 = vpop.f32.mrb[0].mxu0
      %928 = vmatprep.mubr.f32.mxu0 0.0
      %929 = vmatmul.mubr.f32.gmra.mrb[0].mxu0 %v833
      %v930 = vpop.f32.mrb[0].mxu0
      %v931 = vadd.f32 0.0, %v930
      %v932 = vpop.f32.mrb[0].mxu0
      %933 = vmatprep.mubr.f32.mxu0 0.0
      %934 = vmatmul.mubr.f32.gmra.mrb[0].mxu0 %v836
      %v935 = vpop.f32.mrb[0].mxu0
      %v936 = vadd.f32 0.0, %v935
      %v937 = vpop.f32.mrb[0].mxu0
      %938 = vmatprep.mubr.f32.mxu0 0.0
      %939 = vmatmul.mubr.f32.gmra.mrb[0].mxu0 %v839
      %v940 = vpop.f32.mrb[0].mxu0
      %v941 = vadd.f32 0.0, %v940
      %v942 = vpop.f32.mrb[0].mxu0
      %943 = vmatprep.mubr.f32.mxu0 0.0
      %944 = vmatmul.mubr.f32.gmra.mrb[0].mxu0 %v842
      %v945 = vpop.f32.mrb[0].mxu0
      %v946 = vadd.f32 0.0, %v945
      %v947 = vpop.f32.mrb[0].mxu0
      %948 = vdwg.mxu0
      %v949 = vadd.f32 %v812, %v911
      %v950 = vadd.f32 %v813, %v916
      %v951 = vadd.f32 %v814, %v921
      %v952 = vadd.f32 %v815, %v926
      %v953 = vadd.f32 %v816, %v931
      %v954 = vadd.f32 %v817, %v936
      %v955 = vadd.f32 %v818, %v941
      %v956 = vadd.f32 %v819, %v946
      %v958 = vsel %vm408, %v364, 0
      %v961 = vsel %vm408, %v365, 0
      %v964 = vsel %vm408, %v366, 0
      %v967 = vsel %vm408, %v367, 0
      %v970 = vsel %vm408, %v368, 0
      %v973 = vsel %vm408, %v369, 0
      %v976 = vsel %vm408, %v370, 0
      %v979 = vsel %vm408, %v371, 0
      %981 = vmatprep.subr.mxu0 0.0
      %982 = vmatpush1.msra.mxu0 %v324
      %983 = vmatprep.subr.mxu0 0.0
      %984 = vmatpush1.msra.mxu0 %v325
      %985 = vmatprep.subr.mxu0 0.0
      %986 = vmatpush1.msra.mxu0 %v326
      %987 = vmatprep.subr.mxu0 0.0
      %988 = vmatpush1.msra.mxu0 %v327
      %989 = vmatprep.subr.mxu0 0.0
      %990 = vmatpush1.msra.mxu0 0.0
      %991 = vmatprep.subr.mxu0 0.0
      %992 = vmatpush1.msra.mxu0 0.0
      %993 = vmatprep.subr.mxu0 0.0
      %994 = vmatpush1.msra.mxu0 0.0
      %995 = vmatprep.subr.mxu0 0.0
      %996 = vmatpush1.msra.mxu0 0.0
      %997 = vmatprep.subr.mxu0 0.0
      %998 = vmatpush1.msra.mxu0 0.0
      %999 = vmatprep.subr.mxu0 0.0
      %1000 = vmatpush1.msra.mxu0 0.0
      %1001 = vmatprep.subr.mxu0 0.0
      %1002 = vmatpush1.msra.mxu0 0.0
      %1003 = vmatprep.subr.mxu0 0.0
      %1004 = vmatpush1.msra.mxu0 0.0
      %1005 = vmatprep.subr.mxu0 0.0
      %1006 = vmatpush1.msra.mxu0 0.0
      %1007 = vmatprep.subr.mxu0 0.0
      %1008 = vmatpush1.msra.mxu0 0.0
      %1009 = vmatprep.subr.mxu0 0.0
      %1010 = vmatpush1.msra.mxu0 0.0
      %1011 = vmatprep.subr.mxu0 0.0
      %1012 = vmatpush1.msra.mxu0 0.0
      %1013 = vmatprep.subr.mxu0 0.0
      %1014 = vmatpush1.msra.mxu0 0.0
      %1015 = vmatprep.subr.mxu0 0.0
      %1016 = vmatpush1.msra.mxu0 0.0
      %1017 = vmatprep.subr.mxu0 0.0
      %1018 = vmatpush1.msra.mxu0 0.0
      %1019 = vmatprep.subr.mxu0 0.0
      %1020 = vmatpush1.msra.mxu0 0.0
      %1021 = vmatprep.subr.mxu0 0.0
      %1022 = vmatpush1.msra.mxu0 0.0
      %1023 = vmatprep.subr.mxu0 0.0
      %1024 = vmatpush1.msra.mxu0 0.0
      %1025 = vmatprep.subr.mxu0 0.0
      %1026 = vmatpush1.msra.mxu0 0.0
      %1027 = vmatprep.subr.mxu0 0.0
      %1028 = vmatpush1.msra.mxu0 0.0
      %1029 = vmatprep.subr.mxu0 0.0
      %1030 = vmatpush1.msra.mxu0 0.0
      %1031 = vmatprep.subr.mxu0 0.0
      %1032 = vmatpush1.msra.mxu0 0.0
      %1033 = vmatprep.subr.mxu0 0.0
      %1034 = vmatpush1.msra.mxu0 0.0
      %1035 = vmatprep.subr.mxu0 0.0
      %1036 = vmatpush1.msra.mxu0 0.0
      %1037 = vmatprep.subr.mxu0 0.0
      %1038 = vmatpush1.msra.mxu0 0.0
      %1039 = vmatprep.subr.mxu0 0.0
      %1040 = vmatpush1.msra.mxu0 0.0
      %1041 = vmatprep.subr.mxu0 0.0
      %1042 = vmatpush1.msra.mxu0 0.0
      %1043 = vmatprep.subr.mxu0 0.0
      %1044 = vmatpush1.msra.mxu0 0.0
      %1045 = vmatprep.mubr.f32.mxu0 0.0
      %1046 = vmatmul.mubr.f32.gmra.mrb[0].mxu0 %v958
      %v1047 = vpop.f32.mrb[0].mxu0
      %v1048 = vadd.f32 0.0, %v1047
      %v1049 = vpop.f32.mrb[0].mxu0
      %1050 = vmatprep.mubr.f32.mxu0 0.0
      %1051 = vmatmul.mubr.f32.gmra.mrb[0].mxu0 %v961
      %v1052 = vpop.f32.mrb[0].mxu0
      %v1053 = vadd.f32 0.0, %v1052
      %v1054 = vpop.f32.mrb[0].mxu0
      %1055 = vmatprep.mubr.f32.mxu0 0.0
      %1056 = vmatmul.mubr.f32.gmra.mrb[0].mxu0 %v964
      %v1057 = vpop.f32.mrb[0].mxu0
      %v1058 = vadd.f32 0.0, %v1057
      %v1059 = vpop.f32.mrb[0].mxu0
      %1060 = vmatprep.mubr.f32.mxu0 0.0
      %1061 = vmatmul.mubr.f32.gmra.mrb[0].mxu0 %v967
      %v1062 = vpop.f32.mrb[0].mxu0
      %v1063 = vadd.f32 0.0, %v1062
      %v1064 = vpop.f32.mrb[0].mxu0
      %1065 = vmatprep.mubr.f32.mxu0 0.0
      %1066 = vmatmul.mubr.f32.gmra.mrb[0].mxu0 %v970
      %v1067 = vpop.f32.mrb[0].mxu0
      %v1068 = vadd.f32 0.0, %v1067
      %v1069 = vpop.f32.mrb[0].mxu0
      %1070 = vmatprep.mubr.f32.mxu0 0.0
      %1071 = vmatmul.mubr.f32.gmra.mrb[0].mxu0 %v973
      %v1072 = vpop.f32.mrb[0].mxu0
      %v1073 = vadd.f32 0.0, %v1072
      %v1074 = vpop.f32.mrb[0].mxu0
      %1075 = vmatprep.mubr.f32.mxu0 0.0
      %1076 = vmatmul.mubr.f32.gmra.mrb[0].mxu0 %v976
      %v1077 = vpop.f32.mrb[0].mxu0
      %v1078 = vadd.f32 0.0, %v1077
      %v1079 = vpop.f32.mrb[0].mxu0
      %1080 = vmatprep.mubr.f32.mxu0 0.0
      %1081 = vmatmul.mubr.f32.gmra.mrb[0].mxu0 %v979
      %v1082 = vpop.f32.mrb[0].mxu0
      %v1083 = vadd.f32 0.0, %v1082
      %v1084 = vpop.f32.mrb[0].mxu0
      %1085 = vdwg.mxu0
      %v1086 = vadd.f32 %v949, %v1048
      %v1087 = vadd.f32 %v950, %v1053
      %v1088 = vadd.f32 %v951, %v1058
      %v1089 = vadd.f32 %v952, %v1063
      %v1090 = vadd.f32 %v953, %v1068
      %v1091 = vadd.f32 %v954, %v1073
      %v1092 = vadd.f32 %v955, %v1078
      %v1093 = vadd.f32 %v956, %v1083
      %1098 = vrot.lane.b32.xlu0 %v320, 127
      %v1099 = vpop.permute.xlu0 %1098
      %1100 = vrot.lane.b32.xlu0 %v321, 127
      %v1101 = vpop.permute.xlu0 %1100
      %1102 = vrot.lane.b32.xlu0 %v322, 127
      %v1103 = vpop.permute.xlu0 %1102
      %1104 = vrot.lane.b32.xlu0 %v323, 127
      %v1105 = vpop.permute.xlu0 %1104
      %v1111 = vsel %vm408, %v373, 0
      %v1114 = vsel %vm408, %v374, 0
      %v1117 = vsel %vm408, %v375, 0
      %v1120 = vsel %vm408, %v376, 0
      %v1123 = vsel %vm408, %v377, 0
      %v1126 = vsel %vm408, %v378, 0
      %v1129 = vsel %vm408, %v379, 0
      %v1132 = vsel %vm408, %v380, 0
      %1134 = vmatprep.subr.mxu0 0.0
      %1135 = vmatpush1.msra.mxu0 %v1099
      %1136 = vmatprep.subr.mxu0 0.0
      %1137 = vmatpush1.msra.mxu0 %v1101
      %1138 = vmatprep.subr.mxu0 0.0
      %1139 = vmatpush1.msra.mxu0 %v1103
      %1140 = vmatprep.subr.mxu0 0.0
      %1141 = vmatpush1.msra.mxu0 %v1105
      %1142 = vmatprep.subr.mxu0 0.0
      %1143 = vmatpush1.msra.mxu0 0.0
      %1144 = vmatprep.subr.mxu0 0.0
      %1145 = vmatpush1.msra.mxu0 0.0
      %1146 = vmatprep.subr.mxu0 0.0
      %1147 = vmatpush1.msra.mxu0 0.0
      %1148 = vmatprep.subr.mxu0 0.0
      %1149 = vmatpush1.msra.mxu0 0.0
      %1150 = vmatprep.subr.mxu0 0.0
      %1151 = vmatpush1.msra.mxu0 0.0
      %1152 = vmatprep.subr.mxu0 0.0
      %1153 = vmatpush1.msra.mxu0 0.0
      %1154 = vmatprep.subr.mxu0 0.0
      %1155 = vmatpush1.msra.mxu0 0.0
      %1156 = vmatprep.subr.mxu0 0.0
      %1157 = vmatpush1.msra.mxu0 0.0
      %1158 = vmatprep.subr.mxu0 0.0
      %1159 = vmatpush1.msra.mxu0 0.0
      %1160 = vmatprep.subr.mxu0 0.0
      %1161 = vmatpush1.msra.mxu0 0.0
      %1162 = vmatprep.subr.mxu0 0.0
      %1163 = vmatpush1.msra.mxu0 0.0
      %1164 = vmatprep.subr.mxu0 0.0
      %1165 = vmatpush1.msra.mxu0 0.0
      %1166 = vmatprep.subr.mxu0 0.0
      %1167 = vmatpush1.msra.mxu0 0.0
      %1168 = vmatprep.subr.mxu0 0.0
      %1169 = vmatpush1.msra.mxu0 0.0
      %1170 = vmatprep.subr.mxu0 0.0
      %1171 = vmatpush1.msra.mxu0 0.0
      %1172 = vmatprep.subr.mxu0 0.0
      %1173 = vmatpush1.msra.mxu0 0.0
      %1174 = vmatprep.subr.mxu0 0.0
      %1175 = vmatpush1.msra.mxu0 0.0
      %1176 = vmatprep.subr.mxu0 0.0
      %1177 = vmatpush1.msra.mxu0 0.0
      %1178 = vmatprep.subr.mxu0 0.0
      %1179 = vmatpush1.msra.mxu0 0.0
      %1180 = vmatprep.subr.mxu0 0.0
      %1181 = vmatpush1.msra.mxu0 0.0
      %1182 = vmatprep.subr.mxu0 0.0
      %1183 = vmatpush1.msra.mxu0 0.0
      %1184 = vmatprep.subr.mxu0 0.0
      %1185 = vmatpush1.msra.mxu0 0.0
      %1186 = vmatprep.subr.mxu0 0.0
      %1187 = vmatpush1.msra.mxu0 0.0
      %1188 = vmatprep.subr.mxu0 0.0
      %1189 = vmatpush1.msra.mxu0 0.0
      %1190 = vmatprep.subr.mxu0 0.0
      %1191 = vmatpush1.msra.mxu0 0.0
      %1192 = vmatprep.subr.mxu0 0.0
      %1193 = vmatpush1.msra.mxu0 0.0
      %1194 = vmatprep.subr.mxu0 0.0
      %1195 = vmatpush1.msra.mxu0 0.0
      %1196 = vmatprep.subr.mxu0 0.0
      %1197 = vmatpush1.msra.mxu0 0.0
      %1198 = vmatprep.mubr.f32.mxu0 0.0
      %1199 = vmatmul.mubr.f32.gmra.mrb[0].mxu0 %v1111
      %v1200 = vpop.f32.mrb[0].mxu0
      %v1201 = vadd.f32 0.0, %v1200
      %v1202 = vpop.f32.mrb[0].mxu0
      %1203 = vmatprep.mubr.f32.mxu0 0.0
      %1204 = vmatmul.mubr.f32.gmra.mrb[0].mxu0 %v1114
      %v1205 = vpop.f32.mrb[0].mxu0
      %v1206 = vadd.f32 0.0, %v1205
      %v1207 = vpop.f32.mrb[0].mxu0
      %1208 = vmatprep.mubr.f32.mxu0 0.0
      %1209 = vmatmul.mubr.f32.gmra.mrb[0].mxu0 %v1117
      %v1210 = vpop.f32.mrb[0].mxu0
      %v1211 = vadd.f32 0.0, %v1210
      %v1212 = vpop.f32.mrb[0].mxu0
      %1213 = vmatprep.mubr.f32.mxu0 0.0
      %1214 = vmatmul.mubr.f32.gmra.mrb[0].mxu0 %v1120
      %v1215 = vpop.f32.mrb[0].mxu0
      %v1216 = vadd.f32 0.0, %v1215
      %v1217 = vpop.f32.mrb[0].mxu0
      %1218 = vmatprep.mubr.f32.mxu0 0.0
      %1219 = vmatmul.mubr.f32.gmra.mrb[0].mxu0 %v1123
      %v1220 = vpop.f32.mrb[0].mxu0
      %v1221 = vadd.f32 0.0, %v1220
      %v1222 = vpop.f32.mrb[0].mxu0
      %1223 = vmatprep.mubr.f32.mxu0 0.0
      %1224 = vmatmul.mubr.f32.gmra.mrb[0].mxu0 %v1126
      %v1225 = vpop.f32.mrb[0].mxu0
      %v1226 = vadd.f32 0.0, %v1225
      %v1227 = vpop.f32.mrb[0].mxu0
      %1228 = vmatprep.mubr.f32.mxu0 0.0
      %1229 = vmatmul.mubr.f32.gmra.mrb[0].mxu0 %v1129
      %v1230 = vpop.f32.mrb[0].mxu0
      %v1231 = vadd.f32 0.0, %v1230
      %v1232 = vpop.f32.mrb[0].mxu0
      %1233 = vmatprep.mubr.f32.mxu0 0.0
      %1234 = vmatmul.mubr.f32.gmra.mrb[0].mxu0 %v1132
      %v1235 = vpop.f32.mrb[0].mxu0
      %v1236 = vadd.f32 0.0, %v1235
      %v1237 = vpop.f32.mrb[0].mxu0
      %1238 = vdwg.mxu0
      %v1239 = vadd.f32 %v1086, %v1201
      %v1240 = vadd.f32 %v1087, %v1206
      %v1241 = vadd.f32 %v1088, %v1211
      %v1242 = vadd.f32 %v1089, %v1216
      %v1243 = vadd.f32 %v1090, %v1221
      %v1244 = vadd.f32 %v1091, %v1226
      %v1245 = vadd.f32 %v1092, %v1231
      %v1246 = vadd.f32 %v1093, %v1236
      %1247 = vrot.lane.b32.xlu0 %v312, 120
      %v1248 = vpop.permute.xlu0 %1247
      %1249 = vrot.lane.b32.xlu0 %v313, 120
      %v1250 = vpop.permute.xlu0 %1249
      %1251 = vrot.lane.b32.xlu0 %v314, 120
      %v1252 = vpop.permute.xlu0 %1251
      %1253 = vrot.lane.b32.xlu0 %v315, 120
      %v1254 = vpop.permute.xlu0 %1253
      %v1260 = vsel %vm408, %v382, 0
      %v1263 = vsel %vm408, %v383, 0
      %v1266 = vsel %vm408, %v384, 0
      %v1269 = vsel %vm408, %v385, 0
      %v1272 = vsel %vm408, %v386, 0
      %v1275 = vsel %vm408, %v387, 0
      %v1278 = vsel %vm408, %v388, 0
      %v1281 = vsel %vm408, %v389, 0
      %1283 = vmatprep.subr.mxu0 0.0
      %1284 = vmatpush1.msra.mxu0 %v1248
      %1285 = vmatprep.subr.mxu0 0.0
      %1286 = vmatpush1.msra.mxu0 %v1250
      %1287 = vmatprep.subr.mxu0 0.0
      %1288 = vmatpush1.msra.mxu0 %v1252
      %1289 = vmatprep.subr.mxu0 0.0
      %1290 = vmatpush1.msra.mxu0 %v1254
      %1291 = vmatprep.subr.mxu0 0.0
      %1292 = vmatpush1.msra.mxu0 0.0
      %1293 = vmatprep.subr.mxu0 0.0
      %1294 = vmatpush1.msra.mxu0 0.0
      %1295 = vmatprep.subr.mxu0 0.0
      %1296 = vmatpush1.msra.mxu0 0.0
      %1297 = vmatprep.subr.mxu0 0.0
      %1298 = vmatpush1.msra.mxu0 0.0
      %1299 = vmatprep.subr.mxu0 0.0
      %1300 = vmatpush1.msra.mxu0 0.0
      %1301 = vmatprep.subr.mxu0 0.0
      %1302 = vmatpush1.msra.mxu0 0.0
      %1303 = vmatprep.subr.mxu0 0.0
      %1304 = vmatpush1.msra.mxu0 0.0
      %1305 = vmatprep.subr.mxu0 0.0
      %1306 = vmatpush1.msra.mxu0 0.0
      %1307 = vmatprep.subr.mxu0 0.0
      %1308 = vmatpush1.msra.mxu0 0.0
      %1309 = vmatprep.subr.mxu0 0.0
      %1310 = vmatpush1.msra.mxu0 0.0
      %1311 = vmatprep.subr.mxu0 0.0
      %1312 = vmatpush1.msra.mxu0 0.0
      %1313 = vmatprep.subr.mxu0 0.0
      %1314 = vmatpush1.msra.mxu0 0.0
      %1315 = vmatprep.subr.mxu0 0.0
      %1316 = vmatpush1.msra.mxu0 0.0
      %1317 = vmatprep.subr.mxu0 0.0
      %1318 = vmatpush1.msra.mxu0 0.0
      %1319 = vmatprep.subr.mxu0 0.0
      %1320 = vmatpush1.msra.mxu0 0.0
      %1321 = vmatprep.subr.mxu0 0.0
      %1322 = vmatpush1.msra.mxu0 0.0
      %1323 = vmatprep.subr.mxu0 0.0
      %1324 = vmatpush1.msra.mxu0 0.0
      %1325 = vmatprep.subr.mxu0 0.0
      %1326 = vmatpush1.msra.mxu0 0.0
      %1327 = vmatprep.subr.mxu0 0.0
      %1328 = vmatpush1.msra.mxu0 0.0
      %1329 = vmatprep.subr.mxu0 0.0
      %1330 = vmatpush1.msra.mxu0 0.0
      %1331 = vmatprep.subr.mxu0 0.0
      %1332 = vmatpush1.msra.mxu0 0.0
      %1333 = vmatprep.subr.mxu0 0.0
      %1334 = vmatpush1.msra.mxu0 0.0
      %1335 = vmatprep.subr.mxu0 0.0
      %1336 = vmatpush1.msra.mxu0 0.0
      %1337 = vmatprep.subr.mxu0 0.0
      %1338 = vmatpush1.msra.mxu0 0.0
      %1339 = vmatprep.subr.mxu0 0.0
      %1340 = vmatpush1.msra.mxu0 0.0
      %1341 = vmatprep.subr.mxu0 0.0
      %1342 = vmatpush1.msra.mxu0 0.0
      %1343 = vmatprep.subr.mxu0 0.0
      %1344 = vmatpush1.msra.mxu0 0.0
      %1345 = vmatprep.subr.mxu0 0.0
      %1346 = vmatpush1.msra.mxu0 0.0
      %1347 = vmatprep.mubr.f32.mxu0 0.0
      %1348 = vmatmul.mubr.f32.gmra.mrb[0].mxu0 %v1260
      %v1349 = vpop.f32.mrb[0].mxu0
      %v1350 = vadd.f32 0.0, %v1349
      %v1351 = vpop.f32.mrb[0].mxu0
      %1352 = vmatprep.mubr.f32.mxu0 0.0
      %1353 = vmatmul.mubr.f32.gmra.mrb[0].mxu0 %v1263
      %v1354 = vpop.f32.mrb[0].mxu0
      %v1355 = vadd.f32 0.0, %v1354
      %v1356 = vpop.f32.mrb[0].mxu0
      %1357 = vmatprep.mubr.f32.mxu0 0.0
      %1358 = vmatmul.mubr.f32.gmra.mrb[0].mxu0 %v1266
      %v1359 = vpop.f32.mrb[0].mxu0
      %v1360 = vadd.f32 0.0, %v1359
      %v1361 = vpop.f32.mrb[0].mxu0
      %1362 = vmatprep.mubr.f32.mxu0 0.0
      %1363 = vmatmul.mubr.f32.gmra.mrb[0].mxu0 %v1269
      %v1364 = vpop.f32.mrb[0].mxu0
      %v1365 = vadd.f32 0.0, %v1364
      %v1366 = vpop.f32.mrb[0].mxu0
      %1367 = vmatprep.mubr.f32.mxu0 0.0
      %1368 = vmatmul.mubr.f32.gmra.mrb[0].mxu0 %v1272
      %v1369 = vpop.f32.mrb[0].mxu0
      %v1370 = vadd.f32 0.0, %v1369
      %v1371 = vpop.f32.mrb[0].mxu0
      %1372 = vmatprep.mubr.f32.mxu0 0.0
      %1373 = vmatmul.mubr.f32.gmra.mrb[0].mxu0 %v1275
      %v1374 = vpop.f32.mrb[0].mxu0
      %v1375 = vadd.f32 0.0, %v1374
      %v1376 = vpop.f32.mrb[0].mxu0
      %1377 = vmatprep.mubr.f32.mxu0 0.0
      %1378 = vmatmul.mubr.f32.gmra.mrb[0].mxu0 %v1278
      %v1379 = vpop.f32.mrb[0].mxu0
      %v1380 = vadd.f32 0.0, %v1379
      %v1381 = vpop.f32.mrb[0].mxu0
      %1382 = vmatprep.mubr.f32.mxu0 0.0
      %1383 = vmatmul.mubr.f32.gmra.mrb[0].mxu0 %v1281
      %v1384 = vpop.f32.mrb[0].mxu0
      %v1385 = vadd.f32 0.0, %v1384
      %v1386 = vpop.f32.mrb[0].mxu0
      %1387 = vdwg.mxu0
      %v1388 = vadd.f32 %v1239, %v1350
      %v1389 = vadd.f32 %v1240, %v1355
      %v1390 = vadd.f32 %v1241, %v1360
      %v1391 = vadd.f32 %v1242, %v1365
      %v1392 = vadd.f32 %v1243, %v1370
      %v1393 = vadd.f32 %v1244, %v1375
      %v1394 = vadd.f32 %v1245, %v1380
      %v1395 = vadd.f32 %v1246, %v1385
      %1400 = vrot.lane.b32.xlu0 %v316, 120
      %v1401 = vpop.permute.xlu0 %1400
      %1402 = vrot.lane.b32.xlu0 %v317, 120
      %v1403 = vpop.permute.xlu0 %1402
      %1404 = vrot.lane.b32.xlu0 %v318, 120
      %v1405 = vpop.permute.xlu0 %1404
      %1406 = vrot.lane.b32.xlu0 %v319, 120
      %v1407 = vpop.permute.xlu0 %1406
      %v1413 = vsel %vm408, %v391, 0
      %v1416 = vsel %vm408, %v392, 0
      %v1419 = vsel %vm408, %v393, 0
      %v1422 = vsel %vm408, %v394, 0
      %v1425 = vsel %vm408, %v395, 0
      %v1428 = vsel %vm408, %v396, 0
      %v1431 = vsel %vm408, %v397, 0
      %v1434 = vsel %vm408, %v398, 0
      %1436 = vmatprep.subr.mxu0 0.0
      %1437 = vmatpush1.msra.mxu0 %v1401
      %1438 = vmatprep.subr.mxu0 0.0
      %1439 = vmatpush1.msra.mxu0 %v1403
      %1440 = vmatprep.subr.mxu0 0.0
      %1441 = vmatpush1.msra.mxu0 %v1405
      %1442 = vmatprep.subr.mxu0 0.0
      %1443 = vmatpush1.msra.mxu0 %v1407
      %1444 = vmatprep.subr.mxu0 0.0
      %1445 = vmatpush1.msra.mxu0 0.0
      %1446 = vmatprep.subr.mxu0 0.0
      %1447 = vmatpush1.msra.mxu0 0.0
      %1448 = vmatprep.subr.mxu0 0.0
      %1449 = vmatpush1.msra.mxu0 0.0
      %1450 = vmatprep.subr.mxu0 0.0
      %1451 = vmatpush1.msra.mxu0 0.0
      %1452 = vmatprep.subr.mxu0 0.0
      %1453 = vmatpush1.msra.mxu0 0.0
      %1454 = vmatprep.subr.mxu0 0.0
      %1455 = vmatpush1.msra.mxu0 0.0
      %1456 = vmatprep.subr.mxu0 0.0
      %1457 = vmatpush1.msra.mxu0 0.0
      %1458 = vmatprep.subr.mxu0 0.0
      %1459 = vmatpush1.msra.mxu0 0.0
      %1460 = vmatprep.subr.mxu0 0.0
      %1461 = vmatpush1.msra.mxu0 0.0
      %1462 = vmatprep.subr.mxu0 0.0
      %1463 = vmatpush1.msra.mxu0 0.0
      %1464 = vmatprep.subr.mxu0 0.0
      %1465 = vmatpush1.msra.mxu0 0.0
      %1466 = vmatprep.subr.mxu0 0.0
      %1467 = vmatpush1.msra.mxu0 0.0
      %1468 = vmatprep.subr.mxu0 0.0
      %1469 = vmatpush1.msra.mxu0 0.0
      %1470 = vmatprep.subr.mxu0 0.0
      %1471 = vmatpush1.msra.mxu0 0.0
      %1472 = vmatprep.subr.mxu0 0.0
      %1473 = vmatpush1.msra.mxu0 0.0
      %1474 = vmatprep.subr.mxu0 0.0
      %1475 = vmatpush1.msra.mxu0 0.0
      %1476 = vmatprep.subr.mxu0 0.0
      %1477 = vmatpush1.msra.mxu0 0.0
      %1478 = vmatprep.subr.mxu0 0.0
      %1479 = vmatpush1.msra.mxu0 0.0
      %1480 = vmatprep.subr.mxu0 0.0
      %1481 = vmatpush1.msra.mxu0 0.0
      %1482 = vmatprep.subr.mxu0 0.0
      %1483 = vmatpush1.msra.mxu0 0.0
      %1484 = vmatprep.subr.mxu0 0.0
      %1485 = vmatpush1.msra.mxu0 0.0
      %1486 = vmatprep.subr.mxu0 0.0
      %1487 = vmatpush1.msra.mxu0 0.0
      %1488 = vmatprep.subr.mxu0 0.0
      %1489 = vmatpush1.msra.mxu0 0.0
      %1490 = vmatprep.subr.mxu0 0.0
      %1491 = vmatpush1.msra.mxu0 0.0
      %1492 = vmatprep.subr.mxu0 0.0
      %1493 = vmatpush1.msra.mxu0 0.0
      %1494 = vmatprep.subr.mxu0 0.0
      %1495 = vmatpush1.msra.mxu0 0.0
      %1496 = vmatprep.subr.mxu0 0.0
      %1497 = vmatpush1.msra.mxu0 0.0
      %1498 = vmatprep.subr.mxu0 0.0
      %1499 = vmatpush1.msra.mxu0 0.0
      %1500 = vmatprep.mubr.f32.mxu0 0.0
      %1501 = vmatmul.mubr.f32.gmra.mrb[0].mxu0 %v1413
      %v1502 = vpop.f32.mrb[0].mxu0
      %v1503 = vadd.f32 0.0, %v1502
      %v1504 = vpop.f32.mrb[0].mxu0
      %1505 = vmatprep.mubr.f32.mxu0 0.0
      %1506 = vmatmul.mubr.f32.gmra.mrb[0].mxu0 %v1416
      %v1507 = vpop.f32.mrb[0].mxu0
      %v1508 = vadd.f32 0.0, %v1507
      %v1509 = vpop.f32.mrb[0].mxu0
      %1510 = vmatprep.mubr.f32.mxu0 0.0
      %1511 = vmatmul.mubr.f32.gmra.mrb[0].mxu0 %v1419
      %v1512 = vpop.f32.mrb[0].mxu0
      %v1513 = vadd.f32 0.0, %v1512
      %v1514 = vpop.f32.mrb[0].mxu0
      %1515 = vmatprep.mubr.f32.mxu0 0.0
      %1516 = vmatmul.mubr.f32.gmra.mrb[0].mxu0 %v1422
      %v1517 = vpop.f32.mrb[0].mxu0
      %v1518 = vadd.f32 0.0, %v1517
      %v1519 = vpop.f32.mrb[0].mxu0
      %1520 = vmatprep.mubr.f32.mxu0 0.0
      %1521 = vmatmul.mubr.f32.gmra.mrb[0].mxu0 %v1425
      %v1522 = vpop.f32.mrb[0].mxu0
      %v1523 = vadd.f32 0.0, %v1522
      %v1524 = vpop.f32.mrb[0].mxu0
      %1525 = vmatprep.mubr.f32.mxu0 0.0
      %1526 = vmatmul.mubr.f32.gmra.mrb[0].mxu0 %v1428
      %v1527 = vpop.f32.mrb[0].mxu0
      %v1528 = vadd.f32 0.0, %v1527
      %v1529 = vpop.f32.mrb[0].mxu0
      %1530 = vmatprep.mubr.f32.mxu0 0.0
      %1531 = vmatmul.mubr.f32.gmra.mrb[0].mxu0 %v1431
      %v1532 = vpop.f32.mrb[0].mxu0
      %v1533 = vadd.f32 0.0, %v1532
      %v1534 = vpop.f32.mrb[0].mxu0
      %1535 = vmatprep.mubr.f32.mxu0 0.0
      %1536 = vmatmul.mubr.f32.gmra.mrb[0].mxu0 %v1434
      %v1537 = vpop.f32.mrb[0].mxu0
      %v1538 = vadd.f32 0.0, %v1537
      %v1539 = vpop.f32.mrb[0].mxu0
      %1540 = vdwg.mxu0
      %v1541 = vadd.f32 %v1388, %v1503
      %v1542 = vadd.f32 %v1389, %v1508
      %v1543 = vadd.f32 %v1390, %v1513
      %v1544 = vadd.f32 %v1391, %v1518
      %v1545 = vadd.f32 %v1392, %v1523
      %v1546 = vadd.f32 %v1393, %v1528
      %v1547 = vadd.f32 %v1394, %v1533
      %v1548 = vadd.f32 %v1395, %v1538
      %1549 = vrot.lane.b32.xlu0 %v312, 119
      %v1550 = vpop.permute.xlu0 %1549
      %1551 = vrot.lane.b32.xlu0 %v313, 119
      %v1552 = vpop.permute.xlu0 %1551
      %1553 = vrot.lane.b32.xlu0 %v314, 119
      %v1554 = vpop.permute.xlu0 %1553
      %1555 = vrot.lane.b32.xlu0 %v315, 119
      %v1556 = vpop.permute.xlu0 %1555
      %v1562 = vsel %vm408, %v400, 0
      %v1565 = vsel %vm408, %v401, 0
      %v1568 = vsel %vm408, %v402, 0
      %v1571 = vsel %vm408, %v403, 0
      %v1574 = vsel %vm408, %v404, 0
      %v1577 = vsel %vm408, %v405, 0
      %v1580 = vsel %vm408, %v406, 0
      %v1583 = vsel %vm408, %v407, 0
      %1585 = vmatprep.subr.mxu0 0.0
      %1586 = vmatpush1.msra.mxu0 %v1550
      %1587 = vmatprep.subr.mxu0 0.0
      %1588 = vmatpush1.msra.mxu0 %v1552
      %1589 = vmatprep.subr.mxu0 0.0
      %1590 = vmatpush1.msra.mxu0 %v1554
      %1591 = vmatprep.subr.mxu0 0.0
      %1592 = vmatpush1.msra.mxu0 %v1556
      %1593 = vmatprep.subr.mxu0 0.0
      %1594 = vmatpush1.msra.mxu0 0.0
      %1595 = vmatprep.subr.mxu0 0.0
      %1596 = vmatpush1.msra.mxu0 0.0
      %1597 = vmatprep.subr.mxu0 0.0
      %1598 = vmatpush1.msra.mxu0 0.0
      %1599 = vmatprep.subr.mxu0 0.0
      %1600 = vmatpush1.msra.mxu0 0.0
      %1601 = vmatprep.subr.mxu0 0.0
      %1602 = vmatpush1.msra.mxu0 0.0
      %1603 = vmatprep.subr.mxu0 0.0
      %1604 = vmatpush1.msra.mxu0 0.0
      %1605 = vmatprep.subr.mxu0 0.0
      %1606 = vmatpush1.msra.mxu0 0.0
      %1607 = vmatprep.subr.mxu0 0.0
      %1608 = vmatpush1.msra.mxu0 0.0
      %1609 = vmatprep.subr.mxu0 0.0
      %1610 = vmatpush1.msra.mxu0 0.0
      %1611 = vmatprep.subr.mxu0 0.0
      %1612 = vmatpush1.msra.mxu0 0.0
      %1613 = vmatprep.subr.mxu0 0.0
      %1614 = vmatpush1.msra.mxu0 0.0
      %1615 = vmatprep.subr.mxu0 0.0
      %1616 = vmatpush1.msra.mxu0 0.0
      %1617 = vmatprep.subr.mxu0 0.0
      %1618 = vmatpush1.msra.mxu0 0.0
      %1619 = vmatprep.subr.mxu0 0.0
      %1620 = vmatpush1.msra.mxu0 0.0
      %1621 = vmatprep.subr.mxu0 0.0
      %1622 = vmatpush1.msra.mxu0 0.0
      %1623 = vmatprep.subr.mxu0 0.0
      %1624 = vmatpush1.msra.mxu0 0.0
      %1625 = vmatprep.subr.mxu0 0.0
      %1626 = vmatpush1.msra.mxu0 0.0
      %1627 = vmatprep.subr.mxu0 0.0
      %1628 = vmatpush1.msra.mxu0 0.0
      %1629 = vmatprep.subr.mxu0 0.0
      %1630 = vmatpush1.msra.mxu0 0.0
      %1631 = vmatprep.subr.mxu0 0.0
      %1632 = vmatpush1.msra.mxu0 0.0
      %1633 = vmatprep.subr.mxu0 0.0
      %1634 = vmatpush1.msra.mxu0 0.0
      %1635 = vmatprep.subr.mxu0 0.0
      %1636 = vmatpush1.msra.mxu0 0.0
      %1637 = vmatprep.subr.mxu0 0.0
      %1638 = vmatpush1.msra.mxu0 0.0
      %1639 = vmatprep.subr.mxu0 0.0
      %1640 = vmatpush1.msra.mxu0 0.0
      %1641 = vmatprep.subr.mxu0 0.0
      %1642 = vmatpush1.msra.mxu0 0.0
      %1643 = vmatprep.subr.mxu0 0.0
      %1644 = vmatpush1.msra.mxu0 0.0
      %1645 = vmatprep.subr.mxu0 0.0
      %1646 = vmatpush1.msra.mxu0 0.0
      %1647 = vmatprep.subr.mxu0 0.0
      %1648 = vmatpush1.msra.mxu0 0.0
      %1649 = vmatprep.mubr.f32.mxu0 0.0
      %1650 = vmatmul.mubr.f32.gmra.mrb[0].mxu0 %v1562
      %v1651 = vpop.f32.mrb[0].mxu0
      %v1652 = vadd.f32 0.0, %v1651
      %v1653 = vpop.f32.mrb[0].mxu0
      %1654 = vmatprep.mubr.f32.mxu0 0.0
      %1655 = vmatmul.mubr.f32.gmra.mrb[0].mxu0 %v1565
      %v1656 = vpop.f32.mrb[0].mxu0
      %v1657 = vadd.f32 0.0, %v1656
      %v1658 = vpop.f32.mrb[0].mxu0
      %1659 = vmatprep.mubr.f32.mxu0 0.0
      %1660 = vmatmul.mubr.f32.gmra.mrb[0].mxu0 %v1568
      %v1661 = vpop.f32.mrb[0].mxu0
      %v1662 = vadd.f32 0.0, %v1661
      %v1663 = vpop.f32.mrb[0].mxu0
      %1664 = vmatprep.mubr.f32.mxu0 0.0
      %1665 = vmatmul.mubr.f32.gmra.mrb[0].mxu0 %v1571
      %v1666 = vpop.f32.mrb[0].mxu0
      %v1667 = vadd.f32 0.0, %v1666
      %v1668 = vpop.f32.mrb[0].mxu0
      %1669 = vmatprep.mubr.f32.mxu0 0.0
      %1670 = vmatmul.mubr.f32.gmra.mrb[0].mxu0 %v1574
      %v1671 = vpop.f32.mrb[0].mxu0
      %v1672 = vadd.f32 0.0, %v1671
      %v1673 = vpop.f32.mrb[0].mxu0
      %1674 = vmatprep.mubr.f32.mxu0 0.0
      %1675 = vmatmul.mubr.f32.gmra.mrb[0].mxu0 %v1577
      %v1676 = vpop.f32.mrb[0].mxu0
      %v1677 = vadd.f32 0.0, %v1676
      %v1678 = vpop.f32.mrb[0].mxu0
      %1679 = vmatprep.mubr.f32.mxu0 0.0
      %1680 = vmatmul.mubr.f32.gmra.mrb[0].mxu0 %v1580
      %v1681 = vpop.f32.mrb[0].mxu0
      %v1682 = vadd.f32 0.0, %v1681
      %v1683 = vpop.f32.mrb[0].mxu0
      %1684 = vmatprep.mubr.f32.mxu0 0.0
      %1685 = vmatmul.mubr.f32.gmra.mrb[0].mxu0 %v1583
      %v1686 = vpop.f32.mrb[0].mxu0
      %v1687 = vadd.f32 0.0, %v1686
      %v1688 = vpop.f32.mrb[0].mxu0
      %1689 = vdwg.mxu0
      %v1690 = vadd.f32 %v1541, %v1652
      %v1691 = vadd.f32 %v1542, %v1657
      %v1692 = vadd.f32 %v1543, %v1662
      %v1693 = vadd.f32 %v1544, %v1667
      %v1694 = vadd.f32 %v1545, %v1672
      %v1695 = vadd.f32 %v1546, %v1677
      %v1696 = vadd.f32 %v1547, %v1682
      %v1697 = vadd.f32 %v1548, %v1687
      %1698 = vmatprep.subr.mxu0 0.0
      %1699 = vmatpush1.msra.mxu0 %v672
      %1700 = vmatprep.subr.mxu0 0.0
      %1701 = vmatpush1.msra.mxu0 %v674
      %1702 = vmatprep.subr.mxu0 0.0
      %1703 = vmatpush1.msra.mxu0 %v676
      %1704 = vmatprep.subr.mxu0 0.0
      %1705 = vmatpush1.msra.mxu0 %v678
      %1706 = vmatprep.subr.mxu0 0.0
      %1707 = vmatpush1.msra.mxu0 0.0
      %1708 = vmatprep.subr.mxu0 0.0
      %1709 = vmatpush1.msra.mxu0 0.0
      %1710 = vmatprep.subr.mxu0 0.0
      %1711 = vmatpush1.msra.mxu0 0.0
      %1712 = vmatprep.subr.mxu0 0.0
      %1713 = vmatpush1.msra.mxu0 0.0
      %1714 = vmatprep.subr.mxu0 0.0
      %1715 = vmatpush1.msra.mxu0 0.0
      %1716 = vmatprep.subr.mxu0 0.0
      %1717 = vmatpush1.msra.mxu0 0.0
      %1718 = vmatprep.subr.mxu0 0.0
      %1719 = vmatpush1.msra.mxu0 0.0
      %1720 = vmatprep.subr.mxu0 0.0
      %1721 = vmatpush1.msra.mxu0 0.0
      %1722 = vmatprep.subr.mxu0 0.0
      %1723 = vmatpush1.msra.mxu0 0.0
      %1724 = vmatprep.subr.mxu0 0.0
      %1725 = vmatpush1.msra.mxu0 0.0
      %1726 = vmatprep.subr.mxu0 0.0
      %1727 = vmatpush1.msra.mxu0 0.0
      %1728 = vmatprep.subr.mxu0 0.0
      %1729 = vmatpush1.msra.mxu0 0.0
      %1730 = vmatprep.subr.mxu0 0.0
      %1731 = vmatpush1.msra.mxu0 0.0
      %1732 = vmatprep.subr.mxu0 0.0
      %1733 = vmatpush1.msra.mxu0 0.0
      %1734 = vmatprep.subr.mxu0 0.0
      %1735 = vmatpush1.msra.mxu0 0.0
      %1736 = vmatprep.subr.mxu0 0.0
      %1737 = vmatpush1.msra.mxu0 0.0
      %1738 = vmatprep.subr.mxu0 0.0
      %1739 = vmatpush1.msra.mxu0 0.0
      %1740 = vmatprep.subr.mxu0 0.0
      %1741 = vmatpush1.msra.mxu0 0.0
      %1742 = vmatprep.subr.mxu0 0.0
      %1743 = vmatpush1.msra.mxu0 0.0
      %1744 = vmatprep.subr.mxu0 0.0
      %1745 = vmatpush1.msra.mxu0 0.0
      %1746 = vmatprep.subr.mxu0 0.0
      %1747 = vmatpush1.msra.mxu0 0.0
      %1748 = vmatprep.subr.mxu0 0.0
      %1749 = vmatpush1.msra.mxu0 0.0
      %1750 = vmatprep.subr.mxu0 0.0
      %1751 = vmatpush1.msra.mxu0 0.0
      %1752 = vmatprep.subr.mxu0 0.0
      %1753 = vmatpush1.msra.mxu0 0.0
      %1754 = vmatprep.subr.mxu0 0.0
      %1755 = vmatpush1.msra.mxu0 0.0
      %1756 = vmatprep.subr.mxu0 0.0
      %1757 = vmatpush1.msra.mxu0 0.0
      %1758 = vmatprep.subr.mxu0 0.0
      %1759 = vmatpush1.msra.mxu0 0.0
      %1760 = vmatprep.subr.mxu0 0.0
      %1761 = vmatpush1.msra.mxu0 0.0
      %1762 = vmatprep.mubr.f32.mxu0 0.0
      %1763 = vmatmul.mubr.f32.gmra.mrb[0].mxu0 %v410
      %v1764 = vpop.f32.mrb[0].mxu0
      %v1765 = vadd.f32 0.0, %v1764
      %v1766 = vpop.f32.mrb[0].mxu0
      %1767 = vmatprep.mubr.f32.mxu0 0.0
      %1768 = vmatmul.mubr.f32.gmra.mrb[0].mxu0 %v413
      %v1769 = vpop.f32.mrb[0].mxu0
      %v1770 = vadd.f32 0.0, %v1769
      %v1771 = vpop.f32.mrb[0].mxu0
      %1772 = vmatprep.mubr.f32.mxu0 0.0
      %1773 = vmatmul.mubr.f32.gmra.mrb[0].mxu0 %v416
      %v1774 = vpop.f32.mrb[0].mxu0
      %v1775 = vadd.f32 0.0, %v1774
      %v1776 = vpop.f32.mrb[0].mxu0
      %1777 = vmatprep.mubr.f32.mxu0 0.0
      %1778 = vmatmul.mubr.f32.gmra.mrb[0].mxu0 %v419
      %v1779 = vpop.f32.mrb[0].mxu0
      %v1780 = vadd.f32 0.0, %v1779
      %v1781 = vpop.f32.mrb[0].mxu0
      %1782 = vmatprep.mubr.f32.mxu0 0.0
      %1783 = vmatmul.mubr.f32.gmra.mrb[0].mxu0 %v422
      %v1784 = vpop.f32.mrb[0].mxu0
      %v1785 = vadd.f32 0.0, %v1784
      %v1786 = vpop.f32.mrb[0].mxu0
      %1787 = vmatprep.mubr.f32.mxu0 0.0
      %1788 = vmatmul.mubr.f32.gmra.mrb[0].mxu0 %v425
      %v1789 = vpop.f32.mrb[0].mxu0
      %v1790 = vadd.f32 0.0, %v1789
      %v1791 = vpop.f32.mrb[0].mxu0
      %1792 = vmatprep.mubr.f32.mxu0 0.0
      %1793 = vmatmul.mubr.f32.gmra.mrb[0].mxu0 %v428
      %v1794 = vpop.f32.mrb[0].mxu0
      %v1795 = vadd.f32 0.0, %v1794
      %v1796 = vpop.f32.mrb[0].mxu0
      %1797 = vmatprep.mubr.f32.mxu0 0.0
      %1798 = vmatmul.mubr.f32.gmra.mrb[0].mxu0 %v431
      %v1799 = vpop.f32.mrb[0].mxu0
      %v1800 = vadd.f32 0.0, %v1799
      %v1801 = vpop.f32.mrb[0].mxu0
      %1802 = vdwg.mxu0
      %1803 = vmatprep.subr.mxu0 0.0
      %1804 = vmatpush1.msra.mxu0 %v316
      %1805 = vmatprep.subr.mxu0 0.0
      %1806 = vmatpush1.msra.mxu0 %v317
      %1807 = vmatprep.subr.mxu0 0.0
      %1808 = vmatpush1.msra.mxu0 %v318
      %1809 = vmatprep.subr.mxu0 0.0
      %1810 = vmatpush1.msra.mxu0 %v319
      %1811 = vmatprep.subr.mxu0 0.0
      %1812 = vmatpush1.msra.mxu0 0.0
      %1813 = vmatprep.subr.mxu0 0.0
      %1814 = vmatpush1.msra.mxu0 0.0
      %1815 = vmatprep.subr.mxu0 0.0
      %1816 = vmatpush1.msra.mxu0 0.0
      %1817 = vmatprep.subr.mxu0 0.0
      %1818 = vmatpush1.msra.mxu0 0.0
      %1819 = vmatprep.subr.mxu0 0.0
      %1820 = vmatpush1.msra.mxu0 0.0
      %1821 = vmatprep.subr.mxu0 0.0
      %1822 = vmatpush1.msra.mxu0 0.0
      %1823 = vmatprep.subr.mxu0 0.0
      %1824 = vmatpush1.msra.mxu0 0.0
      %1825 = vmatprep.subr.mxu0 0.0
      %1826 = vmatpush1.msra.mxu0 0.0
      %1827 = vmatprep.subr.mxu0 0.0
      %1828 = vmatpush1.msra.mxu0 0.0
      %1829 = vmatprep.subr.mxu0 0.0
      %1830 = vmatpush1.msra.mxu0 0.0
      %1831 = vmatprep.subr.mxu0 0.0
      %1832 = vmatpush1.msra.mxu0 0.0
      %1833 = vmatprep.subr.mxu0 0.0
      %1834 = vmatpush1.msra.mxu0 0.0
      %1835 = vmatprep.subr.mxu0 0.0
      %1836 = vmatpush1.msra.mxu0 0.0
      %1837 = vmatprep.subr.mxu0 0.0
      %1838 = vmatpush1.msra.mxu0 0.0
      %1839 = vmatprep.subr.mxu0 0.0
      %1840 = vmatpush1.msra.mxu0 0.0
      %1841 = vmatprep.subr.mxu0 0.0
      %1842 = vmatpush1.msra.mxu0 0.0
      %1843 = vmatprep.subr.mxu0 0.0
      %1844 = vmatpush1.msra.mxu0 0.0
      %1845 = vmatprep.subr.mxu0 0.0
      %1846 = vmatpush1.msra.mxu0 0.0
      %1847 = vmatprep.subr.mxu0 0.0
      %1848 = vmatpush1.msra.mxu0 0.0
      %1849 = vmatprep.subr.mxu0 0.0
      %1850 = vmatpush1.msra.mxu0 0.0
      %1851 = vmatprep.subr.mxu0 0.0
      %1852 = vmatpush1.msra.mxu0 0.0
      %1853 = vmatprep.subr.mxu0 0.0
      %1854 = vmatpush1.msra.mxu0 0.0
      %1855 = vmatprep.subr.mxu0 0.0
      %1856 = vmatpush1.msra.mxu0 0.0
      %1857 = vmatprep.subr.mxu0 0.0
      %1858 = vmatpush1.msra.mxu0 0.0
      %1859 = vmatprep.subr.mxu0 0.0
      %1860 = vmatpush1.msra.mxu0 0.0
      %1861 = vmatprep.subr.mxu0 0.0
      %1862 = vmatpush1.msra.mxu0 0.0
      %1863 = vmatprep.subr.mxu0 0.0
      %1864 = vmatpush1.msra.mxu0 0.0
      %1865 = vmatprep.subr.mxu0 0.0
      %1866 = vmatpush1.msra.mxu0 0.0
      %1867 = vmatprep.mubr.f32.mxu0 0.0
      %1868 = vmatmul.mubr.f32.gmra.mrb[0].mxu0 %v539
      %v1869 = vpop.f32.mrb[0].mxu0
      %v1870 = vadd.f32 %v1765, %v1869
      %v1871 = vpop.f32.mrb[0].mxu0
      %1872 = vmatprep.mubr.f32.mxu0 0.0
      %1873 = vmatmul.mubr.f32.gmra.mrb[0].mxu0 %v542
      %v1874 = vpop.f32.mrb[0].mxu0
      %v1875 = vadd.f32 %v1770, %v1874
      %v1876 = vpop.f32.mrb[0].mxu0
      %1877 = vmatprep.mubr.f32.mxu0 0.0
      %1878 = vmatmul.mubr.f32.gmra.mrb[0].mxu0 %v545
      %v1879 = vpop.f32.mrb[0].mxu0
      %v1880 = vadd.f32 %v1775, %v1879
      %v1881 = vpop.f32.mrb[0].mxu0
      %1882 = vmatprep.mubr.f32.mxu0 0.0
      %1883 = vmatmul.mubr.f32.gmra.mrb[0].mxu0 %v548
      %v1884 = vpop.f32.mrb[0].mxu0
      %v1885 = vadd.f32 %v1780, %v1884
      %v1886 = vpop.f32.mrb[0].mxu0
      %1887 = vmatprep.mubr.f32.mxu0 0.0
      %1888 = vmatmul.mubr.f32.gmra.mrb[0].mxu0 %v551
      %v1889 = vpop.f32.mrb[0].mxu0
      %v1890 = vadd.f32 %v1785, %v1889
      %v1891 = vpop.f32.mrb[0].mxu0
      %1892 = vmatprep.mubr.f32.mxu0 0.0
      %1893 = vmatmul.mubr.f32.gmra.mrb[0].mxu0 %v554
      %v1894 = vpop.f32.mrb[0].mxu0
      %v1895 = vadd.f32 %v1790, %v1894
      %v1896 = vpop.f32.mrb[0].mxu0
      %1897 = vmatprep.mubr.f32.mxu0 0.0
      %1898 = vmatmul.mubr.f32.gmra.mrb[0].mxu0 %v557
      %v1899 = vpop.f32.mrb[0].mxu0
      %v1900 = vadd.f32 %v1795, %v1899
      %v1901 = vpop.f32.mrb[0].mxu0
      %1902 = vmatprep.mubr.f32.mxu0 0.0
      %1903 = vmatmul.mubr.f32.gmra.mrb[0].mxu0 %v560
      %v1904 = vpop.f32.mrb[0].mxu0
      %v1905 = vadd.f32 %v1800, %v1904
      %v1906 = vpop.f32.mrb[0].mxu0
      %1907 = vdwg.mxu0
      %1908 = vrot.lane.b32.xlu0 %v316, 127
      %v1909 = vpop.permute.xlu0 %1908
      %1910 = vrot.lane.b32.xlu0 %v317, 127
      %v1911 = vpop.permute.xlu0 %1910
      %1912 = vrot.lane.b32.xlu0 %v318, 127
      %v1913 = vpop.permute.xlu0 %1912
      %1914 = vrot.lane.b32.xlu0 %v319, 127
      %v1915 = vpop.permute.xlu0 %1914
      %1920 = vmatprep.subr.mxu0 0.0
      %1921 = vmatpush1.msra.mxu0 %v1909
      %1922 = vmatprep.subr.mxu0 0.0
      %1923 = vmatpush1.msra.mxu0 %v1911
      %1924 = vmatprep.subr.mxu0 0.0
      %1925 = vmatpush1.msra.mxu0 %v1913
      %1926 = vmatprep.subr.mxu0 0.0
      %1927 = vmatpush1.msra.mxu0 %v1915
      %1928 = vmatprep.subr.mxu0 0.0
      %1929 = vmatpush1.msra.mxu0 0.0
      %1930 = vmatprep.subr.mxu0 0.0
      %1931 = vmatpush1.msra.mxu0 0.0
      %1932 = vmatprep.subr.mxu0 0.0
      %1933 = vmatpush1.msra.mxu0 0.0
      %1934 = vmatprep.subr.mxu0 0.0
      %1935 = vmatpush1.msra.mxu0 0.0
      %1936 = vmatprep.subr.mxu0 0.0
      %1937 = vmatpush1.msra.mxu0 0.0
      %1938 = vmatprep.subr.mxu0 0.0
      %1939 = vmatpush1.msra.mxu0 0.0
      %1940 = vmatprep.subr.mxu0 0.0
      %1941 = vmatpush1.msra.mxu0 0.0
      %1942 = vmatprep.subr.mxu0 0.0
      %1943 = vmatpush1.msra.mxu0 0.0
      %1944 = vmatprep.subr.mxu0 0.0
      %1945 = vmatpush1.msra.mxu0 0.0
      %1946 = vmatprep.subr.mxu0 0.0
      %1947 = vmatpush1.msra.mxu0 0.0
      %1948 = vmatprep.subr.mxu0 0.0
      %1949 = vmatpush1.msra.mxu0 0.0
      %1950 = vmatprep.subr.mxu0 0.0
      %1951 = vmatpush1.msra.mxu0 0.0
      %1952 = vmatprep.subr.mxu0 0.0
      %1953 = vmatpush1.msra.mxu0 0.0
      %1954 = vmatprep.subr.mxu0 0.0
      %1955 = vmatpush1.msra.mxu0 0.0
      %1956 = vmatprep.subr.mxu0 0.0
      %1957 = vmatpush1.msra.mxu0 0.0
      %1958 = vmatprep.subr.mxu0 0.0
      %1959 = vmatpush1.msra.mxu0 0.0
      %1960 = vmatprep.subr.mxu0 0.0
      %1961 = vmatpush1.msra.mxu0 0.0
      %1962 = vmatprep.subr.mxu0 0.0
      %1963 = vmatpush1.msra.mxu0 0.0
      %1964 = vmatprep.subr.mxu0 0.0
      %1965 = vmatpush1.msra.mxu0 0.0
      %1966 = vmatprep.subr.mxu0 0.0
      %1967 = vmatpush1.msra.mxu0 0.0
      %1968 = vmatprep.subr.mxu0 0.0
      %1969 = vmatpush1.msra.mxu0 0.0
      %1970 = vmatprep.subr.mxu0 0.0
      %1971 = vmatpush1.msra.mxu0 0.0
      %1972 = vmatprep.subr.mxu0 0.0
      %1973 = vmatpush1.msra.mxu0 0.0
      %1974 = vmatprep.subr.mxu0 0.0
      %1975 = vmatpush1.msra.mxu0 0.0
      %1976 = vmatprep.subr.mxu0 0.0
      %1977 = vmatpush1.msra.mxu0 0.0
      %1978 = vmatprep.subr.mxu0 0.0
      %1979 = vmatpush1.msra.mxu0 0.0
      %1980 = vmatprep.subr.mxu0 0.0
      %1981 = vmatpush1.msra.mxu0 0.0
      %1982 = vmatprep.subr.mxu0 0.0
      %1983 = vmatpush1.msra.mxu0 0.0
      %1984 = vmatprep.mubr.f32.mxu0 0.0
      %1985 = vmatmul.mubr.f32.gmra.mrb[0].mxu0 %v684
      %v1986 = vpop.f32.mrb[0].mxu0
      %v1987 = vadd.f32 0.0, %v1986
      %v1988 = vpop.f32.mrb[0].mxu0
      %1989 = vmatprep.mubr.f32.mxu0 0.0
      %1990 = vmatmul.mubr.f32.gmra.mrb[0].mxu0 %v687
      %v1991 = vpop.f32.mrb[0].mxu0
      %v1992 = vadd.f32 0.0, %v1991
      %v1993 = vpop.f32.mrb[0].mxu0
      %1994 = vmatprep.mubr.f32.mxu0 0.0
      %1995 = vmatmul.mubr.f32.gmra.mrb[0].mxu0 %v690
      %v1996 = vpop.f32.mrb[0].mxu0
      %v1997 = vadd.f32 0.0, %v1996
      %v1998 = vpop.f32.mrb[0].mxu0
      %1999 = vmatprep.mubr.f32.mxu0 0.0
      %2000 = vmatmul.mubr.f32.gmra.mrb[0].mxu0 %v693
      %v2001 = vpop.f32.mrb[0].mxu0
      %v2002 = vadd.f32 0.0, %v2001
      %v2003 = vpop.f32.mrb[0].mxu0
      %2004 = vmatprep.mubr.f32.mxu0 0.0
      %2005 = vmatmul.mubr.f32.gmra.mrb[0].mxu0 %v696
      %v2006 = vpop.f32.mrb[0].mxu0
      %v2007 = vadd.f32 0.0, %v2006
      %v2008 = vpop.f32.mrb[0].mxu0
      %2009 = vmatprep.mubr.f32.mxu0 0.0
      %2010 = vmatmul.mubr.f32.gmra.mrb[0].mxu0 %v699
      %v2011 = vpop.f32.mrb[0].mxu0
      %v2012 = vadd.f32 0.0, %v2011
      %v2013 = vpop.f32.mrb[0].mxu0
      %2014 = vmatprep.mubr.f32.mxu0 0.0
      %2015 = vmatmul.mubr.f32.gmra.mrb[0].mxu0 %v702
      %v2016 = vpop.f32.mrb[0].mxu0
      %v2017 = vadd.f32 0.0, %v2016
      %v2018 = vpop.f32.mrb[0].mxu0
      %2019 = vmatprep.mubr.f32.mxu0 0.0
      %2020 = vmatmul.mubr.f32.gmra.mrb[0].mxu0 %v705
      %v2021 = vpop.f32.mrb[0].mxu0
      %v2022 = vadd.f32 0.0, %v2021
      %v2023 = vpop.f32.mrb[0].mxu0
      %2024 = vdwg.mxu0
      %v2025 = vadd.f32 %v1870, %v1987
      %v2026 = vadd.f32 %v1875, %v1992
      %v2027 = vadd.f32 %v1880, %v1997
      %v2028 = vadd.f32 %v1885, %v2002
      %v2029 = vadd.f32 %v1890, %v2007
      %v2030 = vadd.f32 %v1895, %v2012
      %v2031 = vadd.f32 %v1900, %v2017
      %v2032 = vadd.f32 %v1905, %v2022
      %2033 = vmatprep.subr.mxu0 0.0
      %2034 = vmatpush1.msra.mxu0 %v324
      %2035 = vmatprep.subr.mxu0 0.0
      %2036 = vmatpush1.msra.mxu0 %v325
      %2037 = vmatprep.subr.mxu0 0.0
      %2038 = vmatpush1.msra.mxu0 %v326
      %2039 = vmatprep.subr.mxu0 0.0
      %2040 = vmatpush1.msra.mxu0 %v327
      %2041 = vmatprep.subr.mxu0 0.0
      %2042 = vmatpush1.msra.mxu0 0.0
      %2043 = vmatprep.subr.mxu0 0.0
      %2044 = vmatpush1.msra.mxu0 0.0
      %2045 = vmatprep.subr.mxu0 0.0
      %2046 = vmatpush1.msra.mxu0 0.0
      %2047 = vmatprep.subr.mxu0 0.0
      %2048 = vmatpush1.msra.mxu0 0.0
      %2049 = vmatprep.subr.mxu0 0.0
      %2050 = vmatpush1.msra.mxu0 0.0
      %2051 = vmatprep.subr.mxu0 0.0
      %2052 = vmatpush1.msra.mxu0 0.0
      %2053 = vmatprep.subr.mxu0 0.0
      %2054 = vmatpush1.msra.mxu0 0.0
      %2055 = vmatprep.subr.mxu0 0.0
      %2056 = vmatpush1.msra.mxu0 0.0
      %2057 = vmatprep.subr.mxu0 0.0
      %2058 = vmatpush1.msra.mxu0 0.0
      %2059 = vmatprep.subr.mxu0 0.0
      %2060 = vmatpush1.msra.mxu0 0.0
      %2061 = vmatprep.subr.mxu0 0.0
      %2062 = vmatpush1.msra.mxu0 0.0
      %2063 = vmatprep.subr.mxu0 0.0
      %2064 = vmatpush1.msra.mxu0 0.0
      %2065 = vmatprep.subr.mxu0 0.0
      %2066 = vmatpush1.msra.mxu0 0.0
      %2067 = vmatprep.subr.mxu0 0.0
      %2068 = vmatpush1.msra.mxu0 0.0
      %2069 = vmatprep.subr.mxu0 0.0
      %2070 = vmatpush1.msra.mxu0 0.0
      %2071 = vmatprep.subr.mxu0 0.0
      %2072 = vmatpush1.msra.mxu0 0.0
      %2073 = vmatprep.subr.mxu0 0.0
      %2074 = vmatpush1.msra.mxu0 0.0
      %2075 = vmatprep.subr.mxu0 0.0
      %2076 = vmatpush1.msra.mxu0 0.0
      %2077 = vmatprep.subr.mxu0 0.0
      %2078 = vmatpush1.msra.mxu0 0.0
      %2079 = vmatprep.subr.mxu0 0.0
      %2080 = vmatpush1.msra.mxu0 0.0
      %2081 = vmatprep.subr.mxu0 0.0
      %2082 = vmatpush1.msra.mxu0 0.0
      %2083 = vmatprep.subr.mxu0 0.0
      %2084 = vmatpush1.msra.mxu0 0.0
      %2085 = vmatprep.subr.mxu0 0.0
      %2086 = vmatpush1.msra.mxu0 0.0
      %2087 = vmatprep.subr.mxu0 0.0
      %2088 = vmatpush1.msra.mxu0 0.0
      %2089 = vmatprep.subr.mxu0 0.0
      %2090 = vmatpush1.msra.mxu0 0.0
      %2091 = vmatprep.subr.mxu0 0.0
      %2092 = vmatpush1.msra.mxu0 0.0
      %2093 = vmatprep.subr.mxu0 0.0
      %2094 = vmatpush1.msra.mxu0 0.0
      %2095 = vmatprep.subr.mxu0 0.0
      %2096 = vmatpush1.msra.mxu0 0.0
      %2097 = vmatprep.mubr.f32.mxu0 0.0
      %2098 = vmatmul.mubr.f32.gmra.mrb[0].mxu0 %v821
      %v2099 = vpop.f32.mrb[0].mxu0
      %v2100 = vadd.f32 0.0, %v2099
      %v2101 = vpop.f32.mrb[0].mxu0
      %2102 = vmatprep.mubr.f32.mxu0 0.0
      %2103 = vmatmul.mubr.f32.gmra.mrb[0].mxu0 %v824
      %v2104 = vpop.f32.mrb[0].mxu0
      %v2105 = vadd.f32 0.0, %v2104
      %v2106 = vpop.f32.mrb[0].mxu0
      %2107 = vmatprep.mubr.f32.mxu0 0.0
      %2108 = vmatmul.mubr.f32.gmra.mrb[0].mxu0 %v827
      %v2109 = vpop.f32.mrb[0].mxu0
      %v2110 = vadd.f32 0.0, %v2109
      %v2111 = vpop.f32.mrb[0].mxu0
      %2112 = vmatprep.mubr.f32.mxu0 0.0
      %2113 = vmatmul.mubr.f32.gmra.mrb[0].mxu0 %v830
      %v2114 = vpop.f32.mrb[0].mxu0
      %v2115 = vadd.f32 0.0, %v2114
      %v2116 = vpop.f32.mrb[0].mxu0
      %2117 = vmatprep.mubr.f32.mxu0 0.0
      %2118 = vmatmul.mubr.f32.gmra.mrb[0].mxu0 %v833
      %v2119 = vpop.f32.mrb[0].mxu0
      %v2120 = vadd.f32 0.0, %v2119
      %v2121 = vpop.f32.mrb[0].mxu0
      %2122 = vmatprep.mubr.f32.mxu0 0.0
      %2123 = vmatmul.mubr.f32.gmra.mrb[0].mxu0 %v836
      %v2124 = vpop.f32.mrb[0].mxu0
      %v2125 = vadd.f32 0.0, %v2124
      %v2126 = vpop.f32.mrb[0].mxu0
      %2127 = vmatprep.mubr.f32.mxu0 0.0
      %2128 = vmatmul.mubr.f32.gmra.mrb[0].mxu0 %v839
      %v2129 = vpop.f32.mrb[0].mxu0
      %v2130 = vadd.f32 0.0, %v2129
      %v2131 = vpop.f32.mrb[0].mxu0
      %2132 = vmatprep.mubr.f32.mxu0 0.0
      %2133 = vmatmul.mubr.f32.gmra.mrb[0].mxu0 %v842
      %v2134 = vpop.f32.mrb[0].mxu0
      %v2135 = vadd.f32 0.0, %v2134
      %v2136 = vpop.f32.mrb[0].mxu0
      %2137 = vdwg.mxu0
      %v2138 = vadd.f32 %v2025, %v2100
      %v2139 = vadd.f32 %v2026, %v2105
      %v2140 = vadd.f32 %v2027, %v2110
      %v2141 = vadd.f32 %v2028, %v2115
      %v2142 = vadd.f32 %v2029, %v2120
      %v2143 = vadd.f32 %v2030, %v2125
      %v2144 = vadd.f32 %v2031, %v2130
      %v2145 = vadd.f32 %v2032, %v2135
      %2146 = vmatprep.subr.mxu0 0.0
      %2147 = vmatpush1.msra.mxu0 %v1099
      %2148 = vmatprep.subr.mxu0 0.0
      %2149 = vmatpush1.msra.mxu0 %v1101
      %2150 = vmatprep.subr.mxu0 0.0
      %2151 = vmatpush1.msra.mxu0 %v1103
      %2152 = vmatprep.subr.mxu0 0.0
      %2153 = vmatpush1.msra.mxu0 %v1105
      %2154 = vmatprep.subr.mxu0 0.0
      %2155 = vmatpush1.msra.mxu0 0.0
      %2156 = vmatprep.subr.mxu0 0.0
      %2157 = vmatpush1.msra.mxu0 0.0
      %2158 = vmatprep.subr.mxu0 0.0
      %2159 = vmatpush1.msra.mxu0 0.0
      %2160 = vmatprep.subr.mxu0 0.0
      %2161 = vmatpush1.msra.mxu0 0.0
      %2162 = vmatprep.subr.mxu0 0.0
      %2163 = vmatpush1.msra.mxu0 0.0
      %2164 = vmatprep.subr.mxu0 0.0
      %2165 = vmatpush1.msra.mxu0 0.0
      %2166 = vmatprep.subr.mxu0 0.0
      %2167 = vmatpush1.msra.mxu0 0.0
      %2168 = vmatprep.subr.mxu0 0.0
      %2169 = vmatpush1.msra.mxu0 0.0
      %2170 = vmatprep.subr.mxu0 0.0
      %2171 = vmatpush1.msra.mxu0 0.0
      %2172 = vmatprep.subr.mxu0 0.0
      %2173 = vmatpush1.msra.mxu0 0.0
      %2174 = vmatprep.subr.mxu0 0.0
      %2175 = vmatpush1.msra.mxu0 0.0
      %2176 = vmatprep.subr.mxu0 0.0
      %2177 = vmatpush1.msra.mxu0 0.0
      %2178 = vmatprep.subr.mxu0 0.0
      %2179 = vmatpush1.msra.mxu0 0.0
      %2180 = vmatprep.subr.mxu0 0.0
      %2181 = vmatpush1.msra.mxu0 0.0
      %2182 = vmatprep.subr.mxu0 0.0
      %2183 = vmatpush1.msra.mxu0 0.0
      %2184 = vmatprep.subr.mxu0 0.0
      %2185 = vmatpush1.msra.mxu0 0.0
      %2186 = vmatprep.subr.mxu0 0.0
      %2187 = vmatpush1.msra.mxu0 0.0
      %2188 = vmatprep.subr.mxu0 0.0
      %2189 = vmatpush1.msra.mxu0 0.0
      %2190 = vmatprep.subr.mxu0 0.0
      %2191 = vmatpush1.msra.mxu0 0.0
      %2192 = vmatprep.subr.mxu0 0.0
      %2193 = vmatpush1.msra.mxu0 0.0
      %2194 = vmatprep.subr.mxu0 0.0
      %2195 = vmatpush1.msra.mxu0 0.0
      %2196 = vmatprep.subr.mxu0 0.0
      %2197 = vmatpush1.msra.mxu0 0.0
      %2198 = vmatprep.subr.mxu0 0.0
      %2199 = vmatpush1.msra.mxu0 0.0
      %2200 = vmatprep.subr.mxu0 0.0
      %2201 = vmatpush1.msra.mxu0 0.0
      %2202 = vmatprep.subr.mxu0 0.0
      %2203 = vmatpush1.msra.mxu0 0.0
      %2204 = vmatprep.subr.mxu0 0.0
      %2205 = vmatpush1.msra.mxu0 0.0
      %2206 = vmatprep.subr.mxu0 0.0
      %2207 = vmatpush1.msra.mxu0 0.0
      %2208 = vmatprep.subr.mxu0 0.0
      %2209 = vmatpush1.msra.mxu0 0.0
      %2210 = vmatprep.mubr.f32.mxu0 0.0
      %2211 = vmatmul.mubr.f32.gmra.mrb[0].mxu0 %v958
      %v2212 = vpop.f32.mrb[0].mxu0
      %v2213 = vadd.f32 0.0, %v2212
      %v2214 = vpop.f32.mrb[0].mxu0
      %2215 = vmatprep.mubr.f32.mxu0 0.0
      %2216 = vmatmul.mubr.f32.gmra.mrb[0].mxu0 %v961
      %v2217 = vpop.f32.mrb[0].mxu0
      %v2218 = vadd.f32 0.0, %v2217
      %v2219 = vpop.f32.mrb[0].mxu0
      %2220 = vmatprep.mubr.f32.mxu0 0.0
      %2221 = vmatmul.mubr.f32.gmra.mrb[0].mxu0 %v964
      %v2222 = vpop.f32.mrb[0].mxu0
      %v2223 = vadd.f32 0.0, %v2222
      %v2224 = vpop.f32.mrb[0].mxu0
      %2225 = vmatprep.mubr.f32.mxu0 0.0
      %2226 = vmatmul.mubr.f32.gmra.mrb[0].mxu0 %v967
      %v2227 = vpop.f32.mrb[0].mxu0
      %v2228 = vadd.f32 0.0, %v2227
      %v2229 = vpop.f32.mrb[0].mxu0
      %2230 = vmatprep.mubr.f32.mxu0 0.0
      %2231 = vmatmul.mubr.f32.gmra.mrb[0].mxu0 %v970
      %v2232 = vpop.f32.mrb[0].mxu0
      %v2233 = vadd.f32 0.0, %v2232
      %v2234 = vpop.f32.mrb[0].mxu0
      %2235 = vmatprep.mubr.f32.mxu0 0.0
      %2236 = vmatmul.mubr.f32.gmra.mrb[0].mxu0 %v973
      %v2237 = vpop.f32.mrb[0].mxu0
      %v2238 = vadd.f32 0.0, %v2237
      %v2239 = vpop.f32.mrb[0].mxu0
      %2240 = vmatprep.mubr.f32.mxu0 0.0
      %2241 = vmatmul.mubr.f32.gmra.mrb[0].mxu0 %v976
      %v2242 = vpop.f32.mrb[0].mxu0
      %v2243 = vadd.f32 0.0, %v2242
      %v2244 = vpop.f32.mrb[0].mxu0
      %2245 = vmatprep.mubr.f32.mxu0 0.0
      %2246 = vmatmul.mubr.f32.gmra.mrb[0].mxu0 %v979
      %v2247 = vpop.f32.mrb[0].mxu0
      %v2248 = vadd.f32 0.0, %v2247
      %v2249 = vpop.f32.mrb[0].mxu0
      %2250 = vdwg.mxu0
      %v2251 = vadd.f32 %v2138, %v2213
      %v2252 = vadd.f32 %v2139, %v2218
      %v2253 = vadd.f32 %v2140, %v2223
      %v2254 = vadd.f32 %v2141, %v2228
      %v2255 = vadd.f32 %v2142, %v2233
      %v2256 = vadd.f32 %v2143, %v2238
      %v2257 = vadd.f32 %v2144, %v2243
      %v2258 = vadd.f32 %v2145, %v2248
      %2263 = vrot.lane.b32.xlu0 %v324, 127
      %v2264 = vpop.permute.xlu0 %2263
      %2265 = vrot.lane.b32.xlu0 %v325, 127
      %v2266 = vpop.permute.xlu0 %2265
      %2267 = vrot.lane.b32.xlu0 %v326, 127
      %v2268 = vpop.permute.xlu0 %2267
      %2269 = vrot.lane.b32.xlu0 %v327, 127
      %v2270 = vpop.permute.xlu0 %2269
      %2275 = vmatprep.subr.mxu0 0.0
      %2276 = vmatpush1.msra.mxu0 %v2264
      %2277 = vmatprep.subr.mxu0 0.0
      %2278 = vmatpush1.msra.mxu0 %v2266
      %2279 = vmatprep.subr.mxu0 0.0
      %2280 = vmatpush1.msra.mxu0 %v2268
      %2281 = vmatprep.subr.mxu0 0.0
      %2282 = vmatpush1.msra.mxu0 %v2270
      %2283 = vmatprep.subr.mxu0 0.0
      %2284 = vmatpush1.msra.mxu0 0.0
      %2285 = vmatprep.subr.mxu0 0.0
      %2286 = vmatpush1.msra.mxu0 0.0
      %2287 = vmatprep.subr.mxu0 0.0
      %2288 = vmatpush1.msra.mxu0 0.0
      %2289 = vmatprep.subr.mxu0 0.0
      %2290 = vmatpush1.msra.mxu0 0.0
      %2291 = vmatprep.subr.mxu0 0.0
      %2292 = vmatpush1.msra.mxu0 0.0
      %2293 = vmatprep.subr.mxu0 0.0
      %2294 = vmatpush1.msra.mxu0 0.0
      %2295 = vmatprep.subr.mxu0 0.0
      %2296 = vmatpush1.msra.mxu0 0.0
      %2297 = vmatprep.subr.mxu0 0.0
      %2298 = vmatpush1.msra.mxu0 0.0
      %2299 = vmatprep.subr.mxu0 0.0
      %2300 = vmatpush1.msra.mxu0 0.0
      %2301 = vmatprep.subr.mxu0 0.0
      %2302 = vmatpush1.msra.mxu0 0.0
      %2303 = vmatprep.subr.mxu0 0.0
      %2304 = vmatpush1.msra.mxu0 0.0
      %2305 = vmatprep.subr.mxu0 0.0
      %2306 = vmatpush1.msra.mxu0 0.0
      %2307 = vmatprep.subr.mxu0 0.0
      %2308 = vmatpush1.msra.mxu0 0.0
      %2309 = vmatprep.subr.mxu0 0.0
      %2310 = vmatpush1.msra.mxu0 0.0
      %2311 = vmatprep.subr.mxu0 0.0
      %2312 = vmatpush1.msra.mxu0 0.0
      %2313 = vmatprep.subr.mxu0 0.0
      %2314 = vmatpush1.msra.mxu0 0.0
      %2315 = vmatprep.subr.mxu0 0.0
      %2316 = vmatpush1.msra.mxu0 0.0
      %2317 = vmatprep.subr.mxu0 0.0
      %2318 = vmatpush1.msra.mxu0 0.0
      %2319 = vmatprep.subr.mxu0 0.0
      %2320 = vmatpush1.msra.mxu0 0.0
      %2321 = vmatprep.subr.mxu0 0.0
      %2322 = vmatpush1.msra.mxu0 0.0
      %2323 = vmatprep.subr.mxu0 0.0
      %2324 = vmatpush1.msra.mxu0 0.0
      %2325 = vmatprep.subr.mxu0 0.0
      %2326 = vmatpush1.msra.mxu0 0.0
      %2327 = vmatprep.subr.mxu0 0.0
      %2328 = vmatpush1.msra.mxu0 0.0
      %2329 = vmatprep.subr.mxu0 0.0
      %2330 = vmatpush1.msra.mxu0 0.0
      %2331 = vmatprep.subr.mxu0 0.0
      %2332 = vmatpush1.msra.mxu0 0.0
      %2333 = vmatprep.subr.mxu0 0.0
      %2334 = vmatpush1.msra.mxu0 0.0
      %2335 = vmatprep.subr.mxu0 0.0
      %2336 = vmatpush1.msra.mxu0 0.0
      %2337 = vmatprep.subr.mxu0 0.0
      %2338 = vmatpush1.msra.mxu0 0.0
      %2339 = vmatprep.mubr.f32.mxu0 0.0
      %2340 = vmatmul.mubr.f32.gmra.mrb[0].mxu0 %v1111
      %v2341 = vpop.f32.mrb[0].mxu0
      %v2342 = vadd.f32 0.0, %v2341
      %v2343 = vpop.f32.mrb[0].mxu0
      %2344 = vmatprep.mubr.f32.mxu0 0.0
      %2345 = vmatmul.mubr.f32.gmra.mrb[0].mxu0 %v1114
      %v2346 = vpop.f32.mrb[0].mxu0
      %v2347 = vadd.f32 0.0, %v2346
      %v2348 = vpop.f32.mrb[0].mxu0
      %2349 = vmatprep.mubr.f32.mxu0 0.0
      %2350 = vmatmul.mubr.f32.gmra.mrb[0].mxu0 %v1117
      %v2351 = vpop.f32.mrb[0].mxu0
      %v2352 = vadd.f32 0.0, %v2351
      %v2353 = vpop.f32.mrb[0].mxu0
      %2354 = vmatprep.mubr.f32.mxu0 0.0
      %2355 = vmatmul.mubr.f32.gmra.mrb[0].mxu0 %v1120
      %v2356 = vpop.f32.mrb[0].mxu0
      %v2357 = vadd.f32 0.0, %v2356
      %v2358 = vpop.f32.mrb[0].mxu0
      %2359 = vmatprep.mubr.f32.mxu0 0.0
      %2360 = vmatmul.mubr.f32.gmra.mrb[0].mxu0 %v1123
      %v2361 = vpop.f32.mrb[0].mxu0
      %v2362 = vadd.f32 0.0, %v2361
      %v2363 = vpop.f32.mrb[0].mxu0
      %2364 = vmatprep.mubr.f32.mxu0 0.0
      %2365 = vmatmul.mubr.f32.gmra.mrb[0].mxu0 %v1126
      %v2366 = vpop.f32.mrb[0].mxu0
      %v2367 = vadd.f32 0.0, %v2366
      %v2368 = vpop.f32.mrb[0].mxu0
      %2369 = vmatprep.mubr.f32.mxu0 0.0
      %2370 = vmatmul.mubr.f32.gmra.mrb[0].mxu0 %v1129
      %v2371 = vpop.f32.mrb[0].mxu0
      %v2372 = vadd.f32 0.0, %v2371
      %v2373 = vpop.f32.mrb[0].mxu0
      %2374 = vmatprep.mubr.f32.mxu0 0.0
      %2375 = vmatmul.mubr.f32.gmra.mrb[0].mxu0 %v1132
      %v2376 = vpop.f32.mrb[0].mxu0
      %v2377 = vadd.f32 0.0, %v2376
      %v2378 = vpop.f32.mrb[0].mxu0
      %2379 = vdwg.mxu0
      %v2380 = vadd.f32 %v2251, %v2342
      %v2381 = vadd.f32 %v2252, %v2347
      %v2382 = vadd.f32 %v2253, %v2352
      %v2383 = vadd.f32 %v2254, %v2357
      %v2384 = vadd.f32 %v2255, %v2362
      %v2385 = vadd.f32 %v2256, %v2367
      %v2386 = vadd.f32 %v2257, %v2372
      %v2387 = vadd.f32 %v2258, %v2377
      %2388 = vmatprep.subr.mxu0 0.0
      %2389 = vmatpush1.msra.mxu0 %v1401
      %2390 = vmatprep.subr.mxu0 0.0
      %2391 = vmatpush1.msra.mxu0 %v1403
      %2392 = vmatprep.subr.mxu0 0.0
      %2393 = vmatpush1.msra.mxu0 %v1405
      %2394 = vmatprep.subr.mxu0 0.0
      %2395 = vmatpush1.msra.mxu0 %v1407
      %2396 = vmatprep.subr.mxu0 0.0
      %2397 = vmatpush1.msra.mxu0 0.0
      %2398 = vmatprep.subr.mxu0 0.0
      %2399 = vmatpush1.msra.mxu0 0.0
      %2400 = vmatprep.subr.mxu0 0.0
      %2401 = vmatpush1.msra.mxu0 0.0
      %2402 = vmatprep.subr.mxu0 0.0
      %2403 = vmatpush1.msra.mxu0 0.0
      %2404 = vmatprep.subr.mxu0 0.0
      %2405 = vmatpush1.msra.mxu0 0.0
      %2406 = vmatprep.subr.mxu0 0.0
      %2407 = vmatpush1.msra.mxu0 0.0
      %2408 = vmatprep.subr.mxu0 0.0
      %2409 = vmatpush1.msra.mxu0 0.0
      %2410 = vmatprep.subr.mxu0 0.0
      %2411 = vmatpush1.msra.mxu0 0.0
      %2412 = vmatprep.subr.mxu0 0.0
      %2413 = vmatpush1.msra.mxu0 0.0
      %2414 = vmatprep.subr.mxu0 0.0
      %2415 = vmatpush1.msra.mxu0 0.0
      %2416 = vmatprep.subr.mxu0 0.0
      %2417 = vmatpush1.msra.mxu0 0.0
      %2418 = vmatprep.subr.mxu0 0.0
      %2419 = vmatpush1.msra.mxu0 0.0
      %2420 = vmatprep.subr.mxu0 0.0
      %2421 = vmatpush1.msra.mxu0 0.0
      %2422 = vmatprep.subr.mxu0 0.0
      %2423 = vmatpush1.msra.mxu0 0.0
      %2424 = vmatprep.subr.mxu0 0.0
      %2425 = vmatpush1.msra.mxu0 0.0
      %2426 = vmatprep.subr.mxu0 0.0
      %2427 = vmatpush1.msra.mxu0 0.0
      %2428 = vmatprep.subr.mxu0 0.0
      %2429 = vmatpush1.msra.mxu0 0.0
      %2430 = vmatprep.subr.mxu0 0.0
      %2431 = vmatpush1.msra.mxu0 0.0
      %2432 = vmatprep.subr.mxu0 0.0
      %2433 = vmatpush1.msra.mxu0 0.0
      %2434 = vmatprep.subr.mxu0 0.0
      %2435 = vmatpush1.msra.mxu0 0.0
      %2436 = vmatprep.subr.mxu0 0.0
      %2437 = vmatpush1.msra.mxu0 0.0
      %2438 = vmatprep.subr.mxu0 0.0
      %2439 = vmatpush1.msra.mxu0 0.0
      %2440 = vmatprep.subr.mxu0 0.0
      %2441 = vmatpush1.msra.mxu0 0.0
      %2442 = vmatprep.subr.mxu0 0.0
      %2443 = vmatpush1.msra.mxu0 0.0
      %2444 = vmatprep.subr.mxu0 0.0
      %2445 = vmatpush1.msra.mxu0 0.0
      %2446 = vmatprep.subr.mxu0 0.0
      %2447 = vmatpush1.msra.mxu0 0.0
      %2448 = vmatprep.subr.mxu0 0.0
      %2449 = vmatpush1.msra.mxu0 0.0
      %2450 = vmatprep.subr.mxu0 0.0
      %2451 = vmatpush1.msra.mxu0 0.0
      %2452 = vmatprep.mubr.f32.mxu0 0.0
      %2453 = vmatmul.mubr.f32.gmra.mrb[0].mxu0 %v1260
      %v2454 = vpop.f32.mrb[0].mxu0
      %v2455 = vadd.f32 0.0, %v2454
      %v2456 = vpop.f32.mrb[0].mxu0
      %2457 = vmatprep.mubr.f32.mxu0 0.0
      %2458 = vmatmul.mubr.f32.gmra.mrb[0].mxu0 %v1263
      %v2459 = vpop.f32.mrb[0].mxu0
      %v2460 = vadd.f32 0.0, %v2459
      %v2461 = vpop.f32.mrb[0].mxu0
      %2462 = vmatprep.mubr.f32.mxu0 0.0
      %2463 = vmatmul.mubr.f32.gmra.mrb[0].mxu0 %v1266
      %v2464 = vpop.f32.mrb[0].mxu0
      %v2465 = vadd.f32 0.0, %v2464
      %v2466 = vpop.f32.mrb[0].mxu0
      %2467 = vmatprep.mubr.f32.mxu0 0.0
      %2468 = vmatmul.mubr.f32.gmra.mrb[0].mxu0 %v1269
      %v2469 = vpop.f32.mrb[0].mxu0
      %v2470 = vadd.f32 0.0, %v2469
      %v2471 = vpop.f32.mrb[0].mxu0
      %2472 = vmatprep.mubr.f32.mxu0 0.0
      %2473 = vmatmul.mubr.f32.gmra.mrb[0].mxu0 %v1272
      %v2474 = vpop.f32.mrb[0].mxu0
      %v2475 = vadd.f32 0.0, %v2474
      %v2476 = vpop.f32.mrb[0].mxu0
      %2477 = vmatprep.mubr.f32.mxu0 0.0
      %2478 = vmatmul.mubr.f32.gmra.mrb[0].mxu0 %v1275
      %v2479 = vpop.f32.mrb[0].mxu0
      %v2480 = vadd.f32 0.0, %v2479
      %v2481 = vpop.f32.mrb[0].mxu0
      %2482 = vmatprep.mubr.f32.mxu0 0.0
      %2483 = vmatmul.mubr.f32.gmra.mrb[0].mxu0 %v1278
      %v2484 = vpop.f32.mrb[0].mxu0
      %v2485 = vadd.f32 0.0, %v2484
      %v2486 = vpop.f32.mrb[0].mxu0
      %2487 = vmatprep.mubr.f32.mxu0 0.0
      %2488 = vmatmul.mubr.f32.gmra.mrb[0].mxu0 %v1281
      %v2489 = vpop.f32.mrb[0].mxu0
      %v2490 = vadd.f32 0.0, %v2489
      %v2491 = vpop.f32.mrb[0].mxu0
      %2492 = vdwg.mxu0
      %v2493 = vadd.f32 %v2380, %v2455
      %v2494 = vadd.f32 %v2381, %v2460
      %v2495 = vadd.f32 %v2382, %v2465
      %v2496 = vadd.f32 %v2383, %v2470
      %v2497 = vadd.f32 %v2384, %v2475
      %v2498 = vadd.f32 %v2385, %v2480
      %v2499 = vadd.f32 %v2386, %v2485
      %v2500 = vadd.f32 %v2387, %v2490
      %2501 = vmatprep.subr.mxu0 0.0
      %2502 = vmatpush1.msra.mxu0 %v1550
      %2503 = vmatprep.subr.mxu0 0.0
      %2504 = vmatpush1.msra.mxu0 %v1552
      %2505 = vmatprep.subr.mxu0 0.0
      %2506 = vmatpush1.msra.mxu0 %v1554
      %2507 = vmatprep.subr.mxu0 0.0
      %2508 = vmatpush1.msra.mxu0 %v1556
      %2509 = vmatprep.subr.mxu0 0.0
      %2510 = vmatpush1.msra.mxu0 0.0
      %2511 = vmatprep.subr.mxu0 0.0
      %2512 = vmatpush1.msra.mxu0 0.0
      %2513 = vmatprep.subr.mxu0 0.0
      %2514 = vmatpush1.msra.mxu0 0.0
      %2515 = vmatprep.subr.mxu0 0.0
      %2516 = vmatpush1.msra.mxu0 0.0
      %2517 = vmatprep.subr.mxu0 0.0
      %2518 = vmatpush1.msra.mxu0 0.0
      %2519 = vmatprep.subr.mxu0 0.0
      %2520 = vmatpush1.msra.mxu0 0.0
      %2521 = vmatprep.subr.mxu0 0.0
      %2522 = vmatpush1.msra.mxu0 0.0
      %2523 = vmatprep.subr.mxu0 0.0
      %2524 = vmatpush1.msra.mxu0 0.0
      %2525 = vmatprep.subr.mxu0 0.0
      %2526 = vmatpush1.msra.mxu0 0.0
      %2527 = vmatprep.subr.mxu0 0.0
      %2528 = vmatpush1.msra.mxu0 0.0
      %2529 = vmatprep.subr.mxu0 0.0
      %2530 = vmatpush1.msra.mxu0 0.0
      %2531 = vmatprep.subr.mxu0 0.0
      %2532 = vmatpush1.msra.mxu0 0.0
      %2533 = vmatprep.subr.mxu0 0.0
      %2534 = vmatpush1.msra.mxu0 0.0
      %2535 = vmatprep.subr.mxu0 0.0
      %2536 = vmatpush1.msra.mxu0 0.0
      %2537 = vmatprep.subr.mxu0 0.0
      %2538 = vmatpush1.msra.mxu0 0.0
      %2539 = vmatprep.subr.mxu0 0.0
      %2540 = vmatpush1.msra.mxu0 0.0
      %2541 = vmatprep.subr.mxu0 0.0
      %2542 = vmatpush1.msra.mxu0 0.0
      %2543 = vmatprep.subr.mxu0 0.0
      %2544 = vmatpush1.msra.mxu0 0.0
      %2545 = vmatprep.subr.mxu0 0.0
      %2546 = vmatpush1.msra.mxu0 0.0
      %2547 = vmatprep.subr.mxu0 0.0
      %2548 = vmatpush1.msra.mxu0 0.0
      %2549 = vmatprep.subr.mxu0 0.0
      %2550 = vmatpush1.msra.mxu0 0.0
      %2551 = vmatprep.subr.mxu0 0.0
      %2552 = vmatpush1.msra.mxu0 0.0
      %2553 = vmatprep.subr.mxu0 0.0
      %2554 = vmatpush1.msra.mxu0 0.0
      %2555 = vmatprep.subr.mxu0 0.0
      %2556 = vmatpush1.msra.mxu0 0.0
      %2557 = vmatprep.subr.mxu0 0.0
      %2558 = vmatpush1.msra.mxu0 0.0
      %2559 = vmatprep.subr.mxu0 0.0
      %2560 = vmatpush1.msra.mxu0 0.0
      %2561 = vmatprep.subr.mxu0 0.0
      %2562 = vmatpush1.msra.mxu0 0.0
      %2563 = vmatprep.subr.mxu0 0.0
      %2564 = vmatpush1.msra.mxu0 0.0
      %2565 = vmatprep.mubr.f32.mxu0 0.0
      %2566 = vmatmul.mubr.f32.gmra.mrb[0].mxu0 %v1413
      %v2567 = vpop.f32.mrb[0].mxu0
      %v2568 = vadd.f32 0.0, %v2567
      %v2569 = vpop.f32.mrb[0].mxu0
      %2570 = vmatprep.mubr.f32.mxu0 0.0
      %2571 = vmatmul.mubr.f32.gmra.mrb[0].mxu0 %v1416
      %v2572 = vpop.f32.mrb[0].mxu0
      %v2573 = vadd.f32 0.0, %v2572
      %v2574 = vpop.f32.mrb[0].mxu0
      %2575 = vmatprep.mubr.f32.mxu0 0.0
      %2576 = vmatmul.mubr.f32.gmra.mrb[0].mxu0 %v1419
      %v2577 = vpop.f32.mrb[0].mxu0
      %v2578 = vadd.f32 0.0, %v2577
      %v2579 = vpop.f32.mrb[0].mxu0
      %2580 = vmatprep.mubr.f32.mxu0 0.0
      %2581 = vmatmul.mubr.f32.gmra.mrb[0].mxu0 %v1422
      %v2582 = vpop.f32.mrb[0].mxu0
      %v2583 = vadd.f32 0.0, %v2582
      %v2584 = vpop.f32.mrb[0].mxu0
      %2585 = vmatprep.mubr.f32.mxu0 0.0
      %2586 = vmatmul.mubr.f32.gmra.mrb[0].mxu0 %v1425
      %v2587 = vpop.f32.mrb[0].mxu0
      %v2588 = vadd.f32 0.0, %v2587
      %v2589 = vpop.f32.mrb[0].mxu0
      %2590 = vmatprep.mubr.f32.mxu0 0.0
      %2591 = vmatmul.mubr.f32.gmra.mrb[0].mxu0 %v1428
      %v2592 = vpop.f32.mrb[0].mxu0
      %v2593 = vadd.f32 0.0, %v2592
      %v2594 = vpop.f32.mrb[0].mxu0
      %2595 = vmatprep.mubr.f32.mxu0 0.0
      %2596 = vmatmul.mubr.f32.gmra.mrb[0].mxu0 %v1431
      %v2597 = vpop.f32.mrb[0].mxu0
      %v2598 = vadd.f32 0.0, %v2597
      %v2599 = vpop.f32.mrb[0].mxu0
      %2600 = vmatprep.mubr.f32.mxu0 0.0
      %2601 = vmatmul.mubr.f32.gmra.mrb[0].mxu0 %v1434
      %v2602 = vpop.f32.mrb[0].mxu0
      %v2603 = vadd.f32 0.0, %v2602
      %v2604 = vpop.f32.mrb[0].mxu0
      %2605 = vdwg.mxu0
      %v2606 = vadd.f32 %v2493, %v2568
      %v2607 = vadd.f32 %v2494, %v2573
      %v2608 = vadd.f32 %v2495, %v2578
      %v2609 = vadd.f32 %v2496, %v2583
      %v2610 = vadd.f32 %v2497, %v2588
      %v2611 = vadd.f32 %v2498, %v2593
      %v2612 = vadd.f32 %v2499, %v2598
      %v2613 = vadd.f32 %v2500, %v2603
      %2614 = vrot.lane.b32.xlu0 %v316, 119
      %v2615 = vpop.permute.xlu0 %2614
      %2616 = vrot.lane.b32.xlu0 %v317, 119
      %v2617 = vpop.permute.xlu0 %2616
      %2618 = vrot.lane.b32.xlu0 %v318, 119
      %v2619 = vpop.permute.xlu0 %2618
      %2620 = vrot.lane.b32.xlu0 %v319, 119
      %v2621 = vpop.permute.xlu0 %2620
      %2626 = vmatprep.subr.mxu0 0.0
      %2627 = vmatpush1.msra.mxu0 %v2615
      %2628 = vmatprep.subr.mxu0 0.0
      %2629 = vmatpush1.msra.mxu0 %v2617
      %2630 = vmatprep.subr.mxu0 0.0
      %2631 = vmatpush1.msra.mxu0 %v2619
      %2632 = vmatprep.subr.mxu0 0.0
      %2633 = vmatpush1.msra.mxu0 %v2621
      %2634 = vmatprep.subr.mxu0 0.0
      %2635 = vmatpush1.msra.mxu0 0.0
      %2636 = vmatprep.subr.mxu0 0.0
      %2637 = vmatpush1.msra.mxu0 0.0
      %2638 = vmatprep.subr.mxu0 0.0
      %2639 = vmatpush1.msra.mxu0 0.0
      %2640 = vmatprep.subr.mxu0 0.0
      %2641 = vmatpush1.msra.mxu0 0.0
      %2642 = vmatprep.subr.mxu0 0.0
      %2643 = vmatpush1.msra.mxu0 0.0
      %2644 = vmatprep.subr.mxu0 0.0
      %2645 = vmatpush1.msra.mxu0 0.0
      %2646 = vmatprep.subr.mxu0 0.0
      %2647 = vmatpush1.msra.mxu0 0.0
      %2648 = vmatprep.subr.mxu0 0.0
      %2649 = vmatpush1.msra.mxu0 0.0
      %2650 = vmatprep.subr.mxu0 0.0
      %2651 = vmatpush1.msra.mxu0 0.0
      %2652 = vmatprep.subr.mxu0 0.0
      %2653 = vmatpush1.msra.mxu0 0.0
      %2654 = vmatprep.subr.mxu0 0.0
      %2655 = vmatpush1.msra.mxu0 0.0
      %2656 = vmatprep.subr.mxu0 0.0
      %2657 = vmatpush1.msra.mxu0 0.0
      %2658 = vmatprep.subr.mxu0 0.0
      %2659 = vmatpush1.msra.mxu0 0.0
      %2660 = vmatprep.subr.mxu0 0.0
      %2661 = vmatpush1.msra.mxu0 0.0
      %2662 = vmatprep.subr.mxu0 0.0
      %2663 = vmatpush1.msra.mxu0 0.0
      %2664 = vmatprep.subr.mxu0 0.0
      %2665 = vmatpush1.msra.mxu0 0.0
      %2666 = vmatprep.subr.mxu0 0.0
      %2667 = vmatpush1.msra.mxu0 0.0
      %2668 = vmatprep.subr.mxu0 0.0
      %2669 = vmatpush1.msra.mxu0 0.0
      %2670 = vmatprep.subr.mxu0 0.0
      %2671 = vmatpush1.msra.mxu0 0.0
      %2672 = vmatprep.subr.mxu0 0.0
      %2673 = vmatpush1.msra.mxu0 0.0
      %2674 = vmatprep.subr.mxu0 0.0
      %2675 = vmatpush1.msra.mxu0 0.0
      %2676 = vmatprep.subr.mxu0 0.0
      %2677 = vmatpush1.msra.mxu0 0.0
      %2678 = vmatprep.subr.mxu0 0.0
      %2679 = vmatpush1.msra.mxu0 0.0
      %2680 = vmatprep.subr.mxu0 0.0
      %2681 = vmatpush1.msra.mxu0 0.0
      %2682 = vmatprep.subr.mxu0 0.0
      %2683 = vmatpush1.msra.mxu0 0.0
      %2684 = vmatprep.subr.mxu0 0.0
      %2685 = vmatpush1.msra.mxu0 0.0
      %2686 = vmatprep.subr.mxu0 0.0
      %2687 = vmatpush1.msra.mxu0 0.0
      %2688 = vmatprep.subr.mxu0 0.0
      %2689 = vmatpush1.msra.mxu0 0.0
      %2690 = vmatprep.mubr.f32.mxu0 0.0
      %2691 = vmatmul.mubr.f32.gmra.mrb[0].mxu0 %v1562
      %v2692 = vpop.f32.mrb[0].mxu0
      %v2693 = vadd.f32 0.0, %v2692
      %v2694 = vpop.f32.mrb[0].mxu0
      %2695 = vmatprep.mubr.f32.mxu0 0.0
      %2696 = vmatmul.mubr.f32.gmra.mrb[0].mxu0 %v1565
      %v2697 = vpop.f32.mrb[0].mxu0
      %v2698 = vadd.f32 0.0, %v2697
      %v2699 = vpop.f32.mrb[0].mxu0
      %2700 = vmatprep.mubr.f32.mxu0 0.0
      %2701 = vmatmul.mubr.f32.gmra.mrb[0].mxu0 %v1568
      %v2702 = vpop.f32.mrb[0].mxu0
      %v2703 = vadd.f32 0.0, %v2702
      %v2704 = vpop.f32.mrb[0].mxu0
      %2705 = vmatprep.mubr.f32.mxu0 0.0
      %2706 = vmatmul.mubr.f32.gmra.mrb[0].mxu0 %v1571
      %v2707 = vpop.f32.mrb[0].mxu0
      %v2708 = vadd.f32 0.0, %v2707
      %v2709 = vpop.f32.mrb[0].mxu0
      %2710 = vmatprep.mubr.f32.mxu0 0.0
      %2711 = vmatmul.mubr.f32.gmra.mrb[0].mxu0 %v1574
      %v2712 = vpop.f32.mrb[0].mxu0
      %v2713 = vadd.f32 0.0, %v2712
      %v2714 = vpop.f32.mrb[0].mxu0
      %2715 = vmatprep.mubr.f32.mxu0 0.0
      %2716 = vmatmul.mubr.f32.gmra.mrb[0].mxu0 %v1577
      %v2717 = vpop.f32.mrb[0].mxu0
      %v2718 = vadd.f32 0.0, %v2717
      %v2719 = vpop.f32.mrb[0].mxu0
      %2720 = vmatprep.mubr.f32.mxu0 0.0
      %2721 = vmatmul.mubr.f32.gmra.mrb[0].mxu0 %v1580
      %v2722 = vpop.f32.mrb[0].mxu0
      %v2723 = vadd.f32 0.0, %v2722
      %v2724 = vpop.f32.mrb[0].mxu0
      %2725 = vmatprep.mubr.f32.mxu0 0.0
      %2726 = vmatmul.mubr.f32.gmra.mrb[0].mxu0 %v1583
      %v2727 = vpop.f32.mrb[0].mxu0
      %v2728 = vadd.f32 0.0, %v2727
      %v2729 = vpop.f32.mrb[0].mxu0
      %2730 = vdwg.mxu0
      %v2731 = vadd.f32 %v2606, %v2693
      %v2732 = vadd.f32 %v2607, %v2698
      %v2733 = vadd.f32 %v2608, %v2703
      %v2734 = vadd.f32 %v2609, %v2708
      %v2735 = vadd.f32 %v2610, %v2713
      %v2736 = vadd.f32 %v2611, %v2718
      %v2737 = vadd.f32 %v2612, %v2723
      %v2738 = vadd.f32 %v2613, %v2728
      %v2739 = vmax.f32 %v1690, %v2731
      %v2740 = vmax.f32 %v1691, %v2732
      %v2741 = vmax.f32 %v1692, %v2733
      %v2742 = vmax.f32 %v1693, %v2734
      %v2743 = vmax.f32 %v1694, %v2735
      %v2744 = vmax.f32 %v1695, %v2736
      %v2745 = vmax.f32 %v1696, %v2737
      %v2746 = vmax.f32 %v1697, %v2738
      %2747 = vmatprep.subr.mxu0 0.0
      %2748 = vmatpush1.msra.mxu0 %v324
      %2749 = vmatprep.subr.mxu0 0.0
      %2750 = vmatpush1.msra.mxu0 %v325
      %2751 = vmatprep.subr.mxu0 0.0
      %2752 = vmatpush1.msra.mxu0 %v326
      %2753 = vmatprep.subr.mxu0 0.0
      %2754 = vmatpush1.msra.mxu0 %v327
      %2755 = vmatprep.subr.mxu0 0.0
      %2756 = vmatpush1.msra.mxu0 0.0
      %2757 = vmatprep.subr.mxu0 0.0
      %2758 = vmatpush1.msra.mxu0 0.0
      %2759 = vmatprep.subr.mxu0 0.0
      %2760 = vmatpush1.msra.mxu0 0.0
      %2761 = vmatprep.subr.mxu0 0.0
      %2762 = vmatpush1.msra.mxu0 0.0
      %2763 = vmatprep.subr.mxu0 0.0
      %2764 = vmatpush1.msra.mxu0 0.0
      %2765 = vmatprep.subr.mxu0 0.0
      %2766 = vmatpush1.msra.mxu0 0.0
      %2767 = vmatprep.subr.mxu0 0.0
      %2768 = vmatpush1.msra.mxu0 0.0
      %2769 = vmatprep.subr.mxu0 0.0
      %2770 = vmatpush1.msra.mxu0 0.0
      %2771 = vmatprep.subr.mxu0 0.0
      %2772 = vmatpush1.msra.mxu0 0.0
      %2773 = vmatprep.subr.mxu0 0.0
      %2774 = vmatpush1.msra.mxu0 0.0
      %2775 = vmatprep.subr.mxu0 0.0
      %2776 = vmatpush1.msra.mxu0 0.0
      %2777 = vmatprep.subr.mxu0 0.0
      %2778 = vmatpush1.msra.mxu0 0.0
      %2779 = vmatprep.subr.mxu0 0.0
      %2780 = vmatpush1.msra.mxu0 0.0
      %2781 = vmatprep.subr.mxu0 0.0
      %2782 = vmatpush1.msra.mxu0 0.0
      %2783 = vmatprep.subr.mxu0 0.0
      %2784 = vmatpush1.msra.mxu0 0.0
      %2785 = vmatprep.subr.mxu0 0.0
      %2786 = vmatpush1.msra.mxu0 0.0
      %2787 = vmatprep.subr.mxu0 0.0
      %2788 = vmatpush1.msra.mxu0 0.0
      %2789 = vmatprep.subr.mxu0 0.0
      %2790 = vmatpush1.msra.mxu0 0.0
      %2791 = vmatprep.subr.mxu0 0.0
      %2792 = vmatpush1.msra.mxu0 0.0
      %2793 = vmatprep.subr.mxu0 0.0
      %2794 = vmatpush1.msra.mxu0 0.0
      %2795 = vmatprep.subr.mxu0 0.0
      %2796 = vmatpush1.msra.mxu0 0.0
      %2797 = vmatprep.subr.mxu0 0.0
      %2798 = vmatpush1.msra.mxu0 0.0
      %2799 = vmatprep.subr.mxu0 0.0
      %2800 = vmatpush1.msra.mxu0 0.0
      %2801 = vmatprep.subr.mxu0 0.0
      %2802 = vmatpush1.msra.mxu0 0.0
      %2803 = vmatprep.subr.mxu0 0.0
      %2804 = vmatpush1.msra.mxu0 0.0
      %2805 = vmatprep.subr.mxu0 0.0
      %2806 = vmatpush1.msra.mxu0 0.0
      %2807 = vmatprep.subr.mxu0 0.0
      %2808 = vmatpush1.msra.mxu0 0.0
      %2809 = vmatprep.subr.mxu0 0.0
      %2810 = vmatpush1.msra.mxu0 0.0
      %2811 = vmatprep.mubr.f32.mxu0 0.0
      %2812 = vmatmul.mubr.f32.gmra.mrb[0].mxu0 %v410
      %v2813 = vpop.f32.mrb[0].mxu0
      %v2814 = vadd.f32 0.0, %v2813
      %v2815 = vpop.f32.mrb[0].mxu0
      %2816 = vmatprep.mubr.f32.mxu0 0.0
      %2817 = vmatmul.mubr.f32.gmra.mrb[0].mxu0 %v413
      %v2818 = vpop.f32.mrb[0].mxu0
      %v2819 = vadd.f32 0.0, %v2818
      %v2820 = vpop.f32.mrb[0].mxu0
      %2821 = vmatprep.mubr.f32.mxu0 0.0
      %2822 = vmatmul.mubr.f32.gmra.mrb[0].mxu0 %v416
      %v2823 = vpop.f32.mrb[0].mxu0
      %v2824 = vadd.f32 0.0, %v2823
      %v2825 = vpop.f32.mrb[0].mxu0
      %2826 = vmatprep.mubr.f32.mxu0 0.0
      %2827 = vmatmul.mubr.f32.gmra.mrb[0].mxu0 %v419
      %v2828 = vpop.f32.mrb[0].mxu0
      %v2829 = vadd.f32 0.0, %v2828
      %v2830 = vpop.f32.mrb[0].mxu0
      %2831 = vmatprep.mubr.f32.mxu0 0.0
      %2832 = vmatmul.mubr.f32.gmra.mrb[0].mxu0 %v422
      %v2833 = vpop.f32.mrb[0].mxu0
      %v2834 = vadd.f32 0.0, %v2833
      %v2835 = vpop.f32.mrb[0].mxu0
      %2836 = vmatprep.mubr.f32.mxu0 0.0
      %2837 = vmatmul.mubr.f32.gmra.mrb[0].mxu0 %v425
      %v2838 = vpop.f32.mrb[0].mxu0
      %v2839 = vadd.f32 0.0, %v2838
      %v2840 = vpop.f32.mrb[0].mxu0
      %2841 = vmatprep.mubr.f32.mxu0 0.0
      %2842 = vmatmul.mubr.f32.gmra.mrb[0].mxu0 %v428
      %v2843 = vpop.f32.mrb[0].mxu0
      %v2844 = vadd.f32 0.0, %v2843
      %v2845 = vpop.f32.mrb[0].mxu0
      %2846 = vmatprep.mubr.f32.mxu0 0.0
      %2847 = vmatmul.mubr.f32.gmra.mrb[0].mxu0 %v431
      %v2848 = vpop.f32.mrb[0].mxu0
      %v2849 = vadd.f32 0.0, %v2848
      %v2850 = vpop.f32.mrb[0].mxu0
      %2851 = vdwg.mxu0
      %2852 = vmatprep.subr.mxu0 0.0
      %2853 = vmatpush1.msra.mxu0 %v320
      %2854 = vmatprep.subr.mxu0 0.0
      %2855 = vmatpush1.msra.mxu0 %v321
      %2856 = vmatprep.subr.mxu0 0.0
      %2857 = vmatpush1.msra.mxu0 %v322
      %2858 = vmatprep.subr.mxu0 0.0
      %2859 = vmatpush1.msra.mxu0 %v323
      %2860 = vmatprep.subr.mxu0 0.0
      %2861 = vmatpush1.msra.mxu0 0.0
      %2862 = vmatprep.subr.mxu0 0.0
      %2863 = vmatpush1.msra.mxu0 0.0
      %2864 = vmatprep.subr.mxu0 0.0
      %2865 = vmatpush1.msra.mxu0 0.0
      %2866 = vmatprep.subr.mxu0 0.0
      %2867 = vmatpush1.msra.mxu0 0.0
      %2868 = vmatprep.subr.mxu0 0.0
      %2869 = vmatpush1.msra.mxu0 0.0
      %2870 = vmatprep.subr.mxu0 0.0
      %2871 = vmatpush1.msra.mxu0 0.0
      %2872 = vmatprep.subr.mxu0 0.0
      %2873 = vmatpush1.msra.mxu0 0.0
      %2874 = vmatprep.subr.mxu0 0.0
      %2875 = vmatpush1.msra.mxu0 0.0
      %2876 = vmatprep.subr.mxu0 0.0
      %2877 = vmatpush1.msra.mxu0 0.0
      %2878 = vmatprep.subr.mxu0 0.0
      %2879 = vmatpush1.msra.mxu0 0.0
      %2880 = vmatprep.subr.mxu0 0.0
      %2881 = vmatpush1.msra.mxu0 0.0
      %2882 = vmatprep.subr.mxu0 0.0
      %2883 = vmatpush1.msra.mxu0 0.0
      %2884 = vmatprep.subr.mxu0 0.0
      %2885 = vmatpush1.msra.mxu0 0.0
      %2886 = vmatprep.subr.mxu0 0.0
      %2887 = vmatpush1.msra.mxu0 0.0
      %2888 = vmatprep.subr.mxu0 0.0
      %2889 = vmatpush1.msra.mxu0 0.0
      %2890 = vmatprep.subr.mxu0 0.0
      %2891 = vmatpush1.msra.mxu0 0.0
      %2892 = vmatprep.subr.mxu0 0.0
      %2893 = vmatpush1.msra.mxu0 0.0
      %2894 = vmatprep.subr.mxu0 0.0
      %2895 = vmatpush1.msra.mxu0 0.0
      %2896 = vmatprep.subr.mxu0 0.0
      %2897 = vmatpush1.msra.mxu0 0.0
      %2898 = vmatprep.subr.mxu0 0.0
      %2899 = vmatpush1.msra.mxu0 0.0
      %2900 = vmatprep.subr.mxu0 0.0
      %2901 = vmatpush1.msra.mxu0 0.0
      %2902 = vmatprep.subr.mxu0 0.0
      %2903 = vmatpush1.msra.mxu0 0.0
      %2904 = vmatprep.subr.mxu0 0.0
      %2905 = vmatpush1.msra.mxu0 0.0
      %2906 = vmatprep.subr.mxu0 0.0
      %2907 = vmatpush1.msra.mxu0 0.0
      %2908 = vmatprep.subr.mxu0 0.0
      %2909 = vmatpush1.msra.mxu0 0.0
      %2910 = vmatprep.subr.mxu0 0.0
      %2911 = vmatpush1.msra.mxu0 0.0
      %2912 = vmatprep.subr.mxu0 0.0
      %2913 = vmatpush1.msra.mxu0 0.0
      %2914 = vmatprep.subr.mxu0 0.0
      %2915 = vmatpush1.msra.mxu0 0.0
      %2916 = vmatprep.mubr.f32.mxu0 0.0
      %2917 = vmatmul.mubr.f32.gmra.mrb[0].mxu0 %v539
      %v2918 = vpop.f32.mrb[0].mxu0
      %v2919 = vadd.f32 %v2814, %v2918
      %v2920 = vpop.f32.mrb[0].mxu0
      %2921 = vmatprep.mubr.f32.mxu0 0.0
      %2922 = vmatmul.mubr.f32.gmra.mrb[0].mxu0 %v542
      %v2923 = vpop.f32.mrb[0].mxu0
      %v2924 = vadd.f32 %v2819, %v2923
      %v2925 = vpop.f32.mrb[0].mxu0
      %2926 = vmatprep.mubr.f32.mxu0 0.0
      %2927 = vmatmul.mubr.f32.gmra.mrb[0].mxu0 %v545
      %v2928 = vpop.f32.mrb[0].mxu0
      %v2929 = vadd.f32 %v2824, %v2928
      %v2930 = vpop.f32.mrb[0].mxu0
      %2931 = vmatprep.mubr.f32.mxu0 0.0
      %2932 = vmatmul.mubr.f32.gmra.mrb[0].mxu0 %v548
      %v2933 = vpop.f32.mrb[0].mxu0
      %v2934 = vadd.f32 %v2829, %v2933
      %v2935 = vpop.f32.mrb[0].mxu0
      %2936 = vmatprep.mubr.f32.mxu0 0.0
      %2937 = vmatmul.mubr.f32.gmra.mrb[0].mxu0 %v551
      %v2938 = vpop.f32.mrb[0].mxu0
      %v2939 = vadd.f32 %v2834, %v2938
      %v2940 = vpop.f32.mrb[0].mxu0
      %2941 = vmatprep.mubr.f32.mxu0 0.0
      %2942 = vmatmul.mubr.f32.gmra.mrb[0].mxu0 %v554
      %v2943 = vpop.f32.mrb[0].mxu0
      %v2944 = vadd.f32 %v2839, %v2943
      %v2945 = vpop.f32.mrb[0].mxu0
      %2946 = vmatprep.mubr.f32.mxu0 0.0
      %2947 = vmatmul.mubr.f32.gmra.mrb[0].mxu0 %v557
      %v2948 = vpop.f32.mrb[0].mxu0
      %v2949 = vadd.f32 %v2844, %v2948
      %v2950 = vpop.f32.mrb[0].mxu0
      %2951 = vmatprep.mubr.f32.mxu0 0.0
      %2952 = vmatmul.mubr.f32.gmra.mrb[0].mxu0 %v560
      %v2953 = vpop.f32.mrb[0].mxu0
      %v2954 = vadd.f32 %v2849, %v2953
      %v2955 = vpop.f32.mrb[0].mxu0
      %2956 = vdwg.mxu0
      %2957 = vmatprep.subr.mxu0 0.0
      %2958 = vmatpush1.msra.mxu0 %v1099
      %2959 = vmatprep.subr.mxu0 0.0
      %2960 = vmatpush1.msra.mxu0 %v1101
      %2961 = vmatprep.subr.mxu0 0.0
      %2962 = vmatpush1.msra.mxu0 %v1103
      %2963 = vmatprep.subr.mxu0 0.0
      %2964 = vmatpush1.msra.mxu0 %v1105
      %2965 = vmatprep.subr.mxu0 0.0
      %2966 = vmatpush1.msra.mxu0 0.0
      %2967 = vmatprep.subr.mxu0 0.0
      %2968 = vmatpush1.msra.mxu0 0.0
      %2969 = vmatprep.subr.mxu0 0.0
      %2970 = vmatpush1.msra.mxu0 0.0
      %2971 = vmatprep.subr.mxu0 0.0
      %2972 = vmatpush1.msra.mxu0 0.0
      %2973 = vmatprep.subr.mxu0 0.0
      %2974 = vmatpush1.msra.mxu0 0.0
      %2975 = vmatprep.subr.mxu0 0.0
      %2976 = vmatpush1.msra.mxu0 0.0
      %2977 = vmatprep.subr.mxu0 0.0
      %2978 = vmatpush1.msra.mxu0 0.0
      %2979 = vmatprep.subr.mxu0 0.0
      %2980 = vmatpush1.msra.mxu0 0.0
      %2981 = vmatprep.subr.mxu0 0.0
      %2982 = vmatpush1.msra.mxu0 0.0
      %2983 = vmatprep.subr.mxu0 0.0
      %2984 = vmatpush1.msra.mxu0 0.0
      %2985 = vmatprep.subr.mxu0 0.0
      %2986 = vmatpush1.msra.mxu0 0.0
      %2987 = vmatprep.subr.mxu0 0.0
      %2988 = vmatpush1.msra.mxu0 0.0
      %2989 = vmatprep.subr.mxu0 0.0
      %2990 = vmatpush1.msra.mxu0 0.0
      %2991 = vmatprep.subr.mxu0 0.0
      %2992 = vmatpush1.msra.mxu0 0.0
      %2993 = vmatprep.subr.mxu0 0.0
      %2994 = vmatpush1.msra.mxu0 0.0
      %2995 = vmatprep.subr.mxu0 0.0
      %2996 = vmatpush1.msra.mxu0 0.0
      %2997 = vmatprep.subr.mxu0 0.0
      %2998 = vmatpush1.msra.mxu0 0.0
      %2999 = vmatprep.subr.mxu0 0.0
      %3000 = vmatpush1.msra.mxu0 0.0
      %3001 = vmatprep.subr.mxu0 0.0
      %3002 = vmatpush1.msra.mxu0 0.0
      %3003 = vmatprep.subr.mxu0 0.0
      %3004 = vmatpush1.msra.mxu0 0.0
      %3005 = vmatprep.subr.mxu0 0.0
      %3006 = vmatpush1.msra.mxu0 0.0
      %3007 = vmatprep.subr.mxu0 0.0
      %3008 = vmatpush1.msra.mxu0 0.0
      %3009 = vmatprep.subr.mxu0 0.0
      %3010 = vmatpush1.msra.mxu0 0.0
      %3011 = vmatprep.subr.mxu0 0.0
      %3012 = vmatpush1.msra.mxu0 0.0
      %3013 = vmatprep.subr.mxu0 0.0
      %3014 = vmatpush1.msra.mxu0 0.0
      %3015 = vmatprep.subr.mxu0 0.0
      %3016 = vmatpush1.msra.mxu0 0.0
      %3017 = vmatprep.subr.mxu0 0.0
      %3018 = vmatpush1.msra.mxu0 0.0
      %3019 = vmatprep.subr.mxu0 0.0
      %3020 = vmatpush1.msra.mxu0 0.0
      %3021 = vmatprep.mubr.f32.mxu0 0.0
      %3022 = vmatmul.mubr.f32.gmra.mrb[0].mxu0 %v684
      %v3023 = vpop.f32.mrb[0].mxu0
      %v3024 = vadd.f32 0.0, %v3023
      %v3025 = vpop.f32.mrb[0].mxu0
      %3026 = vmatprep.mubr.f32.mxu0 0.0
      %3027 = vmatmul.mubr.f32.gmra.mrb[0].mxu0 %v687
      %v3028 = vpop.f32.mrb[0].mxu0
      %v3029 = vadd.f32 0.0, %v3028
      %v3030 = vpop.f32.mrb[0].mxu0
      %3031 = vmatprep.mubr.f32.mxu0 0.0
      %3032 = vmatmul.mubr.f32.gmra.mrb[0].mxu0 %v690
      %v3033 = vpop.f32.mrb[0].mxu0
      %v3034 = vadd.f32 0.0, %v3033
      %v3035 = vpop.f32.mrb[0].mxu0
      %3036 = vmatprep.mubr.f32.mxu0 0.0
      %3037 = vmatmul.mubr.f32.gmra.mrb[0].mxu0 %v693
      %v3038 = vpop.f32.mrb[0].mxu0
      %v3039 = vadd.f32 0.0, %v3038
      %v3040 = vpop.f32.mrb[0].mxu0
      %3041 = vmatprep.mubr.f32.mxu0 0.0
      %3042 = vmatmul.mubr.f32.gmra.mrb[0].mxu0 %v696
      %v3043 = vpop.f32.mrb[0].mxu0
      %v3044 = vadd.f32 0.0, %v3043
      %v3045 = vpop.f32.mrb[0].mxu0
      %3046 = vmatprep.mubr.f32.mxu0 0.0
      %3047 = vmatmul.mubr.f32.gmra.mrb[0].mxu0 %v699
      %v3048 = vpop.f32.mrb[0].mxu0
      %v3049 = vadd.f32 0.0, %v3048
      %v3050 = vpop.f32.mrb[0].mxu0
      %3051 = vmatprep.mubr.f32.mxu0 0.0
      %3052 = vmatmul.mubr.f32.gmra.mrb[0].mxu0 %v702
      %v3053 = vpop.f32.mrb[0].mxu0
      %v3054 = vadd.f32 0.0, %v3053
      %v3055 = vpop.f32.mrb[0].mxu0
      %3056 = vmatprep.mubr.f32.mxu0 0.0
      %3057 = vmatmul.mubr.f32.gmra.mrb[0].mxu0 %v705
      %v3058 = vpop.f32.mrb[0].mxu0
      %v3059 = vadd.f32 0.0, %v3058
      %v3060 = vpop.f32.mrb[0].mxu0
      %3061 = vdwg.mxu0
      %v3062 = vadd.f32 %v2919, %v3024
      %v3063 = vadd.f32 %v2924, %v3029
      %v3064 = vadd.f32 %v2929, %v3034
      %v3065 = vadd.f32 %v2934, %v3039
      %v3066 = vadd.f32 %v2939, %v3044
      %v3067 = vadd.f32 %v2944, %v3049
      %v3068 = vadd.f32 %v2949, %v3054
      %v3069 = vadd.f32 %v2954, %v3059
      %3070 = vmatprep.subr.mxu0 0.0
      %3071 = vmatpush1.msra.mxu0 %v1248
      %3072 = vmatprep.subr.mxu0 0.0
      %3073 = vmatpush1.msra.mxu0 %v1250
      %3074 = vmatprep.subr.mxu0 0.0
      %3075 = vmatpush1.msra.mxu0 %v1252
      %3076 = vmatprep.subr.mxu0 0.0
      %3077 = vmatpush1.msra.mxu0 %v1254
      %3078 = vmatprep.subr.mxu0 0.0
      %3079 = vmatpush1.msra.mxu0 0.0
      %3080 = vmatprep.subr.mxu0 0.0
      %3081 = vmatpush1.msra.mxu0 0.0
      %3082 = vmatprep.subr.mxu0 0.0
      %3083 = vmatpush1.msra.mxu0 0.0
      %3084 = vmatprep.subr.mxu0 0.0
      %3085 = vmatpush1.msra.mxu0 0.0
      %3086 = vmatprep.subr.mxu0 0.0
      %3087 = vmatpush1.msra.mxu0 0.0
      %3088 = vmatprep.subr.mxu0 0.0
      %3089 = vmatpush1.msra.mxu0 0.0
      %3090 = vmatprep.subr.mxu0 0.0
      %3091 = vmatpush1.msra.mxu0 0.0
      %3092 = vmatprep.subr.mxu0 0.0
      %3093 = vmatpush1.msra.mxu0 0.0
      %3094 = vmatprep.subr.mxu0 0.0
      %3095 = vmatpush1.msra.mxu0 0.0
      %3096 = vmatprep.subr.mxu0 0.0
      %3097 = vmatpush1.msra.mxu0 0.0
      %3098 = vmatprep.subr.mxu0 0.0
      %3099 = vmatpush1.msra.mxu0 0.0
      %3100 = vmatprep.subr.mxu0 0.0
      %3101 = vmatpush1.msra.mxu0 0.0
      %3102 = vmatprep.subr.mxu0 0.0
      %3103 = vmatpush1.msra.mxu0 0.0
      %3104 = vmatprep.subr.mxu0 0.0
      %3105 = vmatpush1.msra.mxu0 0.0
      %3106 = vmatprep.subr.mxu0 0.0
      %3107 = vmatpush1.msra.mxu0 0.0
      %3108 = vmatprep.subr.mxu0 0.0
      %3109 = vmatpush1.msra.mxu0 0.0
      %3110 = vmatprep.subr.mxu0 0.0
      %3111 = vmatpush1.msra.mxu0 0.0
      %3112 = vmatprep.subr.mxu0 0.0
      %3113 = vmatpush1.msra.mxu0 0.0
      %3114 = vmatprep.subr.mxu0 0.0
      %3115 = vmatpush1.msra.mxu0 0.0
      %3116 = vmatprep.subr.mxu0 0.0
      %3117 = vmatpush1.msra.mxu0 0.0
      %3118 = vmatprep.subr.mxu0 0.0
      %3119 = vmatpush1.msra.mxu0 0.0
      %3120 = vmatprep.subr.mxu0 0.0
      %3121 = vmatpush1.msra.mxu0 0.0
      %3122 = vmatprep.subr.mxu0 0.0
      %3123 = vmatpush1.msra.mxu0 0.0
      %3124 = vmatprep.subr.mxu0 0.0
      %3125 = vmatpush1.msra.mxu0 0.0
      %3126 = vmatprep.subr.mxu0 0.0
      %3127 = vmatpush1.msra.mxu0 0.0
      %3128 = vmatprep.subr.mxu0 0.0
      %3129 = vmatpush1.msra.mxu0 0.0
      %3130 = vmatprep.subr.mxu0 0.0
      %3131 = vmatpush1.msra.mxu0 0.0
      %3132 = vmatprep.subr.mxu0 0.0
      %3133 = vmatpush1.msra.mxu0 0.0
      %3134 = vmatprep.mubr.f32.mxu0 0.0
      %3135 = vmatmul.mubr.f32.gmra.mrb[0].mxu0 %v821
      %v3136 = vpop.f32.mrb[0].mxu0
      %v3137 = vadd.f32 0.0, %v3136
      %v3138 = vpop.f32.mrb[0].mxu0
      %3139 = vmatprep.mubr.f32.mxu0 0.0
      %3140 = vmatmul.mubr.f32.gmra.mrb[0].mxu0 %v824
      %v3141 = vpop.f32.mrb[0].mxu0
      %v3142 = vadd.f32 0.0, %v3141
      %v3143 = vpop.f32.mrb[0].mxu0
      %3144 = vmatprep.mubr.f32.mxu0 0.0
      %3145 = vmatmul.mubr.f32.gmra.mrb[0].mxu0 %v827
      %v3146 = vpop.f32.mrb[0].mxu0
      %v3147 = vadd.f32 0.0, %v3146
      %v3148 = vpop.f32.mrb[0].mxu0
      %3149 = vmatprep.mubr.f32.mxu0 0.0
      %3150 = vmatmul.mubr.f32.gmra.mrb[0].mxu0 %v830
      %v3151 = vpop.f32.mrb[0].mxu0
      %v3152 = vadd.f32 0.0, %v3151
      %v3153 = vpop.f32.mrb[0].mxu0
      %3154 = vmatprep.mubr.f32.mxu0 0.0
      %3155 = vmatmul.mubr.f32.gmra.mrb[0].mxu0 %v833
      %v3156 = vpop.f32.mrb[0].mxu0
      %v3157 = vadd.f32 0.0, %v3156
      %v3158 = vpop.f32.mrb[0].mxu0
      %3159 = vmatprep.mubr.f32.mxu0 0.0
      %3160 = vmatmul.mubr.f32.gmra.mrb[0].mxu0 %v836
      %v3161 = vpop.f32.mrb[0].mxu0
      %v3162 = vadd.f32 0.0, %v3161
      %v3163 = vpop.f32.mrb[0].mxu0
      %3164 = vmatprep.mubr.f32.mxu0 0.0
      %3165 = vmatmul.mubr.f32.gmra.mrb[0].mxu0 %v839
      %v3166 = vpop.f32.mrb[0].mxu0
      %v3167 = vadd.f32 0.0, %v3166
      %v3168 = vpop.f32.mrb[0].mxu0
      %3169 = vmatprep.mubr.f32.mxu0 0.0
      %3170 = vmatmul.mubr.f32.gmra.mrb[0].mxu0 %v842
      %v3171 = vpop.f32.mrb[0].mxu0
      %v3172 = vadd.f32 0.0, %v3171
      %v3173 = vpop.f32.mrb[0].mxu0
      %3174 = vdwg.mxu0
      %v3175 = vadd.f32 %v3062, %v3137
      %v3176 = vadd.f32 %v3063, %v3142
      %v3177 = vadd.f32 %v3064, %v3147
      %v3178 = vadd.f32 %v3065, %v3152
      %v3179 = vadd.f32 %v3066, %v3157
      %v3180 = vadd.f32 %v3067, %v3162
      %v3181 = vadd.f32 %v3068, %v3167
      %v3182 = vadd.f32 %v3069, %v3172
      %3183 = vmatprep.subr.mxu0 0.0
      %3184 = vmatpush1.msra.mxu0 %v1401
      %3185 = vmatprep.subr.mxu0 0.0
      %3186 = vmatpush1.msra.mxu0 %v1403
      %3187 = vmatprep.subr.mxu0 0.0
      %3188 = vmatpush1.msra.mxu0 %v1405
      %3189 = vmatprep.subr.mxu0 0.0
      %3190 = vmatpush1.msra.mxu0 %v1407
      %3191 = vmatprep.subr.mxu0 0.0
      %3192 = vmatpush1.msra.mxu0 0.0
      %3193 = vmatprep.subr.mxu0 0.0
      %3194 = vmatpush1.msra.mxu0 0.0
      %3195 = vmatprep.subr.mxu0 0.0
      %3196 = vmatpush1.msra.mxu0 0.0
      %3197 = vmatprep.subr.mxu0 0.0
      %3198 = vmatpush1.msra.mxu0 0.0
      %3199 = vmatprep.subr.mxu0 0.0
      %3200 = vmatpush1.msra.mxu0 0.0
      %3201 = vmatprep.subr.mxu0 0.0
      %3202 = vmatpush1.msra.mxu0 0.0
      %3203 = vmatprep.subr.mxu0 0.0
      %3204 = vmatpush1.msra.mxu0 0.0
      %3205 = vmatprep.subr.mxu0 0.0
      %3206 = vmatpush1.msra.mxu0 0.0
      %3207 = vmatprep.subr.mxu0 0.0
      %3208 = vmatpush1.msra.mxu0 0.0
      %3209 = vmatprep.subr.mxu0 0.0
      %3210 = vmatpush1.msra.mxu0 0.0
      %3211 = vmatprep.subr.mxu0 0.0
      %3212 = vmatpush1.msra.mxu0 0.0
      %3213 = vmatprep.subr.mxu0 0.0
      %3214 = vmatpush1.msra.mxu0 0.0
      %3215 = vmatprep.subr.mxu0 0.0
      %3216 = vmatpush1.msra.mxu0 0.0
      %3217 = vmatprep.subr.mxu0 0.0
      %3218 = vmatpush1.msra.mxu0 0.0
      %3219 = vmatprep.subr.mxu0 0.0
      %3220 = vmatpush1.msra.mxu0 0.0
      %3221 = vmatprep.subr.mxu0 0.0
      %3222 = vmatpush1.msra.mxu0 0.0
      %3223 = vmatprep.subr.mxu0 0.0
      %3224 = vmatpush1.msra.mxu0 0.0
      %3225 = vmatprep.subr.mxu0 0.0
      %3226 = vmatpush1.msra.mxu0 0.0
      %3227 = vmatprep.subr.mxu0 0.0
      %3228 = vmatpush1.msra.mxu0 0.0
      %3229 = vmatprep.subr.mxu0 0.0
      %3230 = vmatpush1.msra.mxu0 0.0
      %3231 = vmatprep.subr.mxu0 0.0
      %3232 = vmatpush1.msra.mxu0 0.0
      %3233 = vmatprep.subr.mxu0 0.0
      %3234 = vmatpush1.msra.mxu0 0.0
      %3235 = vmatprep.subr.mxu0 0.0
      %3236 = vmatpush1.msra.mxu0 0.0
      %3237 = vmatprep.subr.mxu0 0.0
      %3238 = vmatpush1.msra.mxu0 0.0
      %3239 = vmatprep.subr.mxu0 0.0
      %3240 = vmatpush1.msra.mxu0 0.0
      %3241 = vmatprep.subr.mxu0 0.0
      %3242 = vmatpush1.msra.mxu0 0.0
      %3243 = vmatprep.subr.mxu0 0.0
      %3244 = vmatpush1.msra.mxu0 0.0
      %3245 = vmatprep.subr.mxu0 0.0
      %3246 = vmatpush1.msra.mxu0 0.0
      %3247 = vmatprep.mubr.f32.mxu0 0.0
      %3248 = vmatmul.mubr.f32.gmra.mrb[0].mxu0 %v958
      %v3249 = vpop.f32.mrb[0].mxu0
      %v3250 = vadd.f32 0.0, %v3249
      %v3251 = vpop.f32.mrb[0].mxu0
      %3252 = vmatprep.mubr.f32.mxu0 0.0
      %3253 = vmatmul.mubr.f32.gmra.mrb[0].mxu0 %v961
      %v3254 = vpop.f32.mrb[0].mxu0
      %v3255 = vadd.f32 0.0, %v3254
      %v3256 = vpop.f32.mrb[0].mxu0
      %3257 = vmatprep.mubr.f32.mxu0 0.0
      %3258 = vmatmul.mubr.f32.gmra.mrb[0].mxu0 %v964
      %v3259 = vpop.f32.mrb[0].mxu0
      %v3260 = vadd.f32 0.0, %v3259
      %v3261 = vpop.f32.mrb[0].mxu0
      %3262 = vmatprep.mubr.f32.mxu0 0.0
      %3263 = vmatmul.mubr.f32.gmra.mrb[0].mxu0 %v967
      %v3264 = vpop.f32.mrb[0].mxu0
      %v3265 = vadd.f32 0.0, %v3264
      %v3266 = vpop.f32.mrb[0].mxu0
      %3267 = vmatprep.mubr.f32.mxu0 0.0
      %3268 = vmatmul.mubr.f32.gmra.mrb[0].mxu0 %v970
      %v3269 = vpop.f32.mrb[0].mxu0
      %v3270 = vadd.f32 0.0, %v3269
      %v3271 = vpop.f32.mrb[0].mxu0
      %3272 = vmatprep.mubr.f32.mxu0 0.0
      %3273 = vmatmul.mubr.f32.gmra.mrb[0].mxu0 %v973
      %v3274 = vpop.f32.mrb[0].mxu0
      %v3275 = vadd.f32 0.0, %v3274
      %v3276 = vpop.f32.mrb[0].mxu0
      %3277 = vmatprep.mubr.f32.mxu0 0.0
      %3278 = vmatmul.mubr.f32.gmra.mrb[0].mxu0 %v976
      %v3279 = vpop.f32.mrb[0].mxu0
      %v3280 = vadd.f32 0.0, %v3279
      %v3281 = vpop.f32.mrb[0].mxu0
      %3282 = vmatprep.mubr.f32.mxu0 0.0
      %3283 = vmatmul.mubr.f32.gmra.mrb[0].mxu0 %v979
      %v3284 = vpop.f32.mrb[0].mxu0
      %v3285 = vadd.f32 0.0, %v3284
      %v3286 = vpop.f32.mrb[0].mxu0
      %3287 = vdwg.mxu0
      %v3288 = vadd.f32 %v3175, %v3250
      %v3289 = vadd.f32 %v3176, %v3255
      %v3290 = vadd.f32 %v3177, %v3260
      %v3291 = vadd.f32 %v3178, %v3265
      %v3292 = vadd.f32 %v3179, %v3270
      %v3293 = vadd.f32 %v3180, %v3275
      %v3294 = vadd.f32 %v3181, %v3280
      %v3295 = vadd.f32 %v3182, %v3285
      %3296 = vmatprep.subr.mxu0 0.0
      %3297 = vmatpush1.msra.mxu0 %v1550
      %3298 = vmatprep.subr.mxu0 0.0
      %3299 = vmatpush1.msra.mxu0 %v1552
      %3300 = vmatprep.subr.mxu0 0.0
      %3301 = vmatpush1.msra.mxu0 %v1554
      %3302 = vmatprep.subr.mxu0 0.0
      %3303 = vmatpush1.msra.mxu0 %v1556
      %3304 = vmatprep.subr.mxu0 0.0
      %3305 = vmatpush1.msra.mxu0 0.0
      %3306 = vmatprep.subr.mxu0 0.0
      %3307 = vmatpush1.msra.mxu0 0.0
      %3308 = vmatprep.subr.mxu0 0.0
      %3309 = vmatpush1.msra.mxu0 0.0
      %3310 = vmatprep.subr.mxu0 0.0
      %3311 = vmatpush1.msra.mxu0 0.0
      %3312 = vmatprep.subr.mxu0 0.0
      %3313 = vmatpush1.msra.mxu0 0.0
      %3314 = vmatprep.subr.mxu0 0.0
      %3315 = vmatpush1.msra.mxu0 0.0
      %3316 = vmatprep.subr.mxu0 0.0
      %3317 = vmatpush1.msra.mxu0 0.0
      %3318 = vmatprep.subr.mxu0 0.0
      %3319 = vmatpush1.msra.mxu0 0.0
      %3320 = vmatprep.subr.mxu0 0.0
      %3321 = vmatpush1.msra.mxu0 0.0
      %3322 = vmatprep.subr.mxu0 0.0
      %3323 = vmatpush1.msra.mxu0 0.0
      %3324 = vmatprep.subr.mxu0 0.0
      %3325 = vmatpush1.msra.mxu0 0.0
      %3326 = vmatprep.subr.mxu0 0.0
      %3327 = vmatpush1.msra.mxu0 0.0
      %3328 = vmatprep.subr.mxu0 0.0
      %3329 = vmatpush1.msra.mxu0 0.0
      %3330 = vmatprep.subr.mxu0 0.0
      %3331 = vmatpush1.msra.mxu0 0.0
      %3332 = vmatprep.subr.mxu0 0.0
      %3333 = vmatpush1.msra.mxu0 0.0
      %3334 = vmatprep.subr.mxu0 0.0
      %3335 = vmatpush1.msra.mxu0 0.0
      %3336 = vmatprep.subr.mxu0 0.0
      %3337 = vmatpush1.msra.mxu0 0.0
      %3338 = vmatprep.subr.mxu0 0.0
      %3339 = vmatpush1.msra.mxu0 0.0
      %3340 = vmatprep.subr.mxu0 0.0
      %3341 = vmatpush1.msra.mxu0 0.0
      %3342 = vmatprep.subr.mxu0 0.0
      %3343 = vmatpush1.msra.mxu0 0.0
      %3344 = vmatprep.subr.mxu0 0.0
      %3345 = vmatpush1.msra.mxu0 0.0
      %3346 = vmatprep.subr.mxu0 0.0
      %3347 = vmatpush1.msra.mxu0 0.0
      %3348 = vmatprep.subr.mxu0 0.0
      %3349 = vmatpush1.msra.mxu0 0.0
      %3350 = vmatprep.subr.mxu0 0.0
      %3351 = vmatpush1.msra.mxu0 0.0
      %3352 = vmatprep.subr.mxu0 0.0
      %3353 = vmatpush1.msra.mxu0 0.0
      %3354 = vmatprep.subr.mxu0 0.0
      %3355 = vmatpush1.msra.mxu0 0.0
      %3356 = vmatprep.subr.mxu0 0.0
      %3357 = vmatpush1.msra.mxu0 0.0
      %3358 = vmatprep.subr.mxu0 0.0
      %3359 = vmatpush1.msra.mxu0 0.0
      %3360 = vmatprep.mubr.f32.mxu0 0.0
      %3361 = vmatmul.mubr.f32.gmra.mrb[0].mxu0 %v1111
      %v3362 = vpop.f32.mrb[0].mxu0
      %v3363 = vadd.f32 0.0, %v3362
      %v3364 = vpop.f32.mrb[0].mxu0
      %3365 = vmatprep.mubr.f32.mxu0 0.0
      %3366 = vmatmul.mubr.f32.gmra.mrb[0].mxu0 %v1114
      %v3367 = vpop.f32.mrb[0].mxu0
      %v3368 = vadd.f32 0.0, %v3367
      %v3369 = vpop.f32.mrb[0].mxu0
      %3370 = vmatprep.mubr.f32.mxu0 0.0
      %3371 = vmatmul.mubr.f32.gmra.mrb[0].mxu0 %v1117
      %v3372 = vpop.f32.mrb[0].mxu0
      %v3373 = vadd.f32 0.0, %v3372
      %v3374 = vpop.f32.mrb[0].mxu0
      %3375 = vmatprep.mubr.f32.mxu0 0.0
      %3376 = vmatmul.mubr.f32.gmra.mrb[0].mxu0 %v1120
      %v3377 = vpop.f32.mrb[0].mxu0
      %v3378 = vadd.f32 0.0, %v3377
      %v3379 = vpop.f32.mrb[0].mxu0
      %3380 = vmatprep.mubr.f32.mxu0 0.0
      %3381 = vmatmul.mubr.f32.gmra.mrb[0].mxu0 %v1123
      %v3382 = vpop.f32.mrb[0].mxu0
      %v3383 = vadd.f32 0.0, %v3382
      %v3384 = vpop.f32.mrb[0].mxu0
      %3385 = vmatprep.mubr.f32.mxu0 0.0
      %3386 = vmatmul.mubr.f32.gmra.mrb[0].mxu0 %v1126
      %v3387 = vpop.f32.mrb[0].mxu0
      %v3388 = vadd.f32 0.0, %v3387
      %v3389 = vpop.f32.mrb[0].mxu0
      %3390 = vmatprep.mubr.f32.mxu0 0.0
      %3391 = vmatmul.mubr.f32.gmra.mrb[0].mxu0 %v1129
      %v3392 = vpop.f32.mrb[0].mxu0
      %v3393 = vadd.f32 0.0, %v3392
      %v3394 = vpop.f32.mrb[0].mxu0
      %3395 = vmatprep.mubr.f32.mxu0 0.0
      %3396 = vmatmul.mubr.f32.gmra.mrb[0].mxu0 %v1132
      %v3397 = vpop.f32.mrb[0].mxu0
      %v3398 = vadd.f32 0.0, %v3397
      %v3399 = vpop.f32.mrb[0].mxu0
      %3400 = vdwg.mxu0
      %v3401 = vadd.f32 %v3288, %v3363
      %v3402 = vadd.f32 %v3289, %v3368
      %v3403 = vadd.f32 %v3290, %v3373
      %v3404 = vadd.f32 %v3291, %v3378
      %v3405 = vadd.f32 %v3292, %v3383
      %v3406 = vadd.f32 %v3293, %v3388
      %v3407 = vadd.f32 %v3294, %v3393
      %v3408 = vadd.f32 %v3295, %v3398
      %3409 = vrot.lane.b32.xlu0 %v320, 120
      %v3410 = vpop.permute.xlu0 %3409
      %3411 = vrot.lane.b32.xlu0 %v321, 120
      %v3412 = vpop.permute.xlu0 %3411
      %3413 = vrot.lane.b32.xlu0 %v322, 120
      %v3414 = vpop.permute.xlu0 %3413
      %3415 = vrot.lane.b32.xlu0 %v323, 120
      %v3416 = vpop.permute.xlu0 %3415
      %3421 = vmatprep.subr.mxu0 0.0
      %3422 = vmatpush1.msra.mxu0 %v3410
      %3423 = vmatprep.subr.mxu0 0.0
      %3424 = vmatpush1.msra.mxu0 %v3412
      %3425 = vmatprep.subr.mxu0 0.0
      %3426 = vmatpush1.msra.mxu0 %v3414
      %3427 = vmatprep.subr.mxu0 0.0
      %3428 = vmatpush1.msra.mxu0 %v3416
      %3429 = vmatprep.subr.mxu0 0.0
      %3430 = vmatpush1.msra.mxu0 0.0
      %3431 = vmatprep.subr.mxu0 0.0
      %3432 = vmatpush1.msra.mxu0 0.0
      %3433 = vmatprep.subr.mxu0 0.0
      %3434 = vmatpush1.msra.mxu0 0.0
      %3435 = vmatprep.subr.mxu0 0.0
      %3436 = vmatpush1.msra.mxu0 0.0
      %3437 = vmatprep.subr.mxu0 0.0
      %3438 = vmatpush1.msra.mxu0 0.0
      %3439 = vmatprep.subr.mxu0 0.0
      %3440 = vmatpush1.msra.mxu0 0.0
      %3441 = vmatprep.subr.mxu0 0.0
      %3442 = vmatpush1.msra.mxu0 0.0
      %3443 = vmatprep.subr.mxu0 0.0
      %3444 = vmatpush1.msra.mxu0 0.0
      %3445 = vmatprep.subr.mxu0 0.0
      %3446 = vmatpush1.msra.mxu0 0.0
      %3447 = vmatprep.subr.mxu0 0.0
      %3448 = vmatpush1.msra.mxu0 0.0
      %3449 = vmatprep.subr.mxu0 0.0
      %3450 = vmatpush1.msra.mxu0 0.0
      %3451 = vmatprep.subr.mxu0 0.0
      %3452 = vmatpush1.msra.mxu0 0.0
      %3453 = vmatprep.subr.mxu0 0.0
      %3454 = vmatpush1.msra.mxu0 0.0
      %3455 = vmatprep.subr.mxu0 0.0
      %3456 = vmatpush1.msra.mxu0 0.0
      %3457 = vmatprep.subr.mxu0 0.0
      %3458 = vmatpush1.msra.mxu0 0.0
      %3459 = vmatprep.subr.mxu0 0.0
      %3460 = vmatpush1.msra.mxu0 0.0
      %3461 = vmatprep.subr.mxu0 0.0
      %3462 = vmatpush1.msra.mxu0 0.0
      %3463 = vmatprep.subr.mxu0 0.0
      %3464 = vmatpush1.msra.mxu0 0.0
      %3465 = vmatprep.subr.mxu0 0.0
      %3466 = vmatpush1.msra.mxu0 0.0
      %3467 = vmatprep.subr.mxu0 0.0
      %3468 = vmatpush1.msra.mxu0 0.0
      %3469 = vmatprep.subr.mxu0 0.0
      %3470 = vmatpush1.msra.mxu0 0.0
      %3471 = vmatprep.subr.mxu0 0.0
      %3472 = vmatpush1.msra.mxu0 0.0
      %3473 = vmatprep.subr.mxu0 0.0
      %3474 = vmatpush1.msra.mxu0 0.0
      %3475 = vmatprep.subr.mxu0 0.0
      %3476 = vmatpush1.msra.mxu0 0.0
      %3477 = vmatprep.subr.mxu0 0.0
      %3478 = vmatpush1.msra.mxu0 0.0
      %3479 = vmatprep.subr.mxu0 0.0
      %3480 = vmatpush1.msra.mxu0 0.0
      %3481 = vmatprep.subr.mxu0 0.0
      %3482 = vmatpush1.msra.mxu0 0.0
      %3483 = vmatprep.subr.mxu0 0.0
      %3484 = vmatpush1.msra.mxu0 0.0
      %3485 = vmatprep.mubr.f32.mxu0 0.0
      %3486 = vmatmul.mubr.f32.gmra.mrb[0].mxu0 %v1260
      %v3487 = vpop.f32.mrb[0].mxu0
      %v3488 = vadd.f32 0.0, %v3487
      %v3489 = vpop.f32.mrb[0].mxu0
      %3490 = vmatprep.mubr.f32.mxu0 0.0
      %3491 = vmatmul.mubr.f32.gmra.mrb[0].mxu0 %v1263
      %v3492 = vpop.f32.mrb[0].mxu0
      %v3493 = vadd.f32 0.0, %v3492
      %v3494 = vpop.f32.mrb[0].mxu0
      %3495 = vmatprep.mubr.f32.mxu0 0.0
      %3496 = vmatmul.mubr.f32.gmra.mrb[0].mxu0 %v1266
      %v3497 = vpop.f32.mrb[0].mxu0
      %v3498 = vadd.f32 0.0, %v3497
      %v3499 = vpop.f32.mrb[0].mxu0
      %3500 = vmatprep.mubr.f32.mxu0 0.0
      %3501 = vmatmul.mubr.f32.gmra.mrb[0].mxu0 %v1269
      %v3502 = vpop.f32.mrb[0].mxu0
      %v3503 = vadd.f32 0.0, %v3502
      %v3504 = vpop.f32.mrb[0].mxu0
      %3505 = vmatprep.mubr.f32.mxu0 0.0
      %3506 = vmatmul.mubr.f32.gmra.mrb[0].mxu0 %v1272
      %v3507 = vpop.f32.mrb[0].mxu0
      %v3508 = vadd.f32 0.0, %v3507
      %v3509 = vpop.f32.mrb[0].mxu0
      %3510 = vmatprep.mubr.f32.mxu0 0.0
      %3511 = vmatmul.mubr.f32.gmra.mrb[0].mxu0 %v1275
      %v3512 = vpop.f32.mrb[0].mxu0
      %v3513 = vadd.f32 0.0, %v3512
      %v3514 = vpop.f32.mrb[0].mxu0
      %3515 = vmatprep.mubr.f32.mxu0 0.0
      %3516 = vmatmul.mubr.f32.gmra.mrb[0].mxu0 %v1278
      %v3517 = vpop.f32.mrb[0].mxu0
      %v3518 = vadd.f32 0.0, %v3517
      %v3519 = vpop.f32.mrb[0].mxu0
      %3520 = vmatprep.mubr.f32.mxu0 0.0
      %3521 = vmatmul.mubr.f32.gmra.mrb[0].mxu0 %v1281
      %v3522 = vpop.f32.mrb[0].mxu0
      %v3523 = vadd.f32 0.0, %v3522
      %v3524 = vpop.f32.mrb[0].mxu0
      %3525 = vdwg.mxu0
      %v3526 = vadd.f32 %v3401, %v3488
      %v3527 = vadd.f32 %v3402, %v3493
      %v3528 = vadd.f32 %v3403, %v3498
      %v3529 = vadd.f32 %v3404, %v3503
      %v3530 = vadd.f32 %v3405, %v3508
      %v3531 = vadd.f32 %v3406, %v3513
      %v3532 = vadd.f32 %v3407, %v3518
      %v3533 = vadd.f32 %v3408, %v3523
      %3534 = vrot.lane.b32.xlu0 %v324, 120
      %v3535 = vpop.permute.xlu0 %3534
      %3536 = vrot.lane.b32.xlu0 %v325, 120
      %v3537 = vpop.permute.xlu0 %3536
      %3538 = vrot.lane.b32.xlu0 %v326, 120
      %v3539 = vpop.permute.xlu0 %3538
      %3540 = vrot.lane.b32.xlu0 %v327, 120
      %v3541 = vpop.permute.xlu0 %3540
      %3546 = vmatprep.subr.mxu0 0.0
      %3547 = vmatpush1.msra.mxu0 %v3535
      %3548 = vmatprep.subr.mxu0 0.0
      %3549 = vmatpush1.msra.mxu0 %v3537
      %3550 = vmatprep.subr.mxu0 0.0
      %3551 = vmatpush1.msra.mxu0 %v3539
      %3552 = vmatprep.subr.mxu0 0.0
      %3553 = vmatpush1.msra.mxu0 %v3541
      %3554 = vmatprep.subr.mxu0 0.0
      %3555 = vmatpush1.msra.mxu0 0.0
      %3556 = vmatprep.subr.mxu0 0.0
      %3557 = vmatpush1.msra.mxu0 0.0
      %3558 = vmatprep.subr.mxu0 0.0
      %3559 = vmatpush1.msra.mxu0 0.0
      %3560 = vmatprep.subr.mxu0 0.0
      %3561 = vmatpush1.msra.mxu0 0.0
      %3562 = vmatprep.subr.mxu0 0.0
      %3563 = vmatpush1.msra.mxu0 0.0
      %3564 = vmatprep.subr.mxu0 0.0
      %3565 = vmatpush1.msra.mxu0 0.0
      %3566 = vmatprep.subr.mxu0 0.0
      %3567 = vmatpush1.msra.mxu0 0.0
      %3568 = vmatprep.subr.mxu0 0.0
      %3569 = vmatpush1.msra.mxu0 0.0
      %3570 = vmatprep.subr.mxu0 0.0
      %3571 = vmatpush1.msra.mxu0 0.0
      %3572 = vmatprep.subr.mxu0 0.0
      %3573 = vmatpush1.msra.mxu0 0.0
      %3574 = vmatprep.subr.mxu0 0.0
      %3575 = vmatpush1.msra.mxu0 0.0
      %3576 = vmatprep.subr.mxu0 0.0
      %3577 = vmatpush1.msra.mxu0 0.0
      %3578 = vmatprep.subr.mxu0 0.0
      %3579 = vmatpush1.msra.mxu0 0.0
      %3580 = vmatprep.subr.mxu0 0.0
      %3581 = vmatpush1.msra.mxu0 0.0
      %3582 = vmatprep.subr.mxu0 0.0
      %3583 = vmatpush1.msra.mxu0 0.0
      %3584 = vmatprep.subr.mxu0 0.0
      %3585 = vmatpush1.msra.mxu0 0.0
      %3586 = vmatprep.subr.mxu0 0.0
      %3587 = vmatpush1.msra.mxu0 0.0
      %3588 = vmatprep.subr.mxu0 0.0
      %3589 = vmatpush1.msra.mxu0 0.0
      %3590 = vmatprep.subr.mxu0 0.0
      %3591 = vmatpush1.msra.mxu0 0.0
      %3592 = vmatprep.subr.mxu0 0.0
      %3593 = vmatpush1.msra.mxu0 0.0
      %3594 = vmatprep.subr.mxu0 0.0
      %3595 = vmatpush1.msra.mxu0 0.0
      %3596 = vmatprep.subr.mxu0 0.0
      %3597 = vmatpush1.msra.mxu0 0.0
      %3598 = vmatprep.subr.mxu0 0.0
      %3599 = vmatpush1.msra.mxu0 0.0
      %3600 = vmatprep.subr.mxu0 0.0
      %3601 = vmatpush1.msra.mxu0 0.0
      %3602 = vmatprep.subr.mxu0 0.0
      %3603 = vmatpush1.msra.mxu0 0.0
      %3604 = vmatprep.subr.mxu0 0.0
      %3605 = vmatpush1.msra.mxu0 0.0
      %3606 = vmatprep.subr.mxu0 0.0
      %3607 = vmatpush1.msra.mxu0 0.0
      %3608 = vmatprep.subr.mxu0 0.0
      %3609 = vmatpush1.msra.mxu0 0.0
      %3610 = vmatprep.mubr.f32.mxu0 0.0
      %3611 = vmatmul.mubr.f32.gmra.mrb[0].mxu0 %v1413
      %v3612 = vpop.f32.mrb[0].mxu0
      %v3613 = vadd.f32 0.0, %v3612
      %v3614 = vpop.f32.mrb[0].mxu0
      %3615 = vmatprep.mubr.f32.mxu0 0.0
      %3616 = vmatmul.mubr.f32.gmra.mrb[0].mxu0 %v1416
      %v3617 = vpop.f32.mrb[0].mxu0
      %v3618 = vadd.f32 0.0, %v3617
      %v3619 = vpop.f32.mrb[0].mxu0
      %3620 = vmatprep.mubr.f32.mxu0 0.0
      %3621 = vmatmul.mubr.f32.gmra.mrb[0].mxu0 %v1419
      %v3622 = vpop.f32.mrb[0].mxu0
      %v3623 = vadd.f32 0.0, %v3622
      %v3624 = vpop.f32.mrb[0].mxu0
      %3625 = vmatprep.mubr.f32.mxu0 0.0
      %3626 = vmatmul.mubr.f32.gmra.mrb[0].mxu0 %v1422
      %v3627 = vpop.f32.mrb[0].mxu0
      %v3628 = vadd.f32 0.0, %v3627
      %v3629 = vpop.f32.mrb[0].mxu0
      %3630 = vmatprep.mubr.f32.mxu0 0.0
      %3631 = vmatmul.mubr.f32.gmra.mrb[0].mxu0 %v1425
      %v3632 = vpop.f32.mrb[0].mxu0
      %v3633 = vadd.f32 0.0, %v3632
      %v3634 = vpop.f32.mrb[0].mxu0
      %3635 = vmatprep.mubr.f32.mxu0 0.0
      %3636 = vmatmul.mubr.f32.gmra.mrb[0].mxu0 %v1428
      %v3637 = vpop.f32.mrb[0].mxu0
      %v3638 = vadd.f32 0.0, %v3637
      %v3639 = vpop.f32.mrb[0].mxu0
      %3640 = vmatprep.mubr.f32.mxu0 0.0
      %3641 = vmatmul.mubr.f32.gmra.mrb[0].mxu0 %v1431
      %v3642 = vpop.f32.mrb[0].mxu0
      %v3643 = vadd.f32 0.0, %v3642
      %v3644 = vpop.f32.mrb[0].mxu0
      %3645 = vmatprep.mubr.f32.mxu0 0.0
      %3646 = vmatmul.mubr.f32.gmra.mrb[0].mxu0 %v1434
      %v3647 = vpop.f32.mrb[0].mxu0
      %v3648 = vadd.f32 0.0, %v3647
      %v3649 = vpop.f32.mrb[0].mxu0
      %3650 = vdwg.mxu0
      %v3651 = vadd.f32 %v3526, %v3613
      %v3652 = vadd.f32 %v3527, %v3618
      %v3653 = vadd.f32 %v3528, %v3623
      %v3654 = vadd.f32 %v3529, %v3628
      %v3655 = vadd.f32 %v3530, %v3633
      %v3656 = vadd.f32 %v3531, %v3638
      %v3657 = vadd.f32 %v3532, %v3643
      %v3658 = vadd.f32 %v3533, %v3648
      %3659 = vrot.lane.b32.xlu0 %v320, 119
      %v3660 = vpop.permute.xlu0 %3659
      %3661 = vrot.lane.b32.xlu0 %v321, 119
      %v3662 = vpop.permute.xlu0 %3661
      %3663 = vrot.lane.b32.xlu0 %v322, 119
      %v3664 = vpop.permute.xlu0 %3663
      %3665 = vrot.lane.b32.xlu0 %v323, 119
      %v3666 = vpop.permute.xlu0 %3665
      %3671 = vmatprep.subr.mxu0 0.0
      %3672 = vmatpush1.msra.mxu0 %v3660
      %3673 = vmatprep.subr.mxu0 0.0
      %3674 = vmatpush1.msra.mxu0 %v3662
      %3675 = vmatprep.subr.mxu0 0.0
      %3676 = vmatpush1.msra.mxu0 %v3664
      %3677 = vmatprep.subr.mxu0 0.0
      %3678 = vmatpush1.msra.mxu0 %v3666
      %3679 = vmatprep.subr.mxu0 0.0
      %3680 = vmatpush1.msra.mxu0 0.0
      %3681 = vmatprep.subr.mxu0 0.0
      %3682 = vmatpush1.msra.mxu0 0.0
      %3683 = vmatprep.subr.mxu0 0.0
      %3684 = vmatpush1.msra.mxu0 0.0
      %3685 = vmatprep.subr.mxu0 0.0
      %3686 = vmatpush1.msra.mxu0 0.0
      %3687 = vmatprep.subr.mxu0 0.0
      %3688 = vmatpush1.msra.mxu0 0.0
      %3689 = vmatprep.subr.mxu0 0.0
      %3690 = vmatpush1.msra.mxu0 0.0
      %3691 = vmatprep.subr.mxu0 0.0
      %3692 = vmatpush1.msra.mxu0 0.0
      %3693 = vmatprep.subr.mxu0 0.0
      %3694 = vmatpush1.msra.mxu0 0.0
      %3695 = vmatprep.subr.mxu0 0.0
      %3696 = vmatpush1.msra.mxu0 0.0
      %3697 = vmatprep.subr.mxu0 0.0
      %3698 = vmatpush1.msra.mxu0 0.0
      %3699 = vmatprep.subr.mxu0 0.0
      %3700 = vmatpush1.msra.mxu0 0.0
      %3701 = vmatprep.subr.mxu0 0.0
      %3702 = vmatpush1.msra.mxu0 0.0
      %3703 = vmatprep.subr.mxu0 0.0
      %3704 = vmatpush1.msra.mxu0 0.0
      %3705 = vmatprep.subr.mxu0 0.0
      %3706 = vmatpush1.msra.mxu0 0.0
      %3707 = vmatprep.subr.mxu0 0.0
      %3708 = vmatpush1.msra.mxu0 0.0
      %3709 = vmatprep.subr.mxu0 0.0
      %3710 = vmatpush1.msra.mxu0 0.0
      %3711 = vmatprep.subr.mxu0 0.0
      %3712 = vmatpush1.msra.mxu0 0.0
      %3713 = vmatprep.subr.mxu0 0.0
      %3714 = vmatpush1.msra.mxu0 0.0
      %3715 = vmatprep.subr.mxu0 0.0
      %3716 = vmatpush1.msra.mxu0 0.0
      %3717 = vmatprep.subr.mxu0 0.0
      %3718 = vmatpush1.msra.mxu0 0.0
      %3719 = vmatprep.subr.mxu0 0.0
      %3720 = vmatpush1.msra.mxu0 0.0
      %3721 = vmatprep.subr.mxu0 0.0
      %3722 = vmatpush1.msra.mxu0 0.0
      %3723 = vmatprep.subr.mxu0 0.0
      %3724 = vmatpush1.msra.mxu0 0.0
      %3725 = vmatprep.subr.mxu0 0.0
      %3726 = vmatpush1.msra.mxu0 0.0
      %3727 = vmatprep.subr.mxu0 0.0
      %3728 = vmatpush1.msra.mxu0 0.0
      %3729 = vmatprep.subr.mxu0 0.0
      %3730 = vmatpush1.msra.mxu0 0.0
      %3731 = vmatprep.subr.mxu0 0.0
      %3732 = vmatpush1.msra.mxu0 0.0
      %3733 = vmatprep.subr.mxu0 0.0
      %3734 = vmatpush1.msra.mxu0 0.0
      %3735 = vmatprep.mubr.f32.mxu0 0.0
      %3736 = vmatmul.mubr.f32.gmra.mrb[0].mxu0 %v1562
      %v3737 = vpop.f32.mrb[0].mxu0
      %v3738 = vadd.f32 0.0, %v3737
      %v3739 = vpop.f32.mrb[0].mxu0
      %3740 = vmatprep.mubr.f32.mxu0 0.0
      %3741 = vmatmul.mubr.f32.gmra.mrb[0].mxu0 %v1565
      %v3742 = vpop.f32.mrb[0].mxu0
      %v3743 = vadd.f32 0.0, %v3742
      %v3744 = vpop.f32.mrb[0].mxu0
      %3745 = vmatprep.mubr.f32.mxu0 0.0
      %3746 = vmatmul.mubr.f32.gmra.mrb[0].mxu0 %v1568
      %v3747 = vpop.f32.mrb[0].mxu0
      %v3748 = vadd.f32 0.0, %v3747
      %v3749 = vpop.f32.mrb[0].mxu0
      %3750 = vmatprep.mubr.f32.mxu0 0.0
      %3751 = vmatmul.mubr.f32.gmra.mrb[0].mxu0 %v1571
      %v3752 = vpop.f32.mrb[0].mxu0
      %v3753 = vadd.f32 0.0, %v3752
      %v3754 = vpop.f32.mrb[0].mxu0
      %3755 = vmatprep.mubr.f32.mxu0 0.0
      %3756 = vmatmul.mubr.f32.gmra.mrb[0].mxu0 %v1574
      %v3757 = vpop.f32.mrb[0].mxu0
      %v3758 = vadd.f32 0.0, %v3757
      %v3759 = vpop.f32.mrb[0].mxu0
      %3760 = vmatprep.mubr.f32.mxu0 0.0
      %3761 = vmatmul.mubr.f32.gmra.mrb[0].mxu0 %v1577
      %v3762 = vpop.f32.mrb[0].mxu0
      %v3763 = vadd.f32 0.0, %v3762
      %v3764 = vpop.f32.mrb[0].mxu0
      %3765 = vmatprep.mubr.f32.mxu0 0.0
      %3766 = vmatmul.mubr.f32.gmra.mrb[0].mxu0 %v1580
      %v3767 = vpop.f32.mrb[0].mxu0
      %v3768 = vadd.f32 0.0, %v3767
      %v3769 = vpop.f32.mrb[0].mxu0
      %3770 = vmatprep.mubr.f32.mxu0 0.0
      %3771 = vmatmul.mubr.f32.gmra.mrb[0].mxu0 %v1583
      %v3772 = vpop.f32.mrb[0].mxu0
      %v3773 = vadd.f32 0.0, %v3772
      %v3774 = vpop.f32.mrb[0].mxu0
      %3775 = vdwg.mxu0
      %v3776 = vadd.f32 %v3651, %v3738
      %v3777 = vadd.f32 %v3652, %v3743
      %v3778 = vadd.f32 %v3653, %v3748
      %v3779 = vadd.f32 %v3654, %v3753
      %v3780 = vadd.f32 %v3655, %v3758
      %v3781 = vadd.f32 %v3656, %v3763
      %v3782 = vadd.f32 %v3657, %v3768
      %v3783 = vadd.f32 %v3658, %v3773
      %v3784 = vmax.f32 %v2739, %v3776
      %v3785 = vmax.f32 %v2740, %v3777
      %v3786 = vmax.f32 %v2741, %v3778
      %v3787 = vmax.f32 %v2742, %v3779
      %v3788 = vmax.f32 %v2743, %v3780
      %v3789 = vmax.f32 %v2744, %v3781
      %v3790 = vmax.f32 %v2745, %v3782
      %v3791 = vmax.f32 %v2746, %v3783
      %3792 = vmatprep.subr.mxu0 0.0
      %3793 = vmatpush1.msra.mxu0 %v1099
      %3794 = vmatprep.subr.mxu0 0.0
      %3795 = vmatpush1.msra.mxu0 %v1101
      %3796 = vmatprep.subr.mxu0 0.0
      %3797 = vmatpush1.msra.mxu0 %v1103
      %3798 = vmatprep.subr.mxu0 0.0
      %3799 = vmatpush1.msra.mxu0 %v1105
      %3800 = vmatprep.subr.mxu0 0.0
      %3801 = vmatpush1.msra.mxu0 0.0
      %3802 = vmatprep.subr.mxu0 0.0
      %3803 = vmatpush1.msra.mxu0 0.0
      %3804 = vmatprep.subr.mxu0 0.0
      %3805 = vmatpush1.msra.mxu0 0.0
      %3806 = vmatprep.subr.mxu0 0.0
      %3807 = vmatpush1.msra.mxu0 0.0
      %3808 = vmatprep.subr.mxu0 0.0
      %3809 = vmatpush1.msra.mxu0 0.0
      %3810 = vmatprep.subr.mxu0 0.0
      %3811 = vmatpush1.msra.mxu0 0.0
      %3812 = vmatprep.subr.mxu0 0.0
      %3813 = vmatpush1.msra.mxu0 0.0
      %3814 = vmatprep.subr.mxu0 0.0
      %3815 = vmatpush1.msra.mxu0 0.0
      %3816 = vmatprep.subr.mxu0 0.0
      %3817 = vmatpush1.msra.mxu0 0.0
      %3818 = vmatprep.subr.mxu0 0.0
      %3819 = vmatpush1.msra.mxu0 0.0
      %3820 = vmatprep.subr.mxu0 0.0
      %3821 = vmatpush1.msra.mxu0 0.0
      %3822 = vmatprep.subr.mxu0 0.0
      %3823 = vmatpush1.msra.mxu0 0.0
      %3824 = vmatprep.subr.mxu0 0.0
      %3825 = vmatpush1.msra.mxu0 0.0
      %3826 = vmatprep.subr.mxu0 0.0
      %3827 = vmatpush1.msra.mxu0 0.0
      %3828 = vmatprep.subr.mxu0 0.0
      %3829 = vmatpush1.msra.mxu0 0.0
      %3830 = vmatprep.subr.mxu0 0.0
      %3831 = vmatpush1.msra.mxu0 0.0
      %3832 = vmatprep.subr.mxu0 0.0
      %3833 = vmatpush1.msra.mxu0 0.0
      %3834 = vmatprep.subr.mxu0 0.0
      %3835 = vmatpush1.msra.mxu0 0.0
      %3836 = vmatprep.subr.mxu0 0.0
      %3837 = vmatpush1.msra.mxu0 0.0
      %3838 = vmatprep.subr.mxu0 0.0
      %3839 = vmatpush1.msra.mxu0 0.0
      %3840 = vmatprep.subr.mxu0 0.0
      %3841 = vmatpush1.msra.mxu0 0.0
      %3842 = vmatprep.subr.mxu0 0.0
      %3843 = vmatpush1.msra.mxu0 0.0
      %3844 = vmatprep.subr.mxu0 0.0
      %3845 = vmatpush1.msra.mxu0 0.0
      %3846 = vmatprep.subr.mxu0 0.0
      %3847 = vmatpush1.msra.mxu0 0.0
      %3848 = vmatprep.subr.mxu0 0.0
      %3849 = vmatpush1.msra.mxu0 0.0
      %3850 = vmatprep.subr.mxu0 0.0
      %3851 = vmatpush1.msra.mxu0 0.0
      %3852 = vmatprep.subr.mxu0 0.0
      %3853 = vmatpush1.msra.mxu0 0.0
      %3854 = vmatprep.subr.mxu0 0.0
      %3855 = vmatpush1.msra.mxu0 0.0
      %3856 = vmatprep.mubr.f32.mxu0 0.0
      %3857 = vmatmul.mubr.f32.gmra.mrb[0].mxu0 %v410
      %v3858 = vpop.f32.mrb[0].mxu0
      %v3859 = vadd.f32 0.0, %v3858
      %v3860 = vpop.f32.mrb[0].mxu0
      %3861 = vmatprep.mubr.f32.mxu0 0.0
      %3862 = vmatmul.mubr.f32.gmra.mrb[0].mxu0 %v413
      %v3863 = vpop.f32.mrb[0].mxu0
      %v3864 = vadd.f32 0.0, %v3863
      %v3865 = vpop.f32.mrb[0].mxu0
      %3866 = vmatprep.mubr.f32.mxu0 0.0
      %3867 = vmatmul.mubr.f32.gmra.mrb[0].mxu0 %v416
      %v3868 = vpop.f32.mrb[0].mxu0
      %v3869 = vadd.f32 0.0, %v3868
      %v3870 = vpop.f32.mrb[0].mxu0
      %3871 = vmatprep.mubr.f32.mxu0 0.0
      %3872 = vmatmul.mubr.f32.gmra.mrb[0].mxu0 %v419
      %v3873 = vpop.f32.mrb[0].mxu0
      %v3874 = vadd.f32 0.0, %v3873
      %v3875 = vpop.f32.mrb[0].mxu0
      %3876 = vmatprep.mubr.f32.mxu0 0.0
      %3877 = vmatmul.mubr.f32.gmra.mrb[0].mxu0 %v422
      %v3878 = vpop.f32.mrb[0].mxu0
      %v3879 = vadd.f32 0.0, %v3878
      %v3880 = vpop.f32.mrb[0].mxu0
      %3881 = vmatprep.mubr.f32.mxu0 0.0
      %3882 = vmatmul.mubr.f32.gmra.mrb[0].mxu0 %v425
      %v3883 = vpop.f32.mrb[0].mxu0
      %v3884 = vadd.f32 0.0, %v3883
      %v3885 = vpop.f32.mrb[0].mxu0
      %3886 = vmatprep.mubr.f32.mxu0 0.0
      %3887 = vmatmul.mubr.f32.gmra.mrb[0].mxu0 %v428
      %v3888 = vpop.f32.mrb[0].mxu0
      %v3889 = vadd.f32 0.0, %v3888
      %v3890 = vpop.f32.mrb[0].mxu0
      %3891 = vmatprep.mubr.f32.mxu0 0.0
      %3892 = vmatmul.mubr.f32.gmra.mrb[0].mxu0 %v431
      %v3893 = vpop.f32.mrb[0].mxu0
      %v3894 = vadd.f32 0.0, %v3893
      %v3895 = vpop.f32.mrb[0].mxu0
      %3896 = vdwg.mxu0
      %3897 = vmatprep.subr.mxu0 0.0
      %3898 = vmatpush1.msra.mxu0 %v324
      %3899 = vmatprep.subr.mxu0 0.0
      %3900 = vmatpush1.msra.mxu0 %v325
      %3901 = vmatprep.subr.mxu0 0.0
      %3902 = vmatpush1.msra.mxu0 %v326
      %3903 = vmatprep.subr.mxu0 0.0
      %3904 = vmatpush1.msra.mxu0 %v327
      %3905 = vmatprep.subr.mxu0 0.0
      %3906 = vmatpush1.msra.mxu0 0.0
      %3907 = vmatprep.subr.mxu0 0.0
      %3908 = vmatpush1.msra.mxu0 0.0
      %3909 = vmatprep.subr.mxu0 0.0
      %3910 = vmatpush1.msra.mxu0 0.0
      %3911 = vmatprep.subr.mxu0 0.0
      %3912 = vmatpush1.msra.mxu0 0.0
      %3913 = vmatprep.subr.mxu0 0.0
      %3914 = vmatpush1.msra.mxu0 0.0
      %3915 = vmatprep.subr.mxu0 0.0
      %3916 = vmatpush1.msra.mxu0 0.0
      %3917 = vmatprep.subr.mxu0 0.0
      %3918 = vmatpush1.msra.mxu0 0.0
      %3919 = vmatprep.subr.mxu0 0.0
      %3920 = vmatpush1.msra.mxu0 0.0
      %3921 = vmatprep.subr.mxu0 0.0
      %3922 = vmatpush1.msra.mxu0 0.0
      %3923 = vmatprep.subr.mxu0 0.0
      %3924 = vmatpush1.msra.mxu0 0.0
      %3925 = vmatprep.subr.mxu0 0.0
      %3926 = vmatpush1.msra.mxu0 0.0
      %3927 = vmatprep.subr.mxu0 0.0
      %3928 = vmatpush1.msra.mxu0 0.0
      %3929 = vmatprep.subr.mxu0 0.0
      %3930 = vmatpush1.msra.mxu0 0.0
      %3931 = vmatprep.subr.mxu0 0.0
      %3932 = vmatpush1.msra.mxu0 0.0
      %3933 = vmatprep.subr.mxu0 0.0
      %3934 = vmatpush1.msra.mxu0 0.0
      %3935 = vmatprep.subr.mxu0 0.0
      %3936 = vmatpush1.msra.mxu0 0.0
      %3937 = vmatprep.subr.mxu0 0.0
      %3938 = vmatpush1.msra.mxu0 0.0
      %3939 = vmatprep.subr.mxu0 0.0
      %3940 = vmatpush1.msra.mxu0 0.0
      %3941 = vmatprep.subr.mxu0 0.0
      %3942 = vmatpush1.msra.mxu0 0.0
      %3943 = vmatprep.subr.mxu0 0.0
      %3944 = vmatpush1.msra.mxu0 0.0
      %3945 = vmatprep.subr.mxu0 0.0
      %3946 = vmatpush1.msra.mxu0 0.0
      %3947 = vmatprep.subr.mxu0 0.0
      %3948 = vmatpush1.msra.mxu0 0.0
      %3949 = vmatprep.subr.mxu0 0.0
      %3950 = vmatpush1.msra.mxu0 0.0
      %3951 = vmatprep.subr.mxu0 0.0
      %3952 = vmatpush1.msra.mxu0 0.0
      %3953 = vmatprep.subr.mxu0 0.0
      %3954 = vmatpush1.msra.mxu0 0.0
      %3955 = vmatprep.subr.mxu0 0.0
      %3956 = vmatpush1.msra.mxu0 0.0
      %3957 = vmatprep.subr.mxu0 0.0
      %3958 = vmatpush1.msra.mxu0 0.0
      %3959 = vmatprep.subr.mxu0 0.0
      %3960 = vmatpush1.msra.mxu0 0.0
      %3961 = vmatprep.mubr.f32.mxu0 0.0
      %3962 = vmatmul.mubr.f32.gmra.mrb[0].mxu0 %v539
      %v3963 = vpop.f32.mrb[0].mxu0
      %v3964 = vadd.f32 %v3859, %v3963
      %v3965 = vpop.f32.mrb[0].mxu0
      %3966 = vmatprep.mubr.f32.mxu0 0.0
      %3967 = vmatmul.mubr.f32.gmra.mrb[0].mxu0 %v542
      %v3968 = vpop.f32.mrb[0].mxu0
      %v3969 = vadd.f32 %v3864, %v3968
      %v3970 = vpop.f32.mrb[0].mxu0
      %3971 = vmatprep.mubr.f32.mxu0 0.0
      %3972 = vmatmul.mubr.f32.gmra.mrb[0].mxu0 %v545
      %v3973 = vpop.f32.mrb[0].mxu0
      %v3974 = vadd.f32 %v3869, %v3973
      %v3975 = vpop.f32.mrb[0].mxu0
      %3976 = vmatprep.mubr.f32.mxu0 0.0
      %3977 = vmatmul.mubr.f32.gmra.mrb[0].mxu0 %v548
      %v3978 = vpop.f32.mrb[0].mxu0
      %v3979 = vadd.f32 %v3874, %v3978
      %v3980 = vpop.f32.mrb[0].mxu0
      %3981 = vmatprep.mubr.f32.mxu0 0.0
      %3982 = vmatmul.mubr.f32.gmra.mrb[0].mxu0 %v551
      %v3983 = vpop.f32.mrb[0].mxu0
      %v3984 = vadd.f32 %v3879, %v3983
      %v3985 = vpop.f32.mrb[0].mxu0
      %3986 = vmatprep.mubr.f32.mxu0 0.0
      %3987 = vmatmul.mubr.f32.gmra.mrb[0].mxu0 %v554
      %v3988 = vpop.f32.mrb[0].mxu0
      %v3989 = vadd.f32 %v3884, %v3988
      %v3990 = vpop.f32.mrb[0].mxu0
      %3991 = vmatprep.mubr.f32.mxu0 0.0
      %3992 = vmatmul.mubr.f32.gmra.mrb[0].mxu0 %v557
      %v3993 = vpop.f32.mrb[0].mxu0
      %v3994 = vadd.f32 %v3889, %v3993
      %v3995 = vpop.f32.mrb[0].mxu0
      %3996 = vmatprep.mubr.f32.mxu0 0.0
      %3997 = vmatmul.mubr.f32.gmra.mrb[0].mxu0 %v560
      %v3998 = vpop.f32.mrb[0].mxu0
      %v3999 = vadd.f32 %v3894, %v3998
      %v4000 = vpop.f32.mrb[0].mxu0
      %4001 = vdwg.mxu0
      %4002 = vmatprep.subr.mxu0 0.0
      %4003 = vmatpush1.msra.mxu0 %v2264
      %4004 = vmatprep.subr.mxu0 0.0
      %4005 = vmatpush1.msra.mxu0 %v2266
      %4006 = vmatprep.subr.mxu0 0.0
      %4007 = vmatpush1.msra.mxu0 %v2268
      %4008 = vmatprep.subr.mxu0 0.0
      %4009 = vmatpush1.msra.mxu0 %v2270
      %4010 = vmatprep.subr.mxu0 0.0
      %4011 = vmatpush1.msra.mxu0 0.0
      %4012 = vmatprep.subr.mxu0 0.0
      %4013 = vmatpush1.msra.mxu0 0.0
      %4014 = vmatprep.subr.mxu0 0.0
      %4015 = vmatpush1.msra.mxu0 0.0
      %4016 = vmatprep.subr.mxu0 0.0
      %4017 = vmatpush1.msra.mxu0 0.0
      %4018 = vmatprep.subr.mxu0 0.0
      %4019 = vmatpush1.msra.mxu0 0.0
      %4020 = vmatprep.subr.mxu0 0.0
      %4021 = vmatpush1.msra.mxu0 0.0
      %4022 = vmatprep.subr.mxu0 0.0
      %4023 = vmatpush1.msra.mxu0 0.0
      %4024 = vmatprep.subr.mxu0 0.0
      %4025 = vmatpush1.msra.mxu0 0.0
      %4026 = vmatprep.subr.mxu0 0.0
      %4027 = vmatpush1.msra.mxu0 0.0
      %4028 = vmatprep.subr.mxu0 0.0
      %4029 = vmatpush1.msra.mxu0 0.0
      %4030 = vmatprep.subr.mxu0 0.0
      %4031 = vmatpush1.msra.mxu0 0.0
      %4032 = vmatprep.subr.mxu0 0.0
      %4033 = vmatpush1.msra.mxu0 0.0
      %4034 = vmatprep.subr.mxu0 0.0
      %4035 = vmatpush1.msra.mxu0 0.0
      %4036 = vmatprep.subr.mxu0 0.0
      %4037 = vmatpush1.msra.mxu0 0.0
      %4038 = vmatprep.subr.mxu0 0.0
      %4039 = vmatpush1.msra.mxu0 0.0
      %4040 = vmatprep.subr.mxu0 0.0
      %4041 = vmatpush1.msra.mxu0 0.0
      %4042 = vmatprep.subr.mxu0 0.0
      %4043 = vmatpush1.msra.mxu0 0.0
      %4044 = vmatprep.subr.mxu0 0.0
      %4045 = vmatpush1.msra.mxu0 0.0
      %4046 = vmatprep.subr.mxu0 0.0
      %4047 = vmatpush1.msra.mxu0 0.0
      %4048 = vmatprep.subr.mxu0 0.0
      %4049 = vmatpush1.msra.mxu0 0.0
      %4050 = vmatprep.subr.mxu0 0.0
      %4051 = vmatpush1.msra.mxu0 0.0
      %4052 = vmatprep.subr.mxu0 0.0
      %4053 = vmatpush1.msra.mxu0 0.0
      %4054 = vmatprep.subr.mxu0 0.0
      %4055 = vmatpush1.msra.mxu0 0.0
      %4056 = vmatprep.subr.mxu0 0.0
      %4057 = vmatpush1.msra.mxu0 0.0
      %4058 = vmatprep.subr.mxu0 0.0
      %4059 = vmatpush1.msra.mxu0 0.0
      %4060 = vmatprep.subr.mxu0 0.0
      %4061 = vmatpush1.msra.mxu0 0.0
      %4062 = vmatprep.subr.mxu0 0.0
      %4063 = vmatpush1.msra.mxu0 0.0
      %4064 = vmatprep.subr.mxu0 0.0
      %4065 = vmatpush1.msra.mxu0 0.0
      %4066 = vmatprep.mubr.f32.mxu0 0.0
      %4067 = vmatmul.mubr.f32.gmra.mrb[0].mxu0 %v684
      %v4068 = vpop.f32.mrb[0].mxu0
      %v4069 = vadd.f32 0.0, %v4068
      %v4070 = vpop.f32.mrb[0].mxu0
      %4071 = vmatprep.mubr.f32.mxu0 0.0
      %4072 = vmatmul.mubr.f32.gmra.mrb[0].mxu0 %v687
      %v4073 = vpop.f32.mrb[0].mxu0
      %v4074 = vadd.f32 0.0, %v4073
      %v4075 = vpop.f32.mrb[0].mxu0
      %4076 = vmatprep.mubr.f32.mxu0 0.0
      %4077 = vmatmul.mubr.f32.gmra.mrb[0].mxu0 %v690
      %v4078 = vpop.f32.mrb[0].mxu0
      %v4079 = vadd.f32 0.0, %v4078
      %v4080 = vpop.f32.mrb[0].mxu0
      %4081 = vmatprep.mubr.f32.mxu0 0.0
      %4082 = vmatmul.mubr.f32.gmra.mrb[0].mxu0 %v693
      %v4083 = vpop.f32.mrb[0].mxu0
      %v4084 = vadd.f32 0.0, %v4083
      %v4085 = vpop.f32.mrb[0].mxu0
      %4086 = vmatprep.mubr.f32.mxu0 0.0
      %4087 = vmatmul.mubr.f32.gmra.mrb[0].mxu0 %v696
      %v4088 = vpop.f32.mrb[0].mxu0
      %v4089 = vadd.f32 0.0, %v4088
      %v4090 = vpop.f32.mrb[0].mxu0
      %4091 = vmatprep.mubr.f32.mxu0 0.0
      %4092 = vmatmul.mubr.f32.gmra.mrb[0].mxu0 %v699
      %v4093 = vpop.f32.mrb[0].mxu0
      %v4094 = vadd.f32 0.0, %v4093
      %v4095 = vpop.f32.mrb[0].mxu0
      %4096 = vmatprep.mubr.f32.mxu0 0.0
      %4097 = vmatmul.mubr.f32.gmra.mrb[0].mxu0 %v702
      %v4098 = vpop.f32.mrb[0].mxu0
      %v4099 = vadd.f32 0.0, %v4098
      %v4100 = vpop.f32.mrb[0].mxu0
      %4101 = vmatprep.mubr.f32.mxu0 0.0
      %4102 = vmatmul.mubr.f32.gmra.mrb[0].mxu0 %v705
      %v4103 = vpop.f32.mrb[0].mxu0
      %v4104 = vadd.f32 0.0, %v4103
      %v4105 = vpop.f32.mrb[0].mxu0
      %4106 = vdwg.mxu0
      %v4107 = vadd.f32 %v3964, %v4069
      %v4108 = vadd.f32 %v3969, %v4074
      %v4109 = vadd.f32 %v3974, %v4079
      %v4110 = vadd.f32 %v3979, %v4084
      %v4111 = vadd.f32 %v3984, %v4089
      %v4112 = vadd.f32 %v3989, %v4094
      %v4113 = vadd.f32 %v3994, %v4099
      %v4114 = vadd.f32 %v3999, %v4104
      %4115 = vmatprep.subr.mxu0 0.0
      %4116 = vmatpush1.msra.mxu0 %v1401
      %4117 = vmatprep.subr.mxu0 0.0
      %4118 = vmatpush1.msra.mxu0 %v1403
      %4119 = vmatprep.subr.mxu0 0.0
      %4120 = vmatpush1.msra.mxu0 %v1405
      %4121 = vmatprep.subr.mxu0 0.0
      %4122 = vmatpush1.msra.mxu0 %v1407
      %4123 = vmatprep.subr.mxu0 0.0
      %4124 = vmatpush1.msra.mxu0 0.0
      %4125 = vmatprep.subr.mxu0 0.0
      %4126 = vmatpush1.msra.mxu0 0.0
      %4127 = vmatprep.subr.mxu0 0.0
      %4128 = vmatpush1.msra.mxu0 0.0
      %4129 = vmatprep.subr.mxu0 0.0
      %4130 = vmatpush1.msra.mxu0 0.0
      %4131 = vmatprep.subr.mxu0 0.0
      %4132 = vmatpush1.msra.mxu0 0.0
      %4133 = vmatprep.subr.mxu0 0.0
      %4134 = vmatpush1.msra.mxu0 0.0
      %4135 = vmatprep.subr.mxu0 0.0
      %4136 = vmatpush1.msra.mxu0 0.0
      %4137 = vmatprep.subr.mxu0 0.0
      %4138 = vmatpush1.msra.mxu0 0.0
      %4139 = vmatprep.subr.mxu0 0.0
      %4140 = vmatpush1.msra.mxu0 0.0
      %4141 = vmatprep.subr.mxu0 0.0
      %4142 = vmatpush1.msra.mxu0 0.0
      %4143 = vmatprep.subr.mxu0 0.0
      %4144 = vmatpush1.msra.mxu0 0.0
      %4145 = vmatprep.subr.mxu0 0.0
      %4146 = vmatpush1.msra.mxu0 0.0
      %4147 = vmatprep.subr.mxu0 0.0
      %4148 = vmatpush1.msra.mxu0 0.0
      %4149 = vmatprep.subr.mxu0 0.0
      %4150 = vmatpush1.msra.mxu0 0.0
      %4151 = vmatprep.subr.mxu0 0.0
      %4152 = vmatpush1.msra.mxu0 0.0
      %4153 = vmatprep.subr.mxu0 0.0
      %4154 = vmatpush1.msra.mxu0 0.0
      %4155 = vmatprep.subr.mxu0 0.0
      %4156 = vmatpush1.msra.mxu0 0.0
      %4157 = vmatprep.subr.mxu0 0.0
      %4158 = vmatpush1.msra.mxu0 0.0
      %4159 = vmatprep.subr.mxu0 0.0
      %4160 = vmatpush1.msra.mxu0 0.0
      %4161 = vmatprep.subr.mxu0 0.0
      %4162 = vmatpush1.msra.mxu0 0.0
      %4163 = vmatprep.subr.mxu0 0.0
      %4164 = vmatpush1.msra.mxu0 0.0
      %4165 = vmatprep.subr.mxu0 0.0
      %4166 = vmatpush1.msra.mxu0 0.0
      %4167 = vmatprep.subr.mxu0 0.0
      %4168 = vmatpush1.msra.mxu0 0.0
      %4169 = vmatprep.subr.mxu0 0.0
      %4170 = vmatpush1.msra.mxu0 0.0
      %4171 = vmatprep.subr.mxu0 0.0
      %4172 = vmatpush1.msra.mxu0 0.0
      %4173 = vmatprep.subr.mxu0 0.0
      %4174 = vmatpush1.msra.mxu0 0.0
      %4175 = vmatprep.subr.mxu0 0.0
      %4176 = vmatpush1.msra.mxu0 0.0
      %4177 = vmatprep.subr.mxu0 0.0
      %4178 = vmatpush1.msra.mxu0 0.0
      %4179 = vmatprep.mubr.f32.mxu0 0.0
      %4180 = vmatmul.mubr.f32.gmra.mrb[0].mxu0 %v821
      %v4181 = vpop.f32.mrb[0].mxu0
      %v4182 = vadd.f32 0.0, %v4181
      %v4183 = vpop.f32.mrb[0].mxu0
      %4184 = vmatprep.mubr.f32.mxu0 0.0
      %4185 = vmatmul.mubr.f32.gmra.mrb[0].mxu0 %v824
      %v4186 = vpop.f32.mrb[0].mxu0
      %v4187 = vadd.f32 0.0, %v4186
      %v4188 = vpop.f32.mrb[0].mxu0
      %4189 = vmatprep.mubr.f32.mxu0 0.0
      %4190 = vmatmul.mubr.f32.gmra.mrb[0].mxu0 %v827
      %v4191 = vpop.f32.mrb[0].mxu0
      %v4192 = vadd.f32 0.0, %v4191
      %v4193 = vpop.f32.mrb[0].mxu0
      %4194 = vmatprep.mubr.f32.mxu0 0.0
      %4195 = vmatmul.mubr.f32.gmra.mrb[0].mxu0 %v830
      %v4196 = vpop.f32.mrb[0].mxu0
      %v4197 = vadd.f32 0.0, %v4196
      %v4198 = vpop.f32.mrb[0].mxu0
      %4199 = vmatprep.mubr.f32.mxu0 0.0
      %4200 = vmatmul.mubr.f32.gmra.mrb[0].mxu0 %v833
      %v4201 = vpop.f32.mrb[0].mxu0
      %v4202 = vadd.f32 0.0, %v4201
      %v4203 = vpop.f32.mrb[0].mxu0
      %4204 = vmatprep.mubr.f32.mxu0 0.0
      %4205 = vmatmul.mubr.f32.gmra.mrb[0].mxu0 %v836
      %v4206 = vpop.f32.mrb[0].mxu0
      %v4207 = vadd.f32 0.0, %v4206
      %v4208 = vpop.f32.mrb[0].mxu0
      %4209 = vmatprep.mubr.f32.mxu0 0.0
      %4210 = vmatmul.mubr.f32.gmra.mrb[0].mxu0 %v839
      %v4211 = vpop.f32.mrb[0].mxu0
      %v4212 = vadd.f32 0.0, %v4211
      %v4213 = vpop.f32.mrb[0].mxu0
      %4214 = vmatprep.mubr.f32.mxu0 0.0
      %4215 = vmatmul.mubr.f32.gmra.mrb[0].mxu0 %v842
      %v4216 = vpop.f32.mrb[0].mxu0
      %v4217 = vadd.f32 0.0, %v4216
      %v4218 = vpop.f32.mrb[0].mxu0
      %4219 = vdwg.mxu0
      %v4220 = vadd.f32 %v4107, %v4182
      %v4221 = vadd.f32 %v4108, %v4187
      %v4222 = vadd.f32 %v4109, %v4192
      %v4223 = vadd.f32 %v4110, %v4197
      %v4224 = vadd.f32 %v4111, %v4202
      %v4225 = vadd.f32 %v4112, %v4207
      %v4226 = vadd.f32 %v4113, %v4212
      %v4227 = vadd.f32 %v4114, %v4217
      %4228 = vmatprep.subr.mxu0 0.0
      %4229 = vmatpush1.msra.mxu0 %v1550
      %4230 = vmatprep.subr.mxu0 0.0
      %4231 = vmatpush1.msra.mxu0 %v1552
      %4232 = vmatprep.subr.mxu0 0.0
      %4233 = vmatpush1.msra.mxu0 %v1554
      %4234 = vmatprep.subr.mxu0 0.0
      %4235 = vmatpush1.msra.mxu0 %v1556
      %4236 = vmatprep.subr.mxu0 0.0
      %4237 = vmatpush1.msra.mxu0 0.0
      %4238 = vmatprep.subr.mxu0 0.0
      %4239 = vmatpush1.msra.mxu0 0.0
      %4240 = vmatprep.subr.mxu0 0.0
      %4241 = vmatpush1.msra.mxu0 0.0
      %4242 = vmatprep.subr.mxu0 0.0
      %4243 = vmatpush1.msra.mxu0 0.0
      %4244 = vmatprep.subr.mxu0 0.0
      %4245 = vmatpush1.msra.mxu0 0.0
      %4246 = vmatprep.subr.mxu0 0.0
      %4247 = vmatpush1.msra.mxu0 0.0
      %4248 = vmatprep.subr.mxu0 0.0
      %4249 = vmatpush1.msra.mxu0 0.0
      %4250 = vmatprep.subr.mxu0 0.0
      %4251 = vmatpush1.msra.mxu0 0.0
      %4252 = vmatprep.subr.mxu0 0.0
      %4253 = vmatpush1.msra.mxu0 0.0
      %4254 = vmatprep.subr.mxu0 0.0
      %4255 = vmatpush1.msra.mxu0 0.0
      %4256 = vmatprep.subr.mxu0 0.0
      %4257 = vmatpush1.msra.mxu0 0.0
      %4258 = vmatprep.subr.mxu0 0.0
      %4259 = vmatpush1.msra.mxu0 0.0
      %4260 = vmatprep.subr.mxu0 0.0
      %4261 = vmatpush1.msra.mxu0 0.0
      %4262 = vmatprep.subr.mxu0 0.0
      %4263 = vmatpush1.msra.mxu0 0.0
      %4264 = vmatprep.subr.mxu0 0.0
      %4265 = vmatpush1.msra.mxu0 0.0
      %4266 = vmatprep.subr.mxu0 0.0
      %4267 = vmatpush1.msra.mxu0 0.0
      %4268 = vmatprep.subr.mxu0 0.0
      %4269 = vmatpush1.msra.mxu0 0.0
      %4270 = vmatprep.subr.mxu0 0.0
      %4271 = vmatpush1.msra.mxu0 0.0
      %4272 = vmatprep.subr.mxu0 0.0
      %4273 = vmatpush1.msra.mxu0 0.0
      %4274 = vmatprep.subr.mxu0 0.0
      %4275 = vmatpush1.msra.mxu0 0.0
      %4276 = vmatprep.subr.mxu0 0.0
      %4277 = vmatpush1.msra.mxu0 0.0
      %4278 = vmatprep.subr.mxu0 0.0
      %4279 = vmatpush1.msra.mxu0 0.0
      %4280 = vmatprep.subr.mxu0 0.0
      %4281 = vmatpush1.msra.mxu0 0.0
      %4282 = vmatprep.subr.mxu0 0.0
      %4283 = vmatpush1.msra.mxu0 0.0
      %4284 = vmatprep.subr.mxu0 0.0
      %4285 = vmatpush1.msra.mxu0 0.0
      %4286 = vmatprep.subr.mxu0 0.0
      %4287 = vmatpush1.msra.mxu0 0.0
      %4288 = vmatprep.subr.mxu0 0.0
      %4289 = vmatpush1.msra.mxu0 0.0
      %4290 = vmatprep.subr.mxu0 0.0
      %4291 = vmatpush1.msra.mxu0 0.0
      %4292 = vmatprep.mubr.f32.mxu0 0.0
      %4293 = vmatmul.mubr.f32.gmra.mrb[0].mxu0 %v958
      %v4294 = vpop.f32.mrb[0].mxu0
      %v4295 = vadd.f32 0.0, %v4294
      %v4296 = vpop.f32.mrb[0].mxu0
      %4297 = vmatprep.mubr.f32.mxu0 0.0
      %4298 = vmatmul.mubr.f32.gmra.mrb[0].mxu0 %v961
      %v4299 = vpop.f32.mrb[0].mxu0
      %v4300 = vadd.f32 0.0, %v4299
      %v4301 = vpop.f32.mrb[0].mxu0
      %4302 = vmatprep.mubr.f32.mxu0 0.0
      %4303 = vmatmul.mubr.f32.gmra.mrb[0].mxu0 %v964
      %v4304 = vpop.f32.mrb[0].mxu0
      %v4305 = vadd.f32 0.0, %v4304
      %v4306 = vpop.f32.mrb[0].mxu0
      %4307 = vmatprep.mubr.f32.mxu0 0.0
      %4308 = vmatmul.mubr.f32.gmra.mrb[0].mxu0 %v967
      %v4309 = vpop.f32.mrb[0].mxu0
      %v4310 = vadd.f32 0.0, %v4309
      %v4311 = vpop.f32.mrb[0].mxu0
      %4312 = vmatprep.mubr.f32.mxu0 0.0
      %4313 = vmatmul.mubr.f32.gmra.mrb[0].mxu0 %v970
      %v4314 = vpop.f32.mrb[0].mxu0
      %v4315 = vadd.f32 0.0, %v4314
      %v4316 = vpop.f32.mrb[0].mxu0
      %4317 = vmatprep.mubr.f32.mxu0 0.0
      %4318 = vmatmul.mubr.f32.gmra.mrb[0].mxu0 %v973
      %v4319 = vpop.f32.mrb[0].mxu0
      %v4320 = vadd.f32 0.0, %v4319
      %v4321 = vpop.f32.mrb[0].mxu0
      %4322 = vmatprep.mubr.f32.mxu0 0.0
      %4323 = vmatmul.mubr.f32.gmra.mrb[0].mxu0 %v976
      %v4324 = vpop.f32.mrb[0].mxu0
      %v4325 = vadd.f32 0.0, %v4324
      %v4326 = vpop.f32.mrb[0].mxu0
      %4327 = vmatprep.mubr.f32.mxu0 0.0
      %4328 = vmatmul.mubr.f32.gmra.mrb[0].mxu0 %v979
      %v4329 = vpop.f32.mrb[0].mxu0
      %v4330 = vadd.f32 0.0, %v4329
      %v4331 = vpop.f32.mrb[0].mxu0
      %4332 = vdwg.mxu0
      %v4333 = vadd.f32 %v4220, %v4295
      %v4334 = vadd.f32 %v4221, %v4300
      %v4335 = vadd.f32 %v4222, %v4305
      %v4336 = vadd.f32 %v4223, %v4310
      %v4337 = vadd.f32 %v4224, %v4315
      %v4338 = vadd.f32 %v4225, %v4320
      %v4339 = vadd.f32 %v4226, %v4325
      %v4340 = vadd.f32 %v4227, %v4330
      %4341 = vmatprep.subr.mxu0 0.0
      %4342 = vmatpush1.msra.mxu0 %v2615
      %4343 = vmatprep.subr.mxu0 0.0
      %4344 = vmatpush1.msra.mxu0 %v2617
      %4345 = vmatprep.subr.mxu0 0.0
      %4346 = vmatpush1.msra.mxu0 %v2619
      %4347 = vmatprep.subr.mxu0 0.0
      %4348 = vmatpush1.msra.mxu0 %v2621
      %4349 = vmatprep.subr.mxu0 0.0
      %4350 = vmatpush1.msra.mxu0 0.0
      %4351 = vmatprep.subr.mxu0 0.0
      %4352 = vmatpush1.msra.mxu0 0.0
      %4353 = vmatprep.subr.mxu0 0.0
      %4354 = vmatpush1.msra.mxu0 0.0
      %4355 = vmatprep.subr.mxu0 0.0
      %4356 = vmatpush1.msra.mxu0 0.0
      %4357 = vmatprep.subr.mxu0 0.0
      %4358 = vmatpush1.msra.mxu0 0.0
      %4359 = vmatprep.subr.mxu0 0.0
      %4360 = vmatpush1.msra.mxu0 0.0
      %4361 = vmatprep.subr.mxu0 0.0
      %4362 = vmatpush1.msra.mxu0 0.0
      %4363 = vmatprep.subr.mxu0 0.0
      %4364 = vmatpush1.msra.mxu0 0.0
      %4365 = vmatprep.subr.mxu0 0.0
      %4366 = vmatpush1.msra.mxu0 0.0
      %4367 = vmatprep.subr.mxu0 0.0
      %4368 = vmatpush1.msra.mxu0 0.0
      %4369 = vmatprep.subr.mxu0 0.0
      %4370 = vmatpush1.msra.mxu0 0.0
      %4371 = vmatprep.subr.mxu0 0.0
      %4372 = vmatpush1.msra.mxu0 0.0
      %4373 = vmatprep.subr.mxu0 0.0
      %4374 = vmatpush1.msra.mxu0 0.0
      %4375 = vmatprep.subr.mxu0 0.0
      %4376 = vmatpush1.msra.mxu0 0.0
      %4377 = vmatprep.subr.mxu0 0.0
      %4378 = vmatpush1.msra.mxu0 0.0
      %4379 = vmatprep.subr.mxu0 0.0
      %4380 = vmatpush1.msra.mxu0 0.0
      %4381 = vmatprep.subr.mxu0 0.0
      %4382 = vmatpush1.msra.mxu0 0.0
      %4383 = vmatprep.subr.mxu0 0.0
      %4384 = vmatpush1.msra.mxu0 0.0
      %4385 = vmatprep.subr.mxu0 0.0
      %4386 = vmatpush1.msra.mxu0 0.0
      %4387 = vmatprep.subr.mxu0 0.0
      %4388 = vmatpush1.msra.mxu0 0.0
      %4389 = vmatprep.subr.mxu0 0.0
      %4390 = vmatpush1.msra.mxu0 0.0
      %4391 = vmatprep.subr.mxu0 0.0
      %4392 = vmatpush1.msra.mxu0 0.0
      %4393 = vmatprep.subr.mxu0 0.0
      %4394 = vmatpush1.msra.mxu0 0.0
      %4395 = vmatprep.subr.mxu0 0.0
      %4396 = vmatpush1.msra.mxu0 0.0
      %4397 = vmatprep.subr.mxu0 0.0
      %4398 = vmatpush1.msra.mxu0 0.0
      %4399 = vmatprep.subr.mxu0 0.0
      %4400 = vmatpush1.msra.mxu0 0.0
      %4401 = vmatprep.subr.mxu0 0.0
      %4402 = vmatpush1.msra.mxu0 0.0
      %4403 = vmatprep.subr.mxu0 0.0
      %4404 = vmatpush1.msra.mxu0 0.0
      %4405 = vmatprep.mubr.f32.mxu0 0.0
      %4406 = vmatmul.mubr.f32.gmra.mrb[0].mxu0 %v1111
      %v4407 = vpop.f32.mrb[0].mxu0
      %v4408 = vadd.f32 0.0, %v4407
      %v4409 = vpop.f32.mrb[0].mxu0
      %4410 = vmatprep.mubr.f32.mxu0 0.0
      %4411 = vmatmul.mubr.f32.gmra.mrb[0].mxu0 %v1114
      %v4412 = vpop.f32.mrb[0].mxu0
      %v4413 = vadd.f32 0.0, %v4412
      %v4414 = vpop.f32.mrb[0].mxu0
      %4415 = vmatprep.mubr.f32.mxu0 0.0
      %4416 = vmatmul.mubr.f32.gmra.mrb[0].mxu0 %v1117
      %v4417 = vpop.f32.mrb[0].mxu0
      %v4418 = vadd.f32 0.0, %v4417
      %v4419 = vpop.f32.mrb[0].mxu0
      %4420 = vmatprep.mubr.f32.mxu0 0.0
      %4421 = vmatmul.mubr.f32.gmra.mrb[0].mxu0 %v1120
      %v4422 = vpop.f32.mrb[0].mxu0
      %v4423 = vadd.f32 0.0, %v4422
      %v4424 = vpop.f32.mrb[0].mxu0
      %4425 = vmatprep.mubr.f32.mxu0 0.0
      %4426 = vmatmul.mubr.f32.gmra.mrb[0].mxu0 %v1123
      %v4427 = vpop.f32.mrb[0].mxu0
      %v4428 = vadd.f32 0.0, %v4427
      %v4429 = vpop.f32.mrb[0].mxu0
      %4430 = vmatprep.mubr.f32.mxu0 0.0
      %4431 = vmatmul.mubr.f32.gmra.mrb[0].mxu0 %v1126
      %v4432 = vpop.f32.mrb[0].mxu0
      %v4433 = vadd.f32 0.0, %v4432
      %v4434 = vpop.f32.mrb[0].mxu0
      %4435 = vmatprep.mubr.f32.mxu0 0.0
      %4436 = vmatmul.mubr.f32.gmra.mrb[0].mxu0 %v1129
      %v4437 = vpop.f32.mrb[0].mxu0
      %v4438 = vadd.f32 0.0, %v4437
      %v4439 = vpop.f32.mrb[0].mxu0
      %4440 = vmatprep.mubr.f32.mxu0 0.0
      %4441 = vmatmul.mubr.f32.gmra.mrb[0].mxu0 %v1132
      %v4442 = vpop.f32.mrb[0].mxu0
      %v4443 = vadd.f32 0.0, %v4442
      %v4444 = vpop.f32.mrb[0].mxu0
      %4445 = vdwg.mxu0
      %v4446 = vadd.f32 %v4333, %v4408
      %v4447 = vadd.f32 %v4334, %v4413
      %v4448 = vadd.f32 %v4335, %v4418
      %v4449 = vadd.f32 %v4336, %v4423
      %v4450 = vadd.f32 %v4337, %v4428
      %v4451 = vadd.f32 %v4338, %v4433
      %v4452 = vadd.f32 %v4339, %v4438
      %v4453 = vadd.f32 %v4340, %v4443
      %4454 = vmatprep.subr.mxu0 0.0
      %4455 = vmatpush1.msra.mxu0 %v3535
      %4456 = vmatprep.subr.mxu0 0.0
      %4457 = vmatpush1.msra.mxu0 %v3537
      %4458 = vmatprep.subr.mxu0 0.0
      %4459 = vmatpush1.msra.mxu0 %v3539
      %4460 = vmatprep.subr.mxu0 0.0
      %4461 = vmatpush1.msra.mxu0 %v3541
      %4462 = vmatprep.subr.mxu0 0.0
      %4463 = vmatpush1.msra.mxu0 0.0
      %4464 = vmatprep.subr.mxu0 0.0
      %4465 = vmatpush1.msra.mxu0 0.0
      %4466 = vmatprep.subr.mxu0 0.0
      %4467 = vmatpush1.msra.mxu0 0.0
      %4468 = vmatprep.subr.mxu0 0.0
      %4469 = vmatpush1.msra.mxu0 0.0
      %4470 = vmatprep.subr.mxu0 0.0
      %4471 = vmatpush1.msra.mxu0 0.0
      %4472 = vmatprep.subr.mxu0 0.0
      %4473 = vmatpush1.msra.mxu0 0.0
      %4474 = vmatprep.subr.mxu0 0.0
      %4475 = vmatpush1.msra.mxu0 0.0
      %4476 = vmatprep.subr.mxu0 0.0
      %4477 = vmatpush1.msra.mxu0 0.0
      %4478 = vmatprep.subr.mxu0 0.0
      %4479 = vmatpush1.msra.mxu0 0.0
      %4480 = vmatprep.subr.mxu0 0.0
      %4481 = vmatpush1.msra.mxu0 0.0
      %4482 = vmatprep.subr.mxu0 0.0
      %4483 = vmatpush1.msra.mxu0 0.0
      %4484 = vmatprep.subr.mxu0 0.0
      %4485 = vmatpush1.msra.mxu0 0.0
      %4486 = vmatprep.subr.mxu0 0.0
      %4487 = vmatpush1.msra.mxu0 0.0
      %4488 = vmatprep.subr.mxu0 0.0
      %4489 = vmatpush1.msra.mxu0 0.0
      %4490 = vmatprep.subr.mxu0 0.0
      %4491 = vmatpush1.msra.mxu0 0.0
      %4492 = vmatprep.subr.mxu0 0.0
      %4493 = vmatpush1.msra.mxu0 0.0
      %4494 = vmatprep.subr.mxu0 0.0
      %4495 = vmatpush1.msra.mxu0 0.0
      %4496 = vmatprep.subr.mxu0 0.0
      %4497 = vmatpush1.msra.mxu0 0.0
      %4498 = vmatprep.subr.mxu0 0.0
      %4499 = vmatpush1.msra.mxu0 0.0
      %4500 = vmatprep.subr.mxu0 0.0
      %4501 = vmatpush1.msra.mxu0 0.0
      %4502 = vmatprep.subr.mxu0 0.0
      %4503 = vmatpush1.msra.mxu0 0.0
      %4504 = vmatprep.subr.mxu0 0.0
      %4505 = vmatpush1.msra.mxu0 0.0
      %4506 = vmatprep.subr.mxu0 0.0
      %4507 = vmatpush1.msra.mxu0 0.0
      %4508 = vmatprep.subr.mxu0 0.0
      %4509 = vmatpush1.msra.mxu0 0.0
      %4510 = vmatprep.subr.mxu0 0.0
      %4511 = vmatpush1.msra.mxu0 0.0
      %4512 = vmatprep.subr.mxu0 0.0
      %4513 = vmatpush1.msra.mxu0 0.0
      %4514 = vmatprep.subr.mxu0 0.0
      %4515 = vmatpush1.msra.mxu0 0.0
      %4516 = vmatprep.subr.mxu0 0.0
      %4517 = vmatpush1.msra.mxu0 0.0
      %4518 = vmatprep.mubr.f32.mxu0 0.0
      %4519 = vmatmul.mubr.f32.gmra.mrb[0].mxu0 %v1260
      %v4520 = vpop.f32.mrb[0].mxu0
      %v4521 = vadd.f32 0.0, %v4520
      %v4522 = vpop.f32.mrb[0].mxu0
      %4523 = vmatprep.mubr.f32.mxu0 0.0
      %4524 = vmatmul.mubr.f32.gmra.mrb[0].mxu0 %v1263
      %v4525 = vpop.f32.mrb[0].mxu0
      %v4526 = vadd.f32 0.0, %v4525
      %v4527 = vpop.f32.mrb[0].mxu0
      %4528 = vmatprep.mubr.f32.mxu0 0.0
      %4529 = vmatmul.mubr.f32.gmra.mrb[0].mxu0 %v1266
      %v4530 = vpop.f32.mrb[0].mxu0
      %v4531 = vadd.f32 0.0, %v4530
      %v4532 = vpop.f32.mrb[0].mxu0
      %4533 = vmatprep.mubr.f32.mxu0 0.0
      %4534 = vmatmul.mubr.f32.gmra.mrb[0].mxu0 %v1269
      %v4535 = vpop.f32.mrb[0].mxu0
      %v4536 = vadd.f32 0.0, %v4535
      %v4537 = vpop.f32.mrb[0].mxu0
      %4538 = vmatprep.mubr.f32.mxu0 0.0
      %4539 = vmatmul.mubr.f32.gmra.mrb[0].mxu0 %v1272
      %v4540 = vpop.f32.mrb[0].mxu0
      %v4541 = vadd.f32 0.0, %v4540
      %v4542 = vpop.f32.mrb[0].mxu0
      %4543 = vmatprep.mubr.f32.mxu0 0.0
      %4544 = vmatmul.mubr.f32.gmra.mrb[0].mxu0 %v1275
      %v4545 = vpop.f32.mrb[0].mxu0
      %v4546 = vadd.f32 0.0, %v4545
      %v4547 = vpop.f32.mrb[0].mxu0
      %4548 = vmatprep.mubr.f32.mxu0 0.0
      %4549 = vmatmul.mubr.f32.gmra.mrb[0].mxu0 %v1278
      %v4550 = vpop.f32.mrb[0].mxu0
      %v4551 = vadd.f32 0.0, %v4550
      %v4552 = vpop.f32.mrb[0].mxu0
      %4553 = vmatprep.mubr.f32.mxu0 0.0
      %4554 = vmatmul.mubr.f32.gmra.mrb[0].mxu0 %v1281
      %v4555 = vpop.f32.mrb[0].mxu0
      %v4556 = vadd.f32 0.0, %v4555
      %v4557 = vpop.f32.mrb[0].mxu0
      %4558 = vdwg.mxu0
      %v4559 = vadd.f32 %v4446, %v4521
      %v4560 = vadd.f32 %v4447, %v4526
      %v4561 = vadd.f32 %v4448, %v4531
      %v4562 = vadd.f32 %v4449, %v4536
      %v4563 = vadd.f32 %v4450, %v4541
      %v4564 = vadd.f32 %v4451, %v4546
      %v4565 = vadd.f32 %v4452, %v4551
      %v4566 = vadd.f32 %v4453, %v4556
      %4567 = vmatprep.subr.mxu0 0.0
      %4568 = vmatpush1.msra.mxu0 %v3660
      %4569 = vmatprep.subr.mxu0 0.0
      %4570 = vmatpush1.msra.mxu0 %v3662
      %4571 = vmatprep.subr.mxu0 0.0
      %4572 = vmatpush1.msra.mxu0 %v3664
      %4573 = vmatprep.subr.mxu0 0.0
      %4574 = vmatpush1.msra.mxu0 %v3666
      %4575 = vmatprep.subr.mxu0 0.0
      %4576 = vmatpush1.msra.mxu0 0.0
      %4577 = vmatprep.subr.mxu0 0.0
      %4578 = vmatpush1.msra.mxu0 0.0
      %4579 = vmatprep.subr.mxu0 0.0
      %4580 = vmatpush1.msra.mxu0 0.0
      %4581 = vmatprep.subr.mxu0 0.0
      %4582 = vmatpush1.msra.mxu0 0.0
      %4583 = vmatprep.subr.mxu0 0.0
      %4584 = vmatpush1.msra.mxu0 0.0
      %4585 = vmatprep.subr.mxu0 0.0
      %4586 = vmatpush1.msra.mxu0 0.0
      %4587 = vmatprep.subr.mxu0 0.0
      %4588 = vmatpush1.msra.mxu0 0.0
      %4589 = vmatprep.subr.mxu0 0.0
      %4590 = vmatpush1.msra.mxu0 0.0
      %4591 = vmatprep.subr.mxu0 0.0
      %4592 = vmatpush1.msra.mxu0 0.0
      %4593 = vmatprep.subr.mxu0 0.0
      %4594 = vmatpush1.msra.mxu0 0.0
      %4595 = vmatprep.subr.mxu0 0.0
      %4596 = vmatpush1.msra.mxu0 0.0
      %4597 = vmatprep.subr.mxu0 0.0
      %4598 = vmatpush1.msra.mxu0 0.0
      %4599 = vmatprep.subr.mxu0 0.0
      %4600 = vmatpush1.msra.mxu0 0.0
      %4601 = vmatprep.subr.mxu0 0.0
      %4602 = vmatpush1.msra.mxu0 0.0
      %4603 = vmatprep.subr.mxu0 0.0
      %4604 = vmatpush1.msra.mxu0 0.0
      %4605 = vmatprep.subr.mxu0 0.0
      %4606 = vmatpush1.msra.mxu0 0.0
      %4607 = vmatprep.subr.mxu0 0.0
      %4608 = vmatpush1.msra.mxu0 0.0
      %4609 = vmatprep.subr.mxu0 0.0
      %4610 = vmatpush1.msra.mxu0 0.0
      %4611 = vmatprep.subr.mxu0 0.0
      %4612 = vmatpush1.msra.mxu0 0.0
      %4613 = vmatprep.subr.mxu0 0.0
      %4614 = vmatpush1.msra.mxu0 0.0
      %4615 = vmatprep.subr.mxu0 0.0
      %4616 = vmatpush1.msra.mxu0 0.0
      %4617 = vmatprep.subr.mxu0 0.0
      %4618 = vmatpush1.msra.mxu0 0.0
      %4619 = vmatprep.subr.mxu0 0.0
      %4620 = vmatpush1.msra.mxu0 0.0
      %4621 = vmatprep.subr.mxu0 0.0
      %4622 = vmatpush1.msra.mxu0 0.0
      %4623 = vmatprep.subr.mxu0 0.0
      %4624 = vmatpush1.msra.mxu0 0.0
      %4625 = vmatprep.subr.mxu0 0.0
      %4626 = vmatpush1.msra.mxu0 0.0
      %4627 = vmatprep.subr.mxu0 0.0
      %4628 = vmatpush1.msra.mxu0 0.0
      %4629 = vmatprep.subr.mxu0 0.0
      %4630 = vmatpush1.msra.mxu0 0.0
      %4631 = vmatprep.mubr.f32.mxu0 0.0
      %4632 = vmatmul.mubr.f32.gmra.mrb[0].mxu0 %v1413
      %v4633 = vpop.f32.mrb[0].mxu0
      %v4634 = vadd.f32 0.0, %v4633
      %v4635 = vpop.f32.mrb[0].mxu0
      %4636 = vmatprep.mubr.f32.mxu0 0.0
      %4637 = vmatmul.mubr.f32.gmra.mrb[0].mxu0 %v1416
      %v4638 = vpop.f32.mrb[0].mxu0
      %v4639 = vadd.f32 0.0, %v4638
      %v4640 = vpop.f32.mrb[0].mxu0
      %4641 = vmatprep.mubr.f32.mxu0 0.0
      %4642 = vmatmul.mubr.f32.gmra.mrb[0].mxu0 %v1419
      %v4643 = vpop.f32.mrb[0].mxu0
      %v4644 = vadd.f32 0.0, %v4643
      %v4645 = vpop.f32.mrb[0].mxu0
      %4646 = vmatprep.mubr.f32.mxu0 0.0
      %4647 = vmatmul.mubr.f32.gmra.mrb[0].mxu0 %v1422
      %v4648 = vpop.f32.mrb[0].mxu0
      %v4649 = vadd.f32 0.0, %v4648
      %v4650 = vpop.f32.mrb[0].mxu0
      %4651 = vmatprep.mubr.f32.mxu0 0.0
      %4652 = vmatmul.mubr.f32.gmra.mrb[0].mxu0 %v1425
      %v4653 = vpop.f32.mrb[0].mxu0
      %v4654 = vadd.f32 0.0, %v4653
      %v4655 = vpop.f32.mrb[0].mxu0
      %4656 = vmatprep.mubr.f32.mxu0 0.0
      %4657 = vmatmul.mubr.f32.gmra.mrb[0].mxu0 %v1428
      %v4658 = vpop.f32.mrb[0].mxu0
      %v4659 = vadd.f32 0.0, %v4658
      %v4660 = vpop.f32.mrb[0].mxu0
      %4661 = vmatprep.mubr.f32.mxu0 0.0
      %4662 = vmatmul.mubr.f32.gmra.mrb[0].mxu0 %v1431
      %v4663 = vpop.f32.mrb[0].mxu0
      %v4664 = vadd.f32 0.0, %v4663
      %v4665 = vpop.f32.mrb[0].mxu0
      %4666 = vmatprep.mubr.f32.mxu0 0.0
      %4667 = vmatmul.mubr.f32.gmra.mrb[0].mxu0 %v1434
      %v4668 = vpop.f32.mrb[0].mxu0
      %v4669 = vadd.f32 0.0, %v4668
      %v4670 = vpop.f32.mrb[0].mxu0
      %4671 = vdwg.mxu0
      %v4672 = vadd.f32 %v4559, %v4634
      %v4673 = vadd.f32 %v4560, %v4639
      %v4674 = vadd.f32 %v4561, %v4644
      %v4675 = vadd.f32 %v4562, %v4649
      %v4676 = vadd.f32 %v4563, %v4654
      %v4677 = vadd.f32 %v4564, %v4659
      %v4678 = vadd.f32 %v4565, %v4664
      %v4679 = vadd.f32 %v4566, %v4669
      %4680 = vrot.lane.b32.xlu0 %v324, 119
      %v4681 = vpop.permute.xlu0 %4680
      %4682 = vrot.lane.b32.xlu0 %v325, 119
      %v4683 = vpop.permute.xlu0 %4682
      %4684 = vrot.lane.b32.xlu0 %v326, 119
      %v4685 = vpop.permute.xlu0 %4684
      %4686 = vrot.lane.b32.xlu0 %v327, 119
      %v4687 = vpop.permute.xlu0 %4686
      %4692 = vmatprep.subr.mxu0 0.0
      %4693 = vmatpush1.msra.mxu0 %v4681
      %4694 = vmatprep.subr.mxu0 0.0
      %4695 = vmatpush1.msra.mxu0 %v4683
      %4696 = vmatprep.subr.mxu0 0.0
      %4697 = vmatpush1.msra.mxu0 %v4685
      %4698 = vmatprep.subr.mxu0 0.0
      %4699 = vmatpush1.msra.mxu0 %v4687
      %4700 = vmatprep.subr.mxu0 0.0
      %4701 = vmatpush1.msra.mxu0 0.0
      %4702 = vmatprep.subr.mxu0 0.0
      %4703 = vmatpush1.msra.mxu0 0.0
      %4704 = vmatprep.subr.mxu0 0.0
      %4705 = vmatpush1.msra.mxu0 0.0
      %4706 = vmatprep.subr.mxu0 0.0
      %4707 = vmatpush1.msra.mxu0 0.0
      %4708 = vmatprep.subr.mxu0 0.0
      %4709 = vmatpush1.msra.mxu0 0.0
      %4710 = vmatprep.subr.mxu0 0.0
      %4711 = vmatpush1.msra.mxu0 0.0
      %4712 = vmatprep.subr.mxu0 0.0
      %4713 = vmatpush1.msra.mxu0 0.0
      %4714 = vmatprep.subr.mxu0 0.0
      %4715 = vmatpush1.msra.mxu0 0.0
      %4716 = vmatprep.subr.mxu0 0.0
      %4717 = vmatpush1.msra.mxu0 0.0
      %4718 = vmatprep.subr.mxu0 0.0
      %4719 = vmatpush1.msra.mxu0 0.0
      %4720 = vmatprep.subr.mxu0 0.0
      %4721 = vmatpush1.msra.mxu0 0.0
      %4722 = vmatprep.subr.mxu0 0.0
      %4723 = vmatpush1.msra.mxu0 0.0
      %4724 = vmatprep.subr.mxu0 0.0
      %4725 = vmatpush1.msra.mxu0 0.0
      %4726 = vmatprep.subr.mxu0 0.0
      %4727 = vmatpush1.msra.mxu0 0.0
      %4728 = vmatprep.subr.mxu0 0.0
      %4729 = vmatpush1.msra.mxu0 0.0
      %4730 = vmatprep.subr.mxu0 0.0
      %4731 = vmatpush1.msra.mxu0 0.0
      %4732 = vmatprep.subr.mxu0 0.0
      %4733 = vmatpush1.msra.mxu0 0.0
      %4734 = vmatprep.subr.mxu0 0.0
      %4735 = vmatpush1.msra.mxu0 0.0
      %4736 = vmatprep.subr.mxu0 0.0
      %4737 = vmatpush1.msra.mxu0 0.0
      %4738 = vmatprep.subr.mxu0 0.0
      %4739 = vmatpush1.msra.mxu0 0.0
      %4740 = vmatprep.subr.mxu0 0.0
      %4741 = vmatpush1.msra.mxu0 0.0
      %4742 = vmatprep.subr.mxu0 0.0
      %4743 = vmatpush1.msra.mxu0 0.0
      %4744 = vmatprep.subr.mxu0 0.0
      %4745 = vmatpush1.msra.mxu0 0.0
      %4746 = vmatprep.subr.mxu0 0.0
      %4747 = vmatpush1.msra.mxu0 0.0
      %4748 = vmatprep.subr.mxu0 0.0
      %4749 = vmatpush1.msra.mxu0 0.0
      %4750 = vmatprep.subr.mxu0 0.0
      %4751 = vmatpush1.msra.mxu0 0.0
      %4752 = vmatprep.subr.mxu0 0.0
      %4753 = vmatpush1.msra.mxu0 0.0
      %4754 = vmatprep.subr.mxu0 0.0
      %4755 = vmatpush1.msra.mxu0 0.0
      %4756 = vmatprep.mubr.f32.mxu0 0.0
      %4757 = vmatmul.mubr.f32.gmra.mrb[0].mxu0 %v1562
      %v4758 = vpop.f32.mrb[0].mxu0
      %v4759 = vadd.f32 0.0, %v4758
      %v4760 = vpop.f32.mrb[0].mxu0
      %4761 = vmatprep.mubr.f32.mxu0 0.0
      %4762 = vmatmul.mubr.f32.gmra.mrb[0].mxu0 %v1565
      %v4763 = vpop.f32.mrb[0].mxu0
      %v4764 = vadd.f32 0.0, %v4763
      %v4765 = vpop.f32.mrb[0].mxu0
      %4766 = vmatprep.mubr.f32.mxu0 0.0
      %4767 = vmatmul.mubr.f32.gmra.mrb[0].mxu0 %v1568
      %v4768 = vpop.f32.mrb[0].mxu0
      %v4769 = vadd.f32 0.0, %v4768
      %v4770 = vpop.f32.mrb[0].mxu0
      %4771 = vmatprep.mubr.f32.mxu0 0.0
      %4772 = vmatmul.mubr.f32.gmra.mrb[0].mxu0 %v1571
      %v4773 = vpop.f32.mrb[0].mxu0
      %v4774 = vadd.f32 0.0, %v4773
      %v4775 = vpop.f32.mrb[0].mxu0
      %4776 = vmatprep.mubr.f32.mxu0 0.0
      %4777 = vmatmul.mubr.f32.gmra.mrb[0].mxu0 %v1574
      %v4778 = vpop.f32.mrb[0].mxu0
      %v4779 = vadd.f32 0.0, %v4778
      %v4780 = vpop.f32.mrb[0].mxu0
      %4781 = vmatprep.mubr.f32.mxu0 0.0
      %4782 = vmatmul.mubr.f32.gmra.mrb[0].mxu0 %v1577
      %v4783 = vpop.f32.mrb[0].mxu0
      %v4784 = vadd.f32 0.0, %v4783
      %v4785 = vpop.f32.mrb[0].mxu0
      %4786 = vmatprep.mubr.f32.mxu0 0.0
      %4787 = vmatmul.mubr.f32.gmra.mrb[0].mxu0 %v1580
      %v4788 = vpop.f32.mrb[0].mxu0
      %v4789 = vadd.f32 0.0, %v4788
      %v4790 = vpop.f32.mrb[0].mxu0
      %4791 = vmatprep.mubr.f32.mxu0 0.0
      %4792 = vmatmul.mubr.f32.gmra.mrb[0].mxu0 %v1583
      %v4793 = vpop.f32.mrb[0].mxu0
      %v4794 = vadd.f32 0.0, %v4793
      %v4795 = vpop.f32.mrb[0].mxu0
      %4796 = vdwg.mxu0
      %v4797 = vadd.f32 %v4672, %v4759
      %v4798 = vadd.f32 %v4673, %v4764
      %v4799 = vadd.f32 %v4674, %v4769
      %v4800 = vadd.f32 %v4675, %v4774
      %v4801 = vadd.f32 %v4676, %v4779
      %v4802 = vadd.f32 %v4677, %v4784
      %v4803 = vadd.f32 %v4678, %v4789
      %v4804 = vadd.f32 %v4679, %v4794
      %v4805 = vmax.f32 %v3784, %v4797
      %v4806 = vmax.f32 %v3785, %v4798
      %v4807 = vmax.f32 %v3786, %v4799
      %v4808 = vmax.f32 %v3787, %v4800
      %v4809 = vmax.f32 %v3788, %v4801
      %v4810 = vmax.f32 %v3789, %v4802
      %v4811 = vmax.f32 %v3790, %v4803
      %v4812 = vmax.f32 %v3791, %v4804
      %v4813 = vld [vmem:[%s5] sm:$0xff]
      %v4814 = vld [vmem:[%s5 + $0x8] sm:$0xff]
      %v4815 = vld [vmem:[%s5 + $0x10] sm:$0xff]
      %v4816 = vld [vmem:[%s5 + $0x18] sm:$0xff]
      %v4817 = vld [vmem:[%s5 + $0x20] sm:$0xff]
      %v4818 = vld [vmem:[%s5 + $0x28] sm:$0xff]
      %v4819 = vld [vmem:[%s5 + $0x30] sm:$0xff]
      %v4820 = vld [vmem:[%s5 + $0x38] sm:$0xff]
      %4822 = vset.pattern.permute.xlu0 0
      %4823 = vperm.xlu0 %4822, %v4813
      %v4824 = vpop.permute.xlu0 %4823
      %4827 = vset.pattern.permute.xlu0 0
      %4828 = vperm.xlu0 %4827, %v4814
      %v4829 = vpop.permute.xlu0 %4828
      %4832 = vset.pattern.permute.xlu0 0
      %4833 = vperm.xlu0 %4832, %v4815
      %v4834 = vpop.permute.xlu0 %4833
      %4837 = vset.pattern.permute.xlu0 0
      %4838 = vperm.xlu0 %4837, %v4816
      %v4839 = vpop.permute.xlu0 %4838
      %4842 = vset.pattern.permute.xlu0 0
      %4843 = vperm.xlu0 %4842, %v4817
      %v4844 = vpop.permute.xlu0 %4843
      %4847 = vset.pattern.permute.xlu0 0
      %4848 = vperm.xlu0 %4847, %v4818
      %v4849 = vpop.permute.xlu0 %4848
      %4852 = vset.pattern.permute.xlu0 0
      %4853 = vperm.xlu0 %4852, %v4819
      %v4854 = vpop.permute.xlu0 %4853
      %4857 = vset.pattern.permute.xlu0 0
      %4858 = vperm.xlu0 %4857, %v4820
      %v4859 = vpop.permute.xlu0 %4858
      %v4861 = vadd.f32 %v4805, %v4824
      %v4862 = vadd.f32 %v4806, %v4829
      %v4863 = vadd.f32 %v4807, %v4834
      %v4864 = vadd.f32 %v4808, %v4839
      %v4865 = vadd.f32 %v4809, %v4844
      %v4866 = vadd.f32 %v4810, %v4849
      %v4867 = vadd.f32 %v4811, %v4854
      %v4868 = vadd.f32 %v4812, %v4859
      %v4869 = vmax.f32 %v4861, 0.0
      %v4870 = vmax.f32 %v4862, 0.0
      %v4871 = vmax.f32 %v4863, 0.0
      %v4872 = vmax.f32 %v4864, 0.0
      %v4873 = vmax.f32 %v4865, 0.0
      %v4874 = vmax.f32 %v4866, 0.0
      %v4875 = vmax.f32 %v4867, 0.0
      %v4876 = vmax.f32 %v4868, 0.0
      %vm4877 = vcmask 523264
      %4878 = vst.msk [vmem:[%s311] sm:$0xff] %vm4877, 0.0
      %4879 = vst.msk [vmem:[%s311 + $0x8] sm:$0xff] %vm4877, 0.0
      %4880 = vst.msk [vmem:[%s311 + $0x10] sm:$0xff] %vm4877, 0.0
      %4881 = vst.msk [vmem:[%s311 + $0x18] sm:$0xff] %vm4877, 0.0
      %4882 = vst.msk [vmem:[%s311 + $0x20] sm:$0xff] %vm4877, 0.0
      %4883 = vst.msk [vmem:[%s311 + $0x28] sm:$0xff] %vm4877, 0.0
      %4884 = vst.msk [vmem:[%s311 + $0x30] sm:$0xff] %vm4877, 0.0
      %4885 = vst.msk [vmem:[%s311 + $0x38] sm:$0xff] %vm4877, 0.0
      %vm4886 = vcmask 449536
      %4887 = vst.msk [vmem:[%s311] sm:$0xff] %vm4886, %v4869
      %4888 = vst.msk [vmem:[%s311 + $0x8] sm:$0xff] %vm4886, %v4870
      %4889 = vst.msk [vmem:[%s311 + $0x10] sm:$0xff] %vm4886, %v4871
      %4890 = vst.msk [vmem:[%s311 + $0x18] sm:$0xff] %vm4886, %v4872
      %4891 = vst.msk [vmem:[%s311 + $0x20] sm:$0xff] %vm4886, %v4873
      %4892 = vst.msk [vmem:[%s311 + $0x28] sm:$0xff] %vm4886, %v4874
      %4893 = vst.msk [vmem:[%s311 + $0x30] sm:$0xff] %vm4886, %v4875
      %4894 = vst.msk [vmem:[%s311 + $0x38] sm:$0xff] %vm4886, %v4876
      %p4895 = scmp.lt.s32.totalorder %s17, 1
      %s4896 = scalar_select %p4895, %s17, 1
      %s4897 = smul.addr %s4896, 8
      %s4898 = smul.addr %s4897, 8
      %s4899 = scalar_lea.vmem %s6, %s4898
      // Predicated region
      $region45: #{cnn_forward.4} parent=43 // pred_check
        %p4900 = pneg %p181
      $region46: #{cnn_forward.4} parent=43 // pred_check_branch
        %4902 = sbr.rel (%p4900) target = $region48
      $region47: #{cnn_forward.4} parent=43 // pred_region
        _
      $region48: #{cnn_forward.4} parent=43 // pred_fallthru
        _
    $region44: #{cnn_forward.4} parent=5 // pred_fallthru
      _
    %p4903 = scmp.le.s32.totalorder 2, %s12
    // Predicated region
    $region49: #{cnn_forward.4} parent=5 // pred_check
      %p4904 = pneg %p4903
    $region50: #{cnn_forward.4} parent=5 // pred_check_branch
      %4906 = sbr.rel (%p4904) target = $region52
    $region51: #{cnn_forward.4} parent=5 // pred_region
      %s4907 = ssub.s32 %s12, 2
      // Predicated region
      $region53: #{cnn_forward.4} parent=51 // pred_check
        %p4908 = pneg %p187
      $region54: #{cnn_forward.4} parent=51 // pred_check_branch
        %4910 = sbr.rel (%p4908) target = $region56
      $region55: #{cnn_forward.4} parent=51 // pred_region
        %p4911 = scmp.lt.s32.totalorder %s18, 1
        %s4912 = scalar_select %p4911, %s18, 1
        %s4913 = smul.addr %s4912, 8
        %s4914 = smul.addr %s4913, 8
        %s4915 = scalar_lea.vmem %s6, %s4914
      $region56: #{cnn_forward.4} parent=51 // pred_fallthru
        _
    $region52: #{cnn_forward.4} parent=5 // pred_fallthru
      _
  $region6: #{cnn_forward.4} parent=0 // loop_footer
    %s16 = sadd.s32 1, %s12
  $region7: #{cnn_forward.4} parent=0 // loop_footer_branch
    %11 = sbr.rel target = $region3
  $region8: #{cnn_forward.4} parent=0 // loop_exit
    _

// kernel: cnn_forward.5
$region0: #{cnn_forward.5}
  #allocation0 [shape = 'u32[]', space=smem, size = 0x4, offset = 0x4, fixed_abs, tag = 'smem constant byte address 0x4 - core index']
  #allocation1 [shape = 'u32[144,128]{1,0:T(1,128)}', space=vmem, size = 0x12000, scoped, tag = 'internal scratch']
  %s0 = inlined_call_operand.vmem [shape: f32[2,3136], index: 0, kind: input, shape index: {}]
  %s1 = inlined_call_operand.vmem [shape: f32[3136,128], index: 1, kind: input, shape index: {}]
  %s2 = inlined_call_operand.vmem [shape: f32[1,128], index: 2, kind: input, shape index: {}]
  %s3 = inlined_call_operand.vmem [shape: f32[128,10], index: 3, kind: input, shape index: {}]
  %s4 = inlined_call_operand.vmem [shape: f32[1,10], index: 4, kind: input, shape index: {}]
  %s5 = inlined_call_operand.hbm [shape: f32[2,10], index: 5, kind: output, shape index: {}]
  %s6 = sld [smem:[#allocation0]]
  $region30: #{cnn_forward.5} parent=0
    _
  %s8 = ssub.s32 1, %s6
  %s9 = scalar_select 0, %s8, %s6
  $region1: #{cnn_forward.5} parent=0
    #allocation2 [shape = 'u8[1024]{0}', space=vmem, size = 0x400, scoped, tag = 'output window, operand 0, single buffered']
    #allocation3 [shape = 's32[1]{0}', space=sflag, size = 0x4, scoped, tag = 'scoped memory for cnn_forward.5']
    %10 = vsyncpa [#allocation3], 0
    // Predicated region
    $region2: #{cnn_forward.5} parent=1 // pred_check
      _
    $region3: #{cnn_forward.5} parent=1 // pred_check_branch
      %12 = sbr.rel (0) target = $region5
    $region4: #{cnn_forward.5} parent=1 // pred_region
      _
    $region5: #{cnn_forward.5} parent=1 // pred_fallthru
      _
    // Predicated region
    $region6: #{cnn_forward.5} parent=1 // pred_check
      _
    $region7: #{cnn_forward.5} parent=1 // pred_check_branch
      %14 = sbr.rel (0) target = $region9
    $region8: #{cnn_forward.5} parent=1 // pred_region
      _
    $region9: #{cnn_forward.5} parent=1 // pred_fallthru
      _
    // Predicated region
    $region10: #{cnn_forward.5} parent=1 // pred_check
      _
    $region11: #{cnn_forward.5} parent=1 // pred_check_branch
      %16 = sbr.rel (0) target = $region13
    $region12: #{cnn_forward.5} parent=1 // pred_region
      _
    $region13: #{cnn_forward.5} parent=1 // pred_fallthru
      _
    // Predicated region
    $region14: #{cnn_forward.5} parent=1 // pred_check
      _
    $region15: #{cnn_forward.5} parent=1 // pred_check_branch
      %18 = sbr.rel (0) target = $region17
    $region16: #{cnn_forward.5} parent=1 // pred_region
      _
    $region17: #{cnn_forward.5} parent=1 // pred_fallthru
      _
    // Predicated region
    $region18: #{cnn_forward.5} parent=1 // pred_check
      _
    $region19: #{cnn_forward.5} parent=1 // pred_check_branch
      %20 = sbr.rel (0) target = $region21
    $region20: #{cnn_forward.5} parent=1 // pred_region
      _
    $region21: #{cnn_forward.5} parent=1 // pred_fallthru
      _
    %v21 = vld [vmem:[%s0] sm:$0xff]
    %v22 = vld [vmem:[%s0 + $0x8] sm:$0xff]
    %v23 = vld [vmem:[%s0 + $0x10] sm:$0xff]
    %v24 = vld [vmem:[%s0 + $0x18] sm:$0xff]
    %v25 = vld [vmem:[%s0 + $0x20] sm:$0xff]
    %v26 = vld [vmem:[%s0 + $0x28] sm:$0xff]
    %v27 = vld [vmem:[%s0 + $0x30] sm:$0x3]
    %v28 = vld [vmem:[%s1] sm:$0xff]
    %v29 = vld [vmem:[%s1 + $0x8] sm:$0xff]
    %v30 = vld [vmem:[%s1 + $0x10] sm:$0xff]
    %v31 = vld [vmem:[%s1 + $0x18] sm:$0xff]
    %v32 = vld [vmem:[%s1 + $0x20] sm:$0xff]
    %v33 = vld [vmem:[%s1 + $0x28] sm:$0xff]
    %v34 = vld [vmem:[%s1 + $0x30] sm:$0xff]
    %v35 = vld [vmem:[%s1 + $0x38] sm:$0xff]
    %v36 = vld [vmem:[%s1 + $0x40] sm:$0xff]
    %v37 = vld [vmem:[%s1 + $0x48] sm:$0xff]
    %v38 = vld [vmem:[%s1 + $0x50] sm:$0xff]
    %v39 = vld [vmem:[%s1 + $0x58] sm:$0xff]
    %v40 = vld [vmem:[%s1 + $0x60] sm:$0xff]
    %v41 = vld [vmem:[%s1 + $0x68] sm:$0xff]
    %v42 = vld [vmem:[%s1 + $0x70] sm:$0xff]
    %v43 = vld [vmem:[%s1 + $0x78] sm:$0xff]
    %v44 = vld [vmem:[%s1 + $0x80] sm:$0xff]
    %v45 = vld [vmem:[%s1 + $0x88] sm:$0xff]
    %v46 = vld [vmem:[%s1 + $0x90] sm:$0xff]
    %v47 = vld [vmem:[%s1 + $0x98] sm:$0xff]
    %v48 = vld [vmem:[%s1 + $0xa0] sm:$0xff]
    %v49 = vld [vmem:[%s1 + $0xa8] sm:$0xff]
    %v50 = vld [vmem:[%s1 + $0xb0] sm:$0xff]
    %v51 = vld [vmem:[%s1 + $0xb8] sm:$0xff]
    %v52 = vld [vmem:[%s1 + $0xc0] sm:$0xff]
    %v53 = vld [vmem:[%s1 + $0xc8] sm:$0xff]
    %v54 = vld [vmem:[%s1 + $0xd0] sm:$0xff]
    %v55 = vld [vmem:[%s1 + $0xd8] sm:$0xff]
    %v56 = vld [vmem:[%s1 + $0xe0] sm:$0xff]
    %v57 = vld [vmem:[%s1 + $0xe8] sm:$0xff]
    %v58 = vld [vmem:[%s1 + $0xf0] sm:$0xff]
    %v59 = vld [vmem:[%s1 + $0xf8] sm:$0xff]
    %v60 = vld [vmem:[%s1 + $0x100] sm:$0xff]
    %v61 = vld [vmem:[%s1 + $0x108] sm:$0xff]
    %v62 = vld [vmem:[%s1 + $0x110] sm:$0xff]
    %v63 = vld [vmem:[%s1 + $0x118] sm:$0xff]
    %v64 = vld [vmem:[%s1 + $0x120] sm:$0xff]
    %v65 = vld [vmem:[%s1 + $0x128] sm:$0xff]
    %v66 = vld [vmem:[%s1 + $0x130] sm:$0xff]
    %v67 = vld [vmem:[%s1 + $0x138] sm:$0xff]
    %v68 = vld [vmem:[%s1 + $0x140] sm:$0xff]
    %v69 = vld [vmem:[%s1 + $0x148] sm:$0xff]
    %v70 = vld [vmem:[%s1 + $0x150] sm:$0xff]
    %v71 = vld [vmem:[%s1 + $0x158] sm:$0xff]
    %v72 = vld [vmem:[%s1 + $0x160] sm:$0xff]
    %v73 = vld [vmem:[%s1 + $0x168] sm:$0xff]
    %v74 = vld [vmem:[%s1 + $0x170] sm:$0xff]
    %v75 = vld [vmem:[%s1 + $0x178] sm:$0xff]
    %v76 = vld [vmem:[%s1 + $0x180] sm:$0xff]
    %v77 = vld [vmem:[%s1 + $0x188] sm:$0xff]
    %v78 = vld [vmem:[%s1 + $0x190] sm:$0xff]
    %v79 = vld [vmem:[%s1 + $0x198] sm:$0xff]
    %v80 = vld [vmem:[%s1 + $0x1a0] sm:$0xff]
    %v81 = vld [vmem:[%s1 + $0x1a8] sm:$0xff]
    %v82 = vld [vmem:[%s1 + $0x1b0] sm:$0xff]
    %v83 = vld [vmem:[%s1 + $0x1b8] sm:$0xff]
    %v84 = vld [vmem:[%s1 + $0x1c0] sm:$0xff]
    %v85 = vld [vmem:[%s1 + $0x1c8] sm:$0xff]
    %v86 = vld [vmem:[%s1 + $0x1d0] sm:$0xff]
    %v87 = vld [vmem:[%s1 + $0x1d8] sm:$0xff]
    %v88 = vld [vmem:[%s1 + $0x1e0] sm:$0xff]
    %v89 = vld [vmem:[%s1 + $0x1e8] sm:$0xff]
    %v90 = vld [vmem:[%s1 + $0x1f0] sm:$0xff]
    %v91 = vld [vmem:[%s1 + $0x1f8] sm:$0xff]
    %v92 = vld [vmem:[%s1 + $0x200] sm:$0xff]
    %v93 = vld [vmem:[%s1 + $0x208] sm:$0xff]
    %v94 = vld [vmem:[%s1 + $0x210] sm:$0xff]
    %v95 = vld [vmem:[%s1 + $0x218] sm:$0xff]
    %v96 = vld [vmem:[%s1 + $0x220] sm:$0xff]
    %v97 = vld [vmem:[%s1 + $0x228] sm:$0xff]
    %v98 = vld [vmem:[%s1 + $0x230] sm:$0xff]
    %v99 = vld [vmem:[%s1 + $0x238] sm:$0xff]
    %v100 = vld [vmem:[%s1 + $0x240] sm:$0xff]
    %v101 = vld [vmem:[%s1 + $0x248] sm:$0xff]
    %v102 = vld [vmem:[%s1 + $0x250] sm:$0xff]
    %v103 = vld [vmem:[%s1 + $0x258] sm:$0xff]
    %v104 = vld [vmem:[%s1 + $0x260] sm:$0xff]
    %v105 = vld [vmem:[%s1 + $0x268] sm:$0xff]
    %v106 = vld [vmem:[%s1 + $0x270] sm:$0xff]
    %v107 = vld [vmem:[%s1 + $0x278] sm:$0xff]
    %v108 = vld [vmem:[%s1 + $0x280] sm:$0xff]
    %v109 = vld [vmem:[%s1 + $0x288] sm:$0xff]
    %v110 = vld [vmem:[%s1 + $0x290] sm:$0xff]
    %v111 = vld [vmem:[%s1 + $0x298] sm:$0xff]
    %v112 = vld [vmem:[%s1 + $0x2a0] sm:$0xff]
    %v113 = vld [vmem:[%s1 + $0x2a8] sm:$0xff]
    %v114 = vld [vmem:[%s1 + $0x2b0] sm:$0xff]
    %v115 = vld [vmem:[%s1 + $0x2b8] sm:$0xff]
    %v116 = vld [vmem:[%s1 + $0x2c0] sm:$0xff]
    %v117 = vld [vmem:[%s1 + $0x2c8] sm:$0xff]
    %v118 = vld [vmem:[%s1 + $0x2d0] sm:$0xff]
    %v119 = vld [vmem:[%s1 + $0x2d8] sm:$0xff]
    %v120 = vld [vmem:[%s1 + $0x2e0] sm:$0xff]
    %v121 = vld [vmem:[%s1 + $0x2e8] sm:$0xff]
    %v122 = vld [vmem:[%s1 + $0x2f0] sm:$0xff]
    %v123 = vld [vmem:[%s1 + $0x2f8] sm:$0xff]
    %v124 = vld [vmem:[%s1 + $0x300] sm:$0xff]
    %v125 = vld [vmem:[%s1 + $0x308] sm:$0xff]
    %v126 = vld [vmem:[%s1 + $0x310] sm:$0xff]
    %v127 = vld [vmem:[%s1 + $0x318] sm:$0xff]
    %v128 = vld [vmem:[%s1 + $0x320] sm:$0xff]
    %v129 = vld [vmem:[%s1 + $0x328] sm:$0xff]
    %v130 = vld [vmem:[%s1 + $0x330] sm:$0xff]
    %v131 = vld [vmem:[%s1 + $0x338] sm:$0xff]
    %v132 = vld [vmem:[%s1 + $0x340] sm:$0xff]
    %v133 = vld [vmem:[%s1 + $0x348] sm:$0xff]
    %v134 = vld [vmem:[%s1 + $0x350] sm:$0xff]
    %v135 = vld [vmem:[%s1 + $0x358] sm:$0xff]
    %v136 = vld [vmem:[%s1 + $0x360] sm:$0xff]
    %v137 = vld [vmem:[%s1 + $0x368] sm:$0xff]
    %v138 = vld [vmem:[%s1 + $0x370] sm:$0xff]
    %v139 = vld [vmem:[%s1 + $0x378] sm:$0xff]
    %v140 = vld [vmem:[%s1 + $0x380] sm:$0xff]
    %v141 = vld [vmem:[%s1 + $0x388] sm:$0xff]
    %v142 = vld [vmem:[%s1 + $0x390] sm:$0xff]
    %v143 = vld [vmem:[%s1 + $0x398] sm:$0xff]
    %v144 = vld [vmem:[%s1 + $0x3a0] sm:$0xff]
    %v145 = vld [vmem:[%s1 + $0x3a8] sm:$0xff]
    %v146 = vld [vmem:[%s1 + $0x3b0] sm:$0xff]
    %v147 = vld [vmem:[%s1 + $0x3b8] sm:$0xff]
    %v148 = vld [vmem:[%s1 + $0x3c0] sm:$0xff]
    %v149 = vld [vmem:[%s1 + $0x3c8] sm:$0xff]
    %v150 = vld [vmem:[%s1 + $0x3d0] sm:$0xff]
    %v151 = vld [vmem:[%s1 + $0x3d8] sm:$0xff]
    %v152 = vld [vmem:[%s1 + $0x3e0] sm:$0xff]
    %v153 = vld [vmem:[%s1 + $0x3e8] sm:$0xff]
    %v154 = vld [vmem:[%s1 + $0x3f0] sm:$0xff]
    %v155 = vld [vmem:[%s1 + $0x3f8] sm:$0xff]
    %v156 = vld [vmem:[%s1 + $0x400] sm:$0xff]
    %v157 = vld [vmem:[%s1 + $0x408] sm:$0xff]
    %v158 = vld [vmem:[%s1 + $0x410] sm:$0xff]
    %v159 = vld [vmem:[%s1 + $0x418] sm:$0xff]
    %v160 = vld [vmem:[%s1 + $0x420] sm:$0xff]
    %v161 = vld [vmem:[%s1 + $0x428] sm:$0xff]
    %v162 = vld [vmem:[%s1 + $0x430] sm:$0xff]
    %v163 = vld [vmem:[%s1 + $0x438] sm:$0xff]
    %v164 = vld [vmem:[%s1 + $0x440] sm:$0xff]
    %v165 = vld [vmem:[%s1 + $0x448] sm:$0xff]
    %v166 = vld [vmem:[%s1 + $0x450] sm:$0xff]
    %v167 = vld [vmem:[%s1 + $0x458] sm:$0xff]
    %v168 = vld [vmem:[%s1 + $0x460] sm:$0xff]
    %v169 = vld [vmem:[%s1 + $0x468] sm:$0xff]
    %v170 = vld [vmem:[%s1 + $0x470] sm:$0xff]
    %v171 = vld [vmem:[%s1 + $0x478] sm:$0xff]
    %v172 = vld [vmem:[%s1 + $0x480] sm:$0xff]
    %v173 = vld [vmem:[%s1 + $0x488] sm:$0xff]
    %v174 = vld [vmem:[%s1 + $0x490] sm:$0xff]
    %v175 = vld [vmem:[%s1 + $0x498] sm:$0xff]
    %v176 = vld [vmem:[%s1 + $0x4a0] sm:$0xff]
    %v177 = vld [vmem:[%s1 + $0x4a8] sm:$0xff]
    %v178 = vld [vmem:[%s1 + $0x4b0] sm:$0xff]
    %v179 = vld [vmem:[%s1 + $0x4b8] sm:$0xff]
    %v180 = vld [vmem:[%s1 + $0x4c0] sm:$0xff]
    %v181 = vld [vmem:[%s1 + $0x4c8] sm:$0xff]
    %v182 = vld [vmem:[%s1 + $0x4d0] sm:$0xff]
    %v183 = vld [vmem:[%s1 + $0x4d8] sm:$0xff]
    %v184 = vld [vmem:[%s1 + $0x4e0] sm:$0xff]
    %v185 = vld [vmem:[%s1 + $0x4e8] sm:$0xff]
    %v186 = vld [vmem:[%s1 + $0x4f0] sm:$0xff]
    %v187 = vld [vmem:[%s1 + $0x4f8] sm:$0xff]
    %v188 = vld [vmem:[%s1 + $0x500] sm:$0xff]
    %v189 = vld [vmem:[%s1 + $0x508] sm:$0xff]
    %v190 = vld [vmem:[%s1 + $0x510] sm:$0xff]
    %v191 = vld [vmem:[%s1 + $0x518] sm:$0xff]
    %v192 = vld [vmem:[%s1 + $0x520] sm:$0xff]
    %v193 = vld [vmem:[%s1 + $0x528] sm:$0xff]
    %v194 = vld [vmem:[%s1 + $0x530] sm:$0xff]
    %v195 = vld [vmem:[%s1 + $0x538] sm:$0xff]
    %v196 = vld [vmem:[%s1 + $0x540] sm:$0xff]
    %v197 = vld [vmem:[%s1 + $0x548] sm:$0xff]
    %v198 = vld [vmem:[%s1 + $0x550] sm:$0xff]
    %v199 = vld [vmem:[%s1 + $0x558] sm:$0xff]
    %v200 = vld [vmem:[%s1 + $0x560] sm:$0xff]
    %v201 = vld [vmem:[%s1 + $0x568] sm:$0xff]
    %v202 = vld [vmem:[%s1 + $0x570] sm:$0xff]
    %v203 = vld [vmem:[%s1 + $0x578] sm:$0xff]
    %v204 = vld [vmem:[%s1 + $0x580] sm:$0xff]
    %v205 = vld [vmem:[%s1 + $0x588] sm:$0xff]
    %v206 = vld [vmem:[%s1 + $0x590] sm:$0xff]
    %v207 = vld [vmem:[%s1 + $0x598] sm:$0xff]
    %v208 = vld [vmem:[%s1 + $0x5a0] sm:$0xff]
    %v209 = vld [vmem:[%s1 + $0x5a8] sm:$0xff]
    %v210 = vld [vmem:[%s1 + $0x5b0] sm:$0xff]
    %v211 = vld [vmem:[%s1 + $0x5b8] sm:$0xff]
    %v212 = vld [vmem:[%s1 + $0x5c0] sm:$0xff]
    %v213 = vld [vmem:[%s1 + $0x5c8] sm:$0xff]
    %v214 = vld [vmem:[%s1 + $0x5d0] sm:$0xff]
    %v215 = vld [vmem:[%s1 + $0x5d8] sm:$0xff]
    %v216 = vld [vmem:[%s1 + $0x5e0] sm:$0xff]
    %v217 = vld [vmem:[%s1 + $0x5e8] sm:$0xff]
    %v218 = vld [vmem:[%s1 + $0x5f0] sm:$0xff]
    %v219 = vld [vmem:[%s1 + $0x5f8] sm:$0xff]
    %v220 = vld [vmem:[%s1 + $0x600] sm:$0xff]
    %v221 = vld [vmem:[%s1 + $0x608] sm:$0xff]
    %v222 = vld [vmem:[%s1 + $0x610] sm:$0xff]
    %v223 = vld [vmem:[%s1 + $0x618] sm:$0xff]
    %v224 = vld [vmem:[%s1 + $0x620] sm:$0xff]
    %v225 = vld [vmem:[%s1 + $0x628] sm:$0xff]
    %v226 = vld [vmem:[%s1 + $0x630] sm:$0xff]
    %v227 = vld [vmem:[%s1 + $0x638] sm:$0xff]
    %v228 = vld [vmem:[%s1 + $0x640] sm:$0xff]
    %v229 = vld [vmem:[%s1 + $0x648] sm:$0xff]
    %v230 = vld [vmem:[%s1 + $0x650] sm:$0xff]
    %v231 = vld [vmem:[%s1 + $0x658] sm:$0xff]
    %v232 = vld [vmem:[%s1 + $0x660] sm:$0xff]
    %v233 = vld [vmem:[%s1 + $0x668] sm:$0xff]
    %v234 = vld [vmem:[%s1 + $0x670] sm:$0xff]
    %v235 = vld [vmem:[%s1 + $0x678] sm:$0xff]
    %v236 = vld [vmem:[%s1 + $0x680] sm:$0xff]
    %v237 = vld [vmem:[%s1 + $0x688] sm:$0xff]
    %v238 = vld [vmem:[%s1 + $0x690] sm:$0xff]
    %v239 = vld [vmem:[%s1 + $0x698] sm:$0xff]
    %v240 = vld [vmem:[%s1 + $0x6a0] sm:$0xff]
    %v241 = vld [vmem:[%s1 + $0x6a8] sm:$0xff]
    %v242 = vld [vmem:[%s1 + $0x6b0] sm:$0xff]
    %v243 = vld [vmem:[%s1 + $0x6b8] sm:$0xff]
    %v244 = vld [vmem:[%s1 + $0x6c0] sm:$0xff]
    %v245 = vld [vmem:[%s1 + $0x6c8] sm:$0xff]
    %v246 = vld [vmem:[%s1 + $0x6d0] sm:$0xff]
    %v247 = vld [vmem:[%s1 + $0x6d8] sm:$0xff]
    %v248 = vld [vmem:[%s1 + $0x6e0] sm:$0xff]
    %v249 = vld [vmem:[%s1 + $0x6e8] sm:$0xff]
    %v250 = vld [vmem:[%s1 + $0x6f0] sm:$0xff]
    %v251 = vld [vmem:[%s1 + $0x6f8] sm:$0xff]
    %v252 = vld [vmem:[%s1 + $0x700] sm:$0xff]
    %v253 = vld [vmem:[%s1 + $0x708] sm:$0xff]
    %v254 = vld [vmem:[%s1 + $0x710] sm:$0xff]
    %v255 = vld [vmem:[%s1 + $0x718] sm:$0xff]
    %v256 = vld [vmem:[%s1 + $0x720] sm:$0xff]
    %v257 = vld [vmem:[%s1 + $0x728] sm:$0xff]
    %v258 = vld [vmem:[%s1 + $0x730] sm:$0xff]
    %v259 = vld [vmem:[%s1 + $0x738] sm:$0xff]
    %v260 = vld [vmem:[%s1 + $0x740] sm:$0xff]
    %v261 = vld [vmem:[%s1 + $0x748] sm:$0xff]
    %v262 = vld [vmem:[%s1 + $0x750] sm:$0xff]
    %v263 = vld [vmem:[%s1 + $0x758] sm:$0xff]
    %v264 = vld [vmem:[%s1 + $0x760] sm:$0xff]
    %v265 = vld [vmem:[%s1 + $0x768] sm:$0xff]
    %v266 = vld [vmem:[%s1 + $0x770] sm:$0xff]
    %v267 = vld [vmem:[%s1 + $0x778] sm:$0xff]
    %v268 = vld [vmem:[%s1 + $0x780] sm:$0xff]
    %v269 = vld [vmem:[%s1 + $0x788] sm:$0xff]
    %v270 = vld [vmem:[%s1 + $0x790] sm:$0xff]
    %v271 = vld [vmem:[%s1 + $0x798] sm:$0xff]
    %v272 = vld [vmem:[%s1 + $0x7a0] sm:$0xff]
    %v273 = vld [vmem:[%s1 + $0x7a8] sm:$0xff]
    %v274 = vld [vmem:[%s1 + $0x7b0] sm:$0xff]
    %v275 = vld [vmem:[%s1 + $0x7b8] sm:$0xff]
    %v276 = vld [vmem:[%s1 + $0x7c0] sm:$0xff]
    %v277 = vld [vmem:[%s1 + $0x7c8] sm:$0xff]
    %v278 = vld [vmem:[%s1 + $0x7d0] sm:$0xff]
    %v279 = vld [vmem:[%s1 + $0x7d8] sm:$0xff]
    %v280 = vld [vmem:[%s1 + $0x7e0] sm:$0xff]
    %v281 = vld [vmem:[%s1 + $0x7e8] sm:$0xff]
    %v282 = vld [vmem:[%s1 + $0x7f0] sm:$0xff]
    %v283 = vld [vmem:[%s1 + $0x7f8] sm:$0xff]
    %v284 = vld [vmem:[%s1 + $0x800] sm:$0xff]
    %v285 = vld [vmem:[%s1 + $0x808] sm:$0xff]
    %v286 = vld [vmem:[%s1 + $0x810] sm:$0xff]
    %v287 = vld [vmem:[%s1 + $0x818] sm:$0xff]
    %v288 = vld [vmem:[%s1 + $0x820] sm:$0xff]
    %v289 = vld [vmem:[%s1 + $0x828] sm:$0xff]
    %v290 = vld [vmem:[%s1 + $0x830] sm:$0xff]
    %v291 = vld [vmem:[%s1 + $0x838] sm:$0xff]
    %v292 = vld [vmem:[%s1 + $0x840] sm:$0xff]
    %v293 = vld [vmem:[%s1 + $0x848] sm:$0xff]
    %v294 = vld [vmem:[%s1 + $0x850] sm:$0xff]
    %v295 = vld [vmem:[%s1 + $0x858] sm:$0xff]
    %v296 = vld [vmem:[%s1 + $0x860] sm:$0xff]
    %v297 = vld [vmem:[%s1 + $0x868] sm:$0xff]
    %v298 = vld [vmem:[%s1 + $0x870] sm:$0xff]
    %v299 = vld [vmem:[%s1 + $0x878] sm:$0xff]
    %v300 = vld [vmem:[%s1 + $0x880] sm:$0xff]
    %v301 = vld [vmem:[%s1 + $0x888] sm:$0xff]
    %v302 = vld [vmem:[%s1 + $0x890] sm:$0xff]
    %v303 = vld [vmem:[%s1 + $0x898] sm:$0xff]
    %v304 = vld [vmem:[%s1 + $0x8a0] sm:$0xff]
    %v305 = vld [vmem:[%s1 + $0x8a8] sm:$0xff]
    %v306 = vld [vmem:[%s1 + $0x8b0] sm:$0xff]
    %v307 = vld [vmem:[%s1 + $0x8b8] sm:$0xff]
    %v308 = vld [vmem:[%s1 + $0x8c0] sm:$0xff]
    %v309 = vld [vmem:[%s1 + $0x8c8] sm:$0xff]
    %v310 = vld [vmem:[%s1 + $0x8d0] sm:$0xff]
    %v311 = vld [vmem:[%s1 + $0x8d8] sm:$0xff]
    %v312 = vld [vmem:[%s1 + $0x8e0] sm:$0xff]
    %v313 = vld [vmem:[%s1 + $0x8e8] sm:$0xff]
    %v314 = vld [vmem:[%s1 + $0x8f0] sm:$0xff]
    %v315 = vld [vmem:[%s1 + $0x8f8] sm:$0xff]
    %v316 = vld [vmem:[%s1 + $0x900] sm:$0xff]
    %v317 = vld [vmem:[%s1 + $0x908] sm:$0xff]
    %v318 = vld [vmem:[%s1 + $0x910] sm:$0xff]
    %v319 = vld [vmem:[%s1 + $0x918] sm:$0xff]
    %v320 = vld [vmem:[%s1 + $0x920] sm:$0xff]
    %v321 = vld [vmem:[%s1 + $0x928] sm:$0xff]
    %v322 = vld [vmem:[%s1 + $0x930] sm:$0xff]
    %v323 = vld [vmem:[%s1 + $0x938] sm:$0xff]
    %v324 = vld [vmem:[%s1 + $0x940] sm:$0xff]
    %v325 = vld [vmem:[%s1 + $0x948] sm:$0xff]
    %v326 = vld [vmem:[%s1 + $0x950] sm:$0xff]
    %v327 = vld [vmem:[%s1 + $0x958] sm:$0xff]
    %v328 = vld [vmem:[%s1 + $0x960] sm:$0xff]
    %v329 = vld [vmem:[%s1 + $0x968] sm:$0xff]
    %v330 = vld [vmem:[%s1 + $0x970] sm:$0xff]
    %v331 = vld [vmem:[%s1 + $0x978] sm:$0xff]
    %v332 = vld [vmem:[%s1 + $0x980] sm:$0xff]
    %v333 = vld [vmem:[%s1 + $0x988] sm:$0xff]
    %v334 = vld [vmem:[%s1 + $0x990] sm:$0xff]
    %v335 = vld [vmem:[%s1 + $0x998] sm:$0xff]
    %v336 = vld [vmem:[%s1 + $0x9a0] sm:$0xff]
    %v337 = vld [vmem:[%s1 + $0x9a8] sm:$0xff]
    %v338 = vld [vmem:[%s1 + $0x9b0] sm:$0xff]
    %v339 = vld [vmem:[%s1 + $0x9b8] sm:$0xff]
    %v340 = vld [vmem:[%s1 + $0x9c0] sm:$0xff]
    %v341 = vld [vmem:[%s1 + $0x9c8] sm:$0xff]
    %v342 = vld [vmem:[%s1 + $0x9d0] sm:$0xff]
    %v343 = vld [vmem:[%s1 + $0x9d8] sm:$0xff]
    %v344 = vld [vmem:[%s1 + $0x9e0] sm:$0xff]
    %v345 = vld [vmem:[%s1 + $0x9e8] sm:$0xff]
    %v346 = vld [vmem:[%s1 + $0x9f0] sm:$0xff]
    %v347 = vld [vmem:[%s1 + $0x9f8] sm:$0xff]
    %v348 = vld [vmem:[%s1 + $0xa00] sm:$0xff]
    %v349 = vld [vmem:[%s1 + $0xa08] sm:$0xff]
    %v350 = vld [vmem:[%s1 + $0xa10] sm:$0xff]
    %v351 = vld [vmem:[%s1 + $0xa18] sm:$0xff]
    %v352 = vld [vmem:[%s1 + $0xa20] sm:$0xff]
    %v353 = vld [vmem:[%s1 + $0xa28] sm:$0xff]
    %v354 = vld [vmem:[%s1 + $0xa30] sm:$0xff]
    %v355 = vld [vmem:[%s1 + $0xa38] sm:$0xff]
    %v356 = vld [vmem:[%s1 + $0xa40] sm:$0xff]
    %v357 = vld [vmem:[%s1 + $0xa48] sm:$0xff]
    %v358 = vld [vmem:[%s1 + $0xa50] sm:$0xff]
    %v359 = vld [vmem:[%s1 + $0xa58] sm:$0xff]
    %v360 = vld [vmem:[%s1 + $0xa60] sm:$0xff]
    %v361 = vld [vmem:[%s1 + $0xa68] sm:$0xff]
    %v362 = vld [vmem:[%s1 + $0xa70] sm:$0xff]
    %v363 = vld [vmem:[%s1 + $0xa78] sm:$0xff]
    %v364 = vld [vmem:[%s1 + $0xa80] sm:$0xff]
    %v365 = vld [vmem:[%s1 + $0xa88] sm:$0xff]
    %v366 = vld [vmem:[%s1 + $0xa90] sm:$0xff]
    %v367 = vld [vmem:[%s1 + $0xa98] sm:$0xff]
    %v368 = vld [vmem:[%s1 + $0xaa0] sm:$0xff]
    %v369 = vld [vmem:[%s1 + $0xaa8] sm:$0xff]
    %v370 = vld [vmem:[%s1 + $0xab0] sm:$0xff]
    %v371 = vld [vmem:[%s1 + $0xab8] sm:$0xff]
    %v372 = vld [vmem:[%s1 + $0xac0] sm:$0xff]
    %v373 = vld [vmem:[%s1 + $0xac8] sm:$0xff]
    %v374 = vld [vmem:[%s1 + $0xad0] sm:$0xff]
    %v375 = vld [vmem:[%s1 + $0xad8] sm:$0xff]
    %v376 = vld [vmem:[%s1 + $0xae0] sm:$0xff]
    %v377 = vld [vmem:[%s1 + $0xae8] sm:$0xff]
    %v378 = vld [vmem:[%s1 + $0xaf0] sm:$0xff]
    %v379 = vld [vmem:[%s1 + $0xaf8] sm:$0xff]
    %v380 = vld [vmem:[%s1 + $0xb00] sm:$0xff]
    %v381 = vld [vmem:[%s1 + $0xb08] sm:$0xff]
    %v382 = vld [vmem:[%s1 + $0xb10] sm:$0xff]
    %v383 = vld [vmem:[%s1 + $0xb18] sm:$0xff]
    %v384 = vld [vmem:[%s1 + $0xb20] sm:$0xff]
    %v385 = vld [vmem:[%s1 + $0xb28] sm:$0xff]
    %v386 = vld [vmem:[%s1 + $0xb30] sm:$0xff]
    %v387 = vld [vmem:[%s1 + $0xb38] sm:$0xff]
    %v388 = vld [vmem:[%s1 + $0xb40] sm:$0xff]
    %v389 = vld [vmem:[%s1 + $0xb48] sm:$0xff]
    %v390 = vld [vmem:[%s1 + $0xb50] sm:$0xff]
    %v391 = vld [vmem:[%s1 + $0xb58] sm:$0xff]
    %v392 = vld [vmem:[%s1 + $0xb60] sm:$0xff]
    %v393 = vld [vmem:[%s1 + $0xb68] sm:$0xff]
    %v394 = vld [vmem:[%s1 + $0xb70] sm:$0xff]
    %v395 = vld [vmem:[%s1 + $0xb78] sm:$0xff]
    %v396 = vld [vmem:[%s1 + $0xb80] sm:$0xff]
    %v397 = vld [vmem:[%s1 + $0xb88] sm:$0xff]
    %v398 = vld [vmem:[%s1 + $0xb90] sm:$0xff]
    %v399 = vld [vmem:[%s1 + $0xb98] sm:$0xff]
    %v400 = vld [vmem:[%s1 + $0xba0] sm:$0xff]
    %v401 = vld [vmem:[%s1 + $0xba8] sm:$0xff]
    %v402 = vld [vmem:[%s1 + $0xbb0] sm:$0xff]
    %v403 = vld [vmem:[%s1 + $0xbb8] sm:$0xff]
    %v404 = vld [vmem:[%s1 + $0xbc0] sm:$0xff]
    %v405 = vld [vmem:[%s1 + $0xbc8] sm:$0xff]
    %v406 = vld [vmem:[%s1 + $0xbd0] sm:$0xff]
    %v407 = vld [vmem:[%s1 + $0xbd8] sm:$0xff]
    %v408 = vld [vmem:[%s1 + $0xbe0] sm:$0xff]
    %v409 = vld [vmem:[%s1 + $0xbe8] sm:$0xff]
    %v410 = vld [vmem:[%s1 + $0xbf0] sm:$0xff]
    %v411 = vld [vmem:[%s1 + $0xbf8] sm:$0xff]
    %v412 = vld [vmem:[%s1 + $0xc00] sm:$0xff]
    %v413 = vld [vmem:[%s1 + $0xc08] sm:$0xff]
    %v414 = vld [vmem:[%s1 + $0xc10] sm:$0xff]
    %v415 = vld [vmem:[%s1 + $0xc18] sm:$0xff]
    %v416 = vld [vmem:[%s1 + $0xc20] sm:$0xff]
    %v417 = vld [vmem:[%s1 + $0xc28] sm:$0xff]
    %v418 = vld [vmem:[%s1 + $0xc30] sm:$0xff]
    %v419 = vld [vmem:[%s1 + $0xc38] sm:$0xff]
    %v420 = vld [vmem:[%s2] sm:$0x1]
    %v422 = vlaneseq
    %v423 = vshrl.u32 %v422, 7
    %v424 = vsub.s32 0, %v423
    %v425 = vrot.slane %v420, %v424
    %v434 = vcombine.high %v21, %v21
    %v436 = vunpack.c.l.s4 1983009808
    %v437 = vunpack.c.0.s8 %v436
    %v438 = vlaneseq
    %v439 = vshrl.u32 %v438, 7
    %v440 = vsub.s32 %v437, %v439
    %v441 = vrot.slane %v21, %v440
    %v443 = vunpack.c.l.s4 1983009808
    %v444 = vunpack.c.0.s8 %v443
    %v445 = vlaneseq
    %v446 = vshrl.u32 %v445, 7
    %v447 = vsub.s32 %v444, %v446
    %v448 = vrot.slane %v434, %v447
    %v449 = vcombine.high %v441, %v441
    %v450 = vcombine.high %v448, %v448
    %v451 = vcombine.high %v22, %v22
    %v453 = vunpack.c.l.s4 1983009808
    %v454 = vunpack.c.0.s8 %v453
    %v455 = vlaneseq
    %v456 = vshrl.u32 %v455, 7
    %v457 = vsub.s32 %v454, %v456
    %v458 = vrot.slane %v22, %v457
    %v460 = vunpack.c.l.s4 1983009808
    %v461 = vunpack.c.0.s8 %v460
    %v462 = vlaneseq
    %v463 = vshrl.u32 %v462, 7
    %v464 = vsub.s32 %v461, %v463
    %v465 = vrot.slane %v451, %v464
    %v466 = vcombine.high %v458, %v458
    %v467 = vcombine.high %v465, %v465
    %v468 = vcombine.high %v23, %v23
    %v470 = vunpack.c.l.s4 1983009808
    %v471 = vunpack.c.0.s8 %v470
    %v472 = vlaneseq
    %v473 = vshrl.u32 %v472, 7
    %v474 = vsub.s32 %v471, %v473
    %v475 = vrot.slane %v23, %v474
    %v477 = vunpack.c.l.s4 1983009808
    %v478 = vunpack.c.0.s8 %v477
    %v479 = vlaneseq
    %v480 = vshrl.u32 %v479, 7
    %v481 = vsub.s32 %v478, %v480
    %v482 = vrot.slane %v468, %v481
    %v483 = vcombine.high %v475, %v475
    %v484 = vcombine.high %v482, %v482
    %v485 = vcombine.high %v24, %v24
    %v487 = vunpack.c.l.s4 1983009808
    %v488 = vunpack.c.0.s8 %v487
    %v489 = vlaneseq
    %v490 = vshrl.u32 %v489, 7
    %v491 = vsub.s32 %v488, %v490
    %v492 = vrot.slane %v24, %v491
    %v494 = vunpack.c.l.s4 1983009808
    %v495 = vunpack.c.0.s8 %v494
    %v496 = vlaneseq
    %v497 = vshrl.u32 %v496, 7
    %v498 = vsub.s32 %v495, %v497
    %v499 = vrot.slane %v485, %v498
    %v500 = vcombine.high %v492, %v492
    %v501 = vcombine.high %v499, %v499
    %v502 = vcombine.high %v25, %v25
    %v504 = vunpack.c.l.s4 1983009808
    %v505 = vunpack.c.0.s8 %v504
    %v506 = vlaneseq
    %v507 = vshrl.u32 %v506, 7
    %v508 = vsub.s32 %v505, %v507
    %v509 = vrot.slane %v25, %v508
    %v511 = vunpack.c.l.s4 1983009808
    %v512 = vunpack.c.0.s8 %v511
    %v513 = vlaneseq
    %v514 = vshrl.u32 %v513, 7
    %v515 = vsub.s32 %v512, %v514
    %v516 = vrot.slane %v502, %v515
    %v517 = vcombine.high %v509, %v509
    %v518 = vcombine.high %v516, %v516
    %v519 = vcombine.high %v26, %v26
    %v521 = vunpack.c.l.s4 1983009808
    %v522 = vunpack.c.0.s8 %v521
    %v523 = vlaneseq
    %v524 = vshrl.u32 %v523, 7
    %v525 = vsub.s32 %v522, %v524
    %v526 = vrot.slane %v26, %v525
    %v528 = vunpack.c.l.s4 1983009808
    %v529 = vunpack.c.0.s8 %v528
    %v530 = vlaneseq
    %v531 = vshrl.u32 %v530, 7
    %v532 = vsub.s32 %v529, %v531
    %v533 = vrot.slane %v519, %v532
    %v534 = vcombine.high %v526, %v526
    %v535 = vcombine.high %v533, %v533
    %v537 = vunpack.c.l.s4 1983009808
    %v538 = vunpack.c.0.s8 %v537
    %v539 = vlaneseq
    %v540 = vshrl.u32 %v539, 7
    %v541 = vsub.s32 %v538, %v540
    %v542 = vrot.slane %v27, %v541
    %vm567 = vcmask 523264
    %v568 = vsel %vm567, %v542, 0
    %570 = vmatprep.subr.mxu0 0.0
    %571 = vmatpush1.msra.mxu0 %v28
    %572 = vmatprep.subr.mxu0 0.0
    %573 = vmatpush1.msra.mxu0 %v29
    %574 = vmatprep.subr.mxu0 0.0
    %575 = vmatpush1.msra.mxu0 %v30
    %576 = vmatprep.subr.mxu0 0.0
    %577 = vmatpush1.msra.mxu0 %v31
    %578 = vmatprep.subr.mxu0 0.0
    %579 = vmatpush1.msra.mxu0 %v32
    %580 = vmatprep.subr.mxu0 0.0
    %581 = vmatpush1.msra.mxu0 %v33
    %582 = vmatprep.subr.mxu0 0.0
    %583 = vmatpush1.msra.mxu0 %v34
    %584 = vmatprep.subr.mxu0 0.0
    %585 = vmatpush1.msra.mxu0 %v35
    %586 = vmatprep.subr.mxu0 0.0
    %587 = vmatpush1.msra.mxu0 %v36
    %588 = vmatprep.subr.mxu0 0.0
    %589 = vmatpush1.msra.mxu0 %v37
    %590 = vmatprep.subr.mxu0 0.0
    %591 = vmatpush1.msra.mxu0 %v38
    %592 = vmatprep.subr.mxu0 0.0
    %593 = vmatpush1.msra.mxu0 %v39
    %594 = vmatprep.subr.mxu0 0.0
    %595 = vmatpush1.msra.mxu0 %v40
    %596 = vmatprep.subr.mxu0 0.0
    %597 = vmatpush1.msra.mxu0 %v41
    %598 = vmatprep.subr.mxu0 0.0
    %599 = vmatpush1.msra.mxu0 %v42
    %600 = vmatprep.subr.mxu0 0.0
    %601 = vmatpush1.msra.mxu0 %v43
    %602 = vmatprep.subr.mxu0 0.0
    %603 = vmatpush1.msra.mxu0 %v44
    %604 = vmatprep.subr.mxu0 0.0
    %605 = vmatpush1.msra.mxu0 %v45
    %606 = vmatprep.subr.mxu0 0.0
    %607 = vmatpush1.msra.mxu0 %v46
    %608 = vmatprep.subr.mxu0 0.0
    %609 = vmatpush1.msra.mxu0 %v47
    %610 = vmatprep.subr.mxu0 0.0
    %611 = vmatpush1.msra.mxu0 %v48
    %612 = vmatprep.subr.mxu0 0.0
    %613 = vmatpush1.msra.mxu0 %v49
    %614 = vmatprep.subr.mxu0 0.0
    %615 = vmatpush1.msra.mxu0 %v50
    %616 = vmatprep.subr.mxu0 0.0
    %617 = vmatpush1.msra.mxu0 %v51
    %618 = vmatprep.subr.mxu0 0.0
    %619 = vmatpush1.msra.mxu0 %v52
    %620 = vmatprep.subr.mxu0 0.0
    %621 = vmatpush1.msra.mxu0 %v53
    %622 = vmatprep.subr.mxu0 0.0
    %623 = vmatpush1.msra.mxu0 %v54
    %624 = vmatprep.subr.mxu0 0.0
    %625 = vmatpush1.msra.mxu0 %v55
    %626 = vmatprep.subr.mxu0 0.0
    %627 = vmatpush1.msra.mxu0 %v56
    %628 = vmatprep.subr.mxu0 0.0
    %629 = vmatpush1.msra.mxu0 %v57
    %630 = vmatprep.subr.mxu0 0.0
    %631 = vmatpush1.msra.mxu0 %v58
    %632 = vmatprep.subr.mxu0 0.0
    %633 = vmatpush1.msra.mxu0 %v59
    %634 = vmatprep.mubr.f32.mxu0 %v449
    %635 = vmatmul.mubr.f32.gmra.mrb[0].mxu0 %v441
    %v636 = vpop.f32.mrb[0].mxu0
    %v637 = vadd.f32 %v425, %v636
    %v638 = vpop.f32.mrb[0].mxu0
    %639 = vdwg.mxu0
    %640 = vmatprep.subr.mxu0 0.0
    %641 = vmatpush1.msra.mxu0 %v60
    %642 = vmatprep.subr.mxu0 0.0
    %643 = vmatpush1.msra.mxu0 %v61
    %644 = vmatprep.subr.mxu0 0.0
    %645 = vmatpush1.msra.mxu0 %v62
    %646 = vmatprep.subr.mxu0 0.0
    %647 = vmatpush1.msra.mxu0 %v63
    %648 = vmatprep.subr.mxu0 0.0
    %649 = vmatpush1.msra.mxu0 %v64
    %650 = vmatprep.subr.mxu0 0.0
    %651 = vmatpush1.msra.mxu0 %v65
    %652 = vmatprep.subr.mxu0 0.0
    %653 = vmatpush1.msra.mxu0 %v66
    %654 = vmatprep.subr.mxu0 0.0
    %655 = vmatpush1.msra.mxu0 %v67
    %656 = vmatprep.subr.mxu0 0.0
    %657 = vmatpush1.msra.mxu0 %v68
    %658 = vmatprep.subr.mxu0 0.0
    %659 = vmatpush1.msra.mxu0 %v69
    %660 = vmatprep.subr.mxu0 0.0
    %661 = vmatpush1.msra.mxu0 %v70
    %662 = vmatprep.subr.mxu0 0.0
    %663 = vmatpush1.msra.mxu0 %v71
    %664 = vmatprep.subr.mxu0 0.0
    %665 = vmatpush1.msra.mxu0 %v72
    %666 = vmatprep.subr.mxu0 0.0
    %667 = vmatpush1.msra.mxu0 %v73
    %668 = vmatprep.subr.mxu0 0.0
    %669 = vmatpush1.msra.mxu0 %v74
    %670 = vmatprep.subr.mxu0 0.0
    %671 = vmatpush1.msra.mxu0 %v75
    %672 = vmatprep.subr.mxu0 0.0
    %673 = vmatpush1.msra.mxu0 %v76
    %674 = vmatprep.subr.mxu0 0.0
    %675 = vmatpush1.msra.mxu0 %v77
    %676 = vmatprep.subr.mxu0 0.0
    %677 = vmatpush1.msra.mxu0 %v78
    %678 = vmatprep.subr.mxu0 0.0
    %679 = vmatpush1.msra.mxu0 %v79
    %680 = vmatprep.subr.mxu0 0.0
    %681 = vmatpush1.msra.mxu0 %v80
    %682 = vmatprep.subr.mxu0 0.0
    %683 = vmatpush1.msra.mxu0 %v81
    %684 = vmatprep.subr.mxu0 0.0
    %685 = vmatpush1.msra.mxu0 %v82
    %686 = vmatprep.subr.mxu0 0.0
    %687 = vmatpush1.msra.mxu0 %v83
    %688 = vmatprep.subr.mxu0 0.0
    %689 = vmatpush1.msra.mxu0 %v84
    %690 = vmatprep.subr.mxu0 0.0
    %691 = vmatpush1.msra.mxu0 %v85
    %692 = vmatprep.subr.mxu0 0.0
    %693 = vmatpush1.msra.mxu0 %v86
    %694 = vmatprep.subr.mxu0 0.0
    %695 = vmatpush1.msra.mxu0 %v87
    %696 = vmatprep.subr.mxu0 0.0
    %697 = vmatpush1.msra.mxu0 %v88
    %698 = vmatprep.subr.mxu0 0.0
    %699 = vmatpush1.msra.mxu0 %v89
    %700 = vmatprep.subr.mxu0 0.0
    %701 = vmatpush1.msra.mxu0 %v90
    %702 = vmatprep.subr.mxu0 0.0
    %703 = vmatpush1.msra.mxu0 %v91
    %704 = vmatprep.mubr.f32.mxu0 %v450
    %705 = vmatmul.mubr.f32.gmra.mrb[0].mxu0 %v448
    %v706 = vpop.f32.mrb[0].mxu0
    %v707 = vadd.f32 %v637, %v706
    %v708 = vpop.f32.mrb[0].mxu0
    %709 = vdwg.mxu0
    %710 = vmatprep.subr.mxu0 0.0
    %711 = vmatpush1.msra.mxu0 %v92
    %712 = vmatprep.subr.mxu0 0.0
    %713 = vmatpush1.msra.mxu0 %v93
    %714 = vmatprep.subr.mxu0 0.0
    %715 = vmatpush1.msra.mxu0 %v94
    %716 = vmatprep.subr.mxu0 0.0
    %717 = vmatpush1.msra.mxu0 %v95
    %718 = vmatprep.subr.mxu0 0.0
    %719 = vmatpush1.msra.mxu0 %v96
    %720 = vmatprep.subr.mxu0 0.0
    %721 = vmatpush1.msra.mxu0 %v97
    %722 = vmatprep.subr.mxu0 0.0
    %723 = vmatpush1.msra.mxu0 %v98
    %724 = vmatprep.subr.mxu0 0.0
    %725 = vmatpush1.msra.mxu0 %v99
    %726 = vmatprep.subr.mxu0 0.0
    %727 = vmatpush1.msra.mxu0 %v100
    %728 = vmatprep.subr.mxu0 0.0
    %729 = vmatpush1.msra.mxu0 %v101
    %730 = vmatprep.subr.mxu0 0.0
    %731 = vmatpush1.msra.mxu0 %v102
    %732 = vmatprep.subr.mxu0 0.0
    %733 = vmatpush1.msra.mxu0 %v103
    %734 = vmatprep.subr.mxu0 0.0
    %735 = vmatpush1.msra.mxu0 %v104
    %736 = vmatprep.subr.mxu0 0.0
    %737 = vmatpush1.msra.mxu0 %v105
    %738 = vmatprep.subr.mxu0 0.0
    %739 = vmatpush1.msra.mxu0 %v106
    %740 = vmatprep.subr.mxu0 0.0
    %741 = vmatpush1.msra.mxu0 %v107
    %742 = vmatprep.subr.mxu0 0.0
    %743 = vmatpush1.msra.mxu0 %v108
    %744 = vmatprep.subr.mxu0 0.0
    %745 = vmatpush1.msra.mxu0 %v109
    %746 = vmatprep.subr.mxu0 0.0
    %747 = vmatpush1.msra.mxu0 %v110
    %748 = vmatprep.subr.mxu0 0.0
    %749 = vmatpush1.msra.mxu0 %v111
    %750 = vmatprep.subr.mxu0 0.0
    %751 = vmatpush1.msra.mxu0 %v112
    %752 = vmatprep.subr.mxu0 0.0
    %753 = vmatpush1.msra.mxu0 %v113
    %754 = vmatprep.subr.mxu0 0.0
    %755 = vmatpush1.msra.mxu0 %v114
    %756 = vmatprep.subr.mxu0 0.0
    %757 = vmatpush1.msra.mxu0 %v115
    %758 = vmatprep.subr.mxu0 0.0
    %759 = vmatpush1.msra.mxu0 %v116
    %760 = vmatprep.subr.mxu0 0.0
    %761 = vmatpush1.msra.mxu0 %v117
    %762 = vmatprep.subr.mxu0 0.0
    %763 = vmatpush1.msra.mxu0 %v118
    %764 = vmatprep.subr.mxu0 0.0
    %765 = vmatpush1.msra.mxu0 %v119
    %766 = vmatprep.subr.mxu0 0.0
    %767 = vmatpush1.msra.mxu0 %v120
    %768 = vmatprep.subr.mxu0 0.0
    %769 = vmatpush1.msra.mxu0 %v121
    %770 = vmatprep.subr.mxu0 0.0
    %771 = vmatpush1.msra.mxu0 %v122
    %772 = vmatprep.subr.mxu0 0.0
    %773 = vmatpush1.msra.mxu0 %v123
    %774 = vmatprep.mubr.f32.mxu0 %v466
    %775 = vmatmul.mubr.f32.gmra.mrb[0].mxu0 %v458
    %v776 = vpop.f32.mrb[0].mxu0
    %v777 = vadd.f32 %v707, %v776
    %v778 = vpop.f32.mrb[0].mxu0
    %779 = vdwg.mxu0
    %780 = vmatprep.subr.mxu0 0.0
    %781 = vmatpush1.msra.mxu0 %v124
    %782 = vmatprep.subr.mxu0 0.0
    %783 = vmatpush1.msra.mxu0 %v125
    %784 = vmatprep.subr.mxu0 0.0
    %785 = vmatpush1.msra.mxu0 %v126
    %786 = vmatprep.subr.mxu0 0.0
    %787 = vmatpush1.msra.mxu0 %v127
    %788 = vmatprep.subr.mxu0 0.0
    %789 = vmatpush1.msra.mxu0 %v128
    %790 = vmatprep.subr.mxu0 0.0
    %791 = vmatpush1.msra.mxu0 %v129
    %792 = vmatprep.subr.mxu0 0.0
    %793 = vmatpush1.msra.mxu0 %v130
    %794 = vmatprep.subr.mxu0 0.0
    %795 = vmatpush1.msra.mxu0 %v131
    %796 = vmatprep.subr.mxu0 0.0
    %797 = vmatpush1.msra.mxu0 %v132
    %798 = vmatprep.subr.mxu0 0.0
    %799 = vmatpush1.msra.mxu0 %v133
    %800 = vmatprep.subr.mxu0 0.0
    %801 = vmatpush1.msra.mxu0 %v134
    %802 = vmatprep.subr.mxu0 0.0
    %803 = vmatpush1.msra.mxu0 %v135
    %804 = vmatprep.subr.mxu0 0.0
    %805 = vmatpush1.msra.mxu0 %v136
    %806 = vmatprep.subr.mxu0 0.0
    %807 = vmatpush1.msra.mxu0 %v137
    %808 = vmatprep.subr.mxu0 0.0
    %809 = vmatpush1.msra.mxu0 %v138
    %810 = vmatprep.subr.mxu0 0.0
    %811 = vmatpush1.msra.mxu0 %v139
    %812 = vmatprep.subr.mxu0 0.0
    %813 = vmatpush1.msra.mxu0 %v140
    %814 = vmatprep.subr.mxu0 0.0
    %815 = vmatpush1.msra.mxu0 %v141
    %816 = vmatprep.subr.mxu0 0.0
    %817 = vmatpush1.msra.mxu0 %v142
    %818 = vmatprep.subr.mxu0 0.0
    %819 = vmatpush1.msra.mxu0 %v143
    %820 = vmatprep.subr.mxu0 0.0
    %821 = vmatpush1.msra.mxu0 %v144
    %822 = vmatprep.subr.mxu0 0.0
    %823 = vmatpush1.msra.mxu0 %v145
    %824 = vmatprep.subr.mxu0 0.0
    %825 = vmatpush1.msra.mxu0 %v146
    %826 = vmatprep.subr.mxu0 0.0
    %827 = vmatpush1.msra.mxu0 %v147
    %828 = vmatprep.subr.mxu0 0.0
    %829 = vmatpush1.msra.mxu0 %v148
    %830 = vmatprep.subr.mxu0 0.0
    %831 = vmatpush1.msra.mxu0 %v149
    %832 = vmatprep.subr.mxu0 0.0
    %833 = vmatpush1.msra.mxu0 %v150
    %834 = vmatprep.subr.mxu0 0.0
    %835 = vmatpush1.msra.mxu0 %v151
    %836 = vmatprep.subr.mxu0 0.0
    %837 = vmatpush1.msra.mxu0 %v152
    %838 = vmatprep.subr.mxu0 0.0
    %839 = vmatpush1.msra.mxu0 %v153
    %840 = vmatprep.subr.mxu0 0.0
    %841 = vmatpush1.msra.mxu0 %v154
    %842 = vmatprep.subr.mxu0 0.0
    %843 = vmatpush1.msra.mxu0 %v155
    %844 = vmatprep.mubr.f32.mxu0 %v467
    %845 = vmatmul.mubr.f32.gmra.mrb[0].mxu0 %v465
    %v846 = vpop.f32.mrb[0].mxu0
    %v847 = vadd.f32 %v777, %v846
    %v848 = vpop.f32.mrb[0].mxu0
    %849 = vdwg.mxu0
    %850 = vmatprep.subr.mxu0 0.0
    %851 = vmatpush1.msra.mxu0 %v156
    %852 = vmatprep.subr.mxu0 0.0
    %853 = vmatpush1.msra.mxu0 %v157
    %854 = vmatprep.subr.mxu0 0.0
    %855 = vmatpush1.msra.mxu0 %v158
    %856 = vmatprep.subr.mxu0 0.0
    %857 = vmatpush1.msra.mxu0 %v159
    %858 = vmatprep.subr.mxu0 0.0
    %859 = vmatpush1.msra.mxu0 %v160
    %860 = vmatprep.subr.mxu0 0.0
    %861 = vmatpush1.msra.mxu0 %v161
    %862 = vmatprep.subr.mxu0 0.0
    %863 = vmatpush1.msra.mxu0 %v162
    %864 = vmatprep.subr.mxu0 0.0
    %865 = vmatpush1.msra.mxu0 %v163
    %866 = vmatprep.subr.mxu0 0.0
    %867 = vmatpush1.msra.mxu0 %v164
    %868 = vmatprep.subr.mxu0 0.0
    %869 = vmatpush1.msra.mxu0 %v165
    %870 = vmatprep.subr.mxu0 0.0
    %871 = vmatpush1.msra.mxu0 %v166
    %872 = vmatprep.subr.mxu0 0.0
    %873 = vmatpush1.msra.mxu0 %v167
    %874 = vmatprep.subr.mxu0 0.0
    %875 = vmatpush1.msra.mxu0 %v168
    %876 = vmatprep.subr.mxu0 0.0
    %877 = vmatpush1.msra.mxu0 %v169
    %878 = vmatprep.subr.mxu0 0.0
    %879 = vmatpush1.msra.mxu0 %v170
    %880 = vmatprep.subr.mxu0 0.0
    %881 = vmatpush1.msra.mxu0 %v171
    %882 = vmatprep.subr.mxu0 0.0
    %883 = vmatpush1.msra.mxu0 %v172
    %884 = vmatprep.subr.mxu0 0.0
    %885 = vmatpush1.msra.mxu0 %v173
    %886 = vmatprep.subr.mxu0 0.0
    %887 = vmatpush1.msra.mxu0 %v174
    %888 = vmatprep.subr.mxu0 0.0
    %889 = vmatpush1.msra.mxu0 %v175
    %890 = vmatprep.subr.mxu0 0.0
    %891 = vmatpush1.msra.mxu0 %v176
    %892 = vmatprep.subr.mxu0 0.0
    %893 = vmatpush1.msra.mxu0 %v177
    %894 = vmatprep.subr.mxu0 0.0
    %895 = vmatpush1.msra.mxu0 %v178
    %896 = vmatprep.subr.mxu0 0.0
    %897 = vmatpush1.msra.mxu0 %v179
    %898 = vmatprep.subr.mxu0 0.0
    %899 = vmatpush1.msra.mxu0 %v180
    %900 = vmatprep.subr.mxu0 0.0
    %901 = vmatpush1.msra.mxu0 %v181
    %902 = vmatprep.subr.mxu0 0.0
    %903 = vmatpush1.msra.mxu0 %v182
    %904 = vmatprep.subr.mxu0 0.0
    %905 = vmatpush1.msra.mxu0 %v183
    %906 = vmatprep.subr.mxu0 0.0
    %907 = vmatpush1.msra.mxu0 %v184
    %908 = vmatprep.subr.mxu0 0.0
    %909 = vmatpush1.msra.mxu0 %v185
    %910 = vmatprep.subr.mxu0 0.0
    %911 = vmatpush1.msra.mxu0 %v186
    %912 = vmatprep.subr.mxu0 0.0
    %913 = vmatpush1.msra.mxu0 %v187
    %914 = vmatprep.mubr.f32.mxu0 %v483
    %915 = vmatmul.mubr.f32.gmra.mrb[0].mxu0 %v475
    %v916 = vpop.f32.mrb[0].mxu0
    %v917 = vadd.f32 %v847, %v916
    %v918 = vpop.f32.mrb[0].mxu0
    %919 = vdwg.mxu0
    %920 = vmatprep.subr.mxu0 0.0
    %921 = vmatpush1.msra.mxu0 %v188
    %922 = vmatprep.subr.mxu0 0.0
    %923 = vmatpush1.msra.mxu0 %v189
    %924 = vmatprep.subr.mxu0 0.0
    %925 = vmatpush1.msra.mxu0 %v190
    %926 = vmatprep.subr.mxu0 0.0
    %927 = vmatpush1.msra.mxu0 %v191
    %928 = vmatprep.subr.mxu0 0.0
    %929 = vmatpush1.msra.mxu0 %v192
    %930 = vmatprep.subr.mxu0 0.0
    %931 = vmatpush1.msra.mxu0 %v193
    %932 = vmatprep.subr.mxu0 0.0
    %933 = vmatpush1.msra.mxu0 %v194
    %934 = vmatprep.subr.mxu0 0.0
    %935 = vmatpush1.msra.mxu0 %v195
    %936 = vmatprep.subr.mxu0 0.0
    %937 = vmatpush1.msra.mxu0 %v196
    %938 = vmatprep.subr.mxu0 0.0
    %939 = vmatpush1.msra.mxu0 %v197
    %940 = vmatprep.subr.mxu0 0.0
    %941 = vmatpush1.msra.mxu0 %v198
    %942 = vmatprep.subr.mxu0 0.0
    %943 = vmatpush1.msra.mxu0 %v199
    %944 = vmatprep.subr.mxu0 0.0
    %945 = vmatpush1.msra.mxu0 %v200
    %946 = vmatprep.subr.mxu0 0.0
    %947 = vmatpush1.msra.mxu0 %v201
    %948 = vmatprep.subr.mxu0 0.0
    %949 = vmatpush1.msra.mxu0 %v202
    %950 = vmatprep.subr.mxu0 0.0
    %951 = vmatpush1.msra.mxu0 %v203
    %952 = vmatprep.subr.mxu0 0.0
    %953 = vmatpush1.msra.mxu0 %v204
    %954 = vmatprep.subr.mxu0 0.0
    %955 = vmatpush1.msra.mxu0 %v205
    %956 = vmatprep.subr.mxu0 0.0
    %957 = vmatpush1.msra.mxu0 %v206
    %958 = vmatprep.subr.mxu0 0.0
    %959 = vmatpush1.msra.mxu0 %v207
    %960 = vmatprep.subr.mxu0 0.0
    %961 = vmatpush1.msra.mxu0 %v208
    %962 = vmatprep.subr.mxu0 0.0
    %963 = vmatpush1.msra.mxu0 %v209
    %964 = vmatprep.subr.mxu0 0.0
    %965 = vmatpush1.msra.mxu0 %v210
    %966 = vmatprep.subr.mxu0 0.0
    %967 = vmatpush1.msra.mxu0 %v211
    %968 = vmatprep.subr.mxu0 0.0
    %969 = vmatpush1.msra.mxu0 %v212
    %970 = vmatprep.subr.mxu0 0.0
    %971 = vmatpush1.msra.mxu0 %v213
    %972 = vmatprep.subr.mxu0 0.0
    %973 = vmatpush1.msra.mxu0 %v214
    %974 = vmatprep.subr.mxu0 0.0
    %975 = vmatpush1.msra.mxu0 %v215
    %976 = vmatprep.subr.mxu0 0.0
    %977 = vmatpush1.msra.mxu0 %v216
    %978 = vmatprep.subr.mxu0 0.0
    %979 = vmatpush1.msra.mxu0 %v217
    %980 = vmatprep.subr.mxu0 0.0
    %981 = vmatpush1.msra.mxu0 %v218
    %982 = vmatprep.subr.mxu0 0.0
    %983 = vmatpush1.msra.mxu0 %v219
    %984 = vmatprep.mubr.f32.mxu0 %v484
    %985 = vmatmul.mubr.f32.gmra.mrb[0].mxu0 %v482
    %v986 = vpop.f32.mrb[0].mxu0
    %v987 = vadd.f32 %v917, %v986
    %v988 = vpop.f32.mrb[0].mxu0
    %989 = vdwg.mxu0
    %990 = vmatprep.subr.mxu0 0.0
    %991 = vmatpush1.msra.mxu0 %v220
    %992 = vmatprep.subr.mxu0 0.0
    %993 = vmatpush1.msra.mxu0 %v221
    %994 = vmatprep.subr.mxu0 0.0
    %995 = vmatpush1.msra.mxu0 %v222
    %996 = vmatprep.subr.mxu0 0.0
    %997 = vmatpush1.msra.mxu0 %v223
    %998 = vmatprep.subr.mxu0 0.0
    %999 = vmatpush1.msra.mxu0 %v224
    %1000 = vmatprep.subr.mxu0 0.0
    %1001 = vmatpush1.msra.mxu0 %v225
    %1002 = vmatprep.subr.mxu0 0.0
    %1003 = vmatpush1.msra.mxu0 %v226
    %1004 = vmatprep.subr.mxu0 0.0
    %1005 = vmatpush1.msra.mxu0 %v227
    %1006 = vmatprep.subr.mxu0 0.0
    %1007 = vmatpush1.msra.mxu0 %v228
    %1008 = vmatprep.subr.mxu0 0.0
    %1009 = vmatpush1.msra.mxu0 %v229
    %1010 = vmatprep.subr.mxu0 0.0
    %1011 = vmatpush1.msra.mxu0 %v230
    %1012 = vmatprep.subr.mxu0 0.0
    %1013 = vmatpush1.msra.mxu0 %v231
    %1014 = vmatprep.subr.mxu0 0.0
    %1015 = vmatpush1.msra.mxu0 %v232
    %1016 = vmatprep.subr.mxu0 0.0
    %1017 = vmatpush1.msra.mxu0 %v233
    %1018 = vmatprep.subr.mxu0 0.0
    %1019 = vmatpush1.msra.mxu0 %v234
    %1020 = vmatprep.subr.mxu0 0.0
    %1021 = vmatpush1.msra.mxu0 %v235
    %1022 = vmatprep.subr.mxu0 0.0
    %1023 = vmatpush1.msra.mxu0 %v236
    %1024 = vmatprep.subr.mxu0 0.0
    %1025 = vmatpush1.msra.mxu0 %v237
    %1026 = vmatprep.subr.mxu0 0.0
    %1027 = vmatpush1.msra.mxu0 %v238
    %1028 = vmatprep.subr.mxu0 0.0
    %1029 = vmatpush1.msra.mxu0 %v239
    %1030 = vmatprep.subr.mxu0 0.0
    %1031 = vmatpush1.msra.mxu0 %v240
    %1032 = vmatprep.subr.mxu0 0.0
    %1033 = vmatpush1.msra.mxu0 %v241
    %1034 = vmatprep.subr.mxu0 0.0
    %1035 = vmatpush1.msra.mxu0 %v242
    %1036 = vmatprep.subr.mxu0 0.0
    %1037 = vmatpush1.msra.mxu0 %v243
    %1038 = vmatprep.subr.mxu0 0.0
    %1039 = vmatpush1.msra.mxu0 %v244
    %1040 = vmatprep.subr.mxu0 0.0
    %1041 = vmatpush1.msra.mxu0 %v245
    %1042 = vmatprep.subr.mxu0 0.0
    %1043 = vmatpush1.msra.mxu0 %v246
    %1044 = vmatprep.subr.mxu0 0.0
    %1045 = vmatpush1.msra.mxu0 %v247
    %1046 = vmatprep.subr.mxu0 0.0
    %1047 = vmatpush1.msra.mxu0 %v248
    %1048 = vmatprep.subr.mxu0 0.0
    %1049 = vmatpush1.msra.mxu0 %v249
    %1050 = vmatprep.subr.mxu0 0.0
    %1051 = vmatpush1.msra.mxu0 %v250
    %1052 = vmatprep.subr.mxu0 0.0
    %1053 = vmatpush1.msra.mxu0 %v251
    %1054 = vmatprep.mubr.f32.mxu0 %v500
    %1055 = vmatmul.mubr.f32.gmra.mrb[0].mxu0 %v492
    %v1056 = vpop.f32.mrb[0].mxu0
    %v1057 = vadd.f32 %v987, %v1056
    %v1058 = vpop.f32.mrb[0].mxu0
    %1059 = vdwg.mxu0
    %1060 = vmatprep.subr.mxu0 0.0
    %1061 = vmatpush1.msra.mxu0 %v252
    %1062 = vmatprep.subr.mxu0 0.0
    %1063 = vmatpush1.msra.mxu0 %v253
    %1064 = vmatprep.subr.mxu0 0.0
    %1065 = vmatpush1.msra.mxu0 %v254
    %1066 = vmatprep.subr.mxu0 0.0
    %1067 = vmatpush1.msra.mxu0 %v255
    %1068 = vmatprep.subr.mxu0 0.0
    %1069 = vmatpush1.msra.mxu0 %v256
    %1070 = vmatprep.subr.mxu0 0.0
    %1071 = vmatpush1.msra.mxu0 %v257
    %1072 = vmatprep.subr.mxu0 0.0
    %1073 = vmatpush1.msra.mxu0 %v258
    %1074 = vmatprep.subr.mxu0 0.0
    %1075 = vmatpush1.msra.mxu0 %v259
    %1076 = vmatprep.subr.mxu0 0.0
    %1077 = vmatpush1.msra.mxu0 %v260
    %1078 = vmatprep.subr.mxu0 0.0
    %1079 = vmatpush1.msra.mxu0 %v261
    %1080 = vmatprep.subr.mxu0 0.0
    %1081 = vmatpush1.msra.mxu0 %v262
    %1082 = vmatprep.subr.mxu0 0.0
    %1083 = vmatpush1.msra.mxu0 %v263
    %1084 = vmatprep.subr.mxu0 0.0
    %1085 = vmatpush1.msra.mxu0 %v264
    %1086 = vmatprep.subr.mxu0 0.0
    %1087 = vmatpush1.msra.mxu0 %v265
    %1088 = vmatprep.subr.mxu0 0.0
    %1089 = vmatpush1.msra.mxu0 %v266
    %1090 = vmatprep.subr.mxu0 0.0
    %1091 = vmatpush1.msra.mxu0 %v267
    %1092 = vmatprep.subr.mxu0 0.0
    %1093 = vmatpush1.msra.mxu0 %v268
    %1094 = vmatprep.subr.mxu0 0.0
    %1095 = vmatpush1.msra.mxu0 %v269
    %1096 = vmatprep.subr.mxu0 0.0
    %1097 = vmatpush1.msra.mxu0 %v270
    %1098 = vmatprep.subr.mxu0 0.0
    %1099 = vmatpush1.msra.mxu0 %v271
    %1100 = vmatprep.subr.mxu0 0.0
    %1101 = vmatpush1.msra.mxu0 %v272
    %1102 = vmatprep.subr.mxu0 0.0
    %1103 = vmatpush1.msra.mxu0 %v273
    %1104 = vmatprep.subr.mxu0 0.0
    %1105 = vmatpush1.msra.mxu0 %v274
    %1106 = vmatprep.subr.mxu0 0.0
    %1107 = vmatpush1.msra.mxu0 %v275
    %1108 = vmatprep.subr.mxu0 0.0
    %1109 = vmatpush1.msra.mxu0 %v276
    %1110 = vmatprep.subr.mxu0 0.0
    %1111 = vmatpush1.msra.mxu0 %v277
    %1112 = vmatprep.subr.mxu0 0.0
    %1113 = vmatpush1.msra.mxu0 %v278
    %1114 = vmatprep.subr.mxu0 0.0
    %1115 = vmatpush1.msra.mxu0 %v279
    %1116 = vmatprep.subr.mxu0 0.0
    %1117 = vmatpush1.msra.mxu0 %v280
    %1118 = vmatprep.subr.mxu0 0.0
    %1119 = vmatpush1.msra.mxu0 %v281
    %1120 = vmatprep.subr.mxu0 0.0
    %1121 = vmatpush1.msra.mxu0 %v282
    %1122 = vmatprep.subr.mxu0 0.0
    %1123 = vmatpush1.msra.mxu0 %v283
    %1124 = vmatprep.mubr.f32.mxu0 %v501
    %1125 = vmatmul.mubr.f32.gmra.mrb[0].mxu0 %v499
    %v1126 = vpop.f32.mrb[0].mxu0
    %v1127 = vadd.f32 %v1057, %v1126
    %v1128 = vpop.f32.mrb[0].mxu0
    %1129 = vdwg.mxu0
    %1130 = vmatprep.subr.mxu0 0.0
    %1131 = vmatpush1.msra.mxu0 %v284
    %1132 = vmatprep.subr.mxu0 0.0
    %1133 = vmatpush1.msra.mxu0 %v285
    %1134 = vmatprep.subr.mxu0 0.0
    %1135 = vmatpush1.msra.mxu0 %v286
    %1136 = vmatprep.subr.mxu0 0.0
    %1137 = vmatpush1.msra.mxu0 %v287
    %1138 = vmatprep.subr.mxu0 0.0
    %1139 = vmatpush1.msra.mxu0 %v288
    %1140 = vmatprep.subr.mxu0 0.0
    %1141 = vmatpush1.msra.mxu0 %v289
    %1142 = vmatprep.subr.mxu0 0.0
    %1143 = vmatpush1.msra.mxu0 %v290
    %1144 = vmatprep.subr.mxu0 0.0
    %1145 = vmatpush1.msra.mxu0 %v291
    %1146 = vmatprep.subr.mxu0 0.0
    %1147 = vmatpush1.msra.mxu0 %v292
    %1148 = vmatprep.subr.mxu0 0.0
    %1149 = vmatpush1.msra.mxu0 %v293
    %1150 = vmatprep.subr.mxu0 0.0
    %1151 = vmatpush1.msra.mxu0 %v294
    %1152 = vmatprep.subr.mxu0 0.0
    %1153 = vmatpush1.msra.mxu0 %v295
    %1154 = vmatprep.subr.mxu0 0.0
    %1155 = vmatpush1.msra.mxu0 %v296
    %1156 = vmatprep.subr.mxu0 0.0
    %1157 = vmatpush1.msra.mxu0 %v297
    %1158 = vmatprep.subr.mxu0 0.0
    %1159 = vmatpush1.msra.mxu0 %v298
    %1160 = vmatprep.subr.mxu0 0.0
    %1161 = vmatpush1.msra.mxu0 %v299
    %1162 = vmatprep.subr.mxu0 0.0
    %1163 = vmatpush1.msra.mxu0 %v300
    %1164 = vmatprep.subr.mxu0 0.0
    %1165 = vmatpush1.msra.mxu0 %v301
    %1166 = vmatprep.subr.mxu0 0.0
    %1167 = vmatpush1.msra.mxu0 %v302
    %1168 = vmatprep.subr.mxu0 0.0
    %1169 = vmatpush1.msra.mxu0 %v303
    %1170 = vmatprep.subr.mxu0 0.0
    %1171 = vmatpush1.msra.mxu0 %v304
    %1172 = vmatprep.subr.mxu0 0.0
    %1173 = vmatpush1.msra.mxu0 %v305
    %1174 = vmatprep.subr.mxu0 0.0
    %1175 = vmatpush1.msra.mxu0 %v306
    %1176 = vmatprep.subr.mxu0 0.0
    %1177 = vmatpush1.msra.mxu0 %v307
    %1178 = vmatprep.subr.mxu0 0.0
    %1179 = vmatpush1.msra.mxu0 %v308
    %1180 = vmatprep.subr.mxu0 0.0
    %1181 = vmatpush1.msra.mxu0 %v309
    %1182 = vmatprep.subr.mxu0 0.0
    %1183 = vmatpush1.msra.mxu0 %v310
    %1184 = vmatprep.subr.mxu0 0.0
    %1185 = vmatpush1.msra.mxu0 %v311
    %1186 = vmatprep.subr.mxu0 0.0
    %1187 = vmatpush1.msra.mxu0 %v312
    %1188 = vmatprep.subr.mxu0 0.0
    %1189 = vmatpush1.msra.mxu0 %v313
    %1190 = vmatprep.subr.mxu0 0.0
    %1191 = vmatpush1.msra.mxu0 %v314
    %1192 = vmatprep.subr.mxu0 0.0
    %1193 = vmatpush1.msra.mxu0 %v315
    %1194 = vmatprep.mubr.f32.mxu0 %v517
    %1195 = vmatmul.mubr.f32.gmra.mrb[0].mxu0 %v509
    %v1196 = vpop.f32.mrb[0].mxu0
    %v1197 = vadd.f32 %v1127, %v1196
    %v1198 = vpop.f32.mrb[0].mxu0
    %1199 = vdwg.mxu0
    %1200 = vmatprep.subr.mxu0 0.0
    %1201 = vmatpush1.msra.mxu0 %v316
    %1202 = vmatprep.subr.mxu0 0.0
    %1203 = vmatpush1.msra.mxu0 %v317
    %1204 = vmatprep.subr.mxu0 0.0
    %1205 = vmatpush1.msra.mxu0 %v318
    %1206 = vmatprep.subr.mxu0 0.0
    %1207 = vmatpush1.msra.mxu0 %v319
    %1208 = vmatprep.subr.mxu0 0.0
    %1209 = vmatpush1.msra.mxu0 %v320
    %1210 = vmatprep.subr.mxu0 0.0
    %1211 = vmatpush1.msra.mxu0 %v321
    %1212 = vmatprep.subr.mxu0 0.0
    %1213 = vmatpush1.msra.mxu0 %v322
    %1214 = vmatprep.subr.mxu0 0.0
    %1215 = vmatpush1.msra.mxu0 %v323
    %1216 = vmatprep.subr.mxu0 0.0
    %1217 = vmatpush1.msra.mxu0 %v324
    %1218 = vmatprep.subr.mxu0 0.0
    %1219 = vmatpush1.msra.mxu0 %v325
    %1220 = vmatprep.subr.mxu0 0.0
    %1221 = vmatpush1.msra.mxu0 %v326
    %1222 = vmatprep.subr.mxu0 0.0
    %1223 = vmatpush1.msra.mxu0 %v327
    %1224 = vmatprep.subr.mxu0 0.0
    %1225 = vmatpush1.msra.mxu0 %v328
    %1226 = vmatprep.subr.mxu0 0.0
    %1227 = vmatpush1.msra.mxu0 %v329
    %1228 = vmatprep.subr.mxu0 0.0
    %1229 = vmatpush1.msra.mxu0 %v330
    %1230 = vmatprep.subr.mxu0 0.0
    %1231 = vmatpush1.msra.mxu0 %v331
    %1232 = vmatprep.subr.mxu0 0.0
    %1233 = vmatpush1.msra.mxu0 %v332
    %1234 = vmatprep.subr.mxu0 0.0
    %1235 = vmatpush1.msra.mxu0 %v333
    %1236 = vmatprep.subr.mxu0 0.0
    %1237 = vmatpush1.msra.mxu0 %v334
    %1238 = vmatprep.subr.mxu0 0.0
    %1239 = vmatpush1.msra.mxu0 %v335
    %1240 = vmatprep.subr.mxu0 0.0
    %1241 = vmatpush1.msra.mxu0 %v336
    %1242 = vmatprep.subr.mxu0 0.0
    %1243 = vmatpush1.msra.mxu0 %v337
    %1244 = vmatprep.subr.mxu0 0.0
    %1245 = vmatpush1.msra.mxu0 %v338
    %1246 = vmatprep.subr.mxu0 0.0
    %1247 = vmatpush1.msra.mxu0 %v339
    %1248 = vmatprep.subr.mxu0 0.0
    %1249 = vmatpush1.msra.mxu0 %v340
    %1250 = vmatprep.subr.mxu0 0.0
    %1251 = vmatpush1.msra.mxu0 %v341
    %1252 = vmatprep.subr.mxu0 0.0
    %1253 = vmatpush1.msra.mxu0 %v342
    %1254 = vmatprep.subr.mxu0 0.0
    %1255 = vmatpush1.msra.mxu0 %v343
    %1256 = vmatprep.subr.mxu0 0.0
    %1257 = vmatpush1.msra.mxu0 %v344
    %1258 = vmatprep.subr.mxu0 0.0
    %1259 = vmatpush1.msra.mxu0 %v345
    %1260 = vmatprep.subr.mxu0 0.0
    %1261 = vmatpush1.msra.mxu0 %v346
    %1262 = vmatprep.subr.mxu0 0.0
    %1263 = vmatpush1.msra.mxu0 %v347
    %1264 = vmatprep.mubr.f32.mxu0 %v518
    %1265 = vmatmul.mubr.f32.gmra.mrb[0].mxu0 %v516
    %v1266 = vpop.f32.mrb[0].mxu0
    %v1267 = vadd.f32 %v1197, %v1266
    %v1268 = vpop.f32.mrb[0].mxu0
    %1269 = vdwg.mxu0
    %1270 = vmatprep.subr.mxu0 0.0
    %1271 = vmatpush1.msra.mxu0 %v348
    %1272 = vmatprep.subr.mxu0 0.0
    %1273 = vmatpush1.msra.mxu0 %v349
    %1274 = vmatprep.subr.mxu0 0.0
    %1275 = vmatpush1.msra.mxu0 %v350
    %1276 = vmatprep.subr.mxu0 0.0
    %1277 = vmatpush1.msra.mxu0 %v351
    %1278 = vmatprep.subr.mxu0 0.0
    %1279 = vmatpush1.msra.mxu0 %v352
    %1280 = vmatprep.subr.mxu0 0.0
    %1281 = vmatpush1.msra.mxu0 %v353
    %1282 = vmatprep.subr.mxu0 0.0
    %1283 = vmatpush1.msra.mxu0 %v354
    %1284 = vmatprep.subr.mxu0 0.0
    %1285 = vmatpush1.msra.mxu0 %v355
    %1286 = vmatprep.subr.mxu0 0.0
    %1287 = vmatpush1.msra.mxu0 %v356
    %1288 = vmatprep.subr.mxu0 0.0
    %1289 = vmatpush1.msra.mxu0 %v357
    %1290 = vmatprep.subr.mxu0 0.0
    %1291 = vmatpush1.msra.mxu0 %v358
    %1292 = vmatprep.subr.mxu0 0.0
    %1293 = vmatpush1.msra.mxu0 %v359
    %1294 = vmatprep.subr.mxu0 0.0
    %1295 = vmatpush1.msra.mxu0 %v360
    %1296 = vmatprep.subr.mxu0 0.0
    %1297 = vmatpush1.msra.mxu0 %v361
    %1298 = vmatprep.subr.mxu0 0.0
    %1299 = vmatpush1.msra.mxu0 %v362
    %1300 = vmatprep.subr.mxu0 0.0
    %1301 = vmatpush1.msra.mxu0 %v363
    %1302 = vmatprep.subr.mxu0 0.0
    %1303 = vmatpush1.msra.mxu0 %v364
    %1304 = vmatprep.subr.mxu0 0.0
    %1305 = vmatpush1.msra.mxu0 %v365
    %1306 = vmatprep.subr.mxu0 0.0
    %1307 = vmatpush1.msra.mxu0 %v366
    %1308 = vmatprep.subr.mxu0 0.0
    %1309 = vmatpush1.msra.mxu0 %v367
    %1310 = vmatprep.subr.mxu0 0.0
    %1311 = vmatpush1.msra.mxu0 %v368
    %1312 = vmatprep.subr.mxu0 0.0
    %1313 = vmatpush1.msra.mxu0 %v369
    %1314 = vmatprep.subr.mxu0 0.0
    %1315 = vmatpush1.msra.mxu0 %v370
    %1316 = vmatprep.subr.mxu0 0.0
    %1317 = vmatpush1.msra.mxu0 %v371
    %1318 = vmatprep.subr.mxu0 0.0
    %1319 = vmatpush1.msra.mxu0 %v372
    %1320 = vmatprep.subr.mxu0 0.0
    %1321 = vmatpush1.msra.mxu0 %v373
    %1322 = vmatprep.subr.mxu0 0.0
    %1323 = vmatpush1.msra.mxu0 %v374
    %1324 = vmatprep.subr.mxu0 0.0
    %1325 = vmatpush1.msra.mxu0 %v375
    %1326 = vmatprep.subr.mxu0 0.0
    %1327 = vmatpush1.msra.mxu0 %v376
    %1328 = vmatprep.subr.mxu0 0.0
    %1329 = vmatpush1.msra.mxu0 %v377
    %1330 = vmatprep.subr.mxu0 0.0
    %1331 = vmatpush1.msra.mxu0 %v378
    %1332 = vmatprep.subr.mxu0 0.0
    %1333 = vmatpush1.msra.mxu0 %v379
    %1334 = vmatprep.mubr.f32.mxu0 %v534
    %1335 = vmatmul.mubr.f32.gmra.mrb[0].mxu0 %v526
    %v1336 = vpop.f32.mrb[0].mxu0
    %v1337 = vadd.f32 %v1267, %v1336
    %v1338 = vpop.f32.mrb[0].mxu0
    %1339 = vdwg.mxu0
    %1340 = vmatprep.subr.mxu0 0.0
    %1341 = vmatpush1.msra.mxu0 %v380
    %1342 = vmatprep.subr.mxu0 0.0
    %1343 = vmatpush1.msra.mxu0 %v381
    %1344 = vmatprep.subr.mxu0 0.0
    %1345 = vmatpush1.msra.mxu0 %v382
    %1346 = vmatprep.subr.mxu0 0.0
    %1347 = vmatpush1.msra.mxu0 %v383
    %1348 = vmatprep.subr.mxu0 0.0
    %1349 = vmatpush1.msra.mxu0 %v384
    %1350 = vmatprep.subr.mxu0 0.0
    %1351 = vmatpush1.msra.mxu0 %v385
    %1352 = vmatprep.subr.mxu0 0.0
    %1353 = vmatpush1.msra.mxu0 %v386
    %1354 = vmatprep.subr.mxu0 0.0
    %1355 = vmatpush1.msra.mxu0 %v387
    %1356 = vmatprep.subr.mxu0 0.0
    %1357 = vmatpush1.msra.mxu0 %v388
    %1358 = vmatprep.subr.mxu0 0.0
    %1359 = vmatpush1.msra.mxu0 %v389
    %1360 = vmatprep.subr.mxu0 0.0
    %1361 = vmatpush1.msra.mxu0 %v390
    %1362 = vmatprep.subr.mxu0 0.0
    %1363 = vmatpush1.msra.mxu0 %v391
    %1364 = vmatprep.subr.mxu0 0.0
    %1365 = vmatpush1.msra.mxu0 %v392
    %1366 = vmatprep.subr.mxu0 0.0
    %1367 = vmatpush1.msra.mxu0 %v393
    %1368 = vmatprep.subr.mxu0 0.0
    %1369 = vmatpush1.msra.mxu0 %v394
    %1370 = vmatprep.subr.mxu0 0.0
    %1371 = vmatpush1.msra.mxu0 %v395
    %1372 = vmatprep.subr.mxu0 0.0
    %1373 = vmatpush1.msra.mxu0 %v396
    %1374 = vmatprep.subr.mxu0 0.0
    %1375 = vmatpush1.msra.mxu0 %v397
    %1376 = vmatprep.subr.mxu0 0.0
    %1377 = vmatpush1.msra.mxu0 %v398
    %1378 = vmatprep.subr.mxu0 0.0
    %1379 = vmatpush1.msra.mxu0 %v399
    %1380 = vmatprep.subr.mxu0 0.0
    %1381 = vmatpush1.msra.mxu0 %v400
    %1382 = vmatprep.subr.mxu0 0.0
    %1383 = vmatpush1.msra.mxu0 %v401
    %1384 = vmatprep.subr.mxu0 0.0
    %1385 = vmatpush1.msra.mxu0 %v402
    %1386 = vmatprep.subr.mxu0 0.0
    %1387 = vmatpush1.msra.mxu0 %v403
    %1388 = vmatprep.subr.mxu0 0.0
    %1389 = vmatpush1.msra.mxu0 %v404
    %1390 = vmatprep.subr.mxu0 0.0
    %1391 = vmatpush1.msra.mxu0 %v405
    %1392 = vmatprep.subr.mxu0 0.0
    %1393 = vmatpush1.msra.mxu0 %v406
    %1394 = vmatprep.subr.mxu0 0.0
    %1395 = vmatpush1.msra.mxu0 %v407
    %1396 = vmatprep.subr.mxu0 0.0
    %1397 = vmatpush1.msra.mxu0 %v408
    %1398 = vmatprep.subr.mxu0 0.0
    %1399 = vmatpush1.msra.mxu0 %v409
    %1400 = vmatprep.subr.mxu0 0.0
    %1401 = vmatpush1.msra.mxu0 %v410
    %1402 = vmatprep.subr.mxu0 0.0
    %1403 = vmatpush1.msra.mxu0 %v411
    %1404 = vmatprep.mubr.f32.mxu0 %v535
    %1405 = vmatmul.mubr.f32.gmra.mrb[0].mxu0 %v533
    %v1406 = vpop.f32.mrb[0].mxu0
    %v1407 = vadd.f32 %v1337, %v1406
    %v1408 = vpop.f32.mrb[0].mxu0
    %1409 = vdwg.mxu0
    %1410 = vmatprep.subr.mxu0 0.0
    %1411 = vmatpush1.msra.mxu0 %v412
    %1412 = vmatprep.subr.mxu0 0.0
    %1413 = vmatpush1.msra.mxu0 %v413
    %1414 = vmatprep.subr.mxu0 0.0
    %1415 = vmatpush1.msra.mxu0 %v414
    %1416 = vmatprep.subr.mxu0 0.0
    %1417 = vmatpush1.msra.mxu0 %v415
    %1418 = vmatprep.subr.mxu0 0.0
    %1419 = vmatpush1.msra.mxu0 %v416
    %1420 = vmatprep.subr.mxu0 0.0
    %1421 = vmatpush1.msra.mxu0 %v417
    %1422 = vmatprep.subr.mxu0 0.0
    %1423 = vmatpush1.msra.mxu0 %v418
    %1424 = vmatprep.subr.mxu0 0.0
    %1425 = vmatpush1.msra.mxu0 %v419
    %1426 = vmatprep.subr.mxu0 0.0
    %1427 = vmatpush1.msra.mxu0 0.0
    %1428 = vmatprep.subr.mxu0 0.0
    %1429 = vmatpush1.msra.mxu0 0.0
    %1430 = vmatprep.subr.mxu0 0.0
    %1431 = vmatpush1.msra.mxu0 0.0
    %1432 = vmatprep.subr.mxu0 0.0
    %1433 = vmatpush1.msra.mxu0 0.0
    %1434 = vmatprep.subr.mxu0 0.0
    %1435 = vmatpush1.msra.mxu0 0.0
    %1436 = vmatprep.subr.mxu0 0.0
    %1437 = vmatpush1.msra.mxu0 0.0
    %1438 = vmatprep.subr.mxu0 0.0
    %1439 = vmatpush1.msra.mxu0 0.0
    %1440 = vmatprep.subr.mxu0 0.0
    %1441 = vmatpush1.msra.mxu0 0.0
    %1442 = vmatprep.subr.mxu0 0.0
    %1443 = vmatpush1.msra.mxu0 0.0
    %1444 = vmatprep.subr.mxu0 0.0
    %1445 = vmatpush1.msra.mxu0 0.0
    %1446 = vmatprep.subr.mxu0 0.0
    %1447 = vmatpush1.msra.mxu0 0.0
    %1448 = vmatprep.subr.mxu0 0.0
    %1449 = vmatpush1.msra.mxu0 0.0
    %1450 = vmatprep.subr.mxu0 0.0
    %1451 = vmatpush1.msra.mxu0 0.0
    %1452 = vmatprep.subr.mxu0 0.0
    %1453 = vmatpush1.msra.mxu0 0.0
    %1454 = vmatprep.subr.mxu0 0.0
    %1455 = vmatpush1.msra.mxu0 0.0
    %1456 = vmatprep.subr.mxu0 0.0
    %1457 = vmatpush1.msra.mxu0 0.0
    %1458 = vmatprep.subr.mxu0 0.0
    %1459 = vmatpush1.msra.mxu0 0.0
    %1460 = vmatprep.subr.mxu0 0.0
    %1461 = vmatpush1.msra.mxu0 0.0
    %1462 = vmatprep.subr.mxu0 0.0
    %1463 = vmatpush1.msra.mxu0 0.0
    %1464 = vmatprep.subr.mxu0 0.0
    %1465 = vmatpush1.msra.mxu0 0.0
    %1466 = vmatprep.subr.mxu0 0.0
    %1467 = vmatpush1.msra.mxu0 0.0
    %1468 = vmatprep.subr.mxu0 0.0
    %1469 = vmatpush1.msra.mxu0 0.0
    %1470 = vmatprep.subr.mxu0 0.0
    %1471 = vmatpush1.msra.mxu0 0.0
    %1472 = vmatprep.subr.mxu0 0.0
    %1473 = vmatpush1.msra.mxu0 0.0
    %1474 = vmatprep.mubr.f32.mxu0 0.0
    %1475 = vmatmul.mubr.f32.gmra.mrb[0].mxu0 %v568
    %v1476 = vpop.f32.mrb[0].mxu0
    %v1477 = vadd.f32 %v1407, %v1476
    %v1478 = vpop.f32.mrb[0].mxu0
    %1479 = vdwg.mxu0
    %v1480 = vmax.f32 %v1477, 0.0
    %v1481 = vld [vmem:[%s3] sm:$0xff]
    %v1482 = vld [vmem:[%s3 + $0x8] sm:$0xff]
    %v1483 = vld [vmem:[%s3 + $0x10] sm:$0xff]
    %v1484 = vld [vmem:[%s3 + $0x18] sm:$0xff]
    %v1485 = vld [vmem:[%s3 + $0x20] sm:$0xff]
    %v1486 = vld [vmem:[%s3 + $0x28] sm:$0xff]
    %v1487 = vld [vmem:[%s3 + $0x30] sm:$0xff]
    %v1488 = vld [vmem:[%s3 + $0x38] sm:$0xff]
    %v1489 = vld [vmem:[%s3 + $0x40] sm:$0xff]
    %v1490 = vld [vmem:[%s3 + $0x48] sm:$0xff]
    %v1491 = vld [vmem:[%s3 + $0x50] sm:$0xff]
    %v1492 = vld [vmem:[%s3 + $0x58] sm:$0xff]
    %v1493 = vld [vmem:[%s3 + $0x60] sm:$0xff]
    %v1494 = vld [vmem:[%s3 + $0x68] sm:$0xff]
    %v1495 = vld [vmem:[%s3 + $0x70] sm:$0xff]
    %v1496 = vld [vmem:[%s3 + $0x78] sm:$0xff]
    %v1497 = vld [vmem:[%s4] sm:$0x1]
    %v1499 = vlaneseq
    %v1500 = vshrl.u32 %v1499, 7
    %v1501 = vsub.s32 0, %v1500
    %v1502 = vrot.slane %v1497, %v1501
    %1504 = vmatprep.subr.mxu0 0.0
    %1505 = vmatpush1.msra.mxu0 %v1481
    %1506 = vmatprep.subr.mxu0 0.0
    %1507 = vmatpush1.msra.mxu0 %v1482
    %1508 = vmatprep.subr.mxu0 0.0
    %1509 = vmatpush1.msra.mxu0 %v1483
    %1510 = vmatprep.subr.mxu0 0.0
    %1511 = vmatpush1.msra.mxu0 %v1484
    %1512 = vmatprep.subr.mxu0 0.0
    %1513 = vmatpush1.msra.mxu0 %v1485
    %1514 = vmatprep.subr.mxu0 0.0
    %1515 = vmatpush1.msra.mxu0 %v1486
    %1516 = vmatprep.subr.mxu0 0.0
    %1517 = vmatpush1.msra.mxu0 %v1487
    %1518 = vmatprep.subr.mxu0 0.0
    %1519 = vmatpush1.msra.mxu0 %v1488
    %1520 = vmatprep.subr.mxu0 0.0
    %1521 = vmatpush1.msra.mxu0 %v1489
    %1522 = vmatprep.subr.mxu0 0.0
    %1523 = vmatpush1.msra.mxu0 %v1490
    %1524 = vmatprep.subr.mxu0 0.0
    %1525 = vmatpush1.msra.mxu0 %v1491
    %1526 = vmatprep.subr.mxu0 0.0
    %1527 = vmatpush1.msra.mxu0 %v1492
    %1528 = vmatprep.subr.mxu0 0.0
    %1529 = vmatpush1.msra.mxu0 %v1493
    %1530 = vmatprep.subr.mxu0 0.0
    %1531 = vmatpush1.msra.mxu0 %v1494
    %1532 = vmatprep.subr.mxu0 0.0
    %1533 = vmatpush1.msra.mxu0 %v1495
    %1534 = vmatprep.subr.mxu0 0.0
    %1535 = vmatpush1.msra.mxu0 %v1496
    %1536 = vmatprep.subr.mxu0 0.0
    %1537 = vmatpush1.msra.mxu0 0.0
    %1538 = vmatprep.subr.mxu0 0.0
    %1539 = vmatpush1.msra.mxu0 0.0
    %1540 = vmatprep.subr.mxu0 0.0
    %1541 = vmatpush1.msra.mxu0 0.0
    %1542 = vmatprep.subr.mxu0 0.0
    %1543 = vmatpush1.msra.mxu0 0.0
    %1544 = vmatprep.subr.mxu0 0.0
    %1545 = vmatpush1.msra.mxu0 0.0
    %1546 = vmatprep.subr.mxu0 0.0
    %1547 = vmatpush1.msra.mxu0 0.0
    %1548 = vmatprep.subr.mxu0 0.0
    %1549 = vmatpush1.msra.mxu0 0.0
    %1550 = vmatprep.subr.mxu0 0.0
    %1551 = vmatpush1.msra.mxu0 0.0
    %1552 = vmatprep.subr.mxu0 0.0
    %1553 = vmatpush1.msra.mxu0 0.0
    %1554 = vmatprep.subr.mxu0 0.0
    %1555 = vmatpush1.msra.mxu0 0.0
    %1556 = vmatprep.subr.mxu0 0.0
    %1557 = vmatpush1.msra.mxu0 0.0
    %1558 = vmatprep.subr.mxu0 0.0
    %1559 = vmatpush1.msra.mxu0 0.0
    %1560 = vmatprep.subr.mxu0 0.0
    %1561 = vmatpush1.msra.mxu0 0.0
    %1562 = vmatprep.subr.mxu0 0.0
    %1563 = vmatpush1.msra.mxu0 0.0
    %1564 = vmatprep.subr.mxu0 0.0
    %1565 = vmatpush1.msra.mxu0 0.0
    %1566 = vmatprep.subr.mxu0 0.0
    %1567 = vmatpush1.msra.mxu0 0.0
    %1568 = vmatprep.mubr.f32.mxu0 0.0
    %1569 = vmatmul.mubr.f32.gmra.mrb[0].mxu0 %v1480
    %v1570 = vpop.f32.mrb[0].mxu0
    %v1571 = vadd.f32 %v1502, %v1570
    %v1572 = vpop.f32.mrb[0].mxu0
    %1573 = vdwg.mxu0
    %vm1574 = vcmask 74752
    %1575 = vst.msk [vmem:[#allocation2] sm:$0x3] %vm1574, %v1571
    // Predicated region
    $region22: #{cnn_forward.5} parent=1 // pred_check
      _
    $region23: #{cnn_forward.5} parent=1 // pred_check_branch
      %1577 = sbr.rel (0) target = $region25
    $region24: #{cnn_forward.5} parent=1 // pred_region
      %s1579 = ssub.s32 32, 32
      %1580 = vsyncadd [#allocation3], %s1579
      %s1582 = sshll.u32 [#allocation2], 4
      %s1583 = int_to_ptr.vmem [resolvable:$true] %s1582
      %1585 = dma.vmem_to_hbm [thread:$0]  %s1583, 32, %s5, [#allocation3]
    $region25: #{cnn_forward.5} parent=1 // pred_fallthru
      _
    // Predicated region
    $region26: #{cnn_forward.5} parent=1 // pred_check
      _
    $region27: #{cnn_forward.5} parent=1 // pred_check_branch
      %1587 = sbr.rel (0) target = $region29
    $region28: #{cnn_forward.5} parent=1 // pred_region
      %1588 = dma.done [#allocation3], 32
    $region29: #{cnn_forward.5} parent=1 // pred_fallthru
      _
    %1589 = vsyncpa [#allocation3], 1

</llo_original>
